<compile_context>
chip_gen: v6e
topology: v6e:2x2x1
jax: 0.10.0
libtpu: 0.0.40
codegen_flags: <defaults>
</compile_context>

<pallas_src>
import functools

import numpy as np
import jax
import jax.numpy as jnp
from jax.experimental import pallas as pl
from jax.experimental.pallas import tpu as pltpu


# ----------------------------- in-kernel math -----------------------------

def _mish_f32(x):
    # mish(x) = x * tanh(softplus(x)) = x * (t^2 + 2t) / (t^2 + 2t + 2),  t = e^x
    # (clamp keeps exp finite; for x >= 20 the ratio is 1 to f32 precision anyway)
    t = jnp.exp(jnp.minimum(x, 20.0))
    u = t * (t + 2.0)
    return x * u * pl.reciprocal(u + 2.0, approx=True)


# ----------------------------- Pallas kernels -----------------------------

def _conv3x3_mish_kernel(body_ref, halo_ref, w_ref, b_ref, o_ref, xt_ref,
                         *, th, w_out, compute_dtype):
    """y = mish(conv3x3(x_pad) + b) for one (batch, row-tile) block."""
    # Stitch the (TH + 2)-row padded tile: TH body rows + first 2 rows of the halo.
    xt_ref[0:th] = body_ref[0].astype(xt_ref.dtype)
    xt_ref[th:th + 2] = halo_ref[0, 0:2].astype(xt_ref.dtype)

    cin = xt_ref.shape[-1]
    cout = o_ref.shape[-1]
    acc = None
    for ky in range(3):
        for kx in range(3):
            patch = xt_ref[ky:ky + th, kx:kx + w_out, :]          # (TH, W, Cin)
            patch = patch.reshape(th * w_out, cin).astype(compute_dtype)
            d = jnp.dot(patch, w_ref[ky, kx],
                        preferred_element_type=jnp.float32)        # (TH*W, Cout)
            acc = d if acc is None else acc + d
    acc = acc + b_ref[...]                                          # f32 bias
    o_ref[...] = _mish_f32(acc).reshape(1, th, w_out, cout).astype(o_ref.dtype)


def _conv3x3_bneck_mish_kernel(body_ref, halo_ref, x_ref, w2_ref, b2_ref,
                               wb_ref, bb_ref, o_ref, yt_ref,
                               *, th, w_out, compute_dtype):
    """out = mish(conv3x3(y1_pad) + b2 + conv1x1(x) + bb) for one block."""
    yt_ref[0:th] = body_ref[0].astype(yt_ref.dtype)
    yt_ref[th:th + 2] = halo_ref[0, 0:2].astype(yt_ref.dtype)

    cmid = yt_ref.shape[-1]
    cin = x_ref.shape[-1]
    cout = o_ref.shape[-1]
    acc = None
    for ky in range(3):
        for kx in range(3):
            patch = yt_ref[ky:ky + th, kx:kx + w_out, :]           # (TH, W, Cmid)
            patch = patch.reshape(th * w_out, cmid).astype(compute_dtype)
            d = jnp.dot(patch, w2_ref[ky, kx],
                        preferred_element_type=jnp.float32)
            acc = d if acc is None else acc + d
    acc = acc + b2_ref[...]

    # fused 1x1 bottleneck + residual add + Mish epilogue
    xb = x_ref[0].reshape(th * w_out, cin).astype(compute_dtype)
    hx = jnp.dot(xb, wb_ref[...], preferred_element_type=jnp.float32) + bb_ref[...]

    o_ref[...] = _mish_f32(acc + hx).reshape(1, th, w_out, cout).astype(o_ref.dtype)


# ----------------------------- wrapper -----------------------------

def _round_up(x, m):
    return (x + m - 1) // m * m


def _pick_tile_rows(h, w, c_max, budget_bytes=4 * 1024 * 1024):
    """Largest row-tile whose VMEM tile (lane/sublane padded) stays under budget.

    Budget is kept small enough that double-buffered inputs + output + scratch fit
    comfortably inside the default 32 MiB scoped VMEM on v5e/v6e/v7x.
    """
    lanes = _round_up(max(c_max, 1), 128)            # last dim pads to 128 lanes
    per_row = _round_up(w + 2, 8) * lanes * 4        # f32 worst case
    th = max(budget_bytes // max(per_row, 1), 8)
    th = min(th, 512, _round_up(h, 8))
    return max((th // 8) * 8, 8)


def features_processing(params, x_nchw, *, compute_dtype=jnp.bfloat16,
                        tile_rows=None):
    """FeaturesProcessing.forward (NCHW in / NCHW out) using Pallas TPU kernels."""
    w1, b1 = params["conv1"]["w"], params["conv1"]["b"]
    w2, b2 = params["conv2"]["w"], params["conv2"]["b"]
    wb, bb = params["bneck"]["w"], params["bneck"]["b"]

    x = jnp.transpose(x_nchw, (0, 2, 3, 1)).astype(jnp.float32)    # NHWC
    B, H, W, Cin = x.shape
    Cmid = w1.shape[-1]
    Cout = w2.shape[-1]
    assert H >= 2 and W >= 2, "reflect padding needs H, W >= 2"

    TH = tile_rows or _pick_tile_rows(H, W, max(Cin, Cmid))
    assert TH % 8 == 0
    nt = pl.cdiv(H, TH)
    Hr = nt * TH
    Wp = W + 2
    dim_sem = ("parallel", "parallel")

    def _row_pad(t, rows):
        return jnp.pad(t, ((0, 0), (0, rows - t.shape[1]), (0, 0), (0, 0)))

    # ------------------ stage 1: y1 = mish(conv3x3(x) + b1) ------------------
    xp = jnp.pad(x, ((0, 0), (1, 1), (1, 1), (0, 0)), mode="reflect")
    xp = _row_pad(xp, Hr + 8)                        # room for the 8-row halo block

    k1 = functools.partial(_conv3x3_mish_kernel, th=TH, w_out=W,
                           compute_dtype=compute_dtype)
    y1 = pl.pallas_call(
        k1,
        out_shape=jax.ShapeDtypeStruct((B, Hr, W, Cmid), compute_dtype),
        grid=(B, nt),
        in_specs=[
            pl.BlockSpec((1, TH, Wp, Cin), lambda b, t: (b, t, 0, 0)),
            pl.BlockSpec((1, 8, Wp, Cin),
                         lambda b, t: (b, (t + 1) * (TH // 8), 0, 0)),
            pl.BlockSpec((3, 3, Cin, Cmid), lambda b, t: (0, 0, 0, 0)),
            pl.BlockSpec((1, Cmid), lambda b, t: (0, 0)),
        ],
        out_specs=pl.BlockSpec((1, TH, W, Cmid), lambda b, t: (b, t, 0, 0)),
        scratch_shapes=[pltpu.VMEM((TH + 2, Wp, Cin), compute_dtype)],
        compiler_params=pltpu.CompilerParams(dimension_semantics=dim_sem),
    )(xp, xp, w1.astype(compute_dtype),
      b1.reshape(1, Cmid).astype(jnp.float32))

    # -------- stage 2: out = mish(conv3x3(y1) + b2 + conv1x1(x) + bb) --------
    y1p = jnp.pad(y1[:, :H], ((0, 0), (1, 1), (1, 1), (0, 0)), mode="reflect")
    y1p = _row_pad(y1p, Hr + 8)
    x_r = _row_pad(x, Hr)

    k2 = functools.partial(_conv3x3_bneck_mish_kernel, th=TH, w_out=W,
                           compute_dtype=compute_dtype)
    out = pl.pallas_call(
        k2,
        out_shape=jax.ShapeDtypeStruct((B, Hr, W, Cout), jnp.float32),
        grid=(B, nt),
        in_specs=[
            pl.BlockSpec((1, TH, Wp, Cmid), lambda b, t: (b, t, 0, 0)),
            pl.BlockSpec((1, 8, Wp, Cmid),
                         lambda b, t: (b, (t + 1) * (TH // 8), 0, 0)),
            pl.BlockSpec((1, TH, W, Cin), lambda b, t: (b, t, 0, 0)),
            pl.BlockSpec((3, 3, Cmid, Cout), lambda b, t: (0, 0, 0, 0)),
            pl.BlockSpec((1, Cout), lambda b, t: (0, 0)),
            pl.BlockSpec((Cin, Cout), lambda b, t: (0, 0)),
            pl.BlockSpec((1, Cout), lambda b, t: (0, 0)),
        ],
        out_specs=pl.BlockSpec((1, TH, W, Cout), lambda b, t: (b, t, 0, 0)),
        scratch_shapes=[pltpu.VMEM((TH + 2, Wp, Cmid), compute_dtype)],
        compiler_params=pltpu.CompilerParams(dimension_semantics=dim_sem),
    )(y1p, y1p, x_r,
      w2.astype(compute_dtype), b2.reshape(1, Cout).astype(jnp.float32),
      wb.reshape(Cin, Cout).astype(compute_dtype),
      bb.reshape(1, Cout).astype(jnp.float32))

    return jnp.transpose(out[:, :H], (0, 3, 1, 2))                 # back to NCHW


# ----------------------------- init + reference -----------------------------

def init_features_processing(key, in_ch, out_ch):
    def conv_init(k, kh, kw, cin, cout):
        k1, k2 = jax.random.split(k)
        bound = 1.0 / np.sqrt(kh * kw * cin)
        w = jax.random.uniform(k1, (kh, kw, cin, cout), jnp.float32, -bound, bound)
        b = jax.random.uniform(k2, (cout,), jnp.float32, -bound, bound)
        return {"w": w, "b": b}

    ks = jax.random.split(key, 3)
    return {
        "conv1": conv_init(ks[0], 3, 3, in_ch, 2 * in_ch),
        "conv2": conv_init(ks[1], 3, 3, 2 * in_ch, out_ch),
        "bneck": conv_init(ks[2], 1, 1, in_ch, out_ch),
    }


def _mish_ref(x):
    sp = jnp.log1p(jnp.exp(-jnp.abs(x))) + jnp.maximum(x, 0.0)
    return x * jnp.tanh(sp)


def features_processing_reference(params, x_nchw):
    x = jnp.transpose(x_nchw, (0, 2, 3, 1)).astype(jnp.float32)

    def conv(v, w, b, pad):
        if pad:
            v = jnp.pad(v, ((0, 0), (pad, pad), (pad, pad), (0, 0)), mode="reflect")
        y = jax.lax.conv_general_dilated(
            v, w, (1, 1), "VALID", dimension_numbers=("NHWC", "HWIO", "NHWC"))
        return y + b

    y = _mish_ref(conv(x, params["conv1"]["w"], params["conv1"]["b"], 1))
    y = conv(y, params["conv2"]["w"], params["conv2"]["b"], 1)
    hx = conv(x, params["bneck"]["w"], params["bneck"]["b"], 0)
    return jnp.transpose(_mish_ref(hx + y), (0, 3, 1, 2))


# ----------------------------- main -----------------------------

if __name__ == "__main__":
    key = jax.random.PRNGKey(0)
    kp, kx = jax.random.split(key)
    in_ch, out_ch = 4, 8
    params = init_features_processing(kp, in_ch, out_ch)
    x = jax.random.normal(kx, (2, in_ch, 16, 16), dtype=jnp.float32)

    fwd = jax.jit(features_processing)
    out = jax.block_until_ready(fwd(params, x))

    assert out.shape == (2, out_ch, 16, 16)
    assert out.dtype == jnp.float32
    assert bool(jnp.all(jnp.isfinite(out)))

    ref = jax.block_until_ready(features_processing_reference(params, x))
    np.testing.assert_allclose(np.asarray(out), np.asarray(ref),
                               rtol=3e-2, atol=3e-2)
    print("KERNEL_OK")
</pallas_src>

<mosaic_0001>
module attributes {stable_mosaic.version = 11 : i64} {
  func.func @_conv3x3_mish_kernel(%arg0: i32, %arg1: i32, %arg2: memref<1x16x18x4xf32, #tpu.memory_space<vmem>>, %arg3: memref<1x8x18x4xf32, #tpu.memory_space<vmem>>, %arg4: memref<3x3x4x8xbf16, #tpu.memory_space<vmem>>, %arg5: memref<1x8xf32, #tpu.memory_space<vmem>>, %arg6: memref<1x16x16x8xbf16, #tpu.memory_space<vmem>>, %arg7: memref<18x18x4xbf16, #tpu.memory_space<vmem>>) attributes {dimension_semantics = [#tpu.dimension_semantics<parallel>, #tpu.dimension_semantics<parallel>], iteration_bounds = array<i64: 2, 1>, scalar_prefetch = 0 : i64, scratch_operands = 1 : i64, tpu.core_type = #tpu.core_type<tc>, window_params = [{transform_indices = @transform_0, window_bounds = array<i64: 1, 16, 18, 4>}, {transform_indices = @transform_1, window_bounds = array<i64: 1, 8, 18, 4>}, {pipeline_mode = #tpu.pipeline_mode<synchronous>, transform_indices = @transform_2, window_bounds = array<i64: 3, 3, 4, 8>}, {pipeline_mode = #tpu.pipeline_mode<synchronous>, transform_indices = @transform_3, window_bounds = array<i64: 1, 8>}, {transform_indices = @transform_4, window_bounds = array<i64: 1, 16, 16, 8>}]} {
    %c0 = arith.constant 0 : index
    %c0_0 = arith.constant 0 : index
    %c0_1 = arith.constant 0 : index
    %c0_2 = arith.constant 0 : index
    %0 = vector.load %arg2[%c0, %c0_0, %c0_1, %c0_2] : memref<1x16x18x4xf32, #tpu.memory_space<vmem>>, vector<1x16x18x4xf32>
    %1 = vector.shape_cast %0 : vector<1x16x18x4xf32> to vector<16x18x4xf32>
    %2 = arith.truncf %1 : vector<16x18x4xf32> to vector<16x18x4xbf16>
    %c0_3 = arith.constant 0 : index
    %c0_4 = arith.constant 0 : index
    %c0_5 = arith.constant 0 : index
    %3 = vector.load %arg7[%c0_3, %c0_4, %c0_5] : memref<18x18x4xbf16, #tpu.memory_space<vmem>>, vector<16x18x4xbf16>
    tpu.vector_store %arg7[%c0_3, %c0_4, %c0_5], %2 {strides = array<i32>} : memref<18x18x4xbf16, #tpu.memory_space<vmem>>, vector<16x18x4xbf16>,
    %c0_6 = arith.constant 0 : index
    %c0_7 = arith.constant 0 : index
    %c0_8 = arith.constant 0 : index
    %c0_9 = arith.constant 0 : index
    %4 = vector.load %arg3[%c0_6, %c0_7, %c0_8, %c0_9] : memref<1x8x18x4xf32, #tpu.memory_space<vmem>>, vector<1x2x18x4xf32>
    %5 = vector.shape_cast %4 : vector<1x2x18x4xf32> to vector<2x18x4xf32>
    %6 = arith.truncf %5 : vector<2x18x4xf32> to vector<2x18x4xbf16>
    %c16 = arith.constant 16 : index
    %c0_10 = arith.constant 0 : index
    %c0_11 = arith.constant 0 : index
    %7 = vector.load %arg7[%c16, %c0_10, %c0_11] : memref<18x18x4xbf16, #tpu.memory_space<vmem>>, vector<2x18x4xbf16>
    tpu.vector_store %arg7[%c16, %c0_10, %c0_11], %6 {strides = array<i32>} : memref<18x18x4xbf16, #tpu.memory_space<vmem>>, vector<2x18x4xbf16>,
    %c0_12 = arith.constant 0 : index
    %c0_13 = arith.constant 0 : index
    %c0_14 = arith.constant 0 : index
    %8 = vector.load %arg7[%c0_12, %c0_13, %c0_14] : memref<18x18x4xbf16, #tpu.memory_space<vmem>>, vector<16x16x4xbf16>
    %9 = vector.shape_cast %8 : vector<16x16x4xbf16> to vector<256x4xbf16>
    %c0_15 = arith.constant 0 : index
    %c0_16 = arith.constant 0 : index
    %c0_17 = arith.constant 0 : index
    %c0_18 = arith.constant 0 : index
    %10 = vector.load %arg4[%c0_15, %c0_16, %c0_17, %c0_18] : memref<3x3x4x8xbf16, #tpu.memory_space<vmem>>, vector<1x1x4x8xbf16>
    %11 = vector.shape_cast %10 : vector<1x1x4x8xbf16> to vector<4x8xbf16>
    %cst = arith.constant dense<0.000000e+00> : vector<256x8xf32>
    %12 = tpu.matmul %9, %11, %cst {dimension_numbers = #tpu.dot_dimension_numbers<[1], [0], [0], [1], [0, 0, 1, 1], [], []>} : vector<256x4xbf16>, vector<4x8xbf16>, vector<256x8xf32> -> vector<256x8xf32>
    %c0_19 = arith.constant 0 : index
    %c1 = arith.constant 1 : index
    %c0_20 = arith.constant 0 : index
    %13 = vector.load %arg7[%c0_19, %c1, %c0_20] : memref<18x18x4xbf16, #tpu.memory_space<vmem>>, vector<16x16x4xbf16>
    %14 = vector.shape_cast %13 : vector<16x16x4xbf16> to vector<256x4xbf16>
    %c0_21 = arith.constant 0 : index
    %c1_22 = arith.constant 1 : index
    %c0_23 = arith.constant 0 : index
    %c0_24 = arith.constant 0 : index
    %15 = vector.load %arg4[%c0_21, %c1_22, %c0_23, %c0_24] : memref<3x3x4x8xbf16, #tpu.memory_space<vmem>>, vector<1x1x4x8xbf16>
    %16 = vector.shape_cast %15 : vector<1x1x4x8xbf16> to vector<4x8xbf16>
    %cst_25 = arith.constant dense<0.000000e+00> : vector<256x8xf32>
    %17 = tpu.matmul %14, %16, %cst_25 {dimension_numbers = #tpu.dot_dimension_numbers<[1], [0], [0], [1], [0, 0, 1, 1], [], []>} : vector<256x4xbf16>, vector<4x8xbf16>, vector<256x8xf32> -> vector<256x8xf32>
    %18 = arith.addf %12, %17 : vector<256x8xf32>
    %c0_26 = arith.constant 0 : index
    %c2 = arith.constant 2 : index
    %c0_27 = arith.constant 0 : index
    %19 = vector.load %arg7[%c0_26, %c2, %c0_27] : memref<18x18x4xbf16, #tpu.memory_space<vmem>>, vector<16x16x4xbf16>
    %20 = vector.shape_cast %19 : vector<16x16x4xbf16> to vector<256x4xbf16>
    %c0_28 = arith.constant 0 : index
    %c2_29 = arith.constant 2 : index
    %c0_30 = arith.constant 0 : index
    %c0_31 = arith.constant 0 : index
    %21 = vector.load %arg4[%c0_28, %c2_29, %c0_30, %c0_31] : memref<3x3x4x8xbf16, #tpu.memory_space<vmem>>, vector<1x1x4x8xbf16>
    %22 = vector.shape_cast %21 : vector<1x1x4x8xbf16> to vector<4x8xbf16>
    %cst_32 = arith.constant dense<0.000000e+00> : vector<256x8xf32>
    %23 = tpu.matmul %20, %22, %cst_32 {dimension_numbers = #tpu.dot_dimension_numbers<[1], [0], [0], [1], [0, 0, 1, 1], [], []>} : vector<256x4xbf16>, vector<4x8xbf16>, vector<256x8xf32> -> vector<256x8xf32>
    %24 = arith.addf %18, %23 : vector<256x8xf32>
    %c1_33 = arith.constant 1 : index
    %c0_34 = arith.constant 0 : index
    %c0_35 = arith.constant 0 : index
    %25 = vector.load %arg7[%c1_33, %c0_34, %c0_35] : memref<18x18x4xbf16, #tpu.memory_space<vmem>>, vector<16x16x4xbf16>
    %26 = vector.shape_cast %25 : vector<16x16x4xbf16> to vector<256x4xbf16>
    %c1_36 = arith.constant 1 : index
    %c0_37 = arith.constant 0 : index
    %c0_38 = arith.constant 0 : index
    %c0_39 = arith.constant 0 : index
    %27 = vector.load %arg4[%c1_36, %c0_37, %c0_38, %c0_39] : memref<3x3x4x8xbf16, #tpu.memory_space<vmem>>, vector<1x1x4x8xbf16>
    %28 = vector.shape_cast %27 : vector<1x1x4x8xbf16> to vector<4x8xbf16>
    %cst_40 = arith.constant dense<0.000000e+00> : vector<256x8xf32>
    %29 = tpu.matmul %26, %28, %cst_40 {dimension_numbers = #tpu.dot_dimension_numbers<[1], [0], [0], [1], [0, 0, 1, 1], [], []>} : vector<256x4xbf16>, vector<4x8xbf16>, vector<256x8xf32> -> vector<256x8xf32>
    %30 = arith.addf %24, %29 : vector<256x8xf32>
    %c1_41 = arith.constant 1 : index
    %c1_42 = arith.constant 1 : index
    %c0_43 = arith.constant 0 : index
    %31 = vector.load %arg7[%c1_41, %c1_42, %c0_43] : memref<18x18x4xbf16, #tpu.memory_space<vmem>>, vector<16x16x4xbf16>
    %32 = vector.shape_cast %31 : vector<16x16x4xbf16> to vector<256x4xbf16>
    %c1_44 = arith.constant 1 : index
    %c1_45 = arith.constant 1 : index
    %c0_46 = arith.constant 0 : index
    %c0_47 = arith.constant 0 : index
    %33 = vector.load %arg4[%c1_44, %c1_45, %c0_46, %c0_47] : memref<3x3x4x8xbf16, #tpu.memory_space<vmem>>, vector<1x1x4x8xbf16>
    %34 = vector.shape_cast %33 : vector<1x1x4x8xbf16> to vector<4x8xbf16>
    %cst_48 = arith.constant dense<0.000000e+00> : vector<256x8xf32>
    %35 = tpu.matmul %32, %34, %cst_48 {dimension_numbers = #tpu.dot_dimension_numbers<[1], [0], [0], [1], [0, 0, 1, 1], [], []>} : vector<256x4xbf16>, vector<4x8xbf16>, vector<256x8xf32> -> vector<256x8xf32>
    %36 = arith.addf %30, %35 : vector<256x8xf32>
    %c1_49 = arith.constant 1 : index
    %c2_50 = arith.constant 2 : index
    %c0_51 = arith.constant 0 : index
    %37 = vector.load %arg7[%c1_49, %c2_50, %c0_51] : memref<18x18x4xbf16, #tpu.memory_space<vmem>>, vector<16x16x4xbf16>
    %38 = vector.shape_cast %37 : vector<16x16x4xbf16> to vector<256x4xbf16>
    %c1_52 = arith.constant 1 : index
    %c2_53 = arith.constant 2 : index
    %c0_54 = arith.constant 0 : index
    %c0_55 = arith.constant 0 : index
    %39 = vector.load %arg4[%c1_52, %c2_53, %c0_54, %c0_55] : memref<3x3x4x8xbf16, #tpu.memory_space<vmem>>, vector<1x1x4x8xbf16>
    %40 = vector.shape_cast %39 : vector<1x1x4x8xbf16> to vector<4x8xbf16>
    %cst_56 = arith.constant dense<0.000000e+00> : vector<256x8xf32>
    %41 = tpu.matmul %38, %40, %cst_56 {dimension_numbers = #tpu.dot_dimension_numbers<[1], [0], [0], [1], [0, 0, 1, 1], [], []>} : vector<256x4xbf16>, vector<4x8xbf16>, vector<256x8xf32> -> vector<256x8xf32>
    %42 = arith.addf %36, %41 : vector<256x8xf32>
    %c2_57 = arith.constant 2 : index
    %c0_58 = arith.constant 0 : index
    %c0_59 = arith.constant 0 : index
    %43 = vector.load %arg7[%c2_57, %c0_58, %c0_59] : memref<18x18x4xbf16, #tpu.memory_space<vmem>>, vector<16x16x4xbf16>
    %44 = vector.shape_cast %43 : vector<16x16x4xbf16> to vector<256x4xbf16>
    %c2_60 = arith.constant 2 : index
    %c0_61 = arith.constant 0 : index
    %c0_62 = arith.constant 0 : index
    %c0_63 = arith.constant 0 : index
    %45 = vector.load %arg4[%c2_60, %c0_61, %c0_62, %c0_63] : memref<3x3x4x8xbf16, #tpu.memory_space<vmem>>, vector<1x1x4x8xbf16>
    %46 = vector.shape_cast %45 : vector<1x1x4x8xbf16> to vector<4x8xbf16>
    %cst_64 = arith.constant dense<0.000000e+00> : vector<256x8xf32>
    %47 = tpu.matmul %44, %46, %cst_64 {dimension_numbers = #tpu.dot_dimension_numbers<[1], [0], [0], [1], [0, 0, 1, 1], [], []>} : vector<256x4xbf16>, vector<4x8xbf16>, vector<256x8xf32> -> vector<256x8xf32>
    %48 = arith.addf %42, %47 : vector<256x8xf32>
    %c2_65 = arith.constant 2 : index
    %c1_66 = arith.constant 1 : index
    %c0_67 = arith.constant 0 : index
    %49 = vector.load %arg7[%c2_65, %c1_66, %c0_67] : memref<18x18x4xbf16, #tpu.memory_space<vmem>>, vector<16x16x4xbf16>
    %50 = vector.shape_cast %49 : vector<16x16x4xbf16> to vector<256x4xbf16>
    %c2_68 = arith.constant 2 : index
    %c1_69 = arith.constant 1 : index
    %c0_70 = arith.constant 0 : index
    %c0_71 = arith.constant 0 : index
    %51 = vector.load %arg4[%c2_68, %c1_69, %c0_70, %c0_71] : memref<3x3x4x8xbf16, #tpu.memory_space<vmem>>, vector<1x1x4x8xbf16>
    %52 = vector.shape_cast %51 : vector<1x1x4x8xbf16> to vector<4x8xbf16>
    %cst_72 = arith.constant dense<0.000000e+00> : vector<256x8xf32>
    %53 = tpu.matmul %50, %52, %cst_72 {dimension_numbers = #tpu.dot_dimension_numbers<[1], [0], [0], [1], [0, 0, 1, 1], [], []>} : vector<256x4xbf16>, vector<4x8xbf16>, vector<256x8xf32> -> vector<256x8xf32>
    %54 = arith.addf %48, %53 : vector<256x8xf32>
    %c2_73 = arith.constant 2 : index
    %c2_74 = arith.constant 2 : index
    %c0_75 = arith.constant 0 : index
    %55 = vector.load %arg7[%c2_73, %c2_74, %c0_75] : memref<18x18x4xbf16, #tpu.memory_space<vmem>>, vector<16x16x4xbf16>
    %56 = vector.shape_cast %55 : vector<16x16x4xbf16> to vector<256x4xbf16>
    %c2_76 = arith.constant 2 : index
    %c2_77 = arith.constant 2 : index
    %c0_78 = arith.constant 0 : index
    %c0_79 = arith.constant 0 : index
    %57 = vector.load %arg4[%c2_76, %c2_77, %c0_78, %c0_79] : memref<3x3x4x8xbf16, #tpu.memory_space<vmem>>, vector<1x1x4x8xbf16>
    %58 = vector.shape_cast %57 : vector<1x1x4x8xbf16> to vector<4x8xbf16>
    %cst_80 = arith.constant dense<0.000000e+00> : vector<256x8xf32>
    %59 = tpu.matmul %56, %58, %cst_80 {dimension_numbers = #tpu.dot_dimension_numbers<[1], [0], [0], [1], [0, 0, 1, 1], [], []>} : vector<256x4xbf16>, vector<4x8xbf16>, vector<256x8xf32> -> vector<256x8xf32>
    %60 = arith.addf %54, %59 : vector<256x8xf32>
    %c0_81 = arith.constant 0 : index
    %c0_82 = arith.constant 0 : index
    %61 = vector.load %arg5[%c0_81, %c0_82] : memref<1x8xf32, #tpu.memory_space<vmem>>, vector<1x8xf32>
    %62 = vector.broadcast %61 : vector<1x8xf32> to vector<256x8xf32>
    %63 = arith.addf %60, %62 : vector<256x8xf32>
    %cst_83 = arith.constant 2.000000e+01 : f32
    %64 = vector.broadcast %cst_83 : f32 to vector<256x8xf32>
    %65 = arith.minimumf %63, %64 : vector<256x8xf32>
    %66 = math.exp %65 : vector<256x8xf32>
    %cst_84 = arith.constant 2.000000e+00 : f32
    %67 = vector.broadcast %cst_84 : f32 to vector<256x8xf32>
    %68 = arith.addf %66, %67 : vector<256x8xf32>
    %69 = arith.mulf %66, %68 : vector<256x8xf32>
    %70 = arith.mulf %63, %69 : vector<256x8xf32>
    %cst_85 = arith.constant 2.000000e+00 : f32
    %71 = vector.broadcast %cst_85 : f32 to vector<256x8xf32>
    %72 = arith.addf %69, %71 : vector<256x8xf32>
    %73 = tpu.reciprocal %72 {approx = true} : vector<256x8xf32> -> vector<256x8xf32>
    %74 = arith.mulf %70, %73 : vector<256x8xf32>
    %75 = vector.shape_cast %74 : vector<256x8xf32> to vector<1x16x16x8xf32>
    %76 = arith.truncf %75 : vector<1x16x16x8xf32> to vector<1x16x16x8xbf16>
    %c0_86 = arith.constant 0 : index
    %c0_87 = arith.constant 0 : index
    %c0_88 = arith.constant 0 : index
    %c0_89 = arith.constant 0 : index
    %77 = vector.load %arg6[%c0_86, %c0_87, %c0_88, %c0_89] : memref<1x16x16x8xbf16, #tpu.memory_space<vmem>>, vector<1x16x16x8xbf16>
    tpu.vector_store %arg6[%c0_86, %c0_87, %c0_88, %c0_89], %76 {strides = array<i32>} : memref<1x16x16x8xbf16, #tpu.memory_space<vmem>>, vector<1x16x16x8xbf16>,
    return
  }
  func.func @transform_0(%arg0: i32, %arg1: i32) -> (i32, i32, i32, i32) {
    %c0_i32 = arith.constant 0 : i32
    %c0_i32_0 = arith.constant 0 : i32
    %c0_i32_1 = arith.constant 0 : i32
    return %arg0, %arg1, %c0_i32, %c0_i32_0 : i32, i32, i32, i32
  }
  func.func @transform_1(%arg0: i32, %arg1: i32) -> (i32, i32, i32, i32) {
    %c1_i32 = arith.constant 1 : i32
    %0 = arith.addi %arg1, %c1_i32 : i32
    %c2_i32 = arith.constant 2 : i32
    %1 = arith.muli %0, %c2_i32 : i32
    %c0_i32 = arith.constant 0 : i32
    %c0_i32_0 = arith.constant 0 : i32
    %c0_i32_1 = arith.constant 0 : i32
    return %arg0, %1, %c0_i32, %c0_i32_0 : i32, i32, i32, i32
  }
  func.func @transform_2(%arg0: i32, %arg1: i32) -> (i32, i32, i32, i32) {
    %c0_i32 = arith.constant 0 : i32
    %c0_i32_0 = arith.constant 0 : i32
    %c0_i32_1 = arith.constant 0 : i32
    %c0_i32_2 = arith.constant 0 : i32
    %c0_i32_3 = arith.constant 0 : i32
    return %c0_i32, %c0_i32_0, %c0_i32_1, %c0_i32_2 : i32, i32, i32, i32
  }
  func.func @transform_3(%arg0: i32, %arg1: i32) -> (i32, i32) {
    %c0_i32 = arith.constant 0 : i32
    %c0_i32_0 = arith.constant 0 : i32
    %c0_i32_1 = arith.constant 0 : i32
    return %c0_i32, %c0_i32_0 : i32, i32
  }
  func.func @transform_4(%arg0: i32, %arg1: i32) -> (i32, i32, i32, i32) {
    %c0_i32 = arith.constant 0 : i32
    %c0_i32_0 = arith.constant 0 : i32
    %c0_i32_1 = arith.constant 0 : i32
    return %arg0, %arg1, %c0_i32, %c0_i32_0 : i32, i32, i32, i32
  }
}

module attributes {stable_mosaic.version = 11 : i64} {
  func.func @_conv3x3_bneck_mish_kernel(%arg0: i32, %arg1: i32, %arg2: memref<1x16x18x8xbf16, #tpu.memory_space<vmem>>, %arg3: memref<1x8x18x8xbf16, #tpu.memory_space<vmem>>, %arg4: memref<1x16x16x4xf32, #tpu.memory_space<vmem>>, %arg5: memref<3x3x8x8xbf16, #tpu.memory_space<vmem>>, %arg6: memref<1x8xf32, #tpu.memory_space<vmem>>, %arg7: memref<4x8xbf16, #tpu.memory_space<vmem>>, %arg8: memref<1x8xf32, #tpu.memory_space<vmem>>, %arg9: memref<1x16x16x8xf32, #tpu.memory_space<vmem>>, %arg10: memref<18x18x8xbf16, #tpu.memory_space<vmem>>) attributes {dimension_semantics = [#tpu.dimension_semantics<parallel>, #tpu.dimension_semantics<parallel>], iteration_bounds = array<i64: 2, 1>, scalar_prefetch = 0 : i64, scratch_operands = 1 : i64, tpu.core_type = #tpu.core_type<tc>, window_params = [{transform_indices = @transform_0, window_bounds = array<i64: 1, 16, 18, 8>}, {transform_indices = @transform_1, window_bounds = array<i64: 1, 8, 18, 8>}, {transform_indices = @transform_2, window_bounds = array<i64: 1, 16, 16, 4>}, {pipeline_mode = #tpu.pipeline_mode<synchronous>, transform_indices = @transform_3, window_bounds = array<i64: 3, 3, 8, 8>}, {pipeline_mode = #tpu.pipeline_mode<synchronous>, transform_indices = @transform_4, window_bounds = array<i64: 1, 8>}, {pipeline_mode = #tpu.pipeline_mode<synchronous>, transform_indices = @transform_5, window_bounds = array<i64: 4, 8>}, {pipeline_mode = #tpu.pipeline_mode<synchronous>, transform_indices = @transform_6, window_bounds = array<i64: 1, 8>}, {transform_indices = @transform_7, window_bounds = array<i64: 1, 16, 16, 8>}]} {
    %c0 = arith.constant 0 : index
    %c0_0 = arith.constant 0 : index
    %c0_1 = arith.constant 0 : index
    %c0_2 = arith.constant 0 : index
    %0 = vector.load %arg2[%c0, %c0_0, %c0_1, %c0_2] : memref<1x16x18x8xbf16, #tpu.memory_space<vmem>>, vector<1x16x18x8xbf16>
    %1 = vector.shape_cast %0 : vector<1x16x18x8xbf16> to vector<16x18x8xbf16>
    %c0_3 = arith.constant 0 : index
    %c0_4 = arith.constant 0 : index
    %c0_5 = arith.constant 0 : index
    %2 = vector.load %arg10[%c0_3, %c0_4, %c0_5] : memref<18x18x8xbf16, #tpu.memory_space<vmem>>, vector<16x18x8xbf16>
    tpu.vector_store %arg10[%c0_3, %c0_4, %c0_5], %1 {strides = array<i32>} : memref<18x18x8xbf16, #tpu.memory_space<vmem>>, vector<16x18x8xbf16>,
    %c0_6 = arith.constant 0 : index
    %c0_7 = arith.constant 0 : index
    %c0_8 = arith.constant 0 : index
    %c0_9 = arith.constant 0 : index
    %3 = vector.load %arg3[%c0_6, %c0_7, %c0_8, %c0_9] : memref<1x8x18x8xbf16, #tpu.memory_space<vmem>>, vector<1x2x18x8xbf16>
    %4 = vector.shape_cast %3 : vector<1x2x18x8xbf16> to vector<2x18x8xbf16>
    %c16 = arith.constant 16 : index
    %c0_10 = arith.constant 0 : index
    %c0_11 = arith.constant 0 : index
    %5 = vector.load %arg10[%c16, %c0_10, %c0_11] : memref<18x18x8xbf16, #tpu.memory_space<vmem>>, vector<2x18x8xbf16>
    tpu.vector_store %arg10[%c16, %c0_10, %c0_11], %4 {strides = array<i32>} : memref<18x18x8xbf16, #tpu.memory_space<vmem>>, vector<2x18x8xbf16>,
    %c0_12 = arith.constant 0 : index
    %c0_13 = arith.constant 0 : index
    %c0_14 = arith.constant 0 : index
    %6 = vector.load %arg10[%c0_12, %c0_13, %c0_14] : memref<18x18x8xbf16, #tpu.memory_space<vmem>>, vector<16x16x8xbf16>
    %7 = vector.shape_cast %6 : vector<16x16x8xbf16> to vector<256x8xbf16>
    %c0_15 = arith.constant 0 : index
    %c0_16 = arith.constant 0 : index
    %c0_17 = arith.constant 0 : index
    %c0_18 = arith.constant 0 : index
    %8 = vector.load %arg5[%c0_15, %c0_16, %c0_17, %c0_18] : memref<3x3x8x8xbf16, #tpu.memory_space<vmem>>, vector<1x1x8x8xbf16>
    %9 = vector.shape_cast %8 : vector<1x1x8x8xbf16> to vector<8x8xbf16>
    %cst = arith.constant dense<0.000000e+00> : vector<256x8xf32>
    %10 = tpu.matmul %7, %9, %cst {dimension_numbers = #tpu.dot_dimension_numbers<[1], [0], [0], [1], [0, 0, 1, 1], [], []>} : vector<256x8xbf16>, vector<8x8xbf16>, vector<256x8xf32> -> vector<256x8xf32>
    %c0_19 = arith.constant 0 : index
    %c1 = arith.constant 1 : index
    %c0_20 = arith.constant 0 : index
    %11 = vector.load %arg10[%c0_19, %c1, %c0_20] : memref<18x18x8xbf16, #tpu.memory_space<vmem>>, vector<16x16x8xbf16>
    %12 = vector.shape_cast %11 : vector<16x16x8xbf16> to vector<256x8xbf16>
    %c0_21 = arith.constant 0 : index
    %c1_22 = arith.constant 1 : index
    %c0_23 = arith.constant 0 : index
    %c0_24 = arith.constant 0 : index
    %13 = vector.load %arg5[%c0_21, %c1_22, %c0_23, %c0_24] : memref<3x3x8x8xbf16, #tpu.memory_space<vmem>>, vector<1x1x8x8xbf16>
    %14 = vector.shape_cast %13 : vector<1x1x8x8xbf16> to vector<8x8xbf16>
    %cst_25 = arith.constant dense<0.000000e+00> : vector<256x8xf32>
    %15 = tpu.matmul %12, %14, %cst_25 {dimension_numbers = #tpu.dot_dimension_numbers<[1], [0], [0], [1], [0, 0, 1, 1], [], []>} : vector<256x8xbf16>, vector<8x8xbf16>, vector<256x8xf32> -> vector<256x8xf32>
    %16 = arith.addf %10, %15 : vector<256x8xf32>
    %c0_26 = arith.constant 0 : index
    %c2 = arith.constant 2 : index
    %c0_27 = arith.constant 0 : index
    %17 = vector.load %arg10[%c0_26, %c2, %c0_27] : memref<18x18x8xbf16, #tpu.memory_space<vmem>>, vector<16x16x8xbf16>
    %18 = vector.shape_cast %17 : vector<16x16x8xbf16> to vector<256x8xbf16>
    %c0_28 = arith.constant 0 : index
    %c2_29 = arith.constant 2 : index
    %c0_30 = arith.constant 0 : index
    %c0_31 = arith.constant 0 : index
    %19 = vector.load %arg5[%c0_28, %c2_29, %c0_30, %c0_31] : memref<3x3x8x8xbf16, #tpu.memory_space<vmem>>, vector<1x1x8x8xbf16>
    %20 = vector.shape_cast %19 : vector<1x1x8x8xbf16> to vector<8x8xbf16>
    %cst_32 = arith.constant dense<0.000000e+00> : vector<256x8xf32>
    %21 = tpu.matmul %18, %20, %cst_32 {dimension_numbers = #tpu.dot_dimension_numbers<[1], [0], [0], [1], [0, 0, 1, 1], [], []>} : vector<256x8xbf16>, vector<8x8xbf16>, vector<256x8xf32> -> vector<256x8xf32>
    %22 = arith.addf %16, %21 : vector<256x8xf32>
    %c1_33 = arith.constant 1 : index
    %c0_34 = arith.constant 0 : index
    %c0_35 = arith.constant 0 : index
    %23 = vector.load %arg10[%c1_33, %c0_34, %c0_35] : memref<18x18x8xbf16, #tpu.memory_space<vmem>>, vector<16x16x8xbf16>
    %24 = vector.shape_cast %23 : vector<16x16x8xbf16> to vector<256x8xbf16>
    %c1_36 = arith.constant 1 : index
    %c0_37 = arith.constant 0 : index
    %c0_38 = arith.constant 0 : index
    %c0_39 = arith.constant 0 : index
    %25 = vector.load %arg5[%c1_36, %c0_37, %c0_38, %c0_39] : memref<3x3x8x8xbf16, #tpu.memory_space<vmem>>, vector<1x1x8x8xbf16>
    %26 = vector.shape_cast %25 : vector<1x1x8x8xbf16> to vector<8x8xbf16>
    %cst_40 = arith.constant dense<0.000000e+00> : vector<256x8xf32>
    %27 = tpu.matmul %24, %26, %cst_40 {dimension_numbers = #tpu.dot_dimension_numbers<[1], [0], [0], [1], [0, 0, 1, 1], [], []>} : vector<256x8xbf16>, vector<8x8xbf16>, vector<256x8xf32> -> vector<256x8xf32>
    %28 = arith.addf %22, %27 : vector<256x8xf32>
    %c1_41 = arith.constant 1 : index
    %c1_42 = arith.constant 1 : index
    %c0_43 = arith.constant 0 : index
    %29 = vector.load %arg10[%c1_41, %c1_42, %c0_43] : memref<18x18x8xbf16, #tpu.memory_space<vmem>>, vector<16x16x8xbf16>
    %30 = vector.shape_cast %29 : vector<16x16x8xbf16> to vector<256x8xbf16>
    %c1_44 = arith.constant 1 : index
    %c1_45 = arith.constant 1 : index
    %c0_46 = arith.constant 0 : index
    %c0_47 = arith.constant 0 : index
    %31 = vector.load %arg5[%c1_44, %c1_45, %c0_46, %c0_47] : memref<3x3x8x8xbf16, #tpu.memory_space<vmem>>, vector<1x1x8x8xbf16>
    %32 = vector.shape_cast %31 : vector<1x1x8x8xbf16> to vector<8x8xbf16>
    %cst_48 = arith.constant dense<0.000000e+00> : vector<256x8xf32>
    %33 = tpu.matmul %30, %32, %cst_48 {dimension_numbers = #tpu.dot_dimension_numbers<[1], [0], [0], [1], [0, 0, 1, 1], [], []>} : vector<256x8xbf16>, vector<8x8xbf16>, vector<256x8xf32> -> vector<256x8xf32>
    %34 = arith.addf %28, %33 : vector<256x8xf32>
    %c1_49 = arith.constant 1 : index
    %c2_50 = arith.constant 2 : index
    %c0_51 = arith.constant 0 : index
    %35 = vector.load %arg10[%c1_49, %c2_50, %c0_51] : memref<18x18x8xbf16, #tpu.memory_space<vmem>>, vector<16x16x8xbf16>
    %36 = vector.shape_cast %35 : vector<16x16x8xbf16> to vector<256x8xbf16>
    %c1_52 = arith.constant 1 : index
    %c2_53 = arith.constant 2 : index
    %c0_54 = arith.constant 0 : index
    %c0_55 = arith.constant 0 : index
    %37 = vector.load %arg5[%c1_52, %c2_53, %c0_54, %c0_55] : memref<3x3x8x8xbf16, #tpu.memory_space<vmem>>, vector<1x1x8x8xbf16>
    %38 = vector.shape_cast %37 : vector<1x1x8x8xbf16> to vector<8x8xbf16>
    %cst_56 = arith.constant dense<0.000000e+00> : vector<256x8xf32>
    %39 = tpu.matmul %36, %38, %cst_56 {dimension_numbers = #tpu.dot_dimension_numbers<[1], [0], [0], [1], [0, 0, 1, 1], [], []>} : vector<256x8xbf16>, vector<8x8xbf16>, vector<256x8xf32> -> vector<256x8xf32>
    %40 = arith.addf %34, %39 : vector<256x8xf32>
    %c2_57 = arith.constant 2 : index
    %c0_58 = arith.constant 0 : index
    %c0_59 = arith.constant 0 : index
    %41 = vector.load %arg10[%c2_57, %c0_58, %c0_59] : memref<18x18x8xbf16, #tpu.memory_space<vmem>>, vector<16x16x8xbf16>
    %42 = vector.shape_cast %41 : vector<16x16x8xbf16> to vector<256x8xbf16>
    %c2_60 = arith.constant 2 : index
    %c0_61 = arith.constant 0 : index
    %c0_62 = arith.constant 0 : index
    %c0_63 = arith.constant 0 : index
    %43 = vector.load %arg5[%c2_60, %c0_61, %c0_62, %c0_63] : memref<3x3x8x8xbf16, #tpu.memory_space<vmem>>, vector<1x1x8x8xbf16>
    %44 = vector.shape_cast %43 : vector<1x1x8x8xbf16> to vector<8x8xbf16>
    %cst_64 = arith.constant dense<0.000000e+00> : vector<256x8xf32>
    %45 = tpu.matmul %42, %44, %cst_64 {dimension_numbers = #tpu.dot_dimension_numbers<[1], [0], [0], [1], [0, 0, 1, 1], [], []>} : vector<256x8xbf16>, vector<8x8xbf16>, vector<256x8xf32> -> vector<256x8xf32>
    %46 = arith.addf %40, %45 : vector<256x8xf32>
    %c2_65 = arith.constant 2 : index
    %c1_66 = arith.constant 1 : index
    %c0_67 = arith.constant 0 : index
    %47 = vector.load %arg10[%c2_65, %c1_66, %c0_67] : memref<18x18x8xbf16, #tpu.memory_space<vmem>>, vector<16x16x8xbf16>
    %48 = vector.shape_cast %47 : vector<16x16x8xbf16> to vector<256x8xbf16>
    %c2_68 = arith.constant 2 : index
    %c1_69 = arith.constant 1 : index
    %c0_70 = arith.constant 0 : index
    %c0_71 = arith.constant 0 : index
    %49 = vector.load %arg5[%c2_68, %c1_69, %c0_70, %c0_71] : memref<3x3x8x8xbf16, #tpu.memory_space<vmem>>, vector<1x1x8x8xbf16>
    %50 = vector.shape_cast %49 : vector<1x1x8x8xbf16> to vector<8x8xbf16>
    %cst_72 = arith.constant dense<0.000000e+00> : vector<256x8xf32>
    %51 = tpu.matmul %48, %50, %cst_72 {dimension_numbers = #tpu.dot_dimension_numbers<[1], [0], [0], [1], [0, 0, 1, 1], [], []>} : vector<256x8xbf16>, vector<8x8xbf16>, vector<256x8xf32> -> vector<256x8xf32>
    %52 = arith.addf %46, %51 : vector<256x8xf32>
    %c2_73 = arith.constant 2 : index
    %c2_74 = arith.constant 2 : index
    %c0_75 = arith.constant 0 : index
    %53 = vector.load %arg10[%c2_73, %c2_74, %c0_75] : memref<18x18x8xbf16, #tpu.memory_space<vmem>>, vector<16x16x8xbf16>
    %54 = vector.shape_cast %53 : vector<16x16x8xbf16> to vector<256x8xbf16>
    %c2_76 = arith.constant 2 : index
    %c2_77 = arith.constant 2 : index
    %c0_78 = arith.constant 0 : index
    %c0_79 = arith.constant 0 : index
    %55 = vector.load %arg5[%c2_76, %c2_77, %c0_78, %c0_79] : memref<3x3x8x8xbf16, #tpu.memory_space<vmem>>, vector<1x1x8x8xbf16>
    %56 = vector.shape_cast %55 : vector<1x1x8x8xbf16> to vector<8x8xbf16>
    %cst_80 = arith.constant dense<0.000000e+00> : vector<256x8xf32>
    %57 = tpu.matmul %54, %56, %cst_80 {dimension_numbers = #tpu.dot_dimension_numbers<[1], [0], [0], [1], [0, 0, 1, 1], [], []>} : vector<256x8xbf16>, vector<8x8xbf16>, vector<256x8xf32> -> vector<256x8xf32>
    %58 = arith.addf %52, %57 : vector<256x8xf32>
    %c0_81 = arith.constant 0 : index
    %c0_82 = arith.constant 0 : index
    %59 = vector.load %arg6[%c0_81, %c0_82] : memref<1x8xf32, #tpu.memory_space<vmem>>, vector<1x8xf32>
    %60 = vector.broadcast %59 : vector<1x8xf32> to vector<256x8xf32>
    %61 = arith.addf %58, %60 : vector<256x8xf32>
    %c0_83 = arith.constant 0 : index
    %c0_84 = arith.constant 0 : index
    %c0_85 = arith.constant 0 : index
    %c0_86 = arith.constant 0 : index
    %62 = vector.load %arg4[%c0_83, %c0_84, %c0_85, %c0_86] : memref<1x16x16x4xf32, #tpu.memory_space<vmem>>, vector<1x16x16x4xf32>
    %63 = vector.shape_cast %62 : vector<1x16x16x4xf32> to vector<16x16x4xf32>
    %64 = vector.shape_cast %63 : vector<16x16x4xf32> to vector<256x4xf32>
    %65 = arith.truncf %64 : vector<256x4xf32> to vector<256x4xbf16>
    %c0_87 = arith.constant 0 : index
    %c0_88 = arith.constant 0 : index
    %66 = vector.load %arg7[%c0_87, %c0_88] : memref<4x8xbf16, #tpu.memory_space<vmem>>, vector<4x8xbf16>
    %cst_89 = arith.constant dense<0.000000e+00> : vector<256x8xf32>
    %67 = tpu.matmul %65, %66, %cst_89 {dimension_numbers = #tpu.dot_dimension_numbers<[1], [0], [0], [1], [0, 0, 1, 1], [], []>} : vector<256x4xbf16>, vector<4x8xbf16>, vector<256x8xf32> -> vector<256x8xf32>
    %c0_90 = arith.constant 0 : index
    %c0_91 = arith.constant 0 : index
    %68 = vector.load %arg8[%c0_90, %c0_91] : memref<1x8xf32, #tpu.memory_space<vmem>>, vector<1x8xf32>
    %69 = vector.broadcast %68 : vector<1x8xf32> to vector<256x8xf32>
    %70 = arith.addf %67, %69 : vector<256x8xf32>
    %71 = arith.addf %61, %70 : vector<256x8xf32>
    %cst_92 = arith.constant 2.000000e+01 : f32
    %72 = vector.broadcast %cst_92 : f32 to vector<256x8xf32>
    %73 = arith.minimumf %71, %72 : vector<256x8xf32>
    %74 = math.exp %73 : vector<256x8xf32>
    %cst_93 = arith.constant 2.000000e+00 : f32
    %75 = vector.broadcast %cst_93 : f32 to vector<256x8xf32>
    %76 = arith.addf %74, %75 : vector<256x8xf32>
    %77 = arith.mulf %74, %76 : vector<256x8xf32>
    %78 = arith.mulf %71, %77 : vector<256x8xf32>
    %cst_94 = arith.constant 2.000000e+00 : f32
    %79 = vector.broadcast %cst_94 : f32 to vector<256x8xf32>
    %80 = arith.addf %77, %79 : vector<256x8xf32>
    %81 = tpu.reciprocal %80 {approx = true} : vector<256x8xf32> -> vector<256x8xf32>
    %82 = arith.mulf %78, %81 : vector<256x8xf32>
    %83 = vector.shape_cast %82 : vector<256x8xf32> to vector<1x16x16x8xf32>
    %c0_95 = arith.constant 0 : index
    %c0_96 = arith.constant 0 : index
    %c0_97 = arith.constant 0 : index
    %c0_98 = arith.constant 0 : index
    %84 = vector.load %arg9[%c0_95, %c0_96, %c0_97, %c0_98] : memref<1x16x16x8xf32, #tpu.memory_space<vmem>>, vector<1x16x16x8xf32>
    tpu.vector_store %arg9[%c0_95, %c0_96, %c0_97, %c0_98], %83 {strides = array<i32>} : memref<1x16x16x8xf32, #tpu.memory_space<vmem>>, vector<1x16x16x8xf32>,
    return
  }
  func.func @transform_0(%arg0: i32, %arg1: i32) -> (i32, i32, i32, i32) {
    %c0_i32 = arith.constant 0 : i32
    %c0_i32_0 = arith.constant 0 : i32
    %c0_i32_1 = arith.constant 0 : i32
    return %arg0, %arg1, %c0_i32, %c0_i32_0 : i32, i32, i32, i32
  }
  func.func @transform_1(%arg0: i32, %arg1: i32) -> (i32, i32, i32, i32) {
    %c1_i32 = arith.constant 1 : i32
    %0 = arith.addi %arg1, %c1_i32 : i32
    %c2_i32 = arith.constant 2 : i32
    %1 = arith.muli %0, %c2_i32 : i32
    %c0_i32 = arith.constant 0 : i32
    %c0_i32_0 = arith.constant 0 : i32
    %c0_i32_1 = arith.constant 0 : i32
    return %arg0, %1, %c0_i32, %c0_i32_0 : i32, i32, i32, i32
  }
  func.func @transform_2(%arg0: i32, %arg1: i32) -> (i32, i32, i32, i32) {
    %c0_i32 = arith.constant 0 : i32
    %c0_i32_0 = arith.constant 0 : i32
    %c0_i32_1 = arith.constant 0 : i32
    return %arg0, %arg1, %c0_i32, %c0_i32_0 : i32, i32, i32, i32
  }
  func.func @transform_3(%arg0: i32, %arg1: i32) -> (i32, i32, i32, i32) {
    %c0_i32 = arith.constant 0 : i32
    %c0_i32_0 = arith.constant 0 : i32
    %c0_i32_1 = arith.constant 0 : i32
    %c0_i32_2 = arith.constant 0 : i32
    %c0_i32_3 = arith.constant 0 : i32
    return %c0_i32, %c0_i32_0, %c0_i32_1, %c0_i32_2 : i32, i32, i32, i32
  }
  func.func @transform_4(%arg0: i32, %arg1: i32) -> (i32, i32) {
    %c0_i32 = arith.constant 0 : i32
    %c0_i32_0 = arith.constant 0 : i32
    %c0_i32_1 = arith.constant 0 : i32
    return %c0_i32, %c0_i32_0 : i32, i32
  }
  func.func @transform_5(%arg0: i32, %arg1: i32) -> (i32, i32) {
    %c0_i32 = arith.constant 0 : i32
    %c0_i32_0 = arith.constant 0 : i32
    %c0_i32_1 = arith.constant 0 : i32
    return %c0_i32, %c0_i32_0 : i32, i32
  }
  func.func @transform_6(%arg0: i32, %arg1: i32) -> (i32, i32) {
    %c0_i32 = arith.constant 0 : i32
    %c0_i32_0 = arith.constant 0 : i32
    %c0_i32_1 = arith.constant 0 : i32
    return %c0_i32, %c0_i32_0 : i32, i32
  }
  func.func @transform_7(%arg0: i32, %arg1: i32) -> (i32, i32, i32, i32) {
    %c0_i32 = arith.constant 0 : i32
    %c0_i32_0 = arith.constant 0 : i32
    %c0_i32_1 = arith.constant 0 : i32
    return %arg0, %arg1, %c0_i32, %c0_i32_0 : i32, i32, i32, i32
  }
}

</mosaic_0001>

<llo_original>
// kernel: features_processing.2
$region0: #{features_processing.2}
  #allocation0 [shape = 'u32[]', space=smem, size = 0x4, offset = 0x4, fixed_abs, tag = 'smem constant byte address 0x4 - core index']
  #allocation1 [shape = 'u32[144,128]{1,0:T(1,128)}', space=vmem, size = 0x12000, scoped, tag = 'internal scratch']
  #allocation2 [shape = 'bf16[18,18,4]{2,1,0:T(8,128)(2,1)}', space=vmem, size = 0x1b000, scoped, tag = 'scratch operand']
  %s0 = inlined_call_operand.vmem [shape: f32[2,24,18,4], index: 0, kind: input, shape index: {}, may-alias: {0,1}]
  %s1 = inlined_call_operand.vmem [shape: f32[2,24,18,4], index: 1, kind: input, shape index: {}, may-alias: {0,1}]
  %s2 = inlined_call_operand.vmem [shape: bf16[3,3,4,8], index: 2, kind: input, shape index: {}]
  %s3 = inlined_call_operand.vmem [shape: f32[1,8], index: 3, kind: input, shape index: {}]
  %s4 = inlined_call_operand.vmem [shape: bf16[2,16,16,8], index: 4, kind: output, shape index: {}]
  %s5 = sld [smem:[#allocation0]]
  $region49: #{features_processing.2} parent=0
    _
  %s7 = ssub.s32 1, %s5
  %s8 = scalar_select 0, %s7, %s5
  loop: start=0, step=1, limit=4
  $region2: #{features_processing.2} parent=0 // loop_pre_header
    _
  $region3: #{features_processing.2} parent=0 // loop_header
    %s10 = sphi 0, %s14
    %p11 = scmp.ge.s32.totalorder %s10, 4
    %s17 = sphi 0, %s29
    %s18 = sphi 0, %s25
    %s19 = sphi 0, %s17
    %s20 = sphi 0, %s18
    %s21 = sphi 0, %s19
    %s22 = sphi 0, %s20
    %s34 = sphi 0, %s36
    %s37 = sphi 0, %s34
    %s38 = sphi 0, %s37
    %s54 = sphi 0, %s38
    %s66 = sphi 0, %s68
    %s69 = sphi 0, %s66
    %s70 = sphi 0, %s69
    %s86 = sphi 0, %s70
    %s90 = sphi 0, %s90
    %s92 = sphi 0, %s90
    %s93 = sphi 0, %s92
    %s107 = sphi 0, %s93
    %s111 = sphi 0, %s111
    %s113 = sphi 0, %s111
    %s114 = sphi 0, %s113
    %s128 = sphi 0, %s114
    %s136 = sphi 0, %s138
    %s139 = sphi 0, %s136
    %s140 = sphi 0, %s139
    %s156 = sphi 0, %s140
  $region4: #{features_processing.2} parent=0 // loop_header_branch
    %13 = sbr.rel (%p11) target = $region8
  $region5: #{features_processing.2} parent=0 // loop_body
    %s15 = ssub.s32 %s10, 1
    %s16 = ssub.s32 %s10, 2
    %s23 = sadd.s32 1, %s18
    %p24 = scmp.ge.s32.totalorder %s23, 1
    %s25 = scalar_select %p24, 0, %s23
    %s26 = sadd.s32 1, %s17
    %s27 = scalar_select %p24, %s26, %s17
    %p28 = scmp.ge.s32.totalorder %s27, 2
    %s29 = scalar_select %p28, 0, %s27
    %s30 = ssub.s32 %s17, %s29
    %s31 = ssub.s32 %s18, %s25
    %s32 = sor.u32 %s30, %s31
    %p33 = scmp.eq.s32.totalorder %s32, 0
    %s35 = sadd.s32 %s34, 1
    %s36 = scalar_select %p33, %s34, %s35
    %p39 = pneg %p33
    %p40 = scmp.eq.s32.totalorder %s10, 1
    %p41 = por %p39, %p40
    %p42 = scmp.ne.s32.totalorder %s34, %s37
    %p43 = scmp.eq.s32.totalorder %s10, 0
    %p44 = por %p42, %p43
    %p45 = scmp.ne.s32.totalorder %s34, %s37
    %p46 = scmp.eq.s32.totalorder %s15, 1
    %p47 = por %p45, %p46
    %p48 = scmp.ne.s32.totalorder %s37, %s38
    %p49 = scmp.eq.s32.totalorder %s15, 0
    %p50 = por %p48, %p49
    %p51 = scmp.ne.s32.totalorder %s37, %s38
    %p52 = scmp.eq.s32.totalorder %s16, 1
    %p53 = por %p51, %p52
    %p55 = scmp.ne.s32.totalorder %s38, %s54
    %p56 = scmp.eq.s32.totalorder %s16, 0
    %p57 = por %p55, %p56
    %s58 = sadd.s32 %s18, 1
    %s59 = smul.u32 %s58, 2
    %s60 = sadd.s32 %s25, 1
    %s61 = smul.u32 %s60, 2
    %s62 = ssub.s32 %s17, %s29
    %s63 = ssub.s32 %s59, %s61
    %s64 = sor.u32 %s62, %s63
    %p65 = scmp.eq.s32.totalorder %s64, 0
    %s67 = sadd.s32 %s66, 1
    %s68 = scalar_select %p65, %s66, %s67
    %p71 = pneg %p65
    %p72 = scmp.eq.s32.totalorder %s10, 1
    %p73 = por %p71, %p72
    %p74 = scmp.ne.s32.totalorder %s66, %s69
    %p75 = scmp.eq.s32.totalorder %s10, 0
    %p76 = por %p74, %p75
    %p77 = scmp.ne.s32.totalorder %s66, %s69
    %p78 = scmp.eq.s32.totalorder %s15, 1
    %p79 = por %p77, %p78
    %p80 = scmp.ne.s32.totalorder %s69, %s70
    %p81 = scmp.eq.s32.totalorder %s15, 0
    %p82 = por %p80, %p81
    %p83 = scmp.ne.s32.totalorder %s69, %s70
    %p84 = scmp.eq.s32.totalorder %s16, 1
    %p85 = por %p83, %p84
    %p87 = scmp.ne.s32.totalorder %s70, %s86
    %p88 = scmp.eq.s32.totalorder %s16, 0
    %p89 = por %p87, %p88
    %s91 = sadd.s32 %s90, 1
    %p94 = scmp.eq.s32.totalorder %s10, 1
    %p95 = scmp.ne.s32.totalorder %s90, %s92
    %p96 = scmp.eq.s32.totalorder %s10, 0
    %p97 = por %p95, %p96
    %p98 = scmp.ne.s32.totalorder %s90, %s92
    %p99 = scmp.eq.s32.totalorder %s15, 1
    %p100 = por %p98, %p99
    %p101 = scmp.ne.s32.totalorder %s92, %s93
    %p102 = scmp.eq.s32.totalorder %s15, 0
    %p103 = por %p101, %p102
    %p104 = scmp.ne.s32.totalorder %s92, %s93
    %p105 = scmp.eq.s32.totalorder %s16, 1
    %p106 = por %p104, %p105
    %p108 = scmp.ne.s32.totalorder %s93, %s107
    %p109 = scmp.eq.s32.totalorder %s16, 0
    %p110 = por %p108, %p109
    %s112 = sadd.s32 %s111, 1
    %p115 = scmp.eq.s32.totalorder %s10, 1
    %p116 = scmp.ne.s32.totalorder %s111, %s113
    %p117 = scmp.eq.s32.totalorder %s10, 0
    %p118 = por %p116, %p117
    %p119 = scmp.ne.s32.totalorder %s111, %s113
    %p120 = scmp.eq.s32.totalorder %s15, 1
    %p121 = por %p119, %p120
    %p122 = scmp.ne.s32.totalorder %s113, %s114
    %p123 = scmp.eq.s32.totalorder %s15, 0
    %p124 = por %p122, %p123
    %p125 = scmp.ne.s32.totalorder %s113, %s114
    %p126 = scmp.eq.s32.totalorder %s16, 1
    %p127 = por %p125, %p126
    %p129 = scmp.ne.s32.totalorder %s114, %s128
    %p130 = scmp.eq.s32.totalorder %s16, 0
    %p131 = por %p129, %p130
    %s132 = ssub.s32 %s17, %s29
    %s133 = ssub.s32 %s18, %s25
    %s134 = sor.u32 %s132, %s133
    %p135 = scmp.eq.s32.totalorder %s134, 0
    %s137 = sadd.s32 %s136, 1
    %s138 = scalar_select %p135, %s136, %s137
    %p141 = pneg %p135
    %p142 = scmp.eq.s32.totalorder %s10, 1
    %p143 = por %p141, %p142
    %p144 = scmp.ne.s32.totalorder %s136, %s139
    %p145 = scmp.eq.s32.totalorder %s10, 0
    %p146 = por %p144, %p145
    %p147 = scmp.ne.s32.totalorder %s136, %s139
    %p148 = scmp.eq.s32.totalorder %s15, 1
    %p149 = por %p147, %p148
    %p150 = scmp.ne.s32.totalorder %s139, %s140
    %p151 = scmp.eq.s32.totalorder %s15, 0
    %p152 = por %p150, %p151
    %p153 = scmp.ne.s32.totalorder %s139, %s140
    %p154 = scmp.eq.s32.totalorder %s16, 1
    %p155 = por %p153, %p154
    %p157 = scmp.ne.s32.totalorder %s140, %s156
    %p158 = scmp.eq.s32.totalorder %s16, 0
    %p159 = por %p157, %p158
    %p160 = scmp.le.s32.totalorder 1, %s10
    %p161 = scmp.lt.s32.totalorder %s10, 3
    %p162 = pnand %p160, %p161
    %p163 = pneg %p162
    // Predicated region
    $region9: #{features_processing.2} parent=5 // pred_check
      _
    $region10: #{features_processing.2} parent=5 // pred_check_branch
      %165 = sbr.rel (%p162) target = $region12
    $region11: #{features_processing.2} parent=5 // pred_region
      %s166 = ssub.s32 %s10, 1
      // Predicated region
      $region13: #{features_processing.2} parent=11 // pred_check
        %p167 = pneg %p103
      $region14: #{features_processing.2} parent=11 // pred_check_branch
        %169 = sbr.rel (%p167) target = $region16
      $region15: #{features_processing.2} parent=11 // pred_region
        _
      $region16: #{features_processing.2} parent=11 // pred_fallthru
        _
      // Predicated region
      $region17: #{features_processing.2} parent=11 // pred_check
        %p170 = pneg %p124
      $region18: #{features_processing.2} parent=11 // pred_check_branch
        %172 = sbr.rel (%p170) target = $region20
      $region19: #{features_processing.2} parent=11 // pred_region
        _
      $region20: #{features_processing.2} parent=11 // pred_fallthru
        _
    $region12: #{features_processing.2} parent=5 // pred_fallthru
      _
    %p173 = scmp.lt.s32.totalorder %s10, 2
    // Predicated region
    $region21: #{features_processing.2} parent=5 // pred_check
      %p174 = pneg %p173
    $region22: #{features_processing.2} parent=5 // pred_check_branch
      %176 = sbr.rel (%p174) target = $region24
    $region23: #{features_processing.2} parent=5 // pred_region
      // Predicated region
      $region25: #{features_processing.2} parent=23 // pred_check
        %p177 = pneg %p44
      $region26: #{features_processing.2} parent=23 // pred_check_branch
        %179 = sbr.rel (%p177) target = $region28
      $region27: #{features_processing.2} parent=23 // pred_region
        %s180 = smul.u32 16, %s18
        %s181 = ssub.s32 24, %s180
        %p182 = scmp.lt.s32.totalorder %s181, 16
        %s183 = scalar_select %p182, %s181, 16
        %s184 = smul.u32 128, %s183
        %s185 = smul.u32 %s184, 3
        %p186 = scmp.lt.s32.totalorder %s17, 1
        %s187 = scalar_select %p186, %s17, 1
        %p188 = scmp.lt.s32.totalorder %s180, 23
        %s189 = scalar_select %p188, %s180, 23
        %s190 = smul.addr %s189, 3
        %s191 = smul.addr %s187, 72
        %s192 = sadd.s32 %s190, %s191
        %s193 = smul.addr %s192, 8
        %s194 = scalar_lea.vmem %s0, %s193
        %s195 = smul.u32 16, %s18
        %s196 = ssub.s32 24, %s195
        %p197 = scmp.lt.s32.totalorder %s196, 16
        %s198 = scalar_select %p197, %s196, 16
        %s199 = smul.u32 128, %s198
        %s200 = smul.u32 %s199, 3
      $region28: #{features_processing.2} parent=23 // pred_fallthru
        _
      // Predicated region
      $region29: #{features_processing.2} parent=23 // pred_check
        %p201 = pneg %p76
      $region30: #{features_processing.2} parent=23 // pred_check_branch
        %203 = sbr.rel (%p201) target = $region32
      $region31: #{features_processing.2} parent=23 // pred_region
        %s204 = sadd.s32 %s18, 1
        %s205 = smul.u32 %s204, 2
        %s206 = smul.u32 8, %s205
        %p207 = scmp.lt.s32.totalorder %s17, 1
        %s208 = scalar_select %p207, %s17, 1
        %p209 = scmp.lt.s32.totalorder %s206, 23
        %s210 = scalar_select %p209, %s206, 23
        %s211 = smul.addr %s210, 3
        %s212 = smul.addr %s208, 72
        %s213 = sadd.s32 %s211, %s212
        %s214 = smul.addr %s213, 8
        %s215 = scalar_lea.vmem %s1, %s214
        %s216 = sadd.s32 %s18, 1
        %s217 = smul.u32 %s216, 2
        %s218 = smul.u32 8, %s217
      $region32: #{features_processing.2} parent=23 // pred_fallthru
        _
    $region24: #{features_processing.2} parent=5 // pred_fallthru
      _
    %p219 = scmp.le.s32.totalorder 1, %s10
    %p220 = scmp.lt.s32.totalorder %s10, 3
    %p221 = pnand %p219, %p220
    %p222 = pneg %p221
    // Predicated region
    $region33: #{features_processing.2} parent=5 // pred_check
      _
    $region34: #{features_processing.2} parent=5 // pred_check_branch
      %224 = sbr.rel (%p221) target = $region36
    $region35: #{features_processing.2} parent=5 // pred_region
      %s225 = ssub.s32 %s10, 1
      %s226 = smul.u32 16, %s20
      %s227 = ssub.s32 24, %s226
      %p228 = scmp.lt.s32.totalorder %s227, 16
      %s229 = scalar_select %p228, %s227, 16
      %s230 = smul.u32 128, %s229
      %s231 = smul.u32 %s230, 3
      %p232 = scmp.lt.s32.totalorder %s19, 1
      %s233 = scalar_select %p232, %s19, 1
      %p234 = scmp.lt.s32.totalorder %s226, 23
      %s235 = scalar_select %p234, %s226, 23
      %s236 = smul.addr %s235, 3
      %s237 = smul.addr %s233, 72
      %s238 = sadd.s32 %s236, %s237
      %s239 = smul.addr %s238, 8
      %s240 = scalar_lea.vmem %s0, %s239
      %p241 = pneg %p50
      %p242 = pneg %p47
      %s243 = sadd.s32 %s20, 1
      %s244 = smul.u32 %s243, 2
      %s245 = smul.u32 8, %s244
      %p246 = scmp.lt.s32.totalorder %s19, 1
      %s247 = scalar_select %p246, %s19, 1
      %p248 = scmp.lt.s32.totalorder %s245, 23
      %s249 = scalar_select %p248, %s245, 23
      %s250 = smul.addr %s249, 3
      %s251 = smul.addr %s247, 72
      %s252 = sadd.s32 %s250, %s251
      %s253 = smul.addr %s252, 8
      %s254 = scalar_lea.vmem %s1, %s253
      %p255 = pneg %p82
      %p256 = pneg %p79
      %p257 = pneg %p103
      %p258 = pneg %p100
      %p259 = pneg %p124
      %p260 = pneg %p121
      %p261 = pneg %p152
      %p262 = pneg %p149
      %s263 = smul.u32 16, %s20
      %p264 = scmp.lt.s32.totalorder %s19, 1
      %s265 = scalar_select %p264, %s19, 1
      %p266 = scmp.lt.s32.totalorder %s263, 15
      %s267 = scalar_select %p266, %s263, 15
      %s268 = smul.addr %s267, 2
      %s269 = smul.addr %s265, 32
      %s270 = sadd.s32 %s268, %s269
      %s271 = smul.addr %s270, 4
      %s272 = scalar_lea.vmem %s4, %s271
      %s273 = smul.u32 16, %s20
      %s274 = ssub.s32 24, %s273
      %p275 = scmp.lt.s32.totalorder %s274, 16
      %s276 = scalar_select %p275, %s274, 16
      %s277 = smul.u32 128, %s276
      %s278 = smul.u32 %s277, 3
      %p279 = scmp.lt.s32.totalorder %s19, 1
      %s280 = scalar_select %p279, %s19, 1
      %p281 = scmp.lt.s32.totalorder %s273, 23
      %s282 = scalar_select %p281, %s273, 23
      %s283 = smul.addr %s282, 3
      %s284 = smul.addr %s280, 72
      %s285 = sadd.s32 %s283, %s284
      %s286 = smul.addr %s285, 8
      %s287 = scalar_lea.vmem %s0, %s286
      %s288 = smul.u32 16, %s20
      %s289 = ssub.s32 24, %s288
      %p290 = scmp.lt.s32.totalorder %s289, 16
      %s291 = scalar_select %p290, %s289, 16
      %s292 = smul.u32 128, %s291
      %s293 = smul.u32 %s292, 3
      %s294 = sadd.s32 %s20, 1
      %s295 = smul.u32 %s294, 2
      %s296 = smul.u32 8, %s295
      %p297 = scmp.lt.s32.totalorder %s19, 1
      %s298 = scalar_select %p297, %s19, 1
      %p299 = scmp.lt.s32.totalorder %s296, 23
      %s300 = scalar_select %p299, %s296, 23
      %s301 = smul.addr %s300, 3
      %s302 = smul.addr %s298, 72
      %s303 = sadd.s32 %s301, %s302
      %s304 = smul.addr %s303, 8
      %s305 = scalar_lea.vmem %s1, %s304
      %s306 = sadd.s32 %s20, 1
      %s307 = smul.u32 %s306, 2
      %s308 = smul.u32 8, %s307
      %s309 = smul.u32 16, %s20
      %p310 = scmp.lt.s32.totalorder %s19, 1
      %s311 = scalar_select %p310, %s19, 1
      %p312 = scmp.lt.s32.totalorder %s309, 15
      %s313 = scalar_select %p312, %s309, 15
      %s314 = smul.addr %s313, 2
      %s315 = smul.addr %s311, 32
      %s316 = sadd.s32 %s314, %s315
      %s317 = smul.addr %s316, 4
      %s318 = scalar_lea.vmem %s4, %s317
      %s319 = smul.u32 16, %s20
      %v321 = vld [vmem:[%s287] sm:$0xff]
      %v322 = vld [vmem:[%s287 + $0x8] sm:$0xff]
      %v323 = vld [vmem:[%s287 + $0x10] sm:$0x3]
      %v324 = vld [vmem:[%s287 + $0x18] sm:$0xff]
      %v325 = vld [vmem:[%s287 + $0x20] sm:$0xff]
      %v326 = vld [vmem:[%s287 + $0x28] sm:$0x3]
      %v327 = vld [vmem:[%s287 + $0x30] sm:$0xff]
      %v328 = vld [vmem:[%s287 + $0x38] sm:$0xff]
      %v329 = vld [vmem:[%s287 + $0x40] sm:$0x3]
      %v330 = vld [vmem:[%s287 + $0x48] sm:$0xff]
      %v331 = vld [vmem:[%s287 + $0x50] sm:$0xff]
      %v332 = vld [vmem:[%s287 + $0x58] sm:$0x3]
      %v333 = vld [vmem:[%s287 + $0x60] sm:$0xff]
      %v334 = vld [vmem:[%s287 + $0x68] sm:$0xff]
      %v335 = vld [vmem:[%s287 + $0x70] sm:$0x3]
      %v336 = vld [vmem:[%s287 + $0x78] sm:$0xff]
      %v337 = vld [vmem:[%s287 + $0x80] sm:$0xff]
      %v338 = vld [vmem:[%s287 + $0x88] sm:$0x3]
      %v339 = vld [vmem:[%s287 + $0x90] sm:$0xff]
      %v340 = vld [vmem:[%s287 + $0x98] sm:$0xff]
      %v341 = vld [vmem:[%s287 + $0xa0] sm:$0x3]
      %v342 = vld [vmem:[%s287 + $0xa8] sm:$0xff]
      %v343 = vld [vmem:[%s287 + $0xb0] sm:$0xff]
      %v344 = vld [vmem:[%s287 + $0xb8] sm:$0x3]
      %v345 = vld [vmem:[%s287 + $0xc0] sm:$0xff]
      %v346 = vld [vmem:[%s287 + $0xc8] sm:$0xff]
      %v347 = vld [vmem:[%s287 + $0xd0] sm:$0x3]
      %v348 = vld [vmem:[%s287 + $0xd8] sm:$0xff]
      %v349 = vld [vmem:[%s287 + $0xe0] sm:$0xff]
      %v350 = vld [vmem:[%s287 + $0xe8] sm:$0x3]
      %v351 = vld [vmem:[%s287 + $0xf0] sm:$0xff]
      %v352 = vld [vmem:[%s287 + $0xf8] sm:$0xff]
      %v353 = vld [vmem:[%s287 + $0x100] sm:$0x3]
      %v354 = vld [vmem:[%s287 + $0x108] sm:$0xff]
      %v355 = vld [vmem:[%s287 + $0x110] sm:$0xff]
      %v356 = vld [vmem:[%s287 + $0x118] sm:$0x3]
      %v357 = vld [vmem:[%s287 + $0x120] sm:$0xff]
      %v358 = vld [vmem:[%s287 + $0x128] sm:$0xff]
      %v359 = vld [vmem:[%s287 + $0x130] sm:$0x3]
      %v360 = vld [vmem:[%s287 + $0x138] sm:$0xff]
      %v361 = vld [vmem:[%s287 + $0x140] sm:$0xff]
      %v362 = vld [vmem:[%s287 + $0x148] sm:$0x3]
      %v363 = vld [vmem:[%s287 + $0x150] sm:$0xff]
      %v364 = vld [vmem:[%s287 + $0x158] sm:$0xff]
      %v365 = vld [vmem:[%s287 + $0x160] sm:$0x3]
      %v366 = vld [vmem:[%s287 + $0x168] sm:$0xff]
      %v367 = vld [vmem:[%s287 + $0x170] sm:$0xff]
      %v368 = vld [vmem:[%s287 + $0x178] sm:$0x3]
      %v369 = vpack.c.bf16 %v322, %v321
      %v370 = vpack.c.bf16 %v323, %v323
      %v371 = vpack.c.bf16 %v325, %v324
      %v372 = vpack.c.bf16 %v326, %v326
      %v373 = vpack.c.bf16 %v328, %v327
      %v374 = vpack.c.bf16 %v329, %v329
      %v375 = vpack.c.bf16 %v331, %v330
      %v376 = vpack.c.bf16 %v332, %v332
      %v377 = vpack.c.bf16 %v334, %v333
      %v378 = vpack.c.bf16 %v335, %v335
      %v379 = vpack.c.bf16 %v337, %v336
      %v380 = vpack.c.bf16 %v338, %v338
      %v381 = vpack.c.bf16 %v340, %v339
      %v382 = vpack.c.bf16 %v341, %v341
      %v383 = vpack.c.bf16 %v343, %v342
      %v384 = vpack.c.bf16 %v344, %v344
      %v385 = vpack.c.bf16 %v346, %v345
      %v386 = vpack.c.bf16 %v347, %v347
      %v387 = vpack.c.bf16 %v349, %v348
      %v388 = vpack.c.bf16 %v350, %v350
      %v389 = vpack.c.bf16 %v352, %v351
      %v390 = vpack.c.bf16 %v353, %v353
      %v391 = vpack.c.bf16 %v355, %v354
      %v392 = vpack.c.bf16 %v356, %v356
      %v393 = vpack.c.bf16 %v358, %v357
      %v394 = vpack.c.bf16 %v359, %v359
      %v395 = vpack.c.bf16 %v361, %v360
      %v396 = vpack.c.bf16 %v362, %v362
      %v397 = vpack.c.bf16 %v364, %v363
      %v398 = vpack.c.bf16 %v365, %v365
      %v399 = vpack.c.bf16 %v367, %v366
      %v400 = vpack.c.bf16 %v368, %v368
      %v433 = vunpack.c.l.b16 %v369
      %v434 = vunpack.c.h.b16 %v369
      %v435 = vunpack.c.l.b16 %v370
      %v436 = vunpack.c.l.b16 %v371
      %v437 = vunpack.c.h.b16 %v371
      %v438 = vunpack.c.l.b16 %v372
      %v439 = vunpack.c.l.b16 %v373
      %v440 = vunpack.c.h.b16 %v373
      %v441 = vunpack.c.l.b16 %v374
      %v442 = vunpack.c.l.b16 %v375
      %v443 = vunpack.c.h.b16 %v375
      %v444 = vunpack.c.l.b16 %v376
      %v445 = vunpack.c.l.b16 %v377
      %v446 = vunpack.c.h.b16 %v377
      %v447 = vunpack.c.l.b16 %v378
      %v448 = vunpack.c.l.b16 %v379
      %v449 = vunpack.c.h.b16 %v379
      %v450 = vunpack.c.l.b16 %v380
      %v451 = vunpack.c.l.b16 %v381
      %v452 = vunpack.c.h.b16 %v381
      %v453 = vunpack.c.l.b16 %v382
      %v454 = vunpack.c.l.b16 %v383
      %v455 = vunpack.c.h.b16 %v383
      %v456 = vunpack.c.l.b16 %v384
      %v457 = vunpack.c.l.b16 %v385
      %v458 = vunpack.c.h.b16 %v385
      %v459 = vunpack.c.l.b16 %v386
      %v460 = vunpack.c.l.b16 %v387
      %v461 = vunpack.c.h.b16 %v387
      %v462 = vunpack.c.l.b16 %v388
      %v463 = vunpack.c.l.b16 %v389
      %v464 = vunpack.c.h.b16 %v389
      %v465 = vunpack.c.l.b16 %v390
      %v466 = vunpack.c.l.b16 %v391
      %v467 = vunpack.c.h.b16 %v391
      %v468 = vunpack.c.l.b16 %v392
      %v469 = vunpack.c.l.b16 %v393
      %v470 = vunpack.c.h.b16 %v393
      %v471 = vunpack.c.l.b16 %v394
      %v472 = vunpack.c.l.b16 %v395
      %v473 = vunpack.c.h.b16 %v395
      %v474 = vunpack.c.l.b16 %v396
      %v475 = vunpack.c.l.b16 %v397
      %v476 = vunpack.c.h.b16 %v397
      %v477 = vunpack.c.l.b16 %v398
      %v478 = vunpack.c.l.b16 %v399
      %v479 = vunpack.c.h.b16 %v399
      %v480 = vunpack.c.l.b16 %v400
      %v481 = vpack.c.b16 %v433, %v433
      %v482 = vpack.c.b16 %v434, %v434
      %v483 = vpack.c.b16 %v435, %v435
      %v484 = vpack.c.b16 %v436, %v436
      %v485 = vpack.c.b16 %v437, %v437
      %v486 = vpack.c.b16 %v438, %v438
      %v487 = vpack.c.b16 %v439, %v439
      %v488 = vpack.c.b16 %v440, %v440
      %v489 = vpack.c.b16 %v441, %v441
      %v490 = vpack.c.b16 %v442, %v442
      %v491 = vpack.c.b16 %v443, %v443
      %v492 = vpack.c.b16 %v444, %v444
      %v493 = vpack.c.b16 %v445, %v445
      %v494 = vpack.c.b16 %v446, %v446
      %v495 = vpack.c.b16 %v447, %v447
      %v496 = vpack.c.b16 %v448, %v448
      %v497 = vpack.c.b16 %v449, %v449
      %v498 = vpack.c.b16 %v450, %v450
      %v499 = vpack.c.b16 %v451, %v451
      %v500 = vpack.c.b16 %v452, %v452
      %v501 = vpack.c.b16 %v453, %v453
      %v502 = vpack.c.b16 %v454, %v454
      %v503 = vpack.c.b16 %v455, %v455
      %v504 = vpack.c.b16 %v456, %v456
      %v505 = vpack.c.b16 %v457, %v457
      %v506 = vpack.c.b16 %v458, %v458
      %v507 = vpack.c.b16 %v459, %v459
      %v508 = vpack.c.b16 %v460, %v460
      %v509 = vpack.c.b16 %v461, %v461
      %v510 = vpack.c.b16 %v462, %v462
      %v511 = vpack.c.b16 %v463, %v463
      %v512 = vpack.c.b16 %v464, %v464
      %v513 = vpack.c.b16 %v465, %v465
      %v514 = vpack.c.b16 %v466, %v466
      %v515 = vpack.c.b16 %v467, %v467
      %v516 = vpack.c.b16 %v468, %v468
      %v517 = vpack.c.b16 %v469, %v469
      %v518 = vpack.c.b16 %v470, %v470
      %v519 = vpack.c.b16 %v471, %v471
      %v520 = vpack.c.b16 %v472, %v472
      %v521 = vpack.c.b16 %v473, %v473
      %v522 = vpack.c.b16 %v474, %v474
      %v523 = vpack.c.b16 %v475, %v475
      %v524 = vpack.c.b16 %v476, %v476
      %v525 = vpack.c.b16 %v477, %v477
      %v526 = vpack.c.b16 %v478, %v478
      %v527 = vpack.c.b16 %v479, %v479
      %v528 = vpack.c.b16 %v480, %v480
      %vm577 = vcmask 27648
      %578 = vst.msk [vmem:[#allocation2] sm:$0xf] %vm577, %v481
      %579 = vst.msk [vmem:[#allocation2 + $0x4] sm:$0xf] %vm577, %v482
      %vm580 = vcmask 24576
      %581 = vst.msk [vmem:[#allocation2 + $0x8] sm:$0x1] %vm580, %v483
      %582 = vst.msk [vmem:[#allocation2 + $0xc] sm:$0xf] %vm577, %v484
      %583 = vst.msk [vmem:[#allocation2 + $0x10] sm:$0xf] %vm577, %v485
      %584 = vst.msk [vmem:[#allocation2 + $0x14] sm:$0x1] %vm580, %v486
      %585 = vst.msk [vmem:[#allocation2 + $0x18] sm:$0xf] %vm577, %v487
      %586 = vst.msk [vmem:[#allocation2 + $0x1c] sm:$0xf] %vm577, %v488
      %587 = vst.msk [vmem:[#allocation2 + $0x20] sm:$0x1] %vm580, %v489
      %588 = vst.msk [vmem:[#allocation2 + $0x24] sm:$0xf] %vm577, %v490
      %589 = vst.msk [vmem:[#allocation2 + $0x28] sm:$0xf] %vm577, %v491
      %590 = vst.msk [vmem:[#allocation2 + $0x2c] sm:$0x1] %vm580, %v492
      %591 = vst.msk [vmem:[#allocation2 + $0x30] sm:$0xf] %vm577, %v493
      %592 = vst.msk [vmem:[#allocation2 + $0x34] sm:$0xf] %vm577, %v494
      %593 = vst.msk [vmem:[#allocation2 + $0x38] sm:$0x1] %vm580, %v495
      %594 = vst.msk [vmem:[#allocation2 + $0x3c] sm:$0xf] %vm577, %v496
      %595 = vst.msk [vmem:[#allocation2 + $0x40] sm:$0xf] %vm577, %v497
      %596 = vst.msk [vmem:[#allocation2 + $0x44] sm:$0x1] %vm580, %v498
      %597 = vst.msk [vmem:[#allocation2 + $0x48] sm:$0xf] %vm577, %v499
      %598 = vst.msk [vmem:[#allocation2 + $0x4c] sm:$0xf] %vm577, %v500
      %599 = vst.msk [vmem:[#allocation2 + $0x50] sm:$0x1] %vm580, %v501
      %600 = vst.msk [vmem:[#allocation2 + $0x54] sm:$0xf] %vm577, %v502
      %601 = vst.msk [vmem:[#allocation2 + $0x58] sm:$0xf] %vm577, %v503
      %602 = vst.msk [vmem:[#allocation2 + $0x5c] sm:$0x1] %vm580, %v504
      %603 = vst.msk [vmem:[#allocation2 + $0x60] sm:$0xf] %vm577, %v505
      %604 = vst.msk [vmem:[#allocation2 + $0x64] sm:$0xf] %vm577, %v506
      %605 = vst.msk [vmem:[#allocation2 + $0x68] sm:$0x1] %vm580, %v507
      %606 = vst.msk [vmem:[#allocation2 + $0x6c] sm:$0xf] %vm577, %v508
      %607 = vst.msk [vmem:[#allocation2 + $0x70] sm:$0xf] %vm577, %v509
      %608 = vst.msk [vmem:[#allocation2 + $0x74] sm:$0x1] %vm580, %v510
      %609 = vst.msk [vmem:[#allocation2 + $0x78] sm:$0xf] %vm577, %v511
      %610 = vst.msk [vmem:[#allocation2 + $0x7c] sm:$0xf] %vm577, %v512
      %611 = vst.msk [vmem:[#allocation2 + $0x80] sm:$0x1] %vm580, %v513
      %612 = vst.msk [vmem:[#allocation2 + $0x84] sm:$0xf] %vm577, %v514
      %613 = vst.msk [vmem:[#allocation2 + $0x88] sm:$0xf] %vm577, %v515
      %614 = vst.msk [vmem:[#allocation2 + $0x8c] sm:$0x1] %vm580, %v516
      %615 = vst.msk [vmem:[#allocation2 + $0x90] sm:$0xf] %vm577, %v517
      %616 = vst.msk [vmem:[#allocation2 + $0x94] sm:$0xf] %vm577, %v518
      %617 = vst.msk [vmem:[#allocation2 + $0x98] sm:$0x1] %vm580, %v519
      %618 = vst.msk [vmem:[#allocation2 + $0x9c] sm:$0xf] %vm577, %v520
      %619 = vst.msk [vmem:[#allocation2 + $0xa0] sm:$0xf] %vm577, %v521
      %620 = vst.msk [vmem:[#allocation2 + $0xa4] sm:$0x1] %vm580, %v522
      %621 = vst.msk [vmem:[#allocation2 + $0xa8] sm:$0xf] %vm577, %v523
      %622 = vst.msk [vmem:[#allocation2 + $0xac] sm:$0xf] %vm577, %v524
      %623 = vst.msk [vmem:[#allocation2 + $0xb0] sm:$0x1] %vm580, %v525
      %624 = vst.msk [vmem:[#allocation2 + $0xb4] sm:$0xf] %vm577, %v526
      %625 = vst.msk [vmem:[#allocation2 + $0xb8] sm:$0xf] %vm577, %v527
      %626 = vst.msk [vmem:[#allocation2 + $0xbc] sm:$0x1] %vm580, %v528
      %v627 = vld [vmem:[%s305] sm:$0xff]
      %v628 = vld [vmem:[%s305 + $0x8] sm:$0xff]
      %v629 = vld [vmem:[%s305 + $0x10] sm:$0x3]
      %v630 = vld [vmem:[%s305 + $0x18] sm:$0xff]
      %v631 = vld [vmem:[%s305 + $0x20] sm:$0xff]
      %v632 = vld [vmem:[%s305 + $0x28] sm:$0x3]
      %v633 = vpack.c.bf16 %v628, %v627
      %v634 = vpack.c.bf16 %v629, %v629
      %v635 = vpack.c.bf16 %v631, %v630
      %v636 = vpack.c.bf16 %v632, %v632
      %v641 = vunpack.c.l.b16 %v633
      %v642 = vunpack.c.h.b16 %v633
      %v643 = vunpack.c.l.b16 %v634
      %v644 = vunpack.c.l.b16 %v635
      %v645 = vunpack.c.h.b16 %v635
      %v646 = vunpack.c.l.b16 %v636
      %v647 = vpack.c.b16 %v641, %v641
      %v648 = vpack.c.b16 %v642, %v642
      %v649 = vpack.c.b16 %v643, %v643
      %v650 = vpack.c.b16 %v644, %v644
      %v651 = vpack.c.b16 %v645, %v645
      %v652 = vpack.c.b16 %v646, %v646
      %s659 = scalar_lea.vmem [#allocation2], 192
      %660 = vst.msk [vmem:[%s659] sm:$0xf] %vm577, %v647
      %661 = vst.msk [vmem:[%s659 + $0x4] sm:$0xf] %vm577, %v648
      %662 = vst.msk [vmem:[%s659 + $0x8] sm:$0x1] %vm580, %v649
      %663 = vst.msk [vmem:[%s659 + $0xc] sm:$0xf] %vm577, %v650
      %664 = vst.msk [vmem:[%s659 + $0x10] sm:$0xf] %vm577, %v651
      %665 = vst.msk [vmem:[%s659 + $0x14] sm:$0x1] %vm580, %v652
      %v666 = vld [vmem:[#allocation2] sm:$0xf]
      %v667 = vld [vmem:[#allocation2 + $0x4] sm:$0xf]
      %v668 = vld [vmem:[#allocation2 + $0xc] sm:$0xf]
      %v669 = vld [vmem:[#allocation2 + $0x10] sm:$0xf]
      %v670 = vld [vmem:[#allocation2 + $0x18] sm:$0xf]
      %v671 = vld [vmem:[#allocation2 + $0x1c] sm:$0xf]
      %v672 = vld [vmem:[#allocation2 + $0x24] sm:$0xf]
      %v673 = vld [vmem:[#allocation2 + $0x28] sm:$0xf]
      %v674 = vld [vmem:[#allocation2 + $0x30] sm:$0xf]
      %v675 = vld [vmem:[#allocation2 + $0x34] sm:$0xf]
      %v676 = vld [vmem:[#allocation2 + $0x3c] sm:$0xf]
      %v677 = vld [vmem:[#allocation2 + $0x40] sm:$0xf]
      %v678 = vld [vmem:[#allocation2 + $0x48] sm:$0xf]
      %v679 = vld [vmem:[#allocation2 + $0x4c] sm:$0xf]
      %v680 = vld [vmem:[#allocation2 + $0x54] sm:$0xf]
      %v681 = vld [vmem:[#allocation2 + $0x58] sm:$0xf]
      %v682 = vld [vmem:[#allocation2 + $0x60] sm:$0xf]
      %v683 = vld [vmem:[#allocation2 + $0x64] sm:$0xf]
      %v684 = vld [vmem:[#allocation2 + $0x6c] sm:$0xf]
      %v685 = vld [vmem:[#allocation2 + $0x70] sm:$0xf]
      %v686 = vld [vmem:[#allocation2 + $0x78] sm:$0xf]
      %v687 = vld [vmem:[#allocation2 + $0x7c] sm:$0xf]
      %v688 = vld [vmem:[#allocation2 + $0x84] sm:$0xf]
      %v689 = vld [vmem:[#allocation2 + $0x88] sm:$0xf]
      %v690 = vld [vmem:[#allocation2 + $0x90] sm:$0xf]
      %v691 = vld [vmem:[#allocation2 + $0x94] sm:$0xf]
      %v692 = vld [vmem:[#allocation2 + $0x9c] sm:$0xf]
      %v693 = vld [vmem:[#allocation2 + $0xa0] sm:$0xf]
      %v694 = vld [vmem:[#allocation2 + $0xa8] sm:$0xf]
      %v695 = vld [vmem:[#allocation2 + $0xac] sm:$0xf]
      %v696 = vld [vmem:[#allocation2 + $0xb4] sm:$0xf]
      %v697 = vld [vmem:[#allocation2 + $0xb8] sm:$0xf]
      %v698 = vld [vmem:[%s2] sm:$0x3]
      %v699 = vld [vmem:[#allocation2 + $0x8] sm:$0x1]
      %v700 = vld [vmem:[#allocation2 + $0x14] sm:$0x1]
      %v701 = vld [vmem:[#allocation2 + $0x20] sm:$0x1]
      %v702 = vld [vmem:[#allocation2 + $0x2c] sm:$0x1]
      %v703 = vld [vmem:[#allocation2 + $0x38] sm:$0x1]
      %v704 = vld [vmem:[#allocation2 + $0x44] sm:$0x1]
      %v705 = vld [vmem:[#allocation2 + $0x50] sm:$0x1]
      %v706 = vld [vmem:[#allocation2 + $0x5c] sm:$0x1]
      %v707 = vld [vmem:[#allocation2 + $0x68] sm:$0x1]
      %v708 = vld [vmem:[#allocation2 + $0x74] sm:$0x1]
      %v709 = vld [vmem:[#allocation2 + $0x80] sm:$0x1]
      %v710 = vld [vmem:[#allocation2 + $0x8c] sm:$0x1]
      %v711 = vld [vmem:[#allocation2 + $0x98] sm:$0x1]
      %v712 = vld [vmem:[#allocation2 + $0xa4] sm:$0x1]
      %v713 = vld [vmem:[#allocation2 + $0xb0] sm:$0x1]
      %v714 = vld [vmem:[#allocation2 + $0xbc] sm:$0x1]
      %vm715 = vsmask.f32 3328
      %vm716 = vsmask.f32 7440
      %vm717 = vmor %vm715, %vm716
      %v719 = vshrl.u32 %v666, 16
      %v721 = vrot.slane %v719, 4
      %v722 = vshll.u32 %v666, 16
      %v724 = vrot.slane %v722, 5
      %v725 = vor.u32 %v721, %v724
      %v726 = vrot.slane %v725, 4
      %v728 = vshll.u32 %v667, 16
      %v730 = vrot.slane %v728, 5
      %v731 = vsel %vm717, %v726, %v730
      %v732 = vshrl.u32 %v667, 16
      %v734 = vrot.slane %v732, 4
      %v735 = vor.u32 %v734, %v730
      %v736 = vrot.slane %v735, 4
      %v738 = vshll.u32 %v699, 16
      %v740 = vrot.slane %v738, 5
      %v741 = vsel %vm717, %v736, %v740
      %v743 = vshrl.u32 %v668, 16
      %v745 = vrot.slane %v743, 4
      %v746 = vshll.u32 %v668, 16
      %v748 = vrot.slane %v746, 5
      %v749 = vor.u32 %v745, %v748
      %v750 = vrot.slane %v749, 4
      %v752 = vshll.u32 %v669, 16
      %v754 = vrot.slane %v752, 5
      %v755 = vsel %vm717, %v750, %v754
      %v756 = vshrl.u32 %v669, 16
      %v758 = vrot.slane %v756, 4
      %v759 = vor.u32 %v758, %v754
      %v760 = vrot.slane %v759, 4
      %v762 = vshll.u32 %v700, 16
      %v764 = vrot.slane %v762, 5
      %v765 = vsel %vm717, %v760, %v764
      %v767 = vshrl.u32 %v670, 16
      %v769 = vrot.slane %v767, 4
      %v770 = vshll.u32 %v670, 16
      %v772 = vrot.slane %v770, 5
      %v773 = vor.u32 %v769, %v772
      %v774 = vrot.slane %v773, 4
      %v776 = vshll.u32 %v671, 16
      %v778 = vrot.slane %v776, 5
      %v779 = vsel %vm717, %v774, %v778
      %v780 = vshrl.u32 %v671, 16
      %v782 = vrot.slane %v780, 4
      %v783 = vor.u32 %v782, %v778
      %v784 = vrot.slane %v783, 4
      %v786 = vshll.u32 %v701, 16
      %v788 = vrot.slane %v786, 5
      %v789 = vsel %vm717, %v784, %v788
      %v791 = vshrl.u32 %v672, 16
      %v793 = vrot.slane %v791, 4
      %v794 = vshll.u32 %v672, 16
      %v796 = vrot.slane %v794, 5
      %v797 = vor.u32 %v793, %v796
      %v798 = vrot.slane %v797, 4
      %v800 = vshll.u32 %v673, 16
      %v802 = vrot.slane %v800, 5
      %v803 = vsel %vm717, %v798, %v802
      %v804 = vshrl.u32 %v673, 16
      %v806 = vrot.slane %v804, 4
      %v807 = vor.u32 %v806, %v802
      %v808 = vrot.slane %v807, 4
      %v810 = vshll.u32 %v702, 16
      %v812 = vrot.slane %v810, 5
      %v813 = vsel %vm717, %v808, %v812
      %v815 = vshrl.u32 %v674, 16
      %v817 = vrot.slane %v815, 4
      %v818 = vshll.u32 %v674, 16
      %v820 = vrot.slane %v818, 5
      %v821 = vor.u32 %v817, %v820
      %v822 = vrot.slane %v821, 4
      %v824 = vshll.u32 %v675, 16
      %v826 = vrot.slane %v824, 5
      %v827 = vsel %vm717, %v822, %v826
      %v828 = vshrl.u32 %v675, 16
      %v830 = vrot.slane %v828, 4
      %v831 = vor.u32 %v830, %v826
      %v832 = vrot.slane %v831, 4
      %v834 = vshll.u32 %v703, 16
      %v836 = vrot.slane %v834, 5
      %v837 = vsel %vm717, %v832, %v836
      %v839 = vshrl.u32 %v676, 16
      %v841 = vrot.slane %v839, 4
      %v842 = vshll.u32 %v676, 16
      %v844 = vrot.slane %v842, 5
      %v845 = vor.u32 %v841, %v844
      %v846 = vrot.slane %v845, 4
      %v848 = vshll.u32 %v677, 16
      %v850 = vrot.slane %v848, 5
      %v851 = vsel %vm717, %v846, %v850
      %v852 = vshrl.u32 %v677, 16
      %v854 = vrot.slane %v852, 4
      %v855 = vor.u32 %v854, %v850
      %v856 = vrot.slane %v855, 4
      %v858 = vshll.u32 %v704, 16
      %v860 = vrot.slane %v858, 5
      %v861 = vsel %vm717, %v856, %v860
      %v863 = vshrl.u32 %v678, 16
      %v865 = vrot.slane %v863, 4
      %v866 = vshll.u32 %v678, 16
      %v868 = vrot.slane %v866, 5
      %v869 = vor.u32 %v865, %v868
      %v870 = vrot.slane %v869, 4
      %v872 = vshll.u32 %v679, 16
      %v874 = vrot.slane %v872, 5
      %v875 = vsel %vm717, %v870, %v874
      %v876 = vshrl.u32 %v679, 16
      %v878 = vrot.slane %v876, 4
      %v879 = vor.u32 %v878, %v874
      %v880 = vrot.slane %v879, 4
      %v882 = vshll.u32 %v705, 16
      %v884 = vrot.slane %v882, 5
      %v885 = vsel %vm717, %v880, %v884
      %v887 = vshrl.u32 %v680, 16
      %v889 = vrot.slane %v887, 4
      %v890 = vshll.u32 %v680, 16
      %v892 = vrot.slane %v890, 5
      %v893 = vor.u32 %v889, %v892
      %v894 = vrot.slane %v893, 4
      %v896 = vshll.u32 %v681, 16
      %v898 = vrot.slane %v896, 5
      %v899 = vsel %vm717, %v894, %v898
      %v900 = vshrl.u32 %v681, 16
      %v902 = vrot.slane %v900, 4
      %v903 = vor.u32 %v902, %v898
      %v904 = vrot.slane %v903, 4
      %v906 = vshll.u32 %v706, 16
      %v908 = vrot.slane %v906, 5
      %v909 = vsel %vm717, %v904, %v908
      %v911 = vshrl.u32 %v682, 16
      %v913 = vrot.slane %v911, 4
      %v914 = vshll.u32 %v682, 16
      %v916 = vrot.slane %v914, 5
      %v917 = vor.u32 %v913, %v916
      %v918 = vrot.slane %v917, 4
      %v920 = vshll.u32 %v683, 16
      %v922 = vrot.slane %v920, 5
      %v923 = vsel %vm717, %v918, %v922
      %v924 = vshrl.u32 %v683, 16
      %v926 = vrot.slane %v924, 4
      %v927 = vor.u32 %v926, %v922
      %v928 = vrot.slane %v927, 4
      %v930 = vshll.u32 %v707, 16
      %v932 = vrot.slane %v930, 5
      %v933 = vsel %vm717, %v928, %v932
      %v935 = vshrl.u32 %v684, 16
      %v937 = vrot.slane %v935, 4
      %v938 = vshll.u32 %v684, 16
      %v940 = vrot.slane %v938, 5
      %v941 = vor.u32 %v937, %v940
      %v942 = vrot.slane %v941, 4
      %v944 = vshll.u32 %v685, 16
      %v946 = vrot.slane %v944, 5
      %v947 = vsel %vm717, %v942, %v946
      %v948 = vshrl.u32 %v685, 16
      %v950 = vrot.slane %v948, 4
      %v951 = vor.u32 %v950, %v946
      %v952 = vrot.slane %v951, 4
      %v954 = vshll.u32 %v708, 16
      %v956 = vrot.slane %v954, 5
      %v957 = vsel %vm717, %v952, %v956
      %v959 = vshrl.u32 %v686, 16
      %v961 = vrot.slane %v959, 4
      %v962 = vshll.u32 %v686, 16
      %v964 = vrot.slane %v962, 5
      %v965 = vor.u32 %v961, %v964
      %v966 = vrot.slane %v965, 4
      %v968 = vshll.u32 %v687, 16
      %v970 = vrot.slane %v968, 5
      %v971 = vsel %vm717, %v966, %v970
      %v972 = vshrl.u32 %v687, 16
      %v974 = vrot.slane %v972, 4
      %v975 = vor.u32 %v974, %v970
      %v976 = vrot.slane %v975, 4
      %v978 = vshll.u32 %v709, 16
      %v980 = vrot.slane %v978, 5
      %v981 = vsel %vm717, %v976, %v980
      %v983 = vshrl.u32 %v688, 16
      %v985 = vrot.slane %v983, 4
      %v986 = vshll.u32 %v688, 16
      %v988 = vrot.slane %v986, 5
      %v989 = vor.u32 %v985, %v988
      %v990 = vrot.slane %v989, 4
      %v992 = vshll.u32 %v689, 16
      %v994 = vrot.slane %v992, 5
      %v995 = vsel %vm717, %v990, %v994
      %v996 = vshrl.u32 %v689, 16
      %v998 = vrot.slane %v996, 4
      %v999 = vor.u32 %v998, %v994
      %v1000 = vrot.slane %v999, 4
      %v1002 = vshll.u32 %v710, 16
      %v1004 = vrot.slane %v1002, 5
      %v1005 = vsel %vm717, %v1000, %v1004
      %v1007 = vshrl.u32 %v690, 16
      %v1009 = vrot.slane %v1007, 4
      %v1010 = vshll.u32 %v690, 16
      %v1012 = vrot.slane %v1010, 5
      %v1013 = vor.u32 %v1009, %v1012
      %v1014 = vrot.slane %v1013, 4
      %v1016 = vshll.u32 %v691, 16
      %v1018 = vrot.slane %v1016, 5
      %v1019 = vsel %vm717, %v1014, %v1018
      %v1020 = vshrl.u32 %v691, 16
      %v1022 = vrot.slane %v1020, 4
      %v1023 = vor.u32 %v1022, %v1018
      %v1024 = vrot.slane %v1023, 4
      %v1026 = vshll.u32 %v711, 16
      %v1028 = vrot.slane %v1026, 5
      %v1029 = vsel %vm717, %v1024, %v1028
      %v1031 = vshrl.u32 %v692, 16
      %v1033 = vrot.slane %v1031, 4
      %v1034 = vshll.u32 %v692, 16
      %v1036 = vrot.slane %v1034, 5
      %v1037 = vor.u32 %v1033, %v1036
      %v1038 = vrot.slane %v1037, 4
      %v1040 = vshll.u32 %v693, 16
      %v1042 = vrot.slane %v1040, 5
      %v1043 = vsel %vm717, %v1038, %v1042
      %v1044 = vshrl.u32 %v693, 16
      %v1046 = vrot.slane %v1044, 4
      %v1047 = vor.u32 %v1046, %v1042
      %v1048 = vrot.slane %v1047, 4
      %v1050 = vshll.u32 %v712, 16
      %v1052 = vrot.slane %v1050, 5
      %v1053 = vsel %vm717, %v1048, %v1052
      %v1055 = vshrl.u32 %v694, 16
      %v1057 = vrot.slane %v1055, 4
      %v1058 = vshll.u32 %v694, 16
      %v1060 = vrot.slane %v1058, 5
      %v1061 = vor.u32 %v1057, %v1060
      %v1062 = vrot.slane %v1061, 4
      %v1064 = vshll.u32 %v695, 16
      %v1066 = vrot.slane %v1064, 5
      %v1067 = vsel %vm717, %v1062, %v1066
      %v1068 = vshrl.u32 %v695, 16
      %v1070 = vrot.slane %v1068, 4
      %v1071 = vor.u32 %v1070, %v1066
      %v1072 = vrot.slane %v1071, 4
      %v1074 = vshll.u32 %v713, 16
      %v1076 = vrot.slane %v1074, 5
      %v1077 = vsel %vm717, %v1072, %v1076
      %v1079 = vshrl.u32 %v696, 16
      %v1081 = vrot.slane %v1079, 4
      %v1082 = vshll.u32 %v696, 16
      %v1084 = vrot.slane %v1082, 5
      %v1085 = vor.u32 %v1081, %v1084
      %v1086 = vrot.slane %v1085, 4
      %v1088 = vshll.u32 %v697, 16
      %v1090 = vrot.slane %v1088, 5
      %v1091 = vsel %vm717, %v1086, %v1090
      %v1092 = vshrl.u32 %v697, 16
      %v1094 = vrot.slane %v1092, 4
      %v1095 = vor.u32 %v1094, %v1090
      %v1096 = vrot.slane %v1095, 4
      %v1098 = vshll.u32 %v714, 16
      %v1100 = vrot.slane %v1098, 5
      %v1101 = vsel %vm717, %v1096, %v1100
      %s1102 = scalar_lea.vmem %s2, 2
      %v1103 = vld [vmem:[%s1102] sm:$0x3]
      %v1104 = vunpack.c.l.b16 %v731
      %v1105 = vunpack.c.l.b16 %v741
      %v1106 = vunpack.c.l.b16 %v755
      %v1107 = vunpack.c.l.b16 %v765
      %v1108 = vunpack.c.l.b16 %v779
      %v1109 = vunpack.c.l.b16 %v789
      %v1110 = vunpack.c.l.b16 %v803
      %v1111 = vunpack.c.l.b16 %v813
      %v1112 = vunpack.c.l.b16 %v827
      %v1113 = vunpack.c.l.b16 %v837
      %v1114 = vunpack.c.l.b16 %v851
      %v1115 = vunpack.c.l.b16 %v861
      %v1116 = vunpack.c.l.b16 %v875
      %v1117 = vunpack.c.l.b16 %v885
      %v1118 = vunpack.c.l.b16 %v899
      %v1119 = vunpack.c.l.b16 %v909
      %v1120 = vunpack.c.l.b16 %v923
      %v1121 = vunpack.c.l.b16 %v933
      %v1122 = vunpack.c.l.b16 %v947
      %v1123 = vunpack.c.l.b16 %v957
      %v1124 = vunpack.c.l.b16 %v971
      %v1125 = vunpack.c.l.b16 %v981
      %v1126 = vunpack.c.l.b16 %v995
      %v1127 = vunpack.c.l.b16 %v1005
      %v1128 = vunpack.c.l.b16 %v1019
      %v1129 = vunpack.c.l.b16 %v1029
      %v1130 = vunpack.c.l.b16 %v1043
      %v1131 = vunpack.c.l.b16 %v1053
      %v1132 = vunpack.c.l.b16 %v1067
      %v1133 = vunpack.c.l.b16 %v1077
      %v1134 = vunpack.c.l.b16 %v1091
      %v1135 = vunpack.c.l.b16 %v1101
      %v1136 = vpack.c.b16 %v1105, %v1104
      %v1137 = vpack.c.b16 %v1107, %v1106
      %v1138 = vpack.c.b16 %v1109, %v1108
      %v1139 = vpack.c.b16 %v1111, %v1110
      %v1140 = vpack.c.b16 %v1113, %v1112
      %v1141 = vpack.c.b16 %v1115, %v1114
      %v1142 = vpack.c.b16 %v1117, %v1116
      %v1143 = vpack.c.b16 %v1119, %v1118
      %v1144 = vpack.c.b16 %v1121, %v1120
      %v1145 = vpack.c.b16 %v1123, %v1122
      %v1146 = vpack.c.b16 %v1125, %v1124
      %v1147 = vpack.c.b16 %v1127, %v1126
      %v1148 = vpack.c.b16 %v1129, %v1128
      %v1149 = vpack.c.b16 %v1131, %v1130
      %v1150 = vpack.c.b16 %v1133, %v1132
      %v1151 = vpack.c.b16 %v1135, %v1134
      %vm1152 = vcmask 31744
      %v1154 = vsel %vm1152, %v1136, 0
      %v1157 = vsel %vm1152, %v1137, 0
      %v1160 = vsel %vm1152, %v1138, 0
      %v1163 = vsel %vm1152, %v1139, 0
      %v1166 = vsel %vm1152, %v1140, 0
      %v1169 = vsel %vm1152, %v1141, 0
      %v1172 = vsel %vm1152, %v1142, 0
      %v1175 = vsel %vm1152, %v1143, 0
      %v1178 = vsel %vm1152, %v1144, 0
      %v1181 = vsel %vm1152, %v1145, 0
      %v1184 = vsel %vm1152, %v1146, 0
      %v1187 = vsel %vm1152, %v1147, 0
      %v1190 = vsel %vm1152, %v1148, 0
      %v1193 = vsel %vm1152, %v1149, 0
      %v1196 = vsel %vm1152, %v1150, 0
      %v1199 = vsel %vm1152, %v1151, 0
      %vm1201 = vcmask 1041408
      %v1203 = vsel %vm1201, %v1103, 0
      %1205 = vmatprep.subr.bf16.mxu0 0
      %1206 = vmatpush1.bf16.msra.mxu0 0
      %1207 = vmatprep.subr.bf16.mxu0 0
      %1208 = vmatpush1.bf16.msra.mxu0 0
      %1209 = vmatprep.subr.bf16.mxu0 0
      %1210 = vmatpush1.bf16.msra.mxu0 0
      %1211 = vmatprep.subr.bf16.mxu0 0
      %1212 = vmatpush1.bf16.msra.mxu0 0
      %1213 = vmatprep.subr.bf16.mxu0 0
      %1214 = vmatpush1.bf16.msra.mxu0 0
      %1215 = vmatprep.subr.bf16.mxu0 0
      %1216 = vmatpush1.bf16.msra.mxu0 0
      %1217 = vmatprep.subr.bf16.mxu0 0
      %1218 = vmatpush1.bf16.msra.mxu0 0
      %1219 = vmatprep.subr.bf16.mxu0 0
      %1220 = vmatpush1.bf16.msra.mxu0 %v1203
      %1221 = vmatprep.subr.bf16.mxu0 0
      %1222 = vmatpush2.bf16.msra.mxu0 0
      %1223 = vmatprep.subr.bf16.mxu0 0
      %1224 = vmatpush2.bf16.msra.mxu0 0
      %1225 = vmatprep.subr.bf16.mxu0 0
      %1226 = vmatpush2.bf16.msra.mxu0 0
      %1227 = vmatprep.subr.bf16.mxu0 0
      %1228 = vmatpush2.bf16.msra.mxu0 0
      %1229 = vmatprep.subr.bf16.mxu0 0
      %1230 = vmatpush2.bf16.msra.mxu0 0
      %1231 = vmatprep.subr.bf16.mxu0 0
      %1232 = vmatpush2.bf16.msra.mxu0 0
      %1233 = vmatprep.subr.bf16.mxu0 0
      %1234 = vmatpush2.bf16.msra.mxu0 0
      %1235 = vmatprep.subr.bf16.mxu0 0
      %1236 = vmatpush2.bf16.msra.mxu0 0
      %1237 = vmatprep.mubr.bf16.mxu0 0
      %1238 = vmatmul.mubr.bf16.gmra.mxu0 %v1154
      %v1239 = vpop.f32.mrf.mxu0
      %v1240 = vadd.f32 0.0, %v1239
      %v1241 = vpop.f32.mrf.mxu0
      %v1242 = vpop.f32.mrf.mxu0
      %v1243 = vadd.f32 0.0, %v1242
      %v1244 = vpop.f32.mrf.mxu0
      %1245 = vmatprep.mubr.bf16.mxu0 0
      %1246 = vmatmul.mubr.bf16.gmra.mxu0 %v1157
      %v1247 = vpop.f32.mrf.mxu0
      %v1248 = vadd.f32 0.0, %v1247
      %v1249 = vpop.f32.mrf.mxu0
      %v1250 = vpop.f32.mrf.mxu0
      %v1251 = vadd.f32 0.0, %v1250
      %v1252 = vpop.f32.mrf.mxu0
      %1253 = vmatprep.mubr.bf16.mxu0 0
      %1254 = vmatmul.mubr.bf16.gmra.mxu0 %v1160
      %v1255 = vpop.f32.mrf.mxu0
      %v1256 = vadd.f32 0.0, %v1255
      %v1257 = vpop.f32.mrf.mxu0
      %v1258 = vpop.f32.mrf.mxu0
      %v1259 = vadd.f32 0.0, %v1258
      %v1260 = vpop.f32.mrf.mxu0
      %1261 = vmatprep.mubr.bf16.mxu0 0
      %1262 = vmatmul.mubr.bf16.gmra.mxu0 %v1163
      %v1263 = vpop.f32.mrf.mxu0
      %v1264 = vadd.f32 0.0, %v1263
      %v1265 = vpop.f32.mrf.mxu0
      %v1266 = vpop.f32.mrf.mxu0
      %v1267 = vadd.f32 0.0, %v1266
      %v1268 = vpop.f32.mrf.mxu0
      %1269 = vmatprep.mubr.bf16.mxu0 0
      %1270 = vmatmul.mubr.bf16.gmra.mxu0 %v1166
      %v1271 = vpop.f32.mrf.mxu0
      %v1272 = vadd.f32 0.0, %v1271
      %v1273 = vpop.f32.mrf.mxu0
      %v1274 = vpop.f32.mrf.mxu0
      %v1275 = vadd.f32 0.0, %v1274
      %v1276 = vpop.f32.mrf.mxu0
      %1277 = vmatprep.mubr.bf16.mxu0 0
      %1278 = vmatmul.mubr.bf16.gmra.mxu0 %v1169
      %v1279 = vpop.f32.mrf.mxu0
      %v1280 = vadd.f32 0.0, %v1279
      %v1281 = vpop.f32.mrf.mxu0
      %v1282 = vpop.f32.mrf.mxu0
      %v1283 = vadd.f32 0.0, %v1282
      %v1284 = vpop.f32.mrf.mxu0
      %1285 = vmatprep.mubr.bf16.mxu0 0
      %1286 = vmatmul.mubr.bf16.gmra.mxu0 %v1172
      %v1287 = vpop.f32.mrf.mxu0
      %v1288 = vadd.f32 0.0, %v1287
      %v1289 = vpop.f32.mrf.mxu0
      %v1290 = vpop.f32.mrf.mxu0
      %v1291 = vadd.f32 0.0, %v1290
      %v1292 = vpop.f32.mrf.mxu0
      %1293 = vmatprep.mubr.bf16.mxu0 0
      %1294 = vmatmul.mubr.bf16.gmra.mxu0 %v1175
      %v1295 = vpop.f32.mrf.mxu0
      %v1296 = vadd.f32 0.0, %v1295
      %v1297 = vpop.f32.mrf.mxu0
      %v1298 = vpop.f32.mrf.mxu0
      %v1299 = vadd.f32 0.0, %v1298
      %v1300 = vpop.f32.mrf.mxu0
      %1301 = vmatprep.mubr.bf16.mxu0 0
      %1302 = vmatmul.mubr.bf16.gmra.mxu0 %v1178
      %v1303 = vpop.f32.mrf.mxu0
      %v1304 = vadd.f32 0.0, %v1303
      %v1305 = vpop.f32.mrf.mxu0
      %v1306 = vpop.f32.mrf.mxu0
      %v1307 = vadd.f32 0.0, %v1306
      %v1308 = vpop.f32.mrf.mxu0
      %1309 = vmatprep.mubr.bf16.mxu0 0
      %1310 = vmatmul.mubr.bf16.gmra.mxu0 %v1181
      %v1311 = vpop.f32.mrf.mxu0
      %v1312 = vadd.f32 0.0, %v1311
      %v1313 = vpop.f32.mrf.mxu0
      %v1314 = vpop.f32.mrf.mxu0
      %v1315 = vadd.f32 0.0, %v1314
      %v1316 = vpop.f32.mrf.mxu0
      %1317 = vmatprep.mubr.bf16.mxu0 0
      %1318 = vmatmul.mubr.bf16.gmra.mxu0 %v1184
      %v1319 = vpop.f32.mrf.mxu0
      %v1320 = vadd.f32 0.0, %v1319
      %v1321 = vpop.f32.mrf.mxu0
      %v1322 = vpop.f32.mrf.mxu0
      %v1323 = vadd.f32 0.0, %v1322
      %v1324 = vpop.f32.mrf.mxu0
      %1325 = vmatprep.mubr.bf16.mxu0 0
      %1326 = vmatmul.mubr.bf16.gmra.mxu0 %v1187
      %v1327 = vpop.f32.mrf.mxu0
      %v1328 = vadd.f32 0.0, %v1327
      %v1329 = vpop.f32.mrf.mxu0
      %v1330 = vpop.f32.mrf.mxu0
      %v1331 = vadd.f32 0.0, %v1330
      %v1332 = vpop.f32.mrf.mxu0
      %1333 = vmatprep.mubr.bf16.mxu0 0
      %1334 = vmatmul.mubr.bf16.gmra.mxu0 %v1190
      %v1335 = vpop.f32.mrf.mxu0
      %v1336 = vadd.f32 0.0, %v1335
      %v1337 = vpop.f32.mrf.mxu0
      %v1338 = vpop.f32.mrf.mxu0
      %v1339 = vadd.f32 0.0, %v1338
      %v1340 = vpop.f32.mrf.mxu0
      %1341 = vmatprep.mubr.bf16.mxu0 0
      %1342 = vmatmul.mubr.bf16.gmra.mxu0 %v1193
      %v1343 = vpop.f32.mrf.mxu0
      %v1344 = vadd.f32 0.0, %v1343
      %v1345 = vpop.f32.mrf.mxu0
      %v1346 = vpop.f32.mrf.mxu0
      %v1347 = vadd.f32 0.0, %v1346
      %v1348 = vpop.f32.mrf.mxu0
      %1349 = vmatprep.mubr.bf16.mxu0 0
      %1350 = vmatmul.mubr.bf16.gmra.mxu0 %v1196
      %v1351 = vpop.f32.mrf.mxu0
      %v1352 = vadd.f32 0.0, %v1351
      %v1353 = vpop.f32.mrf.mxu0
      %v1354 = vpop.f32.mrf.mxu0
      %v1355 = vadd.f32 0.0, %v1354
      %v1356 = vpop.f32.mrf.mxu0
      %1357 = vmatprep.mubr.bf16.mxu0 0
      %1358 = vmatmul.mubr.bf16.gmra.mxu0 %v1199
      %v1359 = vpop.f32.mrf.mxu0
      %v1360 = vadd.f32 0.0, %v1359
      %v1361 = vpop.f32.mrf.mxu0
      %v1362 = vpop.f32.mrf.mxu0
      %v1363 = vadd.f32 0.0, %v1362
      %v1364 = vpop.f32.mrf.mxu0
      %1365 = vdwg.mxu0
      %v1398 = vunpack.c.l.b16 %v666
      %v1399 = vunpack.c.l.b16 %v667
      %v1400 = vunpack.c.l.b16 %v668
      %v1401 = vunpack.c.l.b16 %v669
      %v1402 = vunpack.c.l.b16 %v670
      %v1403 = vunpack.c.l.b16 %v671
      %v1404 = vunpack.c.l.b16 %v672
      %v1405 = vunpack.c.l.b16 %v673
      %v1406 = vunpack.c.l.b16 %v674
      %v1407 = vunpack.c.l.b16 %v675
      %v1408 = vunpack.c.l.b16 %v676
      %v1409 = vunpack.c.l.b16 %v677
      %v1410 = vunpack.c.l.b16 %v678
      %v1411 = vunpack.c.l.b16 %v679
      %v1412 = vunpack.c.l.b16 %v680
      %v1413 = vunpack.c.l.b16 %v681
      %v1414 = vunpack.c.l.b16 %v682
      %v1415 = vunpack.c.l.b16 %v683
      %v1416 = vunpack.c.l.b16 %v684
      %v1417 = vunpack.c.l.b16 %v685
      %v1418 = vunpack.c.l.b16 %v686
      %v1419 = vunpack.c.l.b16 %v687
      %v1420 = vunpack.c.l.b16 %v688
      %v1421 = vunpack.c.l.b16 %v689
      %v1422 = vunpack.c.l.b16 %v690
      %v1423 = vunpack.c.l.b16 %v691
      %v1424 = vunpack.c.l.b16 %v692
      %v1425 = vunpack.c.l.b16 %v693
      %v1426 = vunpack.c.l.b16 %v694
      %v1427 = vunpack.c.l.b16 %v695
      %v1428 = vunpack.c.l.b16 %v696
      %v1429 = vunpack.c.l.b16 %v697
      %v1430 = vpack.c.b16 %v1399, %v1398
      %v1431 = vpack.c.b16 %v1401, %v1400
      %v1432 = vpack.c.b16 %v1403, %v1402
      %v1433 = vpack.c.b16 %v1405, %v1404
      %v1434 = vpack.c.b16 %v1407, %v1406
      %v1435 = vpack.c.b16 %v1409, %v1408
      %v1436 = vpack.c.b16 %v1411, %v1410
      %v1437 = vpack.c.b16 %v1413, %v1412
      %v1438 = vpack.c.b16 %v1415, %v1414
      %v1439 = vpack.c.b16 %v1417, %v1416
      %v1440 = vpack.c.b16 %v1419, %v1418
      %v1441 = vpack.c.b16 %v1421, %v1420
      %v1442 = vpack.c.b16 %v1423, %v1422
      %v1443 = vpack.c.b16 %v1425, %v1424
      %v1444 = vpack.c.b16 %v1427, %v1426
      %v1445 = vpack.c.b16 %v1429, %v1428
      %v1447 = vsel %vm1152, %v1430, 0
      %v1450 = vsel %vm1152, %v1431, 0
      %v1453 = vsel %vm1152, %v1432, 0
      %v1456 = vsel %vm1152, %v1433, 0
      %v1459 = vsel %vm1152, %v1434, 0
      %v1462 = vsel %vm1152, %v1435, 0
      %v1465 = vsel %vm1152, %v1436, 0
      %v1468 = vsel %vm1152, %v1437, 0
      %v1471 = vsel %vm1152, %v1438, 0
      %v1474 = vsel %vm1152, %v1439, 0
      %v1477 = vsel %vm1152, %v1440, 0
      %v1480 = vsel %vm1152, %v1441, 0
      %v1483 = vsel %vm1152, %v1442, 0
      %v1486 = vsel %vm1152, %v1443, 0
      %v1489 = vsel %vm1152, %v1444, 0
      %v1492 = vsel %vm1152, %v1445, 0
      %v1495 = vsel %vm1201, %v698, 0
      %1497 = vmatprep.subr.bf16.mxu0 0
      %1498 = vmatpush1.bf16.msra.mxu0 0
      %1499 = vmatprep.subr.bf16.mxu0 0
      %1500 = vmatpush1.bf16.msra.mxu0 0
      %1501 = vmatprep.subr.bf16.mxu0 0
      %1502 = vmatpush1.bf16.msra.mxu0 0
      %1503 = vmatprep.subr.bf16.mxu0 0
      %1504 = vmatpush1.bf16.msra.mxu0 0
      %1505 = vmatprep.subr.bf16.mxu0 0
      %1506 = vmatpush1.bf16.msra.mxu0 0
      %1507 = vmatprep.subr.bf16.mxu0 0
      %1508 = vmatpush1.bf16.msra.mxu0 0
      %1509 = vmatprep.subr.bf16.mxu0 0
      %1510 = vmatpush1.bf16.msra.mxu0 0
      %1511 = vmatprep.subr.bf16.mxu0 0
      %1512 = vmatpush1.bf16.msra.mxu0 %v1495
      %1513 = vmatprep.subr.bf16.mxu0 0
      %1514 = vmatpush2.bf16.msra.mxu0 0
      %1515 = vmatprep.subr.bf16.mxu0 0
      %1516 = vmatpush2.bf16.msra.mxu0 0
      %1517 = vmatprep.subr.bf16.mxu0 0
      %1518 = vmatpush2.bf16.msra.mxu0 0
      %1519 = vmatprep.subr.bf16.mxu0 0
      %1520 = vmatpush2.bf16.msra.mxu0 0
      %1521 = vmatprep.subr.bf16.mxu0 0
      %1522 = vmatpush2.bf16.msra.mxu0 0
      %1523 = vmatprep.subr.bf16.mxu0 0
      %1524 = vmatpush2.bf16.msra.mxu0 0
      %1525 = vmatprep.subr.bf16.mxu0 0
      %1526 = vmatpush2.bf16.msra.mxu0 0
      %1527 = vmatprep.subr.bf16.mxu0 0
      %1528 = vmatpush2.bf16.msra.mxu0 0
      %1529 = vmatprep.mubr.bf16.mxu0 0
      %1530 = vmatmul.mubr.bf16.gmra.mxu0 %v1447
      %v1531 = vpop.f32.mrf.mxu0
      %v1532 = vadd.f32 %v1240, %v1531
      %v1533 = vpop.f32.mrf.mxu0
      %v1534 = vpop.f32.mrf.mxu0
      %v1535 = vadd.f32 %v1243, %v1534
      %v1536 = vpop.f32.mrf.mxu0
      %1537 = vmatprep.mubr.bf16.mxu0 0
      %1538 = vmatmul.mubr.bf16.gmra.mxu0 %v1450
      %v1539 = vpop.f32.mrf.mxu0
      %v1540 = vadd.f32 %v1248, %v1539
      %v1541 = vpop.f32.mrf.mxu0
      %v1542 = vpop.f32.mrf.mxu0
      %v1543 = vadd.f32 %v1251, %v1542
      %v1544 = vpop.f32.mrf.mxu0
      %1545 = vmatprep.mubr.bf16.mxu0 0
      %1546 = vmatmul.mubr.bf16.gmra.mxu0 %v1453
      %v1547 = vpop.f32.mrf.mxu0
      %v1548 = vadd.f32 %v1256, %v1547
      %v1549 = vpop.f32.mrf.mxu0
      %v1550 = vpop.f32.mrf.mxu0
      %v1551 = vadd.f32 %v1259, %v1550
      %v1552 = vpop.f32.mrf.mxu0
      %1553 = vmatprep.mubr.bf16.mxu0 0
      %1554 = vmatmul.mubr.bf16.gmra.mxu0 %v1456
      %v1555 = vpop.f32.mrf.mxu0
      %v1556 = vadd.f32 %v1264, %v1555
      %v1557 = vpop.f32.mrf.mxu0
      %v1558 = vpop.f32.mrf.mxu0
      %v1559 = vadd.f32 %v1267, %v1558
      %v1560 = vpop.f32.mrf.mxu0
      %1561 = vmatprep.mubr.bf16.mxu0 0
      %1562 = vmatmul.mubr.bf16.gmra.mxu0 %v1459
      %v1563 = vpop.f32.mrf.mxu0
      %v1564 = vadd.f32 %v1272, %v1563
      %v1565 = vpop.f32.mrf.mxu0
      %v1566 = vpop.f32.mrf.mxu0
      %v1567 = vadd.f32 %v1275, %v1566
      %v1568 = vpop.f32.mrf.mxu0
      %1569 = vmatprep.mubr.bf16.mxu0 0
      %1570 = vmatmul.mubr.bf16.gmra.mxu0 %v1462
      %v1571 = vpop.f32.mrf.mxu0
      %v1572 = vadd.f32 %v1280, %v1571
      %v1573 = vpop.f32.mrf.mxu0
      %v1574 = vpop.f32.mrf.mxu0
      %v1575 = vadd.f32 %v1283, %v1574
      %v1576 = vpop.f32.mrf.mxu0
      %1577 = vmatprep.mubr.bf16.mxu0 0
      %1578 = vmatmul.mubr.bf16.gmra.mxu0 %v1465
      %v1579 = vpop.f32.mrf.mxu0
      %v1580 = vadd.f32 %v1288, %v1579
      %v1581 = vpop.f32.mrf.mxu0
      %v1582 = vpop.f32.mrf.mxu0
      %v1583 = vadd.f32 %v1291, %v1582
      %v1584 = vpop.f32.mrf.mxu0
      %1585 = vmatprep.mubr.bf16.mxu0 0
      %1586 = vmatmul.mubr.bf16.gmra.mxu0 %v1468
      %v1587 = vpop.f32.mrf.mxu0
      %v1588 = vadd.f32 %v1296, %v1587
      %v1589 = vpop.f32.mrf.mxu0
      %v1590 = vpop.f32.mrf.mxu0
      %v1591 = vadd.f32 %v1299, %v1590
      %v1592 = vpop.f32.mrf.mxu0
      %1593 = vmatprep.mubr.bf16.mxu0 0
      %1594 = vmatmul.mubr.bf16.gmra.mxu0 %v1471
      %v1595 = vpop.f32.mrf.mxu0
      %v1596 = vadd.f32 %v1304, %v1595
      %v1597 = vpop.f32.mrf.mxu0
      %v1598 = vpop.f32.mrf.mxu0
      %v1599 = vadd.f32 %v1307, %v1598
      %v1600 = vpop.f32.mrf.mxu0
      %1601 = vmatprep.mubr.bf16.mxu0 0
      %1602 = vmatmul.mubr.bf16.gmra.mxu0 %v1474
      %v1603 = vpop.f32.mrf.mxu0
      %v1604 = vadd.f32 %v1312, %v1603
      %v1605 = vpop.f32.mrf.mxu0
      %v1606 = vpop.f32.mrf.mxu0
      %v1607 = vadd.f32 %v1315, %v1606
      %v1608 = vpop.f32.mrf.mxu0
      %1609 = vmatprep.mubr.bf16.mxu0 0
      %1610 = vmatmul.mubr.bf16.gmra.mxu0 %v1477
      %v1611 = vpop.f32.mrf.mxu0
      %v1612 = vadd.f32 %v1320, %v1611
      %v1613 = vpop.f32.mrf.mxu0
      %v1614 = vpop.f32.mrf.mxu0
      %v1615 = vadd.f32 %v1323, %v1614
      %v1616 = vpop.f32.mrf.mxu0
      %1617 = vmatprep.mubr.bf16.mxu0 0
      %1618 = vmatmul.mubr.bf16.gmra.mxu0 %v1480
      %v1619 = vpop.f32.mrf.mxu0
      %v1620 = vadd.f32 %v1328, %v1619
      %v1621 = vpop.f32.mrf.mxu0
      %v1622 = vpop.f32.mrf.mxu0
      %v1623 = vadd.f32 %v1331, %v1622
      %v1624 = vpop.f32.mrf.mxu0
      %1625 = vmatprep.mubr.bf16.mxu0 0
      %1626 = vmatmul.mubr.bf16.gmra.mxu0 %v1483
      %v1627 = vpop.f32.mrf.mxu0
      %v1628 = vadd.f32 %v1336, %v1627
      %v1629 = vpop.f32.mrf.mxu0
      %v1630 = vpop.f32.mrf.mxu0
      %v1631 = vadd.f32 %v1339, %v1630
      %v1632 = vpop.f32.mrf.mxu0
      %1633 = vmatprep.mubr.bf16.mxu0 0
      %1634 = vmatmul.mubr.bf16.gmra.mxu0 %v1486
      %v1635 = vpop.f32.mrf.mxu0
      %v1636 = vadd.f32 %v1344, %v1635
      %v1637 = vpop.f32.mrf.mxu0
      %v1638 = vpop.f32.mrf.mxu0
      %v1639 = vadd.f32 %v1347, %v1638
      %v1640 = vpop.f32.mrf.mxu0
      %1641 = vmatprep.mubr.bf16.mxu0 0
      %1642 = vmatmul.mubr.bf16.gmra.mxu0 %v1489
      %v1643 = vpop.f32.mrf.mxu0
      %v1644 = vadd.f32 %v1352, %v1643
      %v1645 = vpop.f32.mrf.mxu0
      %v1646 = vpop.f32.mrf.mxu0
      %v1647 = vadd.f32 %v1355, %v1646
      %v1648 = vpop.f32.mrf.mxu0
      %1649 = vmatprep.mubr.bf16.mxu0 0
      %1650 = vmatmul.mubr.bf16.gmra.mxu0 %v1492
      %v1651 = vpop.f32.mrf.mxu0
      %v1652 = vadd.f32 %v1360, %v1651
      %v1653 = vpop.f32.mrf.mxu0
      %v1654 = vpop.f32.mrf.mxu0
      %v1655 = vadd.f32 %v1363, %v1654
      %v1656 = vpop.f32.mrf.mxu0
      %1657 = vdwg.mxu0
      %v1658 = vld [vmem:[#allocation2] sm:$0xe]
      %v1659 = vld [vmem:[#allocation2 + $0xc] sm:$0xe]
      %v1660 = vld [vmem:[#allocation2 + $0x18] sm:$0xe]
      %v1661 = vld [vmem:[#allocation2 + $0x24] sm:$0xe]
      %v1662 = vld [vmem:[#allocation2 + $0x30] sm:$0xe]
      %v1663 = vld [vmem:[#allocation2 + $0x3c] sm:$0xe]
      %v1664 = vld [vmem:[#allocation2 + $0x48] sm:$0xe]
      %v1665 = vld [vmem:[#allocation2 + $0x54] sm:$0xe]
      %v1666 = vld [vmem:[#allocation2 + $0x60] sm:$0xe]
      %v1667 = vld [vmem:[#allocation2 + $0x6c] sm:$0xe]
      %v1668 = vld [vmem:[#allocation2 + $0x78] sm:$0xe]
      %v1669 = vld [vmem:[#allocation2 + $0x84] sm:$0xe]
      %v1670 = vld [vmem:[#allocation2 + $0x90] sm:$0xe]
      %v1671 = vld [vmem:[#allocation2 + $0x9c] sm:$0xe]
      %v1672 = vld [vmem:[#allocation2 + $0xa8] sm:$0xe]
      %v1673 = vld [vmem:[#allocation2 + $0xb4] sm:$0xe]
      %vm1706 = vcmask 1042432
      %vm1707 = vcmask 1046532
      %vm1708 = vmor %vm1706, %vm1707
      %v1709 = vrot.slane %v1658, 5
      %v1710 = vrot.slane %v1709, 4
      %v1711 = vrot.slane %v667, 5
      %v1712 = vsel %vm1708, %v1710, %v1711
      %v1713 = vrot.slane %v1711, 4
      %v1714 = vrot.slane %v699, 5
      %v1715 = vsel %vm1708, %v1713, %v1714
      %v1716 = vrot.slane %v1659, 5
      %v1717 = vrot.slane %v1716, 4
      %v1718 = vrot.slane %v669, 5
      %v1719 = vsel %vm1708, %v1717, %v1718
      %v1720 = vrot.slane %v1718, 4
      %v1721 = vrot.slane %v700, 5
      %v1722 = vsel %vm1708, %v1720, %v1721
      %v1723 = vrot.slane %v1660, 5
      %v1724 = vrot.slane %v1723, 4
      %v1725 = vrot.slane %v671, 5
      %v1726 = vsel %vm1708, %v1724, %v1725
      %v1727 = vrot.slane %v1725, 4
      %v1728 = vrot.slane %v701, 5
      %v1729 = vsel %vm1708, %v1727, %v1728
      %v1730 = vrot.slane %v1661, 5
      %v1731 = vrot.slane %v1730, 4
      %v1732 = vrot.slane %v673, 5
      %v1733 = vsel %vm1708, %v1731, %v1732
      %v1734 = vrot.slane %v1732, 4
      %v1735 = vrot.slane %v702, 5
      %v1736 = vsel %vm1708, %v1734, %v1735
      %v1737 = vrot.slane %v1662, 5
      %v1738 = vrot.slane %v1737, 4
      %v1739 = vrot.slane %v675, 5
      %v1740 = vsel %vm1708, %v1738, %v1739
      %v1741 = vrot.slane %v1739, 4
      %v1742 = vrot.slane %v703, 5
      %v1743 = vsel %vm1708, %v1741, %v1742
      %v1744 = vrot.slane %v1663, 5
      %v1745 = vrot.slane %v1744, 4
      %v1746 = vrot.slane %v677, 5
      %v1747 = vsel %vm1708, %v1745, %v1746
      %v1748 = vrot.slane %v1746, 4
      %v1749 = vrot.slane %v704, 5
      %v1750 = vsel %vm1708, %v1748, %v1749
      %v1751 = vrot.slane %v1664, 5
      %v1752 = vrot.slane %v1751, 4
      %v1753 = vrot.slane %v679, 5
      %v1754 = vsel %vm1708, %v1752, %v1753
      %v1755 = vrot.slane %v1753, 4
      %v1756 = vrot.slane %v705, 5
      %v1757 = vsel %vm1708, %v1755, %v1756
      %v1758 = vrot.slane %v1665, 5
      %v1759 = vrot.slane %v1758, 4
      %v1760 = vrot.slane %v681, 5
      %v1761 = vsel %vm1708, %v1759, %v1760
      %v1762 = vrot.slane %v1760, 4
      %v1763 = vrot.slane %v706, 5
      %v1764 = vsel %vm1708, %v1762, %v1763
      %v1765 = vrot.slane %v1666, 5
      %v1766 = vrot.slane %v1765, 4
      %v1767 = vrot.slane %v683, 5
      %v1768 = vsel %vm1708, %v1766, %v1767
      %v1769 = vrot.slane %v1767, 4
      %v1770 = vrot.slane %v707, 5
      %v1771 = vsel %vm1708, %v1769, %v1770
      %v1772 = vrot.slane %v1667, 5
      %v1773 = vrot.slane %v1772, 4
      %v1774 = vrot.slane %v685, 5
      %v1775 = vsel %vm1708, %v1773, %v1774
      %v1776 = vrot.slane %v1774, 4
      %v1777 = vrot.slane %v708, 5
      %v1778 = vsel %vm1708, %v1776, %v1777
      %v1779 = vrot.slane %v1668, 5
      %v1780 = vrot.slane %v1779, 4
      %v1781 = vrot.slane %v687, 5
      %v1782 = vsel %vm1708, %v1780, %v1781
      %v1783 = vrot.slane %v1781, 4
      %v1784 = vrot.slane %v709, 5
      %v1785 = vsel %vm1708, %v1783, %v1784
      %v1786 = vrot.slane %v1669, 5
      %v1787 = vrot.slane %v1786, 4
      %v1788 = vrot.slane %v689, 5
      %v1789 = vsel %vm1708, %v1787, %v1788
      %v1790 = vrot.slane %v1788, 4
      %v1791 = vrot.slane %v710, 5
      %v1792 = vsel %vm1708, %v1790, %v1791
      %v1793 = vrot.slane %v1670, 5
      %v1794 = vrot.slane %v1793, 4
      %v1795 = vrot.slane %v691, 5
      %v1796 = vsel %vm1708, %v1794, %v1795
      %v1797 = vrot.slane %v1795, 4
      %v1798 = vrot.slane %v711, 5
      %v1799 = vsel %vm1708, %v1797, %v1798
      %v1800 = vrot.slane %v1671, 5
      %v1801 = vrot.slane %v1800, 4
      %v1802 = vrot.slane %v693, 5
      %v1803 = vsel %vm1708, %v1801, %v1802
      %v1804 = vrot.slane %v1802, 4
      %v1805 = vrot.slane %v712, 5
      %v1806 = vsel %vm1708, %v1804, %v1805
      %v1807 = vrot.slane %v1672, 5
      %v1808 = vrot.slane %v1807, 4
      %v1809 = vrot.slane %v695, 5
      %v1810 = vsel %vm1708, %v1808, %v1809
      %v1811 = vrot.slane %v1809, 4
      %v1812 = vrot.slane %v713, 5
      %v1813 = vsel %vm1708, %v1811, %v1812
      %v1814 = vrot.slane %v1673, 5
      %v1815 = vrot.slane %v1814, 4
      %v1816 = vrot.slane %v697, 5
      %v1817 = vsel %vm1708, %v1815, %v1816
      %v1818 = vrot.slane %v1816, 4
      %v1819 = vrot.slane %v714, 5
      %v1820 = vsel %vm1708, %v1818, %v1819
      %s1821 = scalar_lea.vmem %s2, 4
      %v1822 = vld [vmem:[%s1821] sm:$0x3]
      %v1823 = vunpack.c.l.b16 %v1712
      %v1824 = vunpack.c.l.b16 %v1715
      %v1825 = vunpack.c.l.b16 %v1719
      %v1826 = vunpack.c.l.b16 %v1722
      %v1827 = vunpack.c.l.b16 %v1726
      %v1828 = vunpack.c.l.b16 %v1729
      %v1829 = vunpack.c.l.b16 %v1733
      %v1830 = vunpack.c.l.b16 %v1736
      %v1831 = vunpack.c.l.b16 %v1740
      %v1832 = vunpack.c.l.b16 %v1743
      %v1833 = vunpack.c.l.b16 %v1747
      %v1834 = vunpack.c.l.b16 %v1750
      %v1835 = vunpack.c.l.b16 %v1754
      %v1836 = vunpack.c.l.b16 %v1757
      %v1837 = vunpack.c.l.b16 %v1761
      %v1838 = vunpack.c.l.b16 %v1764
      %v1839 = vunpack.c.l.b16 %v1768
      %v1840 = vunpack.c.l.b16 %v1771
      %v1841 = vunpack.c.l.b16 %v1775
      %v1842 = vunpack.c.l.b16 %v1778
      %v1843 = vunpack.c.l.b16 %v1782
      %v1844 = vunpack.c.l.b16 %v1785
      %v1845 = vunpack.c.l.b16 %v1789
      %v1846 = vunpack.c.l.b16 %v1792
      %v1847 = vunpack.c.l.b16 %v1796
      %v1848 = vunpack.c.l.b16 %v1799
      %v1849 = vunpack.c.l.b16 %v1803
      %v1850 = vunpack.c.l.b16 %v1806
      %v1851 = vunpack.c.l.b16 %v1810
      %v1852 = vunpack.c.l.b16 %v1813
      %v1853 = vunpack.c.l.b16 %v1817
      %v1854 = vunpack.c.l.b16 %v1820
      %v1855 = vpack.c.b16 %v1824, %v1823
      %v1856 = vpack.c.b16 %v1826, %v1825
      %v1857 = vpack.c.b16 %v1828, %v1827
      %v1858 = vpack.c.b16 %v1830, %v1829
      %v1859 = vpack.c.b16 %v1832, %v1831
      %v1860 = vpack.c.b16 %v1834, %v1833
      %v1861 = vpack.c.b16 %v1836, %v1835
      %v1862 = vpack.c.b16 %v1838, %v1837
      %v1863 = vpack.c.b16 %v1840, %v1839
      %v1864 = vpack.c.b16 %v1842, %v1841
      %v1865 = vpack.c.b16 %v1844, %v1843
      %v1866 = vpack.c.b16 %v1846, %v1845
      %v1867 = vpack.c.b16 %v1848, %v1847
      %v1868 = vpack.c.b16 %v1850, %v1849
      %v1869 = vpack.c.b16 %v1852, %v1851
      %v1870 = vpack.c.b16 %v1854, %v1853
      %v1872 = vsel %vm1152, %v1855, 0
      %v1875 = vsel %vm1152, %v1856, 0
      %v1878 = vsel %vm1152, %v1857, 0
      %v1881 = vsel %vm1152, %v1858, 0
      %v1884 = vsel %vm1152, %v1859, 0
      %v1887 = vsel %vm1152, %v1860, 0
      %v1890 = vsel %vm1152, %v1861, 0
      %v1893 = vsel %vm1152, %v1862, 0
      %v1896 = vsel %vm1152, %v1863, 0
      %v1899 = vsel %vm1152, %v1864, 0
      %v1902 = vsel %vm1152, %v1865, 0
      %v1905 = vsel %vm1152, %v1866, 0
      %v1908 = vsel %vm1152, %v1867, 0
      %v1911 = vsel %vm1152, %v1868, 0
      %v1914 = vsel %vm1152, %v1869, 0
      %v1917 = vsel %vm1152, %v1870, 0
      %v1920 = vsel %vm1201, %v1822, 0
      %1922 = vmatprep.subr.bf16.mxu0 0
      %1923 = vmatpush1.bf16.msra.mxu0 0
      %1924 = vmatprep.subr.bf16.mxu0 0
      %1925 = vmatpush1.bf16.msra.mxu0 0
      %1926 = vmatprep.subr.bf16.mxu0 0
      %1927 = vmatpush1.bf16.msra.mxu0 0
      %1928 = vmatprep.subr.bf16.mxu0 0
      %1929 = vmatpush1.bf16.msra.mxu0 0
      %1930 = vmatprep.subr.bf16.mxu0 0
      %1931 = vmatpush1.bf16.msra.mxu0 0
      %1932 = vmatprep.subr.bf16.mxu0 0
      %1933 = vmatpush1.bf16.msra.mxu0 0
      %1934 = vmatprep.subr.bf16.mxu0 0
      %1935 = vmatpush1.bf16.msra.mxu0 0
      %1936 = vmatprep.subr.bf16.mxu0 0
      %1937 = vmatpush1.bf16.msra.mxu0 %v1920
      %1938 = vmatprep.subr.bf16.mxu0 0
      %1939 = vmatpush2.bf16.msra.mxu0 0
      %1940 = vmatprep.subr.bf16.mxu0 0
      %1941 = vmatpush2.bf16.msra.mxu0 0
      %1942 = vmatprep.subr.bf16.mxu0 0
      %1943 = vmatpush2.bf16.msra.mxu0 0
      %1944 = vmatprep.subr.bf16.mxu0 0
      %1945 = vmatpush2.bf16.msra.mxu0 0
      %1946 = vmatprep.subr.bf16.mxu0 0
      %1947 = vmatpush2.bf16.msra.mxu0 0
      %1948 = vmatprep.subr.bf16.mxu0 0
      %1949 = vmatpush2.bf16.msra.mxu0 0
      %1950 = vmatprep.subr.bf16.mxu0 0
      %1951 = vmatpush2.bf16.msra.mxu0 0
      %1952 = vmatprep.subr.bf16.mxu0 0
      %1953 = vmatpush2.bf16.msra.mxu0 0
      %1954 = vmatprep.mubr.bf16.mxu0 0
      %1955 = vmatmul.mubr.bf16.gmra.mxu0 %v1872
      %v1956 = vpop.f32.mrf.mxu0
      %v1957 = vadd.f32 0.0, %v1956
      %v1958 = vpop.f32.mrf.mxu0
      %v1959 = vpop.f32.mrf.mxu0
      %v1960 = vadd.f32 0.0, %v1959
      %v1961 = vpop.f32.mrf.mxu0
      %1962 = vmatprep.mubr.bf16.mxu0 0
      %1963 = vmatmul.mubr.bf16.gmra.mxu0 %v1875
      %v1964 = vpop.f32.mrf.mxu0
      %v1965 = vadd.f32 0.0, %v1964
      %v1966 = vpop.f32.mrf.mxu0
      %v1967 = vpop.f32.mrf.mxu0
      %v1968 = vadd.f32 0.0, %v1967
      %v1969 = vpop.f32.mrf.mxu0
      %1970 = vmatprep.mubr.bf16.mxu0 0
      %1971 = vmatmul.mubr.bf16.gmra.mxu0 %v1878
      %v1972 = vpop.f32.mrf.mxu0
      %v1973 = vadd.f32 0.0, %v1972
      %v1974 = vpop.f32.mrf.mxu0
      %v1975 = vpop.f32.mrf.mxu0
      %v1976 = vadd.f32 0.0, %v1975
      %v1977 = vpop.f32.mrf.mxu0
      %1978 = vmatprep.mubr.bf16.mxu0 0
      %1979 = vmatmul.mubr.bf16.gmra.mxu0 %v1881
      %v1980 = vpop.f32.mrf.mxu0
      %v1981 = vadd.f32 0.0, %v1980
      %v1982 = vpop.f32.mrf.mxu0
      %v1983 = vpop.f32.mrf.mxu0
      %v1984 = vadd.f32 0.0, %v1983
      %v1985 = vpop.f32.mrf.mxu0
      %1986 = vmatprep.mubr.bf16.mxu0 0
      %1987 = vmatmul.mubr.bf16.gmra.mxu0 %v1884
      %v1988 = vpop.f32.mrf.mxu0
      %v1989 = vadd.f32 0.0, %v1988
      %v1990 = vpop.f32.mrf.mxu0
      %v1991 = vpop.f32.mrf.mxu0
      %v1992 = vadd.f32 0.0, %v1991
      %v1993 = vpop.f32.mrf.mxu0
      %1994 = vmatprep.mubr.bf16.mxu0 0
      %1995 = vmatmul.mubr.bf16.gmra.mxu0 %v1887
      %v1996 = vpop.f32.mrf.mxu0
      %v1997 = vadd.f32 0.0, %v1996
      %v1998 = vpop.f32.mrf.mxu0
      %v1999 = vpop.f32.mrf.mxu0
      %v2000 = vadd.f32 0.0, %v1999
      %v2001 = vpop.f32.mrf.mxu0
      %2002 = vmatprep.mubr.bf16.mxu0 0
      %2003 = vmatmul.mubr.bf16.gmra.mxu0 %v1890
      %v2004 = vpop.f32.mrf.mxu0
      %v2005 = vadd.f32 0.0, %v2004
      %v2006 = vpop.f32.mrf.mxu0
      %v2007 = vpop.f32.mrf.mxu0
      %v2008 = vadd.f32 0.0, %v2007
      %v2009 = vpop.f32.mrf.mxu0
      %2010 = vmatprep.mubr.bf16.mxu0 0
      %2011 = vmatmul.mubr.bf16.gmra.mxu0 %v1893
      %v2012 = vpop.f32.mrf.mxu0
      %v2013 = vadd.f32 0.0, %v2012
      %v2014 = vpop.f32.mrf.mxu0
      %v2015 = vpop.f32.mrf.mxu0
      %v2016 = vadd.f32 0.0, %v2015
      %v2017 = vpop.f32.mrf.mxu0
      %2018 = vmatprep.mubr.bf16.mxu0 0
      %2019 = vmatmul.mubr.bf16.gmra.mxu0 %v1896
      %v2020 = vpop.f32.mrf.mxu0
      %v2021 = vadd.f32 0.0, %v2020
      %v2022 = vpop.f32.mrf.mxu0
      %v2023 = vpop.f32.mrf.mxu0
      %v2024 = vadd.f32 0.0, %v2023
      %v2025 = vpop.f32.mrf.mxu0
      %2026 = vmatprep.mubr.bf16.mxu0 0
      %2027 = vmatmul.mubr.bf16.gmra.mxu0 %v1899
      %v2028 = vpop.f32.mrf.mxu0
      %v2029 = vadd.f32 0.0, %v2028
      %v2030 = vpop.f32.mrf.mxu0
      %v2031 = vpop.f32.mrf.mxu0
      %v2032 = vadd.f32 0.0, %v2031
      %v2033 = vpop.f32.mrf.mxu0
      %2034 = vmatprep.mubr.bf16.mxu0 0
      %2035 = vmatmul.mubr.bf16.gmra.mxu0 %v1902
      %v2036 = vpop.f32.mrf.mxu0
      %v2037 = vadd.f32 0.0, %v2036
      %v2038 = vpop.f32.mrf.mxu0
      %v2039 = vpop.f32.mrf.mxu0
      %v2040 = vadd.f32 0.0, %v2039
      %v2041 = vpop.f32.mrf.mxu0
      %2042 = vmatprep.mubr.bf16.mxu0 0
      %2043 = vmatmul.mubr.bf16.gmra.mxu0 %v1905
      %v2044 = vpop.f32.mrf.mxu0
      %v2045 = vadd.f32 0.0, %v2044
      %v2046 = vpop.f32.mrf.mxu0
      %v2047 = vpop.f32.mrf.mxu0
      %v2048 = vadd.f32 0.0, %v2047
      %v2049 = vpop.f32.mrf.mxu0
      %2050 = vmatprep.mubr.bf16.mxu0 0
      %2051 = vmatmul.mubr.bf16.gmra.mxu0 %v1908
      %v2052 = vpop.f32.mrf.mxu0
      %v2053 = vadd.f32 0.0, %v2052
      %v2054 = vpop.f32.mrf.mxu0
      %v2055 = vpop.f32.mrf.mxu0
      %v2056 = vadd.f32 0.0, %v2055
      %v2057 = vpop.f32.mrf.mxu0
      %2058 = vmatprep.mubr.bf16.mxu0 0
      %2059 = vmatmul.mubr.bf16.gmra.mxu0 %v1911
      %v2060 = vpop.f32.mrf.mxu0
      %v2061 = vadd.f32 0.0, %v2060
      %v2062 = vpop.f32.mrf.mxu0
      %v2063 = vpop.f32.mrf.mxu0
      %v2064 = vadd.f32 0.0, %v2063
      %v2065 = vpop.f32.mrf.mxu0
      %2066 = vmatprep.mubr.bf16.mxu0 0
      %2067 = vmatmul.mubr.bf16.gmra.mxu0 %v1914
      %v2068 = vpop.f32.mrf.mxu0
      %v2069 = vadd.f32 0.0, %v2068
      %v2070 = vpop.f32.mrf.mxu0
      %v2071 = vpop.f32.mrf.mxu0
      %v2072 = vadd.f32 0.0, %v2071
      %v2073 = vpop.f32.mrf.mxu0
      %2074 = vmatprep.mubr.bf16.mxu0 0
      %2075 = vmatmul.mubr.bf16.gmra.mxu0 %v1917
      %v2076 = vpop.f32.mrf.mxu0
      %v2077 = vadd.f32 0.0, %v2076
      %v2078 = vpop.f32.mrf.mxu0
      %v2079 = vpop.f32.mrf.mxu0
      %v2080 = vadd.f32 0.0, %v2079
      %v2081 = vpop.f32.mrf.mxu0
      %2082 = vdwg.mxu0
      %v2083 = vadd.f32 %v1532, %v1957
      %v2084 = vadd.f32 %v1535, %v1960
      %v2085 = vadd.f32 %v1540, %v1965
      %v2086 = vadd.f32 %v1543, %v1968
      %v2087 = vadd.f32 %v1548, %v1973
      %v2088 = vadd.f32 %v1551, %v1976
      %v2089 = vadd.f32 %v1556, %v1981
      %v2090 = vadd.f32 %v1559, %v1984
      %v2091 = vadd.f32 %v1564, %v1989
      %v2092 = vadd.f32 %v1567, %v1992
      %v2093 = vadd.f32 %v1572, %v1997
      %v2094 = vadd.f32 %v1575, %v2000
      %v2095 = vadd.f32 %v1580, %v2005
      %v2096 = vadd.f32 %v1583, %v2008
      %v2097 = vadd.f32 %v1588, %v2013
      %v2098 = vadd.f32 %v1591, %v2016
      %v2099 = vadd.f32 %v1596, %v2021
      %v2100 = vadd.f32 %v1599, %v2024
      %v2101 = vadd.f32 %v1604, %v2029
      %v2102 = vadd.f32 %v1607, %v2032
      %v2103 = vadd.f32 %v1612, %v2037
      %v2104 = vadd.f32 %v1615, %v2040
      %v2105 = vadd.f32 %v1620, %v2045
      %v2106 = vadd.f32 %v1623, %v2048
      %v2107 = vadd.f32 %v1628, %v2053
      %v2108 = vadd.f32 %v1631, %v2056
      %v2109 = vadd.f32 %v1636, %v2061
      %v2110 = vadd.f32 %v1639, %v2064
      %v2111 = vadd.f32 %v1644, %v2069
      %v2112 = vadd.f32 %v1647, %v2072
      %v2113 = vadd.f32 %v1652, %v2077
      %v2114 = vadd.f32 %v1655, %v2080
      %s2115 = scalar_lea.vmem [#allocation2], 12
      %v2116 = vld [vmem:[%s2115] sm:$0xf]
      %v2117 = vld [vmem:[%s2115 + $0x4] sm:$0xf]
      %v2118 = vld [vmem:[%s2115 + $0xc] sm:$0xf]
      %v2119 = vld [vmem:[%s2115 + $0x10] sm:$0xf]
      %v2120 = vld [vmem:[%s2115 + $0x18] sm:$0xf]
      %v2121 = vld [vmem:[%s2115 + $0x1c] sm:$0xf]
      %v2122 = vld [vmem:[%s2115 + $0x24] sm:$0xf]
      %v2123 = vld [vmem:[%s2115 + $0x28] sm:$0xf]
      %v2124 = vld [vmem:[%s2115 + $0x30] sm:$0xf]
      %v2125 = vld [vmem:[%s2115 + $0x34] sm:$0xf]
      %v2126 = vld [vmem:[%s2115 + $0x3c] sm:$0xf]
      %v2127 = vld [vmem:[%s2115 + $0x40] sm:$0xf]
      %v2128 = vld [vmem:[%s2115 + $0x48] sm:$0xf]
      %v2129 = vld [vmem:[%s2115 + $0x4c] sm:$0xf]
      %v2130 = vld [vmem:[%s2115 + $0x54] sm:$0xf]
      %v2131 = vld [vmem:[%s2115 + $0x58] sm:$0xf]
      %v2132 = vld [vmem:[%s2115 + $0x60] sm:$0xf]
      %v2133 = vld [vmem:[%s2115 + $0x64] sm:$0xf]
      %v2134 = vld [vmem:[%s2115 + $0x6c] sm:$0xf]
      %v2135 = vld [vmem:[%s2115 + $0x70] sm:$0xf]
      %v2136 = vld [vmem:[%s2115 + $0x78] sm:$0xf]
      %v2137 = vld [vmem:[%s2115 + $0x7c] sm:$0xf]
      %v2138 = vld [vmem:[%s2115 + $0x84] sm:$0xf]
      %v2139 = vld [vmem:[%s2115 + $0x88] sm:$0xf]
      %v2140 = vld [vmem:[%s2115 + $0x90] sm:$0xf]
      %v2141 = vld [vmem:[%s2115 + $0x94] sm:$0xf]
      %v2142 = vld [vmem:[%s2115 + $0x9c] sm:$0xf]
      %v2143 = vld [vmem:[%s2115 + $0xa0] sm:$0xf]
      %v2144 = vld [vmem:[%s2115 + $0xa8] sm:$0xf]
      %v2145 = vld [vmem:[%s2115 + $0xac] sm:$0xf]
      %v2146 = vld [vmem:[%s2115 + $0xb4] sm:$0xf]
      %v2147 = vld [vmem:[%s2115 + $0xb8] sm:$0xf]
      %s2148 = scalar_lea.vmem %s2, 6
      %v2149 = vld [vmem:[%s2148] sm:$0x3]
      %v2182 = vunpack.c.l.b16 %v2116
      %v2183 = vunpack.c.l.b16 %v2117
      %v2184 = vunpack.c.l.b16 %v2118
      %v2185 = vunpack.c.l.b16 %v2119
      %v2186 = vunpack.c.l.b16 %v2120
      %v2187 = vunpack.c.l.b16 %v2121
      %v2188 = vunpack.c.l.b16 %v2122
      %v2189 = vunpack.c.l.b16 %v2123
      %v2190 = vunpack.c.l.b16 %v2124
      %v2191 = vunpack.c.l.b16 %v2125
      %v2192 = vunpack.c.l.b16 %v2126
      %v2193 = vunpack.c.l.b16 %v2127
      %v2194 = vunpack.c.l.b16 %v2128
      %v2195 = vunpack.c.l.b16 %v2129
      %v2196 = vunpack.c.l.b16 %v2130
      %v2197 = vunpack.c.l.b16 %v2131
      %v2198 = vunpack.c.l.b16 %v2132
      %v2199 = vunpack.c.l.b16 %v2133
      %v2200 = vunpack.c.l.b16 %v2134
      %v2201 = vunpack.c.l.b16 %v2135
      %v2202 = vunpack.c.l.b16 %v2136
      %v2203 = vunpack.c.l.b16 %v2137
      %v2204 = vunpack.c.l.b16 %v2138
      %v2205 = vunpack.c.l.b16 %v2139
      %v2206 = vunpack.c.l.b16 %v2140
      %v2207 = vunpack.c.l.b16 %v2141
      %v2208 = vunpack.c.l.b16 %v2142
      %v2209 = vunpack.c.l.b16 %v2143
      %v2210 = vunpack.c.l.b16 %v2144
      %v2211 = vunpack.c.l.b16 %v2145
      %v2212 = vunpack.c.l.b16 %v2146
      %v2213 = vunpack.c.l.b16 %v2147
      %v2214 = vpack.c.b16 %v2183, %v2182
      %v2215 = vpack.c.b16 %v2185, %v2184
      %v2216 = vpack.c.b16 %v2187, %v2186
      %v2217 = vpack.c.b16 %v2189, %v2188
      %v2218 = vpack.c.b16 %v2191, %v2190
      %v2219 = vpack.c.b16 %v2193, %v2192
      %v2220 = vpack.c.b16 %v2195, %v2194
      %v2221 = vpack.c.b16 %v2197, %v2196
      %v2222 = vpack.c.b16 %v2199, %v2198
      %v2223 = vpack.c.b16 %v2201, %v2200
      %v2224 = vpack.c.b16 %v2203, %v2202
      %v2225 = vpack.c.b16 %v2205, %v2204
      %v2226 = vpack.c.b16 %v2207, %v2206
      %v2227 = vpack.c.b16 %v2209, %v2208
      %v2228 = vpack.c.b16 %v2211, %v2210
      %v2229 = vpack.c.b16 %v2213, %v2212
      %v2231 = vsel %vm1152, %v2214, 0
      %v2234 = vsel %vm1152, %v2215, 0
      %v2237 = vsel %vm1152, %v2216, 0
      %v2240 = vsel %vm1152, %v2217, 0
      %v2243 = vsel %vm1152, %v2218, 0
      %v2246 = vsel %vm1152, %v2219, 0
      %v2249 = vsel %vm1152, %v2220, 0
      %v2252 = vsel %vm1152, %v2221, 0
      %v2255 = vsel %vm1152, %v2222, 0
      %v2258 = vsel %vm1152, %v2223, 0
      %v2261 = vsel %vm1152, %v2224, 0
      %v2264 = vsel %vm1152, %v2225, 0
      %v2267 = vsel %vm1152, %v2226, 0
      %v2270 = vsel %vm1152, %v2227, 0
      %v2273 = vsel %vm1152, %v2228, 0
      %v2276 = vsel %vm1152, %v2229, 0
      %v2279 = vsel %vm1201, %v2149, 0
      %2281 = vmatprep.subr.bf16.mxu0 0
      %2282 = vmatpush1.bf16.msra.mxu0 0
      %2283 = vmatprep.subr.bf16.mxu0 0
      %2284 = vmatpush1.bf16.msra.mxu0 0
      %2285 = vmatprep.subr.bf16.mxu0 0
      %2286 = vmatpush1.bf16.msra.mxu0 0
      %2287 = vmatprep.subr.bf16.mxu0 0
      %2288 = vmatpush1.bf16.msra.mxu0 0
      %2289 = vmatprep.subr.bf16.mxu0 0
      %2290 = vmatpush1.bf16.msra.mxu0 0
      %2291 = vmatprep.subr.bf16.mxu0 0
      %2292 = vmatpush1.bf16.msra.mxu0 0
      %2293 = vmatprep.subr.bf16.mxu0 0
      %2294 = vmatpush1.bf16.msra.mxu0 0
      %2295 = vmatprep.subr.bf16.mxu0 0
      %2296 = vmatpush1.bf16.msra.mxu0 %v2279
      %2297 = vmatprep.subr.bf16.mxu0 0
      %2298 = vmatpush2.bf16.msra.mxu0 0
      %2299 = vmatprep.subr.bf16.mxu0 0
      %2300 = vmatpush2.bf16.msra.mxu0 0
      %2301 = vmatprep.subr.bf16.mxu0 0
      %2302 = vmatpush2.bf16.msra.mxu0 0
      %2303 = vmatprep.subr.bf16.mxu0 0
      %2304 = vmatpush2.bf16.msra.mxu0 0
      %2305 = vmatprep.subr.bf16.mxu0 0
      %2306 = vmatpush2.bf16.msra.mxu0 0
      %2307 = vmatprep.subr.bf16.mxu0 0
      %2308 = vmatpush2.bf16.msra.mxu0 0
      %2309 = vmatprep.subr.bf16.mxu0 0
      %2310 = vmatpush2.bf16.msra.mxu0 0
      %2311 = vmatprep.subr.bf16.mxu0 0
      %2312 = vmatpush2.bf16.msra.mxu0 0
      %2313 = vmatprep.mubr.bf16.mxu0 0
      %2314 = vmatmul.mubr.bf16.gmra.mxu0 %v2231
      %v2315 = vpop.f32.mrf.mxu0
      %v2316 = vadd.f32 0.0, %v2315
      %v2317 = vpop.f32.mrf.mxu0
      %v2318 = vpop.f32.mrf.mxu0
      %v2319 = vadd.f32 0.0, %v2318
      %v2320 = vpop.f32.mrf.mxu0
      %2321 = vmatprep.mubr.bf16.mxu0 0
      %2322 = vmatmul.mubr.bf16.gmra.mxu0 %v2234
      %v2323 = vpop.f32.mrf.mxu0
      %v2324 = vadd.f32 0.0, %v2323
      %v2325 = vpop.f32.mrf.mxu0
      %v2326 = vpop.f32.mrf.mxu0
      %v2327 = vadd.f32 0.0, %v2326
      %v2328 = vpop.f32.mrf.mxu0
      %2329 = vmatprep.mubr.bf16.mxu0 0
      %2330 = vmatmul.mubr.bf16.gmra.mxu0 %v2237
      %v2331 = vpop.f32.mrf.mxu0
      %v2332 = vadd.f32 0.0, %v2331
      %v2333 = vpop.f32.mrf.mxu0
      %v2334 = vpop.f32.mrf.mxu0
      %v2335 = vadd.f32 0.0, %v2334
      %v2336 = vpop.f32.mrf.mxu0
      %2337 = vmatprep.mubr.bf16.mxu0 0
      %2338 = vmatmul.mubr.bf16.gmra.mxu0 %v2240
      %v2339 = vpop.f32.mrf.mxu0
      %v2340 = vadd.f32 0.0, %v2339
      %v2341 = vpop.f32.mrf.mxu0
      %v2342 = vpop.f32.mrf.mxu0
      %v2343 = vadd.f32 0.0, %v2342
      %v2344 = vpop.f32.mrf.mxu0
      %2345 = vmatprep.mubr.bf16.mxu0 0
      %2346 = vmatmul.mubr.bf16.gmra.mxu0 %v2243
      %v2347 = vpop.f32.mrf.mxu0
      %v2348 = vadd.f32 0.0, %v2347
      %v2349 = vpop.f32.mrf.mxu0
      %v2350 = vpop.f32.mrf.mxu0
      %v2351 = vadd.f32 0.0, %v2350
      %v2352 = vpop.f32.mrf.mxu0
      %2353 = vmatprep.mubr.bf16.mxu0 0
      %2354 = vmatmul.mubr.bf16.gmra.mxu0 %v2246
      %v2355 = vpop.f32.mrf.mxu0
      %v2356 = vadd.f32 0.0, %v2355
      %v2357 = vpop.f32.mrf.mxu0
      %v2358 = vpop.f32.mrf.mxu0
      %v2359 = vadd.f32 0.0, %v2358
      %v2360 = vpop.f32.mrf.mxu0
      %2361 = vmatprep.mubr.bf16.mxu0 0
      %2362 = vmatmul.mubr.bf16.gmra.mxu0 %v2249
      %v2363 = vpop.f32.mrf.mxu0
      %v2364 = vadd.f32 0.0, %v2363
      %v2365 = vpop.f32.mrf.mxu0
      %v2366 = vpop.f32.mrf.mxu0
      %v2367 = vadd.f32 0.0, %v2366
      %v2368 = vpop.f32.mrf.mxu0
      %2369 = vmatprep.mubr.bf16.mxu0 0
      %2370 = vmatmul.mubr.bf16.gmra.mxu0 %v2252
      %v2371 = vpop.f32.mrf.mxu0
      %v2372 = vadd.f32 0.0, %v2371
      %v2373 = vpop.f32.mrf.mxu0
      %v2374 = vpop.f32.mrf.mxu0
      %v2375 = vadd.f32 0.0, %v2374
      %v2376 = vpop.f32.mrf.mxu0
      %2377 = vmatprep.mubr.bf16.mxu0 0
      %2378 = vmatmul.mubr.bf16.gmra.mxu0 %v2255
      %v2379 = vpop.f32.mrf.mxu0
      %v2380 = vadd.f32 0.0, %v2379
      %v2381 = vpop.f32.mrf.mxu0
      %v2382 = vpop.f32.mrf.mxu0
      %v2383 = vadd.f32 0.0, %v2382
      %v2384 = vpop.f32.mrf.mxu0
      %2385 = vmatprep.mubr.bf16.mxu0 0
      %2386 = vmatmul.mubr.bf16.gmra.mxu0 %v2258
      %v2387 = vpop.f32.mrf.mxu0
      %v2388 = vadd.f32 0.0, %v2387
      %v2389 = vpop.f32.mrf.mxu0
      %v2390 = vpop.f32.mrf.mxu0
      %v2391 = vadd.f32 0.0, %v2390
      %v2392 = vpop.f32.mrf.mxu0
      %2393 = vmatprep.mubr.bf16.mxu0 0
      %2394 = vmatmul.mubr.bf16.gmra.mxu0 %v2261
      %v2395 = vpop.f32.mrf.mxu0
      %v2396 = vadd.f32 0.0, %v2395
      %v2397 = vpop.f32.mrf.mxu0
      %v2398 = vpop.f32.mrf.mxu0
      %v2399 = vadd.f32 0.0, %v2398
      %v2400 = vpop.f32.mrf.mxu0
      %2401 = vmatprep.mubr.bf16.mxu0 0
      %2402 = vmatmul.mubr.bf16.gmra.mxu0 %v2264
      %v2403 = vpop.f32.mrf.mxu0
      %v2404 = vadd.f32 0.0, %v2403
      %v2405 = vpop.f32.mrf.mxu0
      %v2406 = vpop.f32.mrf.mxu0
      %v2407 = vadd.f32 0.0, %v2406
      %v2408 = vpop.f32.mrf.mxu0
      %2409 = vmatprep.mubr.bf16.mxu0 0
      %2410 = vmatmul.mubr.bf16.gmra.mxu0 %v2267
      %v2411 = vpop.f32.mrf.mxu0
      %v2412 = vadd.f32 0.0, %v2411
      %v2413 = vpop.f32.mrf.mxu0
      %v2414 = vpop.f32.mrf.mxu0
      %v2415 = vadd.f32 0.0, %v2414
      %v2416 = vpop.f32.mrf.mxu0
      %2417 = vmatprep.mubr.bf16.mxu0 0
      %2418 = vmatmul.mubr.bf16.gmra.mxu0 %v2270
      %v2419 = vpop.f32.mrf.mxu0
      %v2420 = vadd.f32 0.0, %v2419
      %v2421 = vpop.f32.mrf.mxu0
      %v2422 = vpop.f32.mrf.mxu0
      %v2423 = vadd.f32 0.0, %v2422
      %v2424 = vpop.f32.mrf.mxu0
      %2425 = vmatprep.mubr.bf16.mxu0 0
      %2426 = vmatmul.mubr.bf16.gmra.mxu0 %v2273
      %v2427 = vpop.f32.mrf.mxu0
      %v2428 = vadd.f32 0.0, %v2427
      %v2429 = vpop.f32.mrf.mxu0
      %v2430 = vpop.f32.mrf.mxu0
      %v2431 = vadd.f32 0.0, %v2430
      %v2432 = vpop.f32.mrf.mxu0
      %2433 = vmatprep.mubr.bf16.mxu0 0
      %2434 = vmatmul.mubr.bf16.gmra.mxu0 %v2276
      %v2435 = vpop.f32.mrf.mxu0
      %v2436 = vadd.f32 0.0, %v2435
      %v2437 = vpop.f32.mrf.mxu0
      %v2438 = vpop.f32.mrf.mxu0
      %v2439 = vadd.f32 0.0, %v2438
      %v2440 = vpop.f32.mrf.mxu0
      %2441 = vdwg.mxu0
      %v2442 = vadd.f32 %v2083, %v2316
      %v2443 = vadd.f32 %v2084, %v2319
      %v2444 = vadd.f32 %v2085, %v2324
      %v2445 = vadd.f32 %v2086, %v2327
      %v2446 = vadd.f32 %v2087, %v2332
      %v2447 = vadd.f32 %v2088, %v2335
      %v2448 = vadd.f32 %v2089, %v2340
      %v2449 = vadd.f32 %v2090, %v2343
      %v2450 = vadd.f32 %v2091, %v2348
      %v2451 = vadd.f32 %v2092, %v2351
      %v2452 = vadd.f32 %v2093, %v2356
      %v2453 = vadd.f32 %v2094, %v2359
      %v2454 = vadd.f32 %v2095, %v2364
      %v2455 = vadd.f32 %v2096, %v2367
      %v2456 = vadd.f32 %v2097, %v2372
      %v2457 = vadd.f32 %v2098, %v2375
      %v2458 = vadd.f32 %v2099, %v2380
      %v2459 = vadd.f32 %v2100, %v2383
      %v2460 = vadd.f32 %v2101, %v2388
      %v2461 = vadd.f32 %v2102, %v2391
      %v2462 = vadd.f32 %v2103, %v2396
      %v2463 = vadd.f32 %v2104, %v2399
      %v2464 = vadd.f32 %v2105, %v2404
      %v2465 = vadd.f32 %v2106, %v2407
      %v2466 = vadd.f32 %v2107, %v2412
      %v2467 = vadd.f32 %v2108, %v2415
      %v2468 = vadd.f32 %v2109, %v2420
      %v2469 = vadd.f32 %v2110, %v2423
      %v2470 = vadd.f32 %v2111, %v2428
      %v2471 = vadd.f32 %v2112, %v2431
      %v2472 = vadd.f32 %v2113, %v2436
      %v2473 = vadd.f32 %v2114, %v2439
      %v2474 = vld [vmem:[%s2115] sm:$0xf]
      %v2475 = vld [vmem:[%s2115 + $0x4] sm:$0xf]
      %v2476 = vld [vmem:[%s2115 + $0x8] sm:$0x1]
      %v2477 = vld [vmem:[%s2115 + $0xc] sm:$0xf]
      %v2478 = vld [vmem:[%s2115 + $0x10] sm:$0xf]
      %v2479 = vld [vmem:[%s2115 + $0x14] sm:$0x1]
      %v2480 = vld [vmem:[%s2115 + $0x18] sm:$0xf]
      %v2481 = vld [vmem:[%s2115 + $0x1c] sm:$0xf]
      %v2482 = vld [vmem:[%s2115 + $0x20] sm:$0x1]
      %v2483 = vld [vmem:[%s2115 + $0x24] sm:$0xf]
      %v2484 = vld [vmem:[%s2115 + $0x28] sm:$0xf]
      %v2485 = vld [vmem:[%s2115 + $0x2c] sm:$0x1]
      %v2486 = vld [vmem:[%s2115 + $0x30] sm:$0xf]
      %v2487 = vld [vmem:[%s2115 + $0x34] sm:$0xf]
      %v2488 = vld [vmem:[%s2115 + $0x38] sm:$0x1]
      %v2489 = vld [vmem:[%s2115 + $0x3c] sm:$0xf]
      %v2490 = vld [vmem:[%s2115 + $0x40] sm:$0xf]
      %v2491 = vld [vmem:[%s2115 + $0x44] sm:$0x1]
      %v2492 = vld [vmem:[%s2115 + $0x48] sm:$0xf]
      %v2493 = vld [vmem:[%s2115 + $0x4c] sm:$0xf]
      %v2494 = vld [vmem:[%s2115 + $0x50] sm:$0x1]
      %v2495 = vld [vmem:[%s2115 + $0x54] sm:$0xf]
      %v2496 = vld [vmem:[%s2115 + $0x58] sm:$0xf]
      %v2497 = vld [vmem:[%s2115 + $0x5c] sm:$0x1]
      %v2498 = vld [vmem:[%s2115 + $0x60] sm:$0xf]
      %v2499 = vld [vmem:[%s2115 + $0x64] sm:$0xf]
      %v2500 = vld [vmem:[%s2115 + $0x68] sm:$0x1]
      %v2501 = vld [vmem:[%s2115 + $0x6c] sm:$0xf]
      %v2502 = vld [vmem:[%s2115 + $0x70] sm:$0xf]
      %v2503 = vld [vmem:[%s2115 + $0x74] sm:$0x1]
      %v2504 = vld [vmem:[%s2115 + $0x78] sm:$0xf]
      %v2505 = vld [vmem:[%s2115 + $0x7c] sm:$0xf]
      %v2506 = vld [vmem:[%s2115 + $0x80] sm:$0x1]
      %v2507 = vld [vmem:[%s2115 + $0x84] sm:$0xf]
      %v2508 = vld [vmem:[%s2115 + $0x88] sm:$0xf]
      %v2509 = vld [vmem:[%s2115 + $0x8c] sm:$0x1]
      %v2510 = vld [vmem:[%s2115 + $0x90] sm:$0xf]
      %v2511 = vld [vmem:[%s2115 + $0x94] sm:$0xf]
      %v2512 = vld [vmem:[%s2115 + $0x98] sm:$0x1]
      %v2513 = vld [vmem:[%s2115 + $0x9c] sm:$0xf]
      %v2514 = vld [vmem:[%s2115 + $0xa0] sm:$0xf]
      %v2515 = vld [vmem:[%s2115 + $0xa4] sm:$0x1]
      %v2516 = vld [vmem:[%s2115 + $0xa8] sm:$0xf]
      %v2517 = vld [vmem:[%s2115 + $0xac] sm:$0xf]
      %v2518 = vld [vmem:[%s2115 + $0xb0] sm:$0x1]
      %v2519 = vld [vmem:[%s2115 + $0xb4] sm:$0xf]
      %v2520 = vld [vmem:[%s2115 + $0xb8] sm:$0xf]
      %v2521 = vld [vmem:[%s2115 + $0xbc] sm:$0x1]
      %v2523 = vshrl.u32 %v2474, 16
      %v2525 = vrot.slane %v2523, 4
      %v2526 = vshll.u32 %v2474, 16
      %v2528 = vrot.slane %v2526, 5
      %v2529 = vor.u32 %v2525, %v2528
      %v2530 = vrot.slane %v2529, 4
      %v2532 = vshll.u32 %v2475, 16
      %v2534 = vrot.slane %v2532, 5
      %v2535 = vsel %vm717, %v2530, %v2534
      %v2536 = vshrl.u32 %v2475, 16
      %v2538 = vrot.slane %v2536, 4
      %v2539 = vor.u32 %v2538, %v2534
      %v2540 = vrot.slane %v2539, 4
      %v2542 = vshll.u32 %v2476, 16
      %v2544 = vrot.slane %v2542, 5
      %v2545 = vsel %vm717, %v2540, %v2544
      %v2547 = vshrl.u32 %v2477, 16
      %v2549 = vrot.slane %v2547, 4
      %v2550 = vshll.u32 %v2477, 16
      %v2552 = vrot.slane %v2550, 5
      %v2553 = vor.u32 %v2549, %v2552
      %v2554 = vrot.slane %v2553, 4
      %v2556 = vshll.u32 %v2478, 16
      %v2558 = vrot.slane %v2556, 5
      %v2559 = vsel %vm717, %v2554, %v2558
      %v2560 = vshrl.u32 %v2478, 16
      %v2562 = vrot.slane %v2560, 4
      %v2563 = vor.u32 %v2562, %v2558
      %v2564 = vrot.slane %v2563, 4
      %v2566 = vshll.u32 %v2479, 16
      %v2568 = vrot.slane %v2566, 5
      %v2569 = vsel %vm717, %v2564, %v2568
      %v2571 = vshrl.u32 %v2480, 16
      %v2573 = vrot.slane %v2571, 4
      %v2574 = vshll.u32 %v2480, 16
      %v2576 = vrot.slane %v2574, 5
      %v2577 = vor.u32 %v2573, %v2576
      %v2578 = vrot.slane %v2577, 4
      %v2580 = vshll.u32 %v2481, 16
      %v2582 = vrot.slane %v2580, 5
      %v2583 = vsel %vm717, %v2578, %v2582
      %v2584 = vshrl.u32 %v2481, 16
      %v2586 = vrot.slane %v2584, 4
      %v2587 = vor.u32 %v2586, %v2582
      %v2588 = vrot.slane %v2587, 4
      %v2590 = vshll.u32 %v2482, 16
      %v2592 = vrot.slane %v2590, 5
      %v2593 = vsel %vm717, %v2588, %v2592
      %v2595 = vshrl.u32 %v2483, 16
      %v2597 = vrot.slane %v2595, 4
      %v2598 = vshll.u32 %v2483, 16
      %v2600 = vrot.slane %v2598, 5
      %v2601 = vor.u32 %v2597, %v2600
      %v2602 = vrot.slane %v2601, 4
      %v2604 = vshll.u32 %v2484, 16
      %v2606 = vrot.slane %v2604, 5
      %v2607 = vsel %vm717, %v2602, %v2606
      %v2608 = vshrl.u32 %v2484, 16
      %v2610 = vrot.slane %v2608, 4
      %v2611 = vor.u32 %v2610, %v2606
      %v2612 = vrot.slane %v2611, 4
      %v2614 = vshll.u32 %v2485, 16
      %v2616 = vrot.slane %v2614, 5
      %v2617 = vsel %vm717, %v2612, %v2616
      %v2619 = vshrl.u32 %v2486, 16
      %v2621 = vrot.slane %v2619, 4
      %v2622 = vshll.u32 %v2486, 16
      %v2624 = vrot.slane %v2622, 5
      %v2625 = vor.u32 %v2621, %v2624
      %v2626 = vrot.slane %v2625, 4
      %v2628 = vshll.u32 %v2487, 16
      %v2630 = vrot.slane %v2628, 5
      %v2631 = vsel %vm717, %v2626, %v2630
      %v2632 = vshrl.u32 %v2487, 16
      %v2634 = vrot.slane %v2632, 4
      %v2635 = vor.u32 %v2634, %v2630
      %v2636 = vrot.slane %v2635, 4
      %v2638 = vshll.u32 %v2488, 16
      %v2640 = vrot.slane %v2638, 5
      %v2641 = vsel %vm717, %v2636, %v2640
      %v2643 = vshrl.u32 %v2489, 16
      %v2645 = vrot.slane %v2643, 4
      %v2646 = vshll.u32 %v2489, 16
      %v2648 = vrot.slane %v2646, 5
      %v2649 = vor.u32 %v2645, %v2648
      %v2650 = vrot.slane %v2649, 4
      %v2652 = vshll.u32 %v2490, 16
      %v2654 = vrot.slane %v2652, 5
      %v2655 = vsel %vm717, %v2650, %v2654
      %v2656 = vshrl.u32 %v2490, 16
      %v2658 = vrot.slane %v2656, 4
      %v2659 = vor.u32 %v2658, %v2654
      %v2660 = vrot.slane %v2659, 4
      %v2662 = vshll.u32 %v2491, 16
      %v2664 = vrot.slane %v2662, 5
      %v2665 = vsel %vm717, %v2660, %v2664
      %v2667 = vshrl.u32 %v2492, 16
      %v2669 = vrot.slane %v2667, 4
      %v2670 = vshll.u32 %v2492, 16
      %v2672 = vrot.slane %v2670, 5
      %v2673 = vor.u32 %v2669, %v2672
      %v2674 = vrot.slane %v2673, 4
      %v2676 = vshll.u32 %v2493, 16
      %v2678 = vrot.slane %v2676, 5
      %v2679 = vsel %vm717, %v2674, %v2678
      %v2680 = vshrl.u32 %v2493, 16
      %v2682 = vrot.slane %v2680, 4
      %v2683 = vor.u32 %v2682, %v2678
      %v2684 = vrot.slane %v2683, 4
      %v2686 = vshll.u32 %v2494, 16
      %v2688 = vrot.slane %v2686, 5
      %v2689 = vsel %vm717, %v2684, %v2688
      %v2691 = vshrl.u32 %v2495, 16
      %v2693 = vrot.slane %v2691, 4
      %v2694 = vshll.u32 %v2495, 16
      %v2696 = vrot.slane %v2694, 5
      %v2697 = vor.u32 %v2693, %v2696
      %v2698 = vrot.slane %v2697, 4
      %v2700 = vshll.u32 %v2496, 16
      %v2702 = vrot.slane %v2700, 5
      %v2703 = vsel %vm717, %v2698, %v2702
      %v2704 = vshrl.u32 %v2496, 16
      %v2706 = vrot.slane %v2704, 4
      %v2707 = vor.u32 %v2706, %v2702
      %v2708 = vrot.slane %v2707, 4
      %v2710 = vshll.u32 %v2497, 16
      %v2712 = vrot.slane %v2710, 5
      %v2713 = vsel %vm717, %v2708, %v2712
      %v2715 = vshrl.u32 %v2498, 16
      %v2717 = vrot.slane %v2715, 4
      %v2718 = vshll.u32 %v2498, 16
      %v2720 = vrot.slane %v2718, 5
      %v2721 = vor.u32 %v2717, %v2720
      %v2722 = vrot.slane %v2721, 4
      %v2724 = vshll.u32 %v2499, 16
      %v2726 = vrot.slane %v2724, 5
      %v2727 = vsel %vm717, %v2722, %v2726
      %v2728 = vshrl.u32 %v2499, 16
      %v2730 = vrot.slane %v2728, 4
      %v2731 = vor.u32 %v2730, %v2726
      %v2732 = vrot.slane %v2731, 4
      %v2734 = vshll.u32 %v2500, 16
      %v2736 = vrot.slane %v2734, 5
      %v2737 = vsel %vm717, %v2732, %v2736
      %v2739 = vshrl.u32 %v2501, 16
      %v2741 = vrot.slane %v2739, 4
      %v2742 = vshll.u32 %v2501, 16
      %v2744 = vrot.slane %v2742, 5
      %v2745 = vor.u32 %v2741, %v2744
      %v2746 = vrot.slane %v2745, 4
      %v2748 = vshll.u32 %v2502, 16
      %v2750 = vrot.slane %v2748, 5
      %v2751 = vsel %vm717, %v2746, %v2750
      %v2752 = vshrl.u32 %v2502, 16
      %v2754 = vrot.slane %v2752, 4
      %v2755 = vor.u32 %v2754, %v2750
      %v2756 = vrot.slane %v2755, 4
      %v2758 = vshll.u32 %v2503, 16
      %v2760 = vrot.slane %v2758, 5
      %v2761 = vsel %vm717, %v2756, %v2760
      %v2763 = vshrl.u32 %v2504, 16
      %v2765 = vrot.slane %v2763, 4
      %v2766 = vshll.u32 %v2504, 16
      %v2768 = vrot.slane %v2766, 5
      %v2769 = vor.u32 %v2765, %v2768
      %v2770 = vrot.slane %v2769, 4
      %v2772 = vshll.u32 %v2505, 16
      %v2774 = vrot.slane %v2772, 5
      %v2775 = vsel %vm717, %v2770, %v2774
      %v2776 = vshrl.u32 %v2505, 16
      %v2778 = vrot.slane %v2776, 4
      %v2779 = vor.u32 %v2778, %v2774
      %v2780 = vrot.slane %v2779, 4
      %v2782 = vshll.u32 %v2506, 16
      %v2784 = vrot.slane %v2782, 5
      %v2785 = vsel %vm717, %v2780, %v2784
      %v2787 = vshrl.u32 %v2507, 16
      %v2789 = vrot.slane %v2787, 4
      %v2790 = vshll.u32 %v2507, 16
      %v2792 = vrot.slane %v2790, 5
      %v2793 = vor.u32 %v2789, %v2792
      %v2794 = vrot.slane %v2793, 4
      %v2796 = vshll.u32 %v2508, 16
      %v2798 = vrot.slane %v2796, 5
      %v2799 = vsel %vm717, %v2794, %v2798
      %v2800 = vshrl.u32 %v2508, 16
      %v2802 = vrot.slane %v2800, 4
      %v2803 = vor.u32 %v2802, %v2798
      %v2804 = vrot.slane %v2803, 4
      %v2806 = vshll.u32 %v2509, 16
      %v2808 = vrot.slane %v2806, 5
      %v2809 = vsel %vm717, %v2804, %v2808
      %v2811 = vshrl.u32 %v2510, 16
      %v2813 = vrot.slane %v2811, 4
      %v2814 = vshll.u32 %v2510, 16
      %v2816 = vrot.slane %v2814, 5
      %v2817 = vor.u32 %v2813, %v2816
      %v2818 = vrot.slane %v2817, 4
      %v2820 = vshll.u32 %v2511, 16
      %v2822 = vrot.slane %v2820, 5
      %v2823 = vsel %vm717, %v2818, %v2822
      %v2824 = vshrl.u32 %v2511, 16
      %v2826 = vrot.slane %v2824, 4
      %v2827 = vor.u32 %v2826, %v2822
      %v2828 = vrot.slane %v2827, 4
      %v2830 = vshll.u32 %v2512, 16
      %v2832 = vrot.slane %v2830, 5
      %v2833 = vsel %vm717, %v2828, %v2832
      %v2835 = vshrl.u32 %v2513, 16
      %v2837 = vrot.slane %v2835, 4
      %v2838 = vshll.u32 %v2513, 16
      %v2840 = vrot.slane %v2838, 5
      %v2841 = vor.u32 %v2837, %v2840
      %v2842 = vrot.slane %v2841, 4
      %v2844 = vshll.u32 %v2514, 16
      %v2846 = vrot.slane %v2844, 5
      %v2847 = vsel %vm717, %v2842, %v2846
      %v2848 = vshrl.u32 %v2514, 16
      %v2850 = vrot.slane %v2848, 4
      %v2851 = vor.u32 %v2850, %v2846
      %v2852 = vrot.slane %v2851, 4
      %v2854 = vshll.u32 %v2515, 16
      %v2856 = vrot.slane %v2854, 5
      %v2857 = vsel %vm717, %v2852, %v2856
      %v2859 = vshrl.u32 %v2516, 16
      %v2861 = vrot.slane %v2859, 4
      %v2862 = vshll.u32 %v2516, 16
      %v2864 = vrot.slane %v2862, 5
      %v2865 = vor.u32 %v2861, %v2864
      %v2866 = vrot.slane %v2865, 4
      %v2868 = vshll.u32 %v2517, 16
      %v2870 = vrot.slane %v2868, 5
      %v2871 = vsel %vm717, %v2866, %v2870
      %v2872 = vshrl.u32 %v2517, 16
      %v2874 = vrot.slane %v2872, 4
      %v2875 = vor.u32 %v2874, %v2870
      %v2876 = vrot.slane %v2875, 4
      %v2878 = vshll.u32 %v2518, 16
      %v2880 = vrot.slane %v2878, 5
      %v2881 = vsel %vm717, %v2876, %v2880
      %v2883 = vshrl.u32 %v2519, 16
      %v2885 = vrot.slane %v2883, 4
      %v2886 = vshll.u32 %v2519, 16
      %v2888 = vrot.slane %v2886, 5
      %v2889 = vor.u32 %v2885, %v2888
      %v2890 = vrot.slane %v2889, 4
      %v2892 = vshll.u32 %v2520, 16
      %v2894 = vrot.slane %v2892, 5
      %v2895 = vsel %vm717, %v2890, %v2894
      %v2896 = vshrl.u32 %v2520, 16
      %v2898 = vrot.slane %v2896, 4
      %v2899 = vor.u32 %v2898, %v2894
      %v2900 = vrot.slane %v2899, 4
      %v2902 = vshll.u32 %v2521, 16
      %v2904 = vrot.slane %v2902, 5
      %v2905 = vsel %vm717, %v2900, %v2904
      %s2906 = scalar_lea.vmem %s2, 8
      %v2907 = vld [vmem:[%s2906] sm:$0x3]
      %v2908 = vunpack.c.l.b16 %v2535
      %v2909 = vunpack.c.l.b16 %v2545
      %v2910 = vunpack.c.l.b16 %v2559
      %v2911 = vunpack.c.l.b16 %v2569
      %v2912 = vunpack.c.l.b16 %v2583
      %v2913 = vunpack.c.l.b16 %v2593
      %v2914 = vunpack.c.l.b16 %v2607
      %v2915 = vunpack.c.l.b16 %v2617
      %v2916 = vunpack.c.l.b16 %v2631
      %v2917 = vunpack.c.l.b16 %v2641
      %v2918 = vunpack.c.l.b16 %v2655
      %v2919 = vunpack.c.l.b16 %v2665
      %v2920 = vunpack.c.l.b16 %v2679
      %v2921 = vunpack.c.l.b16 %v2689
      %v2922 = vunpack.c.l.b16 %v2703
      %v2923 = vunpack.c.l.b16 %v2713
      %v2924 = vunpack.c.l.b16 %v2727
      %v2925 = vunpack.c.l.b16 %v2737
      %v2926 = vunpack.c.l.b16 %v2751
      %v2927 = vunpack.c.l.b16 %v2761
      %v2928 = vunpack.c.l.b16 %v2775
      %v2929 = vunpack.c.l.b16 %v2785
      %v2930 = vunpack.c.l.b16 %v2799
      %v2931 = vunpack.c.l.b16 %v2809
      %v2932 = vunpack.c.l.b16 %v2823
      %v2933 = vunpack.c.l.b16 %v2833
      %v2934 = vunpack.c.l.b16 %v2847
      %v2935 = vunpack.c.l.b16 %v2857
      %v2936 = vunpack.c.l.b16 %v2871
      %v2937 = vunpack.c.l.b16 %v2881
      %v2938 = vunpack.c.l.b16 %v2895
      %v2939 = vunpack.c.l.b16 %v2905
      %v2940 = vpack.c.b16 %v2909, %v2908
      %v2941 = vpack.c.b16 %v2911, %v2910
      %v2942 = vpack.c.b16 %v2913, %v2912
      %v2943 = vpack.c.b16 %v2915, %v2914
      %v2944 = vpack.c.b16 %v2917, %v2916
      %v2945 = vpack.c.b16 %v2919, %v2918
      %v2946 = vpack.c.b16 %v2921, %v2920
      %v2947 = vpack.c.b16 %v2923, %v2922
      %v2948 = vpack.c.b16 %v2925, %v2924
      %v2949 = vpack.c.b16 %v2927, %v2926
      %v2950 = vpack.c.b16 %v2929, %v2928
      %v2951 = vpack.c.b16 %v2931, %v2930
      %v2952 = vpack.c.b16 %v2933, %v2932
      %v2953 = vpack.c.b16 %v2935, %v2934
      %v2954 = vpack.c.b16 %v2937, %v2936
      %v2955 = vpack.c.b16 %v2939, %v2938
      %v2957 = vsel %vm1152, %v2940, 0
      %v2960 = vsel %vm1152, %v2941, 0
      %v2963 = vsel %vm1152, %v2942, 0
      %v2966 = vsel %vm1152, %v2943, 0
      %v2969 = vsel %vm1152, %v2944, 0
      %v2972 = vsel %vm1152, %v2945, 0
      %v2975 = vsel %vm1152, %v2946, 0
      %v2978 = vsel %vm1152, %v2947, 0
      %v2981 = vsel %vm1152, %v2948, 0
      %v2984 = vsel %vm1152, %v2949, 0
      %v2987 = vsel %vm1152, %v2950, 0
      %v2990 = vsel %vm1152, %v2951, 0
      %v2993 = vsel %vm1152, %v2952, 0
      %v2996 = vsel %vm1152, %v2953, 0
      %v2999 = vsel %vm1152, %v2954, 0
      %v3002 = vsel %vm1152, %v2955, 0
      %v3005 = vsel %vm1201, %v2907, 0
      %3007 = vmatprep.subr.bf16.mxu0 0
      %3008 = vmatpush1.bf16.msra.mxu0 0
      %3009 = vmatprep.subr.bf16.mxu0 0
      %3010 = vmatpush1.bf16.msra.mxu0 0
      %3011 = vmatprep.subr.bf16.mxu0 0
      %3012 = vmatpush1.bf16.msra.mxu0 0
      %3013 = vmatprep.subr.bf16.mxu0 0
      %3014 = vmatpush1.bf16.msra.mxu0 0
      %3015 = vmatprep.subr.bf16.mxu0 0
      %3016 = vmatpush1.bf16.msra.mxu0 0
      %3017 = vmatprep.subr.bf16.mxu0 0
      %3018 = vmatpush1.bf16.msra.mxu0 0
      %3019 = vmatprep.subr.bf16.mxu0 0
      %3020 = vmatpush1.bf16.msra.mxu0 0
      %3021 = vmatprep.subr.bf16.mxu0 0
      %3022 = vmatpush1.bf16.msra.mxu0 %v3005
      %3023 = vmatprep.subr.bf16.mxu0 0
      %3024 = vmatpush2.bf16.msra.mxu0 0
      %3025 = vmatprep.subr.bf16.mxu0 0
      %3026 = vmatpush2.bf16.msra.mxu0 0
      %3027 = vmatprep.subr.bf16.mxu0 0
      %3028 = vmatpush2.bf16.msra.mxu0 0
      %3029 = vmatprep.subr.bf16.mxu0 0
      %3030 = vmatpush2.bf16.msra.mxu0 0
      %3031 = vmatprep.subr.bf16.mxu0 0
      %3032 = vmatpush2.bf16.msra.mxu0 0
      %3033 = vmatprep.subr.bf16.mxu0 0
      %3034 = vmatpush2.bf16.msra.mxu0 0
      %3035 = vmatprep.subr.bf16.mxu0 0
      %3036 = vmatpush2.bf16.msra.mxu0 0
      %3037 = vmatprep.subr.bf16.mxu0 0
      %3038 = vmatpush2.bf16.msra.mxu0 0
      %3039 = vmatprep.mubr.bf16.mxu0 0
      %3040 = vmatmul.mubr.bf16.gmra.mxu0 %v2957
      %v3041 = vpop.f32.mrf.mxu0
      %v3042 = vadd.f32 0.0, %v3041
      %v3043 = vpop.f32.mrf.mxu0
      %v3044 = vpop.f32.mrf.mxu0
      %v3045 = vadd.f32 0.0, %v3044
      %v3046 = vpop.f32.mrf.mxu0
      %3047 = vmatprep.mubr.bf16.mxu0 0
      %3048 = vmatmul.mubr.bf16.gmra.mxu0 %v2960
      %v3049 = vpop.f32.mrf.mxu0
      %v3050 = vadd.f32 0.0, %v3049
      %v3051 = vpop.f32.mrf.mxu0
      %v3052 = vpop.f32.mrf.mxu0
      %v3053 = vadd.f32 0.0, %v3052
      %v3054 = vpop.f32.mrf.mxu0
      %3055 = vmatprep.mubr.bf16.mxu0 0
      %3056 = vmatmul.mubr.bf16.gmra.mxu0 %v2963
      %v3057 = vpop.f32.mrf.mxu0
      %v3058 = vadd.f32 0.0, %v3057
      %v3059 = vpop.f32.mrf.mxu0
      %v3060 = vpop.f32.mrf.mxu0
      %v3061 = vadd.f32 0.0, %v3060
      %v3062 = vpop.f32.mrf.mxu0
      %3063 = vmatprep.mubr.bf16.mxu0 0
      %3064 = vmatmul.mubr.bf16.gmra.mxu0 %v2966
      %v3065 = vpop.f32.mrf.mxu0
      %v3066 = vadd.f32 0.0, %v3065
      %v3067 = vpop.f32.mrf.mxu0
      %v3068 = vpop.f32.mrf.mxu0
      %v3069 = vadd.f32 0.0, %v3068
      %v3070 = vpop.f32.mrf.mxu0
      %3071 = vmatprep.mubr.bf16.mxu0 0
      %3072 = vmatmul.mubr.bf16.gmra.mxu0 %v2969
      %v3073 = vpop.f32.mrf.mxu0
      %v3074 = vadd.f32 0.0, %v3073
      %v3075 = vpop.f32.mrf.mxu0
      %v3076 = vpop.f32.mrf.mxu0
      %v3077 = vadd.f32 0.0, %v3076
      %v3078 = vpop.f32.mrf.mxu0
      %3079 = vmatprep.mubr.bf16.mxu0 0
      %3080 = vmatmul.mubr.bf16.gmra.mxu0 %v2972
      %v3081 = vpop.f32.mrf.mxu0
      %v3082 = vadd.f32 0.0, %v3081
      %v3083 = vpop.f32.mrf.mxu0
      %v3084 = vpop.f32.mrf.mxu0
      %v3085 = vadd.f32 0.0, %v3084
      %v3086 = vpop.f32.mrf.mxu0
      %3087 = vmatprep.mubr.bf16.mxu0 0
      %3088 = vmatmul.mubr.bf16.gmra.mxu0 %v2975
      %v3089 = vpop.f32.mrf.mxu0
      %v3090 = vadd.f32 0.0, %v3089
      %v3091 = vpop.f32.mrf.mxu0
      %v3092 = vpop.f32.mrf.mxu0
      %v3093 = vadd.f32 0.0, %v3092
      %v3094 = vpop.f32.mrf.mxu0
      %3095 = vmatprep.mubr.bf16.mxu0 0
      %3096 = vmatmul.mubr.bf16.gmra.mxu0 %v2978
      %v3097 = vpop.f32.mrf.mxu0
      %v3098 = vadd.f32 0.0, %v3097
      %v3099 = vpop.f32.mrf.mxu0
      %v3100 = vpop.f32.mrf.mxu0
      %v3101 = vadd.f32 0.0, %v3100
      %v3102 = vpop.f32.mrf.mxu0
      %3103 = vmatprep.mubr.bf16.mxu0 0
      %3104 = vmatmul.mubr.bf16.gmra.mxu0 %v2981
      %v3105 = vpop.f32.mrf.mxu0
      %v3106 = vadd.f32 0.0, %v3105
      %v3107 = vpop.f32.mrf.mxu0
      %v3108 = vpop.f32.mrf.mxu0
      %v3109 = vadd.f32 0.0, %v3108
      %v3110 = vpop.f32.mrf.mxu0
      %3111 = vmatprep.mubr.bf16.mxu0 0
      %3112 = vmatmul.mubr.bf16.gmra.mxu0 %v2984
      %v3113 = vpop.f32.mrf.mxu0
      %v3114 = vadd.f32 0.0, %v3113
      %v3115 = vpop.f32.mrf.mxu0
      %v3116 = vpop.f32.mrf.mxu0
      %v3117 = vadd.f32 0.0, %v3116
      %v3118 = vpop.f32.mrf.mxu0
      %3119 = vmatprep.mubr.bf16.mxu0 0
      %3120 = vmatmul.mubr.bf16.gmra.mxu0 %v2987
      %v3121 = vpop.f32.mrf.mxu0
      %v3122 = vadd.f32 0.0, %v3121
      %v3123 = vpop.f32.mrf.mxu0
      %v3124 = vpop.f32.mrf.mxu0
      %v3125 = vadd.f32 0.0, %v3124
      %v3126 = vpop.f32.mrf.mxu0
      %3127 = vmatprep.mubr.bf16.mxu0 0
      %3128 = vmatmul.mubr.bf16.gmra.mxu0 %v2990
      %v3129 = vpop.f32.mrf.mxu0
      %v3130 = vadd.f32 0.0, %v3129
      %v3131 = vpop.f32.mrf.mxu0
      %v3132 = vpop.f32.mrf.mxu0
      %v3133 = vadd.f32 0.0, %v3132
      %v3134 = vpop.f32.mrf.mxu0
      %3135 = vmatprep.mubr.bf16.mxu0 0
      %3136 = vmatmul.mubr.bf16.gmra.mxu0 %v2993
      %v3137 = vpop.f32.mrf.mxu0
      %v3138 = vadd.f32 0.0, %v3137
      %v3139 = vpop.f32.mrf.mxu0
      %v3140 = vpop.f32.mrf.mxu0
      %v3141 = vadd.f32 0.0, %v3140
      %v3142 = vpop.f32.mrf.mxu0
      %3143 = vmatprep.mubr.bf16.mxu0 0
      %3144 = vmatmul.mubr.bf16.gmra.mxu0 %v2996
      %v3145 = vpop.f32.mrf.mxu0
      %v3146 = vadd.f32 0.0, %v3145
      %v3147 = vpop.f32.mrf.mxu0
      %v3148 = vpop.f32.mrf.mxu0
      %v3149 = vadd.f32 0.0, %v3148
      %v3150 = vpop.f32.mrf.mxu0
      %3151 = vmatprep.mubr.bf16.mxu0 0
      %3152 = vmatmul.mubr.bf16.gmra.mxu0 %v2999
      %v3153 = vpop.f32.mrf.mxu0
      %v3154 = vadd.f32 0.0, %v3153
      %v3155 = vpop.f32.mrf.mxu0
      %v3156 = vpop.f32.mrf.mxu0
      %v3157 = vadd.f32 0.0, %v3156
      %v3158 = vpop.f32.mrf.mxu0
      %3159 = vmatprep.mubr.bf16.mxu0 0
      %3160 = vmatmul.mubr.bf16.gmra.mxu0 %v3002
      %v3161 = vpop.f32.mrf.mxu0
      %v3162 = vadd.f32 0.0, %v3161
      %v3163 = vpop.f32.mrf.mxu0
      %v3164 = vpop.f32.mrf.mxu0
      %v3165 = vadd.f32 0.0, %v3164
      %v3166 = vpop.f32.mrf.mxu0
      %3167 = vdwg.mxu0
      %v3168 = vadd.f32 %v2442, %v3042
      %v3169 = vadd.f32 %v2443, %v3045
      %v3170 = vadd.f32 %v2444, %v3050
      %v3171 = vadd.f32 %v2445, %v3053
      %v3172 = vadd.f32 %v2446, %v3058
      %v3173 = vadd.f32 %v2447, %v3061
      %v3174 = vadd.f32 %v2448, %v3066
      %v3175 = vadd.f32 %v2449, %v3069
      %v3176 = vadd.f32 %v2450, %v3074
      %v3177 = vadd.f32 %v2451, %v3077
      %v3178 = vadd.f32 %v2452, %v3082
      %v3179 = vadd.f32 %v2453, %v3085
      %v3180 = vadd.f32 %v2454, %v3090
      %v3181 = vadd.f32 %v2455, %v3093
      %v3182 = vadd.f32 %v2456, %v3098
      %v3183 = vadd.f32 %v2457, %v3101
      %v3184 = vadd.f32 %v2458, %v3106
      %v3185 = vadd.f32 %v2459, %v3109
      %v3186 = vadd.f32 %v2460, %v3114
      %v3187 = vadd.f32 %v2461, %v3117
      %v3188 = vadd.f32 %v2462, %v3122
      %v3189 = vadd.f32 %v2463, %v3125
      %v3190 = vadd.f32 %v2464, %v3130
      %v3191 = vadd.f32 %v2465, %v3133
      %v3192 = vadd.f32 %v2466, %v3138
      %v3193 = vadd.f32 %v2467, %v3141
      %v3194 = vadd.f32 %v2468, %v3146
      %v3195 = vadd.f32 %v2469, %v3149
      %v3196 = vadd.f32 %v2470, %v3154
      %v3197 = vadd.f32 %v2471, %v3157
      %v3198 = vadd.f32 %v2472, %v3162
      %v3199 = vadd.f32 %v2473, %v3165
      %v3200 = vld [vmem:[%s2115] sm:$0xe]
      %v3201 = vld [vmem:[%s2115 + $0xc] sm:$0xe]
      %v3202 = vld [vmem:[%s2115 + $0x18] sm:$0xe]
      %v3203 = vld [vmem:[%s2115 + $0x24] sm:$0xe]
      %v3204 = vld [vmem:[%s2115 + $0x30] sm:$0xe]
      %v3205 = vld [vmem:[%s2115 + $0x3c] sm:$0xe]
      %v3206 = vld [vmem:[%s2115 + $0x48] sm:$0xe]
      %v3207 = vld [vmem:[%s2115 + $0x54] sm:$0xe]
      %v3208 = vld [vmem:[%s2115 + $0x60] sm:$0xe]
      %v3209 = vld [vmem:[%s2115 + $0x6c] sm:$0xe]
      %v3210 = vld [vmem:[%s2115 + $0x78] sm:$0xe]
      %v3211 = vld [vmem:[%s2115 + $0x84] sm:$0xe]
      %v3212 = vld [vmem:[%s2115 + $0x90] sm:$0xe]
      %v3213 = vld [vmem:[%s2115 + $0x9c] sm:$0xe]
      %v3214 = vld [vmem:[%s2115 + $0xa8] sm:$0xe]
      %v3215 = vld [vmem:[%s2115 + $0xb4] sm:$0xe]
      %v3264 = vrot.slane %v3200, 5
      %v3265 = vrot.slane %v3264, 4
      %v3266 = vrot.slane %v2475, 5
      %v3267 = vsel %vm1708, %v3265, %v3266
      %v3268 = vrot.slane %v3266, 4
      %v3269 = vrot.slane %v2476, 5
      %v3270 = vsel %vm1708, %v3268, %v3269
      %v3271 = vrot.slane %v3201, 5
      %v3272 = vrot.slane %v3271, 4
      %v3273 = vrot.slane %v2478, 5
      %v3274 = vsel %vm1708, %v3272, %v3273
      %v3275 = vrot.slane %v3273, 4
      %v3276 = vrot.slane %v2479, 5
      %v3277 = vsel %vm1708, %v3275, %v3276
      %v3278 = vrot.slane %v3202, 5
      %v3279 = vrot.slane %v3278, 4
      %v3280 = vrot.slane %v2481, 5
      %v3281 = vsel %vm1708, %v3279, %v3280
      %v3282 = vrot.slane %v3280, 4
      %v3283 = vrot.slane %v2482, 5
      %v3284 = vsel %vm1708, %v3282, %v3283
      %v3285 = vrot.slane %v3203, 5
      %v3286 = vrot.slane %v3285, 4
      %v3287 = vrot.slane %v2484, 5
      %v3288 = vsel %vm1708, %v3286, %v3287
      %v3289 = vrot.slane %v3287, 4
      %v3290 = vrot.slane %v2485, 5
      %v3291 = vsel %vm1708, %v3289, %v3290
      %v3292 = vrot.slane %v3204, 5
      %v3293 = vrot.slane %v3292, 4
      %v3294 = vrot.slane %v2487, 5
      %v3295 = vsel %vm1708, %v3293, %v3294
      %v3296 = vrot.slane %v3294, 4
      %v3297 = vrot.slane %v2488, 5
      %v3298 = vsel %vm1708, %v3296, %v3297
      %v3299 = vrot.slane %v3205, 5
      %v3300 = vrot.slane %v3299, 4
      %v3301 = vrot.slane %v2490, 5
      %v3302 = vsel %vm1708, %v3300, %v3301
      %v3303 = vrot.slane %v3301, 4
      %v3304 = vrot.slane %v2491, 5
      %v3305 = vsel %vm1708, %v3303, %v3304
      %v3306 = vrot.slane %v3206, 5
      %v3307 = vrot.slane %v3306, 4
      %v3308 = vrot.slane %v2493, 5
      %v3309 = vsel %vm1708, %v3307, %v3308
      %v3310 = vrot.slane %v3308, 4
      %v3311 = vrot.slane %v2494, 5
      %v3312 = vsel %vm1708, %v3310, %v3311
      %v3313 = vrot.slane %v3207, 5
      %v3314 = vrot.slane %v3313, 4
      %v3315 = vrot.slane %v2496, 5
      %v3316 = vsel %vm1708, %v3314, %v3315
      %v3317 = vrot.slane %v3315, 4
      %v3318 = vrot.slane %v2497, 5
      %v3319 = vsel %vm1708, %v3317, %v3318
      %v3320 = vrot.slane %v3208, 5
      %v3321 = vrot.slane %v3320, 4
      %v3322 = vrot.slane %v2499, 5
      %v3323 = vsel %vm1708, %v3321, %v3322
      %v3324 = vrot.slane %v3322, 4
      %v3325 = vrot.slane %v2500, 5
      %v3326 = vsel %vm1708, %v3324, %v3325
      %v3327 = vrot.slane %v3209, 5
      %v3328 = vrot.slane %v3327, 4
      %v3329 = vrot.slane %v2502, 5
      %v3330 = vsel %vm1708, %v3328, %v3329
      %v3331 = vrot.slane %v3329, 4
      %v3332 = vrot.slane %v2503, 5
      %v3333 = vsel %vm1708, %v3331, %v3332
      %v3334 = vrot.slane %v3210, 5
      %v3335 = vrot.slane %v3334, 4
      %v3336 = vrot.slane %v2505, 5
      %v3337 = vsel %vm1708, %v3335, %v3336
      %v3338 = vrot.slane %v3336, 4
      %v3339 = vrot.slane %v2506, 5
      %v3340 = vsel %vm1708, %v3338, %v3339
      %v3341 = vrot.slane %v3211, 5
      %v3342 = vrot.slane %v3341, 4
      %v3343 = vrot.slane %v2508, 5
      %v3344 = vsel %vm1708, %v3342, %v3343
      %v3345 = vrot.slane %v3343, 4
      %v3346 = vrot.slane %v2509, 5
      %v3347 = vsel %vm1708, %v3345, %v3346
      %v3348 = vrot.slane %v3212, 5
      %v3349 = vrot.slane %v3348, 4
      %v3350 = vrot.slane %v2511, 5
      %v3351 = vsel %vm1708, %v3349, %v3350
      %v3352 = vrot.slane %v3350, 4
      %v3353 = vrot.slane %v2512, 5
      %v3354 = vsel %vm1708, %v3352, %v3353
      %v3355 = vrot.slane %v3213, 5
      %v3356 = vrot.slane %v3355, 4
      %v3357 = vrot.slane %v2514, 5
      %v3358 = vsel %vm1708, %v3356, %v3357
      %v3359 = vrot.slane %v3357, 4
      %v3360 = vrot.slane %v2515, 5
      %v3361 = vsel %vm1708, %v3359, %v3360
      %v3362 = vrot.slane %v3214, 5
      %v3363 = vrot.slane %v3362, 4
      %v3364 = vrot.slane %v2517, 5
      %v3365 = vsel %vm1708, %v3363, %v3364
      %v3366 = vrot.slane %v3364, 4
      %v3367 = vrot.slane %v2518, 5
      %v3368 = vsel %vm1708, %v3366, %v3367
      %v3369 = vrot.slane %v3215, 5
      %v3370 = vrot.slane %v3369, 4
      %v3371 = vrot.slane %v2520, 5
      %v3372 = vsel %vm1708, %v3370, %v3371
      %v3373 = vrot.slane %v3371, 4
      %v3374 = vrot.slane %v2521, 5
      %v3375 = vsel %vm1708, %v3373, %v3374
      %s3376 = scalar_lea.vmem %s2, 10
      %v3377 = vld [vmem:[%s3376] sm:$0x3]
      %v3378 = vunpack.c.l.b16 %v3267
      %v3379 = vunpack.c.l.b16 %v3270
      %v3380 = vunpack.c.l.b16 %v3274
      %v3381 = vunpack.c.l.b16 %v3277
      %v3382 = vunpack.c.l.b16 %v3281
      %v3383 = vunpack.c.l.b16 %v3284
      %v3384 = vunpack.c.l.b16 %v3288
      %v3385 = vunpack.c.l.b16 %v3291
      %v3386 = vunpack.c.l.b16 %v3295
      %v3387 = vunpack.c.l.b16 %v3298
      %v3388 = vunpack.c.l.b16 %v3302
      %v3389 = vunpack.c.l.b16 %v3305
      %v3390 = vunpack.c.l.b16 %v3309
      %v3391 = vunpack.c.l.b16 %v3312
      %v3392 = vunpack.c.l.b16 %v3316
      %v3393 = vunpack.c.l.b16 %v3319
      %v3394 = vunpack.c.l.b16 %v3323
      %v3395 = vunpack.c.l.b16 %v3326
      %v3396 = vunpack.c.l.b16 %v3330
      %v3397 = vunpack.c.l.b16 %v3333
      %v3398 = vunpack.c.l.b16 %v3337
      %v3399 = vunpack.c.l.b16 %v3340
      %v3400 = vunpack.c.l.b16 %v3344
      %v3401 = vunpack.c.l.b16 %v3347
      %v3402 = vunpack.c.l.b16 %v3351
      %v3403 = vunpack.c.l.b16 %v3354
      %v3404 = vunpack.c.l.b16 %v3358
      %v3405 = vunpack.c.l.b16 %v3361
      %v3406 = vunpack.c.l.b16 %v3365
      %v3407 = vunpack.c.l.b16 %v3368
      %v3408 = vunpack.c.l.b16 %v3372
      %v3409 = vunpack.c.l.b16 %v3375
      %v3410 = vpack.c.b16 %v3379, %v3378
      %v3411 = vpack.c.b16 %v3381, %v3380
      %v3412 = vpack.c.b16 %v3383, %v3382
      %v3413 = vpack.c.b16 %v3385, %v3384
      %v3414 = vpack.c.b16 %v3387, %v3386
      %v3415 = vpack.c.b16 %v3389, %v3388
      %v3416 = vpack.c.b16 %v3391, %v3390
      %v3417 = vpack.c.b16 %v3393, %v3392
      %v3418 = vpack.c.b16 %v3395, %v3394
      %v3419 = vpack.c.b16 %v3397, %v3396
      %v3420 = vpack.c.b16 %v3399, %v3398
      %v3421 = vpack.c.b16 %v3401, %v3400
      %v3422 = vpack.c.b16 %v3403, %v3402
      %v3423 = vpack.c.b16 %v3405, %v3404
      %v3424 = vpack.c.b16 %v3407, %v3406
      %v3425 = vpack.c.b16 %v3409, %v3408
      %v3427 = vsel %vm1152, %v3410, 0
      %v3430 = vsel %vm1152, %v3411, 0
      %v3433 = vsel %vm1152, %v3412, 0
      %v3436 = vsel %vm1152, %v3413, 0
      %v3439 = vsel %vm1152, %v3414, 0
      %v3442 = vsel %vm1152, %v3415, 0
      %v3445 = vsel %vm1152, %v3416, 0
      %v3448 = vsel %vm1152, %v3417, 0
      %v3451 = vsel %vm1152, %v3418, 0
      %v3454 = vsel %vm1152, %v3419, 0
      %v3457 = vsel %vm1152, %v3420, 0
      %v3460 = vsel %vm1152, %v3421, 0
      %v3463 = vsel %vm1152, %v3422, 0
      %v3466 = vsel %vm1152, %v3423, 0
      %v3469 = vsel %vm1152, %v3424, 0
      %v3472 = vsel %vm1152, %v3425, 0
      %v3475 = vsel %vm1201, %v3377, 0
      %3477 = vmatprep.subr.bf16.mxu0 0
      %3478 = vmatpush1.bf16.msra.mxu0 0
      %3479 = vmatprep.subr.bf16.mxu0 0
      %3480 = vmatpush1.bf16.msra.mxu0 0
      %3481 = vmatprep.subr.bf16.mxu0 0
      %3482 = vmatpush1.bf16.msra.mxu0 0
      %3483 = vmatprep.subr.bf16.mxu0 0
      %3484 = vmatpush1.bf16.msra.mxu0 0
      %3485 = vmatprep.subr.bf16.mxu0 0
      %3486 = vmatpush1.bf16.msra.mxu0 0
      %3487 = vmatprep.subr.bf16.mxu0 0
      %3488 = vmatpush1.bf16.msra.mxu0 0
      %3489 = vmatprep.subr.bf16.mxu0 0
      %3490 = vmatpush1.bf16.msra.mxu0 0
      %3491 = vmatprep.subr.bf16.mxu0 0
      %3492 = vmatpush1.bf16.msra.mxu0 %v3475
      %3493 = vmatprep.subr.bf16.mxu0 0
      %3494 = vmatpush2.bf16.msra.mxu0 0
      %3495 = vmatprep.subr.bf16.mxu0 0
      %3496 = vmatpush2.bf16.msra.mxu0 0
      %3497 = vmatprep.subr.bf16.mxu0 0
      %3498 = vmatpush2.bf16.msra.mxu0 0
      %3499 = vmatprep.subr.bf16.mxu0 0
      %3500 = vmatpush2.bf16.msra.mxu0 0
      %3501 = vmatprep.subr.bf16.mxu0 0
      %3502 = vmatpush2.bf16.msra.mxu0 0
      %3503 = vmatprep.subr.bf16.mxu0 0
      %3504 = vmatpush2.bf16.msra.mxu0 0
      %3505 = vmatprep.subr.bf16.mxu0 0
      %3506 = vmatpush2.bf16.msra.mxu0 0
      %3507 = vmatprep.subr.bf16.mxu0 0
      %3508 = vmatpush2.bf16.msra.mxu0 0
      %3509 = vmatprep.mubr.bf16.mxu0 0
      %3510 = vmatmul.mubr.bf16.gmra.mxu0 %v3427
      %v3511 = vpop.f32.mrf.mxu0
      %v3512 = vadd.f32 0.0, %v3511
      %v3513 = vpop.f32.mrf.mxu0
      %v3514 = vpop.f32.mrf.mxu0
      %v3515 = vadd.f32 0.0, %v3514
      %v3516 = vpop.f32.mrf.mxu0
      %3517 = vmatprep.mubr.bf16.mxu0 0
      %3518 = vmatmul.mubr.bf16.gmra.mxu0 %v3430
      %v3519 = vpop.f32.mrf.mxu0
      %v3520 = vadd.f32 0.0, %v3519
      %v3521 = vpop.f32.mrf.mxu0
      %v3522 = vpop.f32.mrf.mxu0
      %v3523 = vadd.f32 0.0, %v3522
      %v3524 = vpop.f32.mrf.mxu0
      %3525 = vmatprep.mubr.bf16.mxu0 0
      %3526 = vmatmul.mubr.bf16.gmra.mxu0 %v3433
      %v3527 = vpop.f32.mrf.mxu0
      %v3528 = vadd.f32 0.0, %v3527
      %v3529 = vpop.f32.mrf.mxu0
      %v3530 = vpop.f32.mrf.mxu0
      %v3531 = vadd.f32 0.0, %v3530
      %v3532 = vpop.f32.mrf.mxu0
      %3533 = vmatprep.mubr.bf16.mxu0 0
      %3534 = vmatmul.mubr.bf16.gmra.mxu0 %v3436
      %v3535 = vpop.f32.mrf.mxu0
      %v3536 = vadd.f32 0.0, %v3535
      %v3537 = vpop.f32.mrf.mxu0
      %v3538 = vpop.f32.mrf.mxu0
      %v3539 = vadd.f32 0.0, %v3538
      %v3540 = vpop.f32.mrf.mxu0
      %3541 = vmatprep.mubr.bf16.mxu0 0
      %3542 = vmatmul.mubr.bf16.gmra.mxu0 %v3439
      %v3543 = vpop.f32.mrf.mxu0
      %v3544 = vadd.f32 0.0, %v3543
      %v3545 = vpop.f32.mrf.mxu0
      %v3546 = vpop.f32.mrf.mxu0
      %v3547 = vadd.f32 0.0, %v3546
      %v3548 = vpop.f32.mrf.mxu0
      %3549 = vmatprep.mubr.bf16.mxu0 0
      %3550 = vmatmul.mubr.bf16.gmra.mxu0 %v3442
      %v3551 = vpop.f32.mrf.mxu0
      %v3552 = vadd.f32 0.0, %v3551
      %v3553 = vpop.f32.mrf.mxu0
      %v3554 = vpop.f32.mrf.mxu0
      %v3555 = vadd.f32 0.0, %v3554
      %v3556 = vpop.f32.mrf.mxu0
      %3557 = vmatprep.mubr.bf16.mxu0 0
      %3558 = vmatmul.mubr.bf16.gmra.mxu0 %v3445
      %v3559 = vpop.f32.mrf.mxu0
      %v3560 = vadd.f32 0.0, %v3559
      %v3561 = vpop.f32.mrf.mxu0
      %v3562 = vpop.f32.mrf.mxu0
      %v3563 = vadd.f32 0.0, %v3562
      %v3564 = vpop.f32.mrf.mxu0
      %3565 = vmatprep.mubr.bf16.mxu0 0
      %3566 = vmatmul.mubr.bf16.gmra.mxu0 %v3448
      %v3567 = vpop.f32.mrf.mxu0
      %v3568 = vadd.f32 0.0, %v3567
      %v3569 = vpop.f32.mrf.mxu0
      %v3570 = vpop.f32.mrf.mxu0
      %v3571 = vadd.f32 0.0, %v3570
      %v3572 = vpop.f32.mrf.mxu0
      %3573 = vmatprep.mubr.bf16.mxu0 0
      %3574 = vmatmul.mubr.bf16.gmra.mxu0 %v3451
      %v3575 = vpop.f32.mrf.mxu0
      %v3576 = vadd.f32 0.0, %v3575
      %v3577 = vpop.f32.mrf.mxu0
      %v3578 = vpop.f32.mrf.mxu0
      %v3579 = vadd.f32 0.0, %v3578
      %v3580 = vpop.f32.mrf.mxu0
      %3581 = vmatprep.mubr.bf16.mxu0 0
      %3582 = vmatmul.mubr.bf16.gmra.mxu0 %v3454
      %v3583 = vpop.f32.mrf.mxu0
      %v3584 = vadd.f32 0.0, %v3583
      %v3585 = vpop.f32.mrf.mxu0
      %v3586 = vpop.f32.mrf.mxu0
      %v3587 = vadd.f32 0.0, %v3586
      %v3588 = vpop.f32.mrf.mxu0
      %3589 = vmatprep.mubr.bf16.mxu0 0
      %3590 = vmatmul.mubr.bf16.gmra.mxu0 %v3457
      %v3591 = vpop.f32.mrf.mxu0
      %v3592 = vadd.f32 0.0, %v3591
      %v3593 = vpop.f32.mrf.mxu0
      %v3594 = vpop.f32.mrf.mxu0
      %v3595 = vadd.f32 0.0, %v3594
      %v3596 = vpop.f32.mrf.mxu0
      %3597 = vmatprep.mubr.bf16.mxu0 0
      %3598 = vmatmul.mubr.bf16.gmra.mxu0 %v3460
      %v3599 = vpop.f32.mrf.mxu0
      %v3600 = vadd.f32 0.0, %v3599
      %v3601 = vpop.f32.mrf.mxu0
      %v3602 = vpop.f32.mrf.mxu0
      %v3603 = vadd.f32 0.0, %v3602
      %v3604 = vpop.f32.mrf.mxu0
      %3605 = vmatprep.mubr.bf16.mxu0 0
      %3606 = vmatmul.mubr.bf16.gmra.mxu0 %v3463
      %v3607 = vpop.f32.mrf.mxu0
      %v3608 = vadd.f32 0.0, %v3607
      %v3609 = vpop.f32.mrf.mxu0
      %v3610 = vpop.f32.mrf.mxu0
      %v3611 = vadd.f32 0.0, %v3610
      %v3612 = vpop.f32.mrf.mxu0
      %3613 = vmatprep.mubr.bf16.mxu0 0
      %3614 = vmatmul.mubr.bf16.gmra.mxu0 %v3466
      %v3615 = vpop.f32.mrf.mxu0
      %v3616 = vadd.f32 0.0, %v3615
      %v3617 = vpop.f32.mrf.mxu0
      %v3618 = vpop.f32.mrf.mxu0
      %v3619 = vadd.f32 0.0, %v3618
      %v3620 = vpop.f32.mrf.mxu0
      %3621 = vmatprep.mubr.bf16.mxu0 0
      %3622 = vmatmul.mubr.bf16.gmra.mxu0 %v3469
      %v3623 = vpop.f32.mrf.mxu0
      %v3624 = vadd.f32 0.0, %v3623
      %v3625 = vpop.f32.mrf.mxu0
      %v3626 = vpop.f32.mrf.mxu0
      %v3627 = vadd.f32 0.0, %v3626
      %v3628 = vpop.f32.mrf.mxu0
      %3629 = vmatprep.mubr.bf16.mxu0 0
      %3630 = vmatmul.mubr.bf16.gmra.mxu0 %v3472
      %v3631 = vpop.f32.mrf.mxu0
      %v3632 = vadd.f32 0.0, %v3631
      %v3633 = vpop.f32.mrf.mxu0
      %v3634 = vpop.f32.mrf.mxu0
      %v3635 = vadd.f32 0.0, %v3634
      %v3636 = vpop.f32.mrf.mxu0
      %3637 = vdwg.mxu0
      %v3638 = vadd.f32 %v3168, %v3512
      %v3639 = vadd.f32 %v3169, %v3515
      %v3640 = vadd.f32 %v3170, %v3520
      %v3641 = vadd.f32 %v3171, %v3523
      %v3642 = vadd.f32 %v3172, %v3528
      %v3643 = vadd.f32 %v3173, %v3531
      %v3644 = vadd.f32 %v3174, %v3536
      %v3645 = vadd.f32 %v3175, %v3539
      %v3646 = vadd.f32 %v3176, %v3544
      %v3647 = vadd.f32 %v3177, %v3547
      %v3648 = vadd.f32 %v3178, %v3552
      %v3649 = vadd.f32 %v3179, %v3555
      %v3650 = vadd.f32 %v3180, %v3560
      %v3651 = vadd.f32 %v3181, %v3563
      %v3652 = vadd.f32 %v3182, %v3568
      %v3653 = vadd.f32 %v3183, %v3571
      %v3654 = vadd.f32 %v3184, %v3576
      %v3655 = vadd.f32 %v3185, %v3579
      %v3656 = vadd.f32 %v3186, %v3584
      %v3657 = vadd.f32 %v3187, %v3587
      %v3658 = vadd.f32 %v3188, %v3592
      %v3659 = vadd.f32 %v3189, %v3595
      %v3660 = vadd.f32 %v3190, %v3600
      %v3661 = vadd.f32 %v3191, %v3603
      %v3662 = vadd.f32 %v3192, %v3608
      %v3663 = vadd.f32 %v3193, %v3611
      %v3664 = vadd.f32 %v3194, %v3616
      %v3665 = vadd.f32 %v3195, %v3619
      %v3666 = vadd.f32 %v3196, %v3624
      %v3667 = vadd.f32 %v3197, %v3627
      %v3668 = vadd.f32 %v3198, %v3632
      %v3669 = vadd.f32 %v3199, %v3635
      %s3670 = scalar_lea.vmem [#allocation2], 24
      %v3671 = vld [vmem:[%s3670] sm:$0xf]
      %v3672 = vld [vmem:[%s3670 + $0x4] sm:$0xf]
      %v3673 = vld [vmem:[%s3670 + $0xc] sm:$0xf]
      %v3674 = vld [vmem:[%s3670 + $0x10] sm:$0xf]
      %v3675 = vld [vmem:[%s3670 + $0x18] sm:$0xf]
      %v3676 = vld [vmem:[%s3670 + $0x1c] sm:$0xf]
      %v3677 = vld [vmem:[%s3670 + $0x24] sm:$0xf]
      %v3678 = vld [vmem:[%s3670 + $0x28] sm:$0xf]
      %v3679 = vld [vmem:[%s3670 + $0x30] sm:$0xf]
      %v3680 = vld [vmem:[%s3670 + $0x34] sm:$0xf]
      %v3681 = vld [vmem:[%s3670 + $0x3c] sm:$0xf]
      %v3682 = vld [vmem:[%s3670 + $0x40] sm:$0xf]
      %v3683 = vld [vmem:[%s3670 + $0x48] sm:$0xf]
      %v3684 = vld [vmem:[%s3670 + $0x4c] sm:$0xf]
      %v3685 = vld [vmem:[%s3670 + $0x54] sm:$0xf]
      %v3686 = vld [vmem:[%s3670 + $0x58] sm:$0xf]
      %v3687 = vld [vmem:[%s3670 + $0x60] sm:$0xf]
      %v3688 = vld [vmem:[%s3670 + $0x64] sm:$0xf]
      %v3689 = vld [vmem:[%s3670 + $0x6c] sm:$0xf]
      %v3690 = vld [vmem:[%s3670 + $0x70] sm:$0xf]
      %v3691 = vld [vmem:[%s3670 + $0x78] sm:$0xf]
      %v3692 = vld [vmem:[%s3670 + $0x7c] sm:$0xf]
      %v3693 = vld [vmem:[%s3670 + $0x84] sm:$0xf]
      %v3694 = vld [vmem:[%s3670 + $0x88] sm:$0xf]
      %v3695 = vld [vmem:[%s3670 + $0x90] sm:$0xf]
      %v3696 = vld [vmem:[%s3670 + $0x94] sm:$0xf]
      %v3697 = vld [vmem:[%s3670 + $0x9c] sm:$0xf]
      %v3698 = vld [vmem:[%s3670 + $0xa0] sm:$0xf]
      %v3699 = vld [vmem:[%s3670 + $0xa8] sm:$0xf]
      %v3700 = vld [vmem:[%s3670 + $0xac] sm:$0xf]
      %v3701 = vld [vmem:[%s3670 + $0xb4] sm:$0xf]
      %v3702 = vld [vmem:[%s3670 + $0xb8] sm:$0xf]
      %s3703 = scalar_lea.vmem %s2, 12
      %v3704 = vld [vmem:[%s3703] sm:$0x3]
      %v3737 = vunpack.c.l.b16 %v3671
      %v3738 = vunpack.c.l.b16 %v3672
      %v3739 = vunpack.c.l.b16 %v3673
      %v3740 = vunpack.c.l.b16 %v3674
      %v3741 = vunpack.c.l.b16 %v3675
      %v3742 = vunpack.c.l.b16 %v3676
      %v3743 = vunpack.c.l.b16 %v3677
      %v3744 = vunpack.c.l.b16 %v3678
      %v3745 = vunpack.c.l.b16 %v3679
      %v3746 = vunpack.c.l.b16 %v3680
      %v3747 = vunpack.c.l.b16 %v3681
      %v3748 = vunpack.c.l.b16 %v3682
      %v3749 = vunpack.c.l.b16 %v3683
      %v3750 = vunpack.c.l.b16 %v3684
      %v3751 = vunpack.c.l.b16 %v3685
      %v3752 = vunpack.c.l.b16 %v3686
      %v3753 = vunpack.c.l.b16 %v3687
      %v3754 = vunpack.c.l.b16 %v3688
      %v3755 = vunpack.c.l.b16 %v3689
      %v3756 = vunpack.c.l.b16 %v3690
      %v3757 = vunpack.c.l.b16 %v3691
      %v3758 = vunpack.c.l.b16 %v3692
      %v3759 = vunpack.c.l.b16 %v3693
      %v3760 = vunpack.c.l.b16 %v3694
      %v3761 = vunpack.c.l.b16 %v3695
      %v3762 = vunpack.c.l.b16 %v3696
      %v3763 = vunpack.c.l.b16 %v3697
      %v3764 = vunpack.c.l.b16 %v3698
      %v3765 = vunpack.c.l.b16 %v3699
      %v3766 = vunpack.c.l.b16 %v3700
      %v3767 = vunpack.c.l.b16 %v3701
      %v3768 = vunpack.c.l.b16 %v3702
      %v3769 = vpack.c.b16 %v3738, %v3737
      %v3770 = vpack.c.b16 %v3740, %v3739
      %v3771 = vpack.c.b16 %v3742, %v3741
      %v3772 = vpack.c.b16 %v3744, %v3743
      %v3773 = vpack.c.b16 %v3746, %v3745
      %v3774 = vpack.c.b16 %v3748, %v3747
      %v3775 = vpack.c.b16 %v3750, %v3749
      %v3776 = vpack.c.b16 %v3752, %v3751
      %v3777 = vpack.c.b16 %v3754, %v3753
      %v3778 = vpack.c.b16 %v3756, %v3755
      %v3779 = vpack.c.b16 %v3758, %v3757
      %v3780 = vpack.c.b16 %v3760, %v3759
      %v3781 = vpack.c.b16 %v3762, %v3761
      %v3782 = vpack.c.b16 %v3764, %v3763
      %v3783 = vpack.c.b16 %v3766, %v3765
      %v3784 = vpack.c.b16 %v3768, %v3767
      %v3786 = vsel %vm1152, %v3769, 0
      %v3789 = vsel %vm1152, %v3770, 0
      %v3792 = vsel %vm1152, %v3771, 0
      %v3795 = vsel %vm1152, %v3772, 0
      %v3798 = vsel %vm1152, %v3773, 0
      %v3801 = vsel %vm1152, %v3774, 0
      %v3804 = vsel %vm1152, %v3775, 0
      %v3807 = vsel %vm1152, %v3776, 0
      %v3810 = vsel %vm1152, %v3777, 0
      %v3813 = vsel %vm1152, %v3778, 0
      %v3816 = vsel %vm1152, %v3779, 0
      %v3819 = vsel %vm1152, %v3780, 0
      %v3822 = vsel %vm1152, %v3781, 0
      %v3825 = vsel %vm1152, %v3782, 0
      %v3828 = vsel %vm1152, %v3783, 0
      %v3831 = vsel %vm1152, %v3784, 0
      %v3834 = vsel %vm1201, %v3704, 0
      %3836 = vmatprep.subr.bf16.mxu0 0
      %3837 = vmatpush1.bf16.msra.mxu0 0
      %3838 = vmatprep.subr.bf16.mxu0 0
      %3839 = vmatpush1.bf16.msra.mxu0 0
      %3840 = vmatprep.subr.bf16.mxu0 0
      %3841 = vmatpush1.bf16.msra.mxu0 0
      %3842 = vmatprep.subr.bf16.mxu0 0
      %3843 = vmatpush1.bf16.msra.mxu0 0
      %3844 = vmatprep.subr.bf16.mxu0 0
      %3845 = vmatpush1.bf16.msra.mxu0 0
      %3846 = vmatprep.subr.bf16.mxu0 0
      %3847 = vmatpush1.bf16.msra.mxu0 0
      %3848 = vmatprep.subr.bf16.mxu0 0
      %3849 = vmatpush1.bf16.msra.mxu0 0
      %3850 = vmatprep.subr.bf16.mxu0 0
      %3851 = vmatpush1.bf16.msra.mxu0 %v3834
      %3852 = vmatprep.subr.bf16.mxu0 0
      %3853 = vmatpush2.bf16.msra.mxu0 0
      %3854 = vmatprep.subr.bf16.mxu0 0
      %3855 = vmatpush2.bf16.msra.mxu0 0
      %3856 = vmatprep.subr.bf16.mxu0 0
      %3857 = vmatpush2.bf16.msra.mxu0 0
      %3858 = vmatprep.subr.bf16.mxu0 0
      %3859 = vmatpush2.bf16.msra.mxu0 0
      %3860 = vmatprep.subr.bf16.mxu0 0
      %3861 = vmatpush2.bf16.msra.mxu0 0
      %3862 = vmatprep.subr.bf16.mxu0 0
      %3863 = vmatpush2.bf16.msra.mxu0 0
      %3864 = vmatprep.subr.bf16.mxu0 0
      %3865 = vmatpush2.bf16.msra.mxu0 0
      %3866 = vmatprep.subr.bf16.mxu0 0
      %3867 = vmatpush2.bf16.msra.mxu0 0
      %3868 = vmatprep.mubr.bf16.mxu0 0
      %3869 = vmatmul.mubr.bf16.gmra.mxu0 %v3786
      %v3870 = vpop.f32.mrf.mxu0
      %v3871 = vadd.f32 0.0, %v3870
      %v3872 = vpop.f32.mrf.mxu0
      %v3873 = vpop.f32.mrf.mxu0
      %v3874 = vadd.f32 0.0, %v3873
      %v3875 = vpop.f32.mrf.mxu0
      %3876 = vmatprep.mubr.bf16.mxu0 0
      %3877 = vmatmul.mubr.bf16.gmra.mxu0 %v3789
      %v3878 = vpop.f32.mrf.mxu0
      %v3879 = vadd.f32 0.0, %v3878
      %v3880 = vpop.f32.mrf.mxu0
      %v3881 = vpop.f32.mrf.mxu0
      %v3882 = vadd.f32 0.0, %v3881
      %v3883 = vpop.f32.mrf.mxu0
      %3884 = vmatprep.mubr.bf16.mxu0 0
      %3885 = vmatmul.mubr.bf16.gmra.mxu0 %v3792
      %v3886 = vpop.f32.mrf.mxu0
      %v3887 = vadd.f32 0.0, %v3886
      %v3888 = vpop.f32.mrf.mxu0
      %v3889 = vpop.f32.mrf.mxu0
      %v3890 = vadd.f32 0.0, %v3889
      %v3891 = vpop.f32.mrf.mxu0
      %3892 = vmatprep.mubr.bf16.mxu0 0
      %3893 = vmatmul.mubr.bf16.gmra.mxu0 %v3795
      %v3894 = vpop.f32.mrf.mxu0
      %v3895 = vadd.f32 0.0, %v3894
      %v3896 = vpop.f32.mrf.mxu0
      %v3897 = vpop.f32.mrf.mxu0
      %v3898 = vadd.f32 0.0, %v3897
      %v3899 = vpop.f32.mrf.mxu0
      %3900 = vmatprep.mubr.bf16.mxu0 0
      %3901 = vmatmul.mubr.bf16.gmra.mxu0 %v3798
      %v3902 = vpop.f32.mrf.mxu0
      %v3903 = vadd.f32 0.0, %v3902
      %v3904 = vpop.f32.mrf.mxu0
      %v3905 = vpop.f32.mrf.mxu0
      %v3906 = vadd.f32 0.0, %v3905
      %v3907 = vpop.f32.mrf.mxu0
      %3908 = vmatprep.mubr.bf16.mxu0 0
      %3909 = vmatmul.mubr.bf16.gmra.mxu0 %v3801
      %v3910 = vpop.f32.mrf.mxu0
      %v3911 = vadd.f32 0.0, %v3910
      %v3912 = vpop.f32.mrf.mxu0
      %v3913 = vpop.f32.mrf.mxu0
      %v3914 = vadd.f32 0.0, %v3913
      %v3915 = vpop.f32.mrf.mxu0
      %3916 = vmatprep.mubr.bf16.mxu0 0
      %3917 = vmatmul.mubr.bf16.gmra.mxu0 %v3804
      %v3918 = vpop.f32.mrf.mxu0
      %v3919 = vadd.f32 0.0, %v3918
      %v3920 = vpop.f32.mrf.mxu0
      %v3921 = vpop.f32.mrf.mxu0
      %v3922 = vadd.f32 0.0, %v3921
      %v3923 = vpop.f32.mrf.mxu0
      %3924 = vmatprep.mubr.bf16.mxu0 0
      %3925 = vmatmul.mubr.bf16.gmra.mxu0 %v3807
      %v3926 = vpop.f32.mrf.mxu0
      %v3927 = vadd.f32 0.0, %v3926
      %v3928 = vpop.f32.mrf.mxu0
      %v3929 = vpop.f32.mrf.mxu0
      %v3930 = vadd.f32 0.0, %v3929
      %v3931 = vpop.f32.mrf.mxu0
      %3932 = vmatprep.mubr.bf16.mxu0 0
      %3933 = vmatmul.mubr.bf16.gmra.mxu0 %v3810
      %v3934 = vpop.f32.mrf.mxu0
      %v3935 = vadd.f32 0.0, %v3934
      %v3936 = vpop.f32.mrf.mxu0
      %v3937 = vpop.f32.mrf.mxu0
      %v3938 = vadd.f32 0.0, %v3937
      %v3939 = vpop.f32.mrf.mxu0
      %3940 = vmatprep.mubr.bf16.mxu0 0
      %3941 = vmatmul.mubr.bf16.gmra.mxu0 %v3813
      %v3942 = vpop.f32.mrf.mxu0
      %v3943 = vadd.f32 0.0, %v3942
      %v3944 = vpop.f32.mrf.mxu0
      %v3945 = vpop.f32.mrf.mxu0
      %v3946 = vadd.f32 0.0, %v3945
      %v3947 = vpop.f32.mrf.mxu0
      %3948 = vmatprep.mubr.bf16.mxu0 0
      %3949 = vmatmul.mubr.bf16.gmra.mxu0 %v3816
      %v3950 = vpop.f32.mrf.mxu0
      %v3951 = vadd.f32 0.0, %v3950
      %v3952 = vpop.f32.mrf.mxu0
      %v3953 = vpop.f32.mrf.mxu0
      %v3954 = vadd.f32 0.0, %v3953
      %v3955 = vpop.f32.mrf.mxu0
      %3956 = vmatprep.mubr.bf16.mxu0 0
      %3957 = vmatmul.mubr.bf16.gmra.mxu0 %v3819
      %v3958 = vpop.f32.mrf.mxu0
      %v3959 = vadd.f32 0.0, %v3958
      %v3960 = vpop.f32.mrf.mxu0
      %v3961 = vpop.f32.mrf.mxu0
      %v3962 = vadd.f32 0.0, %v3961
      %v3963 = vpop.f32.mrf.mxu0
      %3964 = vmatprep.mubr.bf16.mxu0 0
      %3965 = vmatmul.mubr.bf16.gmra.mxu0 %v3822
      %v3966 = vpop.f32.mrf.mxu0
      %v3967 = vadd.f32 0.0, %v3966
      %v3968 = vpop.f32.mrf.mxu0
      %v3969 = vpop.f32.mrf.mxu0
      %v3970 = vadd.f32 0.0, %v3969
      %v3971 = vpop.f32.mrf.mxu0
      %3972 = vmatprep.mubr.bf16.mxu0 0
      %3973 = vmatmul.mubr.bf16.gmra.mxu0 %v3825
      %v3974 = vpop.f32.mrf.mxu0
      %v3975 = vadd.f32 0.0, %v3974
      %v3976 = vpop.f32.mrf.mxu0
      %v3977 = vpop.f32.mrf.mxu0
      %v3978 = vadd.f32 0.0, %v3977
      %v3979 = vpop.f32.mrf.mxu0
      %3980 = vmatprep.mubr.bf16.mxu0 0
      %3981 = vmatmul.mubr.bf16.gmra.mxu0 %v3828
      %v3982 = vpop.f32.mrf.mxu0
      %v3983 = vadd.f32 0.0, %v3982
      %v3984 = vpop.f32.mrf.mxu0
      %v3985 = vpop.f32.mrf.mxu0
      %v3986 = vadd.f32 0.0, %v3985
      %v3987 = vpop.f32.mrf.mxu0
      %3988 = vmatprep.mubr.bf16.mxu0 0
      %3989 = vmatmul.mubr.bf16.gmra.mxu0 %v3831
      %v3990 = vpop.f32.mrf.mxu0
      %v3991 = vadd.f32 0.0, %v3990
      %v3992 = vpop.f32.mrf.mxu0
      %v3993 = vpop.f32.mrf.mxu0
      %v3994 = vadd.f32 0.0, %v3993
      %v3995 = vpop.f32.mrf.mxu0
      %3996 = vdwg.mxu0
      %v3997 = vadd.f32 %v3638, %v3871
      %v3998 = vadd.f32 %v3639, %v3874
      %v3999 = vadd.f32 %v3640, %v3879
      %v4000 = vadd.f32 %v3641, %v3882
      %v4001 = vadd.f32 %v3642, %v3887
      %v4002 = vadd.f32 %v3643, %v3890
      %v4003 = vadd.f32 %v3644, %v3895
      %v4004 = vadd.f32 %v3645, %v3898
      %v4005 = vadd.f32 %v3646, %v3903
      %v4006 = vadd.f32 %v3647, %v3906
      %v4007 = vadd.f32 %v3648, %v3911
      %v4008 = vadd.f32 %v3649, %v3914
      %v4009 = vadd.f32 %v3650, %v3919
      %v4010 = vadd.f32 %v3651, %v3922
      %v4011 = vadd.f32 %v3652, %v3927
      %v4012 = vadd.f32 %v3653, %v3930
      %v4013 = vadd.f32 %v3654, %v3935
      %v4014 = vadd.f32 %v3655, %v3938
      %v4015 = vadd.f32 %v3656, %v3943
      %v4016 = vadd.f32 %v3657, %v3946
      %v4017 = vadd.f32 %v3658, %v3951
      %v4018 = vadd.f32 %v3659, %v3954
      %v4019 = vadd.f32 %v3660, %v3959
      %v4020 = vadd.f32 %v3661, %v3962
      %v4021 = vadd.f32 %v3662, %v3967
      %v4022 = vadd.f32 %v3663, %v3970
      %v4023 = vadd.f32 %v3664, %v3975
      %v4024 = vadd.f32 %v3665, %v3978
      %v4025 = vadd.f32 %v3666, %v3983
      %v4026 = vadd.f32 %v3667, %v3986
      %v4027 = vadd.f32 %v3668, %v3991
      %v4028 = vadd.f32 %v3669, %v3994
      %v4029 = vld [vmem:[%s3670] sm:$0xf]
      %v4030 = vld [vmem:[%s3670 + $0x4] sm:$0xf]
      %v4031 = vld [vmem:[%s3670 + $0x8] sm:$0x1]
      %v4032 = vld [vmem:[%s3670 + $0xc] sm:$0xf]
      %v4033 = vld [vmem:[%s3670 + $0x10] sm:$0xf]
      %v4034 = vld [vmem:[%s3670 + $0x14] sm:$0x1]
      %v4035 = vld [vmem:[%s3670 + $0x18] sm:$0xf]
      %v4036 = vld [vmem:[%s3670 + $0x1c] sm:$0xf]
      %v4037 = vld [vmem:[%s3670 + $0x20] sm:$0x1]
      %v4038 = vld [vmem:[%s3670 + $0x24] sm:$0xf]
      %v4039 = vld [vmem:[%s3670 + $0x28] sm:$0xf]
      %v4040 = vld [vmem:[%s3670 + $0x2c] sm:$0x1]
      %v4041 = vld [vmem:[%s3670 + $0x30] sm:$0xf]
      %v4042 = vld [vmem:[%s3670 + $0x34] sm:$0xf]
      %v4043 = vld [vmem:[%s3670 + $0x38] sm:$0x1]
      %v4044 = vld [vmem:[%s3670 + $0x3c] sm:$0xf]
      %v4045 = vld [vmem:[%s3670 + $0x40] sm:$0xf]
      %v4046 = vld [vmem:[%s3670 + $0x44] sm:$0x1]
      %v4047 = vld [vmem:[%s3670 + $0x48] sm:$0xf]
      %v4048 = vld [vmem:[%s3670 + $0x4c] sm:$0xf]
      %v4049 = vld [vmem:[%s3670 + $0x50] sm:$0x1]
      %v4050 = vld [vmem:[%s3670 + $0x54] sm:$0xf]
      %v4051 = vld [vmem:[%s3670 + $0x58] sm:$0xf]
      %v4052 = vld [vmem:[%s3670 + $0x5c] sm:$0x1]
      %v4053 = vld [vmem:[%s3670 + $0x60] sm:$0xf]
      %v4054 = vld [vmem:[%s3670 + $0x64] sm:$0xf]
      %v4055 = vld [vmem:[%s3670 + $0x68] sm:$0x1]
      %v4056 = vld [vmem:[%s3670 + $0x6c] sm:$0xf]
      %v4057 = vld [vmem:[%s3670 + $0x70] sm:$0xf]
      %v4058 = vld [vmem:[%s3670 + $0x74] sm:$0x1]
      %v4059 = vld [vmem:[%s3670 + $0x78] sm:$0xf]
      %v4060 = vld [vmem:[%s3670 + $0x7c] sm:$0xf]
      %v4061 = vld [vmem:[%s3670 + $0x80] sm:$0x1]
      %v4062 = vld [vmem:[%s3670 + $0x84] sm:$0xf]
      %v4063 = vld [vmem:[%s3670 + $0x88] sm:$0xf]
      %v4064 = vld [vmem:[%s3670 + $0x8c] sm:$0x1]
      %v4065 = vld [vmem:[%s3670 + $0x90] sm:$0xf]
      %v4066 = vld [vmem:[%s3670 + $0x94] sm:$0xf]
      %v4067 = vld [vmem:[%s3670 + $0x98] sm:$0x1]
      %v4068 = vld [vmem:[%s3670 + $0x9c] sm:$0xf]
      %v4069 = vld [vmem:[%s3670 + $0xa0] sm:$0xf]
      %v4070 = vld [vmem:[%s3670 + $0xa4] sm:$0x1]
      %v4071 = vld [vmem:[%s3670 + $0xa8] sm:$0xf]
      %v4072 = vld [vmem:[%s3670 + $0xac] sm:$0xf]
      %v4073 = vld [vmem:[%s3670 + $0xb0] sm:$0x1]
      %v4074 = vld [vmem:[%s3670 + $0xb4] sm:$0xf]
      %v4075 = vld [vmem:[%s3670 + $0xb8] sm:$0xf]
      %v4076 = vld [vmem:[%s3670 + $0xbc] sm:$0x1]
      %v4078 = vshrl.u32 %v4029, 16
      %v4080 = vrot.slane %v4078, 4
      %v4081 = vshll.u32 %v4029, 16
      %v4083 = vrot.slane %v4081, 5
      %v4084 = vor.u32 %v4080, %v4083
      %v4085 = vrot.slane %v4084, 4
      %v4087 = vshll.u32 %v4030, 16
      %v4089 = vrot.slane %v4087, 5
      %v4090 = vsel %vm717, %v4085, %v4089
      %v4091 = vshrl.u32 %v4030, 16
      %v4093 = vrot.slane %v4091, 4
      %v4094 = vor.u32 %v4093, %v4089
      %v4095 = vrot.slane %v4094, 4
      %v4097 = vshll.u32 %v4031, 16
      %v4099 = vrot.slane %v4097, 5
      %v4100 = vsel %vm717, %v4095, %v4099
      %v4102 = vshrl.u32 %v4032, 16
      %v4104 = vrot.slane %v4102, 4
      %v4105 = vshll.u32 %v4032, 16
      %v4107 = vrot.slane %v4105, 5
      %v4108 = vor.u32 %v4104, %v4107
      %v4109 = vrot.slane %v4108, 4
      %v4111 = vshll.u32 %v4033, 16
      %v4113 = vrot.slane %v4111, 5
      %v4114 = vsel %vm717, %v4109, %v4113
      %v4115 = vshrl.u32 %v4033, 16
      %v4117 = vrot.slane %v4115, 4
      %v4118 = vor.u32 %v4117, %v4113
      %v4119 = vrot.slane %v4118, 4
      %v4121 = vshll.u32 %v4034, 16
      %v4123 = vrot.slane %v4121, 5
      %v4124 = vsel %vm717, %v4119, %v4123
      %v4126 = vshrl.u32 %v4035, 16
      %v4128 = vrot.slane %v4126, 4
      %v4129 = vshll.u32 %v4035, 16
      %v4131 = vrot.slane %v4129, 5
      %v4132 = vor.u32 %v4128, %v4131
      %v4133 = vrot.slane %v4132, 4
      %v4135 = vshll.u32 %v4036, 16
      %v4137 = vrot.slane %v4135, 5
      %v4138 = vsel %vm717, %v4133, %v4137
      %v4139 = vshrl.u32 %v4036, 16
      %v4141 = vrot.slane %v4139, 4
      %v4142 = vor.u32 %v4141, %v4137
      %v4143 = vrot.slane %v4142, 4
      %v4145 = vshll.u32 %v4037, 16
      %v4147 = vrot.slane %v4145, 5
      %v4148 = vsel %vm717, %v4143, %v4147
      %v4150 = vshrl.u32 %v4038, 16
      %v4152 = vrot.slane %v4150, 4
      %v4153 = vshll.u32 %v4038, 16
      %v4155 = vrot.slane %v4153, 5
      %v4156 = vor.u32 %v4152, %v4155
      %v4157 = vrot.slane %v4156, 4
      %v4159 = vshll.u32 %v4039, 16
      %v4161 = vrot.slane %v4159, 5
      %v4162 = vsel %vm717, %v4157, %v4161
      %v4163 = vshrl.u32 %v4039, 16
      %v4165 = vrot.slane %v4163, 4
      %v4166 = vor.u32 %v4165, %v4161
      %v4167 = vrot.slane %v4166, 4
      %v4169 = vshll.u32 %v4040, 16
      %v4171 = vrot.slane %v4169, 5
      %v4172 = vsel %vm717, %v4167, %v4171
      %v4174 = vshrl.u32 %v4041, 16
      %v4176 = vrot.slane %v4174, 4
      %v4177 = vshll.u32 %v4041, 16
      %v4179 = vrot.slane %v4177, 5
      %v4180 = vor.u32 %v4176, %v4179
      %v4181 = vrot.slane %v4180, 4
      %v4183 = vshll.u32 %v4042, 16
      %v4185 = vrot.slane %v4183, 5
      %v4186 = vsel %vm717, %v4181, %v4185
      %v4187 = vshrl.u32 %v4042, 16
      %v4189 = vrot.slane %v4187, 4
      %v4190 = vor.u32 %v4189, %v4185
      %v4191 = vrot.slane %v4190, 4
      %v4193 = vshll.u32 %v4043, 16
      %v4195 = vrot.slane %v4193, 5
      %v4196 = vsel %vm717, %v4191, %v4195
      %v4198 = vshrl.u32 %v4044, 16
      %v4200 = vrot.slane %v4198, 4
      %v4201 = vshll.u32 %v4044, 16
      %v4203 = vrot.slane %v4201, 5
      %v4204 = vor.u32 %v4200, %v4203
      %v4205 = vrot.slane %v4204, 4
      %v4207 = vshll.u32 %v4045, 16
      %v4209 = vrot.slane %v4207, 5
      %v4210 = vsel %vm717, %v4205, %v4209
      %v4211 = vshrl.u32 %v4045, 16
      %v4213 = vrot.slane %v4211, 4
      %v4214 = vor.u32 %v4213, %v4209
      %v4215 = vrot.slane %v4214, 4
      %v4217 = vshll.u32 %v4046, 16
      %v4219 = vrot.slane %v4217, 5
      %v4220 = vsel %vm717, %v4215, %v4219
      %v4222 = vshrl.u32 %v4047, 16
      %v4224 = vrot.slane %v4222, 4
      %v4225 = vshll.u32 %v4047, 16
      %v4227 = vrot.slane %v4225, 5
      %v4228 = vor.u32 %v4224, %v4227
      %v4229 = vrot.slane %v4228, 4
      %v4231 = vshll.u32 %v4048, 16
      %v4233 = vrot.slane %v4231, 5
      %v4234 = vsel %vm717, %v4229, %v4233
      %v4235 = vshrl.u32 %v4048, 16
      %v4237 = vrot.slane %v4235, 4
      %v4238 = vor.u32 %v4237, %v4233
      %v4239 = vrot.slane %v4238, 4
      %v4241 = vshll.u32 %v4049, 16
      %v4243 = vrot.slane %v4241, 5
      %v4244 = vsel %vm717, %v4239, %v4243
      %v4246 = vshrl.u32 %v4050, 16
      %v4248 = vrot.slane %v4246, 4
      %v4249 = vshll.u32 %v4050, 16
      %v4251 = vrot.slane %v4249, 5
      %v4252 = vor.u32 %v4248, %v4251
      %v4253 = vrot.slane %v4252, 4
      %v4255 = vshll.u32 %v4051, 16
      %v4257 = vrot.slane %v4255, 5
      %v4258 = vsel %vm717, %v4253, %v4257
      %v4259 = vshrl.u32 %v4051, 16
      %v4261 = vrot.slane %v4259, 4
      %v4262 = vor.u32 %v4261, %v4257
      %v4263 = vrot.slane %v4262, 4
      %v4265 = vshll.u32 %v4052, 16
      %v4267 = vrot.slane %v4265, 5
      %v4268 = vsel %vm717, %v4263, %v4267
      %v4270 = vshrl.u32 %v4053, 16
      %v4272 = vrot.slane %v4270, 4
      %v4273 = vshll.u32 %v4053, 16
      %v4275 = vrot.slane %v4273, 5
      %v4276 = vor.u32 %v4272, %v4275
      %v4277 = vrot.slane %v4276, 4
      %v4279 = vshll.u32 %v4054, 16
      %v4281 = vrot.slane %v4279, 5
      %v4282 = vsel %vm717, %v4277, %v4281
      %v4283 = vshrl.u32 %v4054, 16
      %v4285 = vrot.slane %v4283, 4
      %v4286 = vor.u32 %v4285, %v4281
      %v4287 = vrot.slane %v4286, 4
      %v4289 = vshll.u32 %v4055, 16
      %v4291 = vrot.slane %v4289, 5
      %v4292 = vsel %vm717, %v4287, %v4291
      %v4294 = vshrl.u32 %v4056, 16
      %v4296 = vrot.slane %v4294, 4
      %v4297 = vshll.u32 %v4056, 16
      %v4299 = vrot.slane %v4297, 5
      %v4300 = vor.u32 %v4296, %v4299
      %v4301 = vrot.slane %v4300, 4
      %v4303 = vshll.u32 %v4057, 16
      %v4305 = vrot.slane %v4303, 5
      %v4306 = vsel %vm717, %v4301, %v4305
      %v4307 = vshrl.u32 %v4057, 16
      %v4309 = vrot.slane %v4307, 4
      %v4310 = vor.u32 %v4309, %v4305
      %v4311 = vrot.slane %v4310, 4
      %v4313 = vshll.u32 %v4058, 16
      %v4315 = vrot.slane %v4313, 5
      %v4316 = vsel %vm717, %v4311, %v4315
      %v4318 = vshrl.u32 %v4059, 16
      %v4320 = vrot.slane %v4318, 4
      %v4321 = vshll.u32 %v4059, 16
      %v4323 = vrot.slane %v4321, 5
      %v4324 = vor.u32 %v4320, %v4323
      %v4325 = vrot.slane %v4324, 4
      %v4327 = vshll.u32 %v4060, 16
      %v4329 = vrot.slane %v4327, 5
      %v4330 = vsel %vm717, %v4325, %v4329
      %v4331 = vshrl.u32 %v4060, 16
      %v4333 = vrot.slane %v4331, 4
      %v4334 = vor.u32 %v4333, %v4329
      %v4335 = vrot.slane %v4334, 4
      %v4337 = vshll.u32 %v4061, 16
      %v4339 = vrot.slane %v4337, 5
      %v4340 = vsel %vm717, %v4335, %v4339
      %v4342 = vshrl.u32 %v4062, 16
      %v4344 = vrot.slane %v4342, 4
      %v4345 = vshll.u32 %v4062, 16
      %v4347 = vrot.slane %v4345, 5
      %v4348 = vor.u32 %v4344, %v4347
      %v4349 = vrot.slane %v4348, 4
      %v4351 = vshll.u32 %v4063, 16
      %v4353 = vrot.slane %v4351, 5
      %v4354 = vsel %vm717, %v4349, %v4353
      %v4355 = vshrl.u32 %v4063, 16
      %v4357 = vrot.slane %v4355, 4
      %v4358 = vor.u32 %v4357, %v4353
      %v4359 = vrot.slane %v4358, 4
      %v4361 = vshll.u32 %v4064, 16
      %v4363 = vrot.slane %v4361, 5
      %v4364 = vsel %vm717, %v4359, %v4363
      %v4366 = vshrl.u32 %v4065, 16
      %v4368 = vrot.slane %v4366, 4
      %v4369 = vshll.u32 %v4065, 16
      %v4371 = vrot.slane %v4369, 5
      %v4372 = vor.u32 %v4368, %v4371
      %v4373 = vrot.slane %v4372, 4
      %v4375 = vshll.u32 %v4066, 16
      %v4377 = vrot.slane %v4375, 5
      %v4378 = vsel %vm717, %v4373, %v4377
      %v4379 = vshrl.u32 %v4066, 16
      %v4381 = vrot.slane %v4379, 4
      %v4382 = vor.u32 %v4381, %v4377
      %v4383 = vrot.slane %v4382, 4
      %v4385 = vshll.u32 %v4067, 16
      %v4387 = vrot.slane %v4385, 5
      %v4388 = vsel %vm717, %v4383, %v4387
      %v4390 = vshrl.u32 %v4068, 16
      %v4392 = vrot.slane %v4390, 4
      %v4393 = vshll.u32 %v4068, 16
      %v4395 = vrot.slane %v4393, 5
      %v4396 = vor.u32 %v4392, %v4395
      %v4397 = vrot.slane %v4396, 4
      %v4399 = vshll.u32 %v4069, 16
      %v4401 = vrot.slane %v4399, 5
      %v4402 = vsel %vm717, %v4397, %v4401
      %v4403 = vshrl.u32 %v4069, 16
      %v4405 = vrot.slane %v4403, 4
      %v4406 = vor.u32 %v4405, %v4401
      %v4407 = vrot.slane %v4406, 4
      %v4409 = vshll.u32 %v4070, 16
      %v4411 = vrot.slane %v4409, 5
      %v4412 = vsel %vm717, %v4407, %v4411
      %v4414 = vshrl.u32 %v4071, 16
      %v4416 = vrot.slane %v4414, 4
      %v4417 = vshll.u32 %v4071, 16
      %v4419 = vrot.slane %v4417, 5
      %v4420 = vor.u32 %v4416, %v4419
      %v4421 = vrot.slane %v4420, 4
      %v4423 = vshll.u32 %v4072, 16
      %v4425 = vrot.slane %v4423, 5
      %v4426 = vsel %vm717, %v4421, %v4425
      %v4427 = vshrl.u32 %v4072, 16
      %v4429 = vrot.slane %v4427, 4
      %v4430 = vor.u32 %v4429, %v4425
      %v4431 = vrot.slane %v4430, 4
      %v4433 = vshll.u32 %v4073, 16
      %v4435 = vrot.slane %v4433, 5
      %v4436 = vsel %vm717, %v4431, %v4435
      %v4438 = vshrl.u32 %v4074, 16
      %v4440 = vrot.slane %v4438, 4
      %v4441 = vshll.u32 %v4074, 16
      %v4443 = vrot.slane %v4441, 5
      %v4444 = vor.u32 %v4440, %v4443
      %v4445 = vrot.slane %v4444, 4
      %v4447 = vshll.u32 %v4075, 16
      %v4449 = vrot.slane %v4447, 5
      %v4450 = vsel %vm717, %v4445, %v4449
      %v4451 = vshrl.u32 %v4075, 16
      %v4453 = vrot.slane %v4451, 4
      %v4454 = vor.u32 %v4453, %v4449
      %v4455 = vrot.slane %v4454, 4
      %v4457 = vshll.u32 %v4076, 16
      %v4459 = vrot.slane %v4457, 5
      %v4460 = vsel %vm717, %v4455, %v4459
      %s4461 = scalar_lea.vmem %s2, 14
      %v4462 = vld [vmem:[%s4461] sm:$0x3]
      %v4463 = vunpack.c.l.b16 %v4090
      %v4464 = vunpack.c.l.b16 %v4100
      %v4465 = vunpack.c.l.b16 %v4114
      %v4466 = vunpack.c.l.b16 %v4124
      %v4467 = vunpack.c.l.b16 %v4138
      %v4468 = vunpack.c.l.b16 %v4148
      %v4469 = vunpack.c.l.b16 %v4162
      %v4470 = vunpack.c.l.b16 %v4172
      %v4471 = vunpack.c.l.b16 %v4186
      %v4472 = vunpack.c.l.b16 %v4196
      %v4473 = vunpack.c.l.b16 %v4210
      %v4474 = vunpack.c.l.b16 %v4220
      %v4475 = vunpack.c.l.b16 %v4234
      %v4476 = vunpack.c.l.b16 %v4244
      %v4477 = vunpack.c.l.b16 %v4258
      %v4478 = vunpack.c.l.b16 %v4268
      %v4479 = vunpack.c.l.b16 %v4282
      %v4480 = vunpack.c.l.b16 %v4292
      %v4481 = vunpack.c.l.b16 %v4306
      %v4482 = vunpack.c.l.b16 %v4316
      %v4483 = vunpack.c.l.b16 %v4330
      %v4484 = vunpack.c.l.b16 %v4340
      %v4485 = vunpack.c.l.b16 %v4354
      %v4486 = vunpack.c.l.b16 %v4364
      %v4487 = vunpack.c.l.b16 %v4378
      %v4488 = vunpack.c.l.b16 %v4388
      %v4489 = vunpack.c.l.b16 %v4402
      %v4490 = vunpack.c.l.b16 %v4412
      %v4491 = vunpack.c.l.b16 %v4426
      %v4492 = vunpack.c.l.b16 %v4436
      %v4493 = vunpack.c.l.b16 %v4450
      %v4494 = vunpack.c.l.b16 %v4460
      %v4495 = vpack.c.b16 %v4464, %v4463
      %v4496 = vpack.c.b16 %v4466, %v4465
      %v4497 = vpack.c.b16 %v4468, %v4467
      %v4498 = vpack.c.b16 %v4470, %v4469
      %v4499 = vpack.c.b16 %v4472, %v4471
      %v4500 = vpack.c.b16 %v4474, %v4473
      %v4501 = vpack.c.b16 %v4476, %v4475
      %v4502 = vpack.c.b16 %v4478, %v4477
      %v4503 = vpack.c.b16 %v4480, %v4479
      %v4504 = vpack.c.b16 %v4482, %v4481
      %v4505 = vpack.c.b16 %v4484, %v4483
      %v4506 = vpack.c.b16 %v4486, %v4485
      %v4507 = vpack.c.b16 %v4488, %v4487
      %v4508 = vpack.c.b16 %v4490, %v4489
      %v4509 = vpack.c.b16 %v4492, %v4491
      %v4510 = vpack.c.b16 %v4494, %v4493
      %v4512 = vsel %vm1152, %v4495, 0
      %v4515 = vsel %vm1152, %v4496, 0
      %v4518 = vsel %vm1152, %v4497, 0
      %v4521 = vsel %vm1152, %v4498, 0
      %v4524 = vsel %vm1152, %v4499, 0
      %v4527 = vsel %vm1152, %v4500, 0
      %v4530 = vsel %vm1152, %v4501, 0
      %v4533 = vsel %vm1152, %v4502, 0
      %v4536 = vsel %vm1152, %v4503, 0
      %v4539 = vsel %vm1152, %v4504, 0
      %v4542 = vsel %vm1152, %v4505, 0
      %v4545 = vsel %vm1152, %v4506, 0
      %v4548 = vsel %vm1152, %v4507, 0
      %v4551 = vsel %vm1152, %v4508, 0
      %v4554 = vsel %vm1152, %v4509, 0
      %v4557 = vsel %vm1152, %v4510, 0
      %v4560 = vsel %vm1201, %v4462, 0
      %4562 = vmatprep.subr.bf16.mxu0 0
      %4563 = vmatpush1.bf16.msra.mxu0 0
      %4564 = vmatprep.subr.bf16.mxu0 0
      %4565 = vmatpush1.bf16.msra.mxu0 0
      %4566 = vmatprep.subr.bf16.mxu0 0
      %4567 = vmatpush1.bf16.msra.mxu0 0
      %4568 = vmatprep.subr.bf16.mxu0 0
      %4569 = vmatpush1.bf16.msra.mxu0 0
      %4570 = vmatprep.subr.bf16.mxu0 0
      %4571 = vmatpush1.bf16.msra.mxu0 0
      %4572 = vmatprep.subr.bf16.mxu0 0
      %4573 = vmatpush1.bf16.msra.mxu0 0
      %4574 = vmatprep.subr.bf16.mxu0 0
      %4575 = vmatpush1.bf16.msra.mxu0 0
      %4576 = vmatprep.subr.bf16.mxu0 0
      %4577 = vmatpush1.bf16.msra.mxu0 %v4560
      %4578 = vmatprep.subr.bf16.mxu0 0
      %4579 = vmatpush2.bf16.msra.mxu0 0
      %4580 = vmatprep.subr.bf16.mxu0 0
      %4581 = vmatpush2.bf16.msra.mxu0 0
      %4582 = vmatprep.subr.bf16.mxu0 0
      %4583 = vmatpush2.bf16.msra.mxu0 0
      %4584 = vmatprep.subr.bf16.mxu0 0
      %4585 = vmatpush2.bf16.msra.mxu0 0
      %4586 = vmatprep.subr.bf16.mxu0 0
      %4587 = vmatpush2.bf16.msra.mxu0 0
      %4588 = vmatprep.subr.bf16.mxu0 0
      %4589 = vmatpush2.bf16.msra.mxu0 0
      %4590 = vmatprep.subr.bf16.mxu0 0
      %4591 = vmatpush2.bf16.msra.mxu0 0
      %4592 = vmatprep.subr.bf16.mxu0 0
      %4593 = vmatpush2.bf16.msra.mxu0 0
      %4594 = vmatprep.mubr.bf16.mxu0 0
      %4595 = vmatmul.mubr.bf16.gmra.mxu0 %v4512
      %v4596 = vpop.f32.mrf.mxu0
      %v4597 = vadd.f32 0.0, %v4596
      %v4598 = vpop.f32.mrf.mxu0
      %v4599 = vpop.f32.mrf.mxu0
      %v4600 = vadd.f32 0.0, %v4599
      %v4601 = vpop.f32.mrf.mxu0
      %4602 = vmatprep.mubr.bf16.mxu0 0
      %4603 = vmatmul.mubr.bf16.gmra.mxu0 %v4515
      %v4604 = vpop.f32.mrf.mxu0
      %v4605 = vadd.f32 0.0, %v4604
      %v4606 = vpop.f32.mrf.mxu0
      %v4607 = vpop.f32.mrf.mxu0
      %v4608 = vadd.f32 0.0, %v4607
      %v4609 = vpop.f32.mrf.mxu0
      %4610 = vmatprep.mubr.bf16.mxu0 0
      %4611 = vmatmul.mubr.bf16.gmra.mxu0 %v4518
      %v4612 = vpop.f32.mrf.mxu0
      %v4613 = vadd.f32 0.0, %v4612
      %v4614 = vpop.f32.mrf.mxu0
      %v4615 = vpop.f32.mrf.mxu0
      %v4616 = vadd.f32 0.0, %v4615
      %v4617 = vpop.f32.mrf.mxu0
      %4618 = vmatprep.mubr.bf16.mxu0 0
      %4619 = vmatmul.mubr.bf16.gmra.mxu0 %v4521
      %v4620 = vpop.f32.mrf.mxu0
      %v4621 = vadd.f32 0.0, %v4620
      %v4622 = vpop.f32.mrf.mxu0
      %v4623 = vpop.f32.mrf.mxu0
      %v4624 = vadd.f32 0.0, %v4623
      %v4625 = vpop.f32.mrf.mxu0
      %4626 = vmatprep.mubr.bf16.mxu0 0
      %4627 = vmatmul.mubr.bf16.gmra.mxu0 %v4524
      %v4628 = vpop.f32.mrf.mxu0
      %v4629 = vadd.f32 0.0, %v4628
      %v4630 = vpop.f32.mrf.mxu0
      %v4631 = vpop.f32.mrf.mxu0
      %v4632 = vadd.f32 0.0, %v4631
      %v4633 = vpop.f32.mrf.mxu0
      %4634 = vmatprep.mubr.bf16.mxu0 0
      %4635 = vmatmul.mubr.bf16.gmra.mxu0 %v4527
      %v4636 = vpop.f32.mrf.mxu0
      %v4637 = vadd.f32 0.0, %v4636
      %v4638 = vpop.f32.mrf.mxu0
      %v4639 = vpop.f32.mrf.mxu0
      %v4640 = vadd.f32 0.0, %v4639
      %v4641 = vpop.f32.mrf.mxu0
      %4642 = vmatprep.mubr.bf16.mxu0 0
      %4643 = vmatmul.mubr.bf16.gmra.mxu0 %v4530
      %v4644 = vpop.f32.mrf.mxu0
      %v4645 = vadd.f32 0.0, %v4644
      %v4646 = vpop.f32.mrf.mxu0
      %v4647 = vpop.f32.mrf.mxu0
      %v4648 = vadd.f32 0.0, %v4647
      %v4649 = vpop.f32.mrf.mxu0
      %4650 = vmatprep.mubr.bf16.mxu0 0
      %4651 = vmatmul.mubr.bf16.gmra.mxu0 %v4533
      %v4652 = vpop.f32.mrf.mxu0
      %v4653 = vadd.f32 0.0, %v4652
      %v4654 = vpop.f32.mrf.mxu0
      %v4655 = vpop.f32.mrf.mxu0
      %v4656 = vadd.f32 0.0, %v4655
      %v4657 = vpop.f32.mrf.mxu0
      %4658 = vmatprep.mubr.bf16.mxu0 0
      %4659 = vmatmul.mubr.bf16.gmra.mxu0 %v4536
      %v4660 = vpop.f32.mrf.mxu0
      %v4661 = vadd.f32 0.0, %v4660
      %v4662 = vpop.f32.mrf.mxu0
      %v4663 = vpop.f32.mrf.mxu0
      %v4664 = vadd.f32 0.0, %v4663
      %v4665 = vpop.f32.mrf.mxu0
      %4666 = vmatprep.mubr.bf16.mxu0 0
      %4667 = vmatmul.mubr.bf16.gmra.mxu0 %v4539
      %v4668 = vpop.f32.mrf.mxu0
      %v4669 = vadd.f32 0.0, %v4668
      %v4670 = vpop.f32.mrf.mxu0
      %v4671 = vpop.f32.mrf.mxu0
      %v4672 = vadd.f32 0.0, %v4671
      %v4673 = vpop.f32.mrf.mxu0
      %4674 = vmatprep.mubr.bf16.mxu0 0
      %4675 = vmatmul.mubr.bf16.gmra.mxu0 %v4542
      %v4676 = vpop.f32.mrf.mxu0
      %v4677 = vadd.f32 0.0, %v4676
      %v4678 = vpop.f32.mrf.mxu0
      %v4679 = vpop.f32.mrf.mxu0
      %v4680 = vadd.f32 0.0, %v4679
      %v4681 = vpop.f32.mrf.mxu0
      %4682 = vmatprep.mubr.bf16.mxu0 0
      %4683 = vmatmul.mubr.bf16.gmra.mxu0 %v4545
      %v4684 = vpop.f32.mrf.mxu0
      %v4685 = vadd.f32 0.0, %v4684
      %v4686 = vpop.f32.mrf.mxu0
      %v4687 = vpop.f32.mrf.mxu0
      %v4688 = vadd.f32 0.0, %v4687
      %v4689 = vpop.f32.mrf.mxu0
      %4690 = vmatprep.mubr.bf16.mxu0 0
      %4691 = vmatmul.mubr.bf16.gmra.mxu0 %v4548
      %v4692 = vpop.f32.mrf.mxu0
      %v4693 = vadd.f32 0.0, %v4692
      %v4694 = vpop.f32.mrf.mxu0
      %v4695 = vpop.f32.mrf.mxu0
      %v4696 = vadd.f32 0.0, %v4695
      %v4697 = vpop.f32.mrf.mxu0
      %4698 = vmatprep.mubr.bf16.mxu0 0
      %4699 = vmatmul.mubr.bf16.gmra.mxu0 %v4551
      %v4700 = vpop.f32.mrf.mxu0
      %v4701 = vadd.f32 0.0, %v4700
      %v4702 = vpop.f32.mrf.mxu0
      %v4703 = vpop.f32.mrf.mxu0
      %v4704 = vadd.f32 0.0, %v4703
      %v4705 = vpop.f32.mrf.mxu0
      %4706 = vmatprep.mubr.bf16.mxu0 0
      %4707 = vmatmul.mubr.bf16.gmra.mxu0 %v4554
      %v4708 = vpop.f32.mrf.mxu0
      %v4709 = vadd.f32 0.0, %v4708
      %v4710 = vpop.f32.mrf.mxu0
      %v4711 = vpop.f32.mrf.mxu0
      %v4712 = vadd.f32 0.0, %v4711
      %v4713 = vpop.f32.mrf.mxu0
      %4714 = vmatprep.mubr.bf16.mxu0 0
      %4715 = vmatmul.mubr.bf16.gmra.mxu0 %v4557
      %v4716 = vpop.f32.mrf.mxu0
      %v4717 = vadd.f32 0.0, %v4716
      %v4718 = vpop.f32.mrf.mxu0
      %v4719 = vpop.f32.mrf.mxu0
      %v4720 = vadd.f32 0.0, %v4719
      %v4721 = vpop.f32.mrf.mxu0
      %4722 = vdwg.mxu0
      %v4723 = vadd.f32 %v3997, %v4597
      %v4724 = vadd.f32 %v3998, %v4600
      %v4725 = vadd.f32 %v3999, %v4605
      %v4726 = vadd.f32 %v4000, %v4608
      %v4727 = vadd.f32 %v4001, %v4613
      %v4728 = vadd.f32 %v4002, %v4616
      %v4729 = vadd.f32 %v4003, %v4621
      %v4730 = vadd.f32 %v4004, %v4624
      %v4731 = vadd.f32 %v4005, %v4629
      %v4732 = vadd.f32 %v4006, %v4632
      %v4733 = vadd.f32 %v4007, %v4637
      %v4734 = vadd.f32 %v4008, %v4640
      %v4735 = vadd.f32 %v4009, %v4645
      %v4736 = vadd.f32 %v4010, %v4648
      %v4737 = vadd.f32 %v4011, %v4653
      %v4738 = vadd.f32 %v4012, %v4656
      %v4739 = vadd.f32 %v4013, %v4661
      %v4740 = vadd.f32 %v4014, %v4664
      %v4741 = vadd.f32 %v4015, %v4669
      %v4742 = vadd.f32 %v4016, %v4672
      %v4743 = vadd.f32 %v4017, %v4677
      %v4744 = vadd.f32 %v4018, %v4680
      %v4745 = vadd.f32 %v4019, %v4685
      %v4746 = vadd.f32 %v4020, %v4688
      %v4747 = vadd.f32 %v4021, %v4693
      %v4748 = vadd.f32 %v4022, %v4696
      %v4749 = vadd.f32 %v4023, %v4701
      %v4750 = vadd.f32 %v4024, %v4704
      %v4751 = vadd.f32 %v4025, %v4709
      %v4752 = vadd.f32 %v4026, %v4712
      %v4753 = vadd.f32 %v4027, %v4717
      %v4754 = vadd.f32 %v4028, %v4720
      %v4755 = vld [vmem:[%s3670] sm:$0xe]
      %v4756 = vld [vmem:[%s3670 + $0xc] sm:$0xe]
      %v4757 = vld [vmem:[%s3670 + $0x18] sm:$0xe]
      %v4758 = vld [vmem:[%s3670 + $0x24] sm:$0xe]
      %v4759 = vld [vmem:[%s3670 + $0x30] sm:$0xe]
      %v4760 = vld [vmem:[%s3670 + $0x3c] sm:$0xe]
      %v4761 = vld [vmem:[%s3670 + $0x48] sm:$0xe]
      %v4762 = vld [vmem:[%s3670 + $0x54] sm:$0xe]
      %v4763 = vld [vmem:[%s3670 + $0x60] sm:$0xe]
      %v4764 = vld [vmem:[%s3670 + $0x6c] sm:$0xe]
      %v4765 = vld [vmem:[%s3670 + $0x78] sm:$0xe]
      %v4766 = vld [vmem:[%s3670 + $0x84] sm:$0xe]
      %v4767 = vld [vmem:[%s3670 + $0x90] sm:$0xe]
      %v4768 = vld [vmem:[%s3670 + $0x9c] sm:$0xe]
      %v4769 = vld [vmem:[%s3670 + $0xa8] sm:$0xe]
      %v4770 = vld [vmem:[%s3670 + $0xb4] sm:$0xe]
      %v4819 = vrot.slane %v4755, 5
      %v4820 = vrot.slane %v4819, 4
      %v4821 = vrot.slane %v4030, 5
      %v4822 = vsel %vm1708, %v4820, %v4821
      %v4823 = vrot.slane %v4821, 4
      %v4824 = vrot.slane %v4031, 5
      %v4825 = vsel %vm1708, %v4823, %v4824
      %v4826 = vrot.slane %v4756, 5
      %v4827 = vrot.slane %v4826, 4
      %v4828 = vrot.slane %v4033, 5
      %v4829 = vsel %vm1708, %v4827, %v4828
      %v4830 = vrot.slane %v4828, 4
      %v4831 = vrot.slane %v4034, 5
      %v4832 = vsel %vm1708, %v4830, %v4831
      %v4833 = vrot.slane %v4757, 5
      %v4834 = vrot.slane %v4833, 4
      %v4835 = vrot.slane %v4036, 5
      %v4836 = vsel %vm1708, %v4834, %v4835
      %v4837 = vrot.slane %v4835, 4
      %v4838 = vrot.slane %v4037, 5
      %v4839 = vsel %vm1708, %v4837, %v4838
      %v4840 = vrot.slane %v4758, 5
      %v4841 = vrot.slane %v4840, 4
      %v4842 = vrot.slane %v4039, 5
      %v4843 = vsel %vm1708, %v4841, %v4842
      %v4844 = vrot.slane %v4842, 4
      %v4845 = vrot.slane %v4040, 5
      %v4846 = vsel %vm1708, %v4844, %v4845
      %v4847 = vrot.slane %v4759, 5
      %v4848 = vrot.slane %v4847, 4
      %v4849 = vrot.slane %v4042, 5
      %v4850 = vsel %vm1708, %v4848, %v4849
      %v4851 = vrot.slane %v4849, 4
      %v4852 = vrot.slane %v4043, 5
      %v4853 = vsel %vm1708, %v4851, %v4852
      %v4854 = vrot.slane %v4760, 5
      %v4855 = vrot.slane %v4854, 4
      %v4856 = vrot.slane %v4045, 5
      %v4857 = vsel %vm1708, %v4855, %v4856
      %v4858 = vrot.slane %v4856, 4
      %v4859 = vrot.slane %v4046, 5
      %v4860 = vsel %vm1708, %v4858, %v4859
      %v4861 = vrot.slane %v4761, 5
      %v4862 = vrot.slane %v4861, 4
      %v4863 = vrot.slane %v4048, 5
      %v4864 = vsel %vm1708, %v4862, %v4863
      %v4865 = vrot.slane %v4863, 4
      %v4866 = vrot.slane %v4049, 5
      %v4867 = vsel %vm1708, %v4865, %v4866
      %v4868 = vrot.slane %v4762, 5
      %v4869 = vrot.slane %v4868, 4
      %v4870 = vrot.slane %v4051, 5
      %v4871 = vsel %vm1708, %v4869, %v4870
      %v4872 = vrot.slane %v4870, 4
      %v4873 = vrot.slane %v4052, 5
      %v4874 = vsel %vm1708, %v4872, %v4873
      %v4875 = vrot.slane %v4763, 5
      %v4876 = vrot.slane %v4875, 4
      %v4877 = vrot.slane %v4054, 5
      %v4878 = vsel %vm1708, %v4876, %v4877
      %v4879 = vrot.slane %v4877, 4
      %v4880 = vrot.slane %v4055, 5
      %v4881 = vsel %vm1708, %v4879, %v4880
      %v4882 = vrot.slane %v4764, 5
      %v4883 = vrot.slane %v4882, 4
      %v4884 = vrot.slane %v4057, 5
      %v4885 = vsel %vm1708, %v4883, %v4884
      %v4886 = vrot.slane %v4884, 4
      %v4887 = vrot.slane %v4058, 5
      %v4888 = vsel %vm1708, %v4886, %v4887
      %v4889 = vrot.slane %v4765, 5
      %v4890 = vrot.slane %v4889, 4
      %v4891 = vrot.slane %v4060, 5
      %v4892 = vsel %vm1708, %v4890, %v4891
      %v4893 = vrot.slane %v4891, 4
      %v4894 = vrot.slane %v4061, 5
      %v4895 = vsel %vm1708, %v4893, %v4894
      %v4896 = vrot.slane %v4766, 5
      %v4897 = vrot.slane %v4896, 4
      %v4898 = vrot.slane %v4063, 5
      %v4899 = vsel %vm1708, %v4897, %v4898
      %v4900 = vrot.slane %v4898, 4
      %v4901 = vrot.slane %v4064, 5
      %v4902 = vsel %vm1708, %v4900, %v4901
      %v4903 = vrot.slane %v4767, 5
      %v4904 = vrot.slane %v4903, 4
      %v4905 = vrot.slane %v4066, 5
      %v4906 = vsel %vm1708, %v4904, %v4905
      %v4907 = vrot.slane %v4905, 4
      %v4908 = vrot.slane %v4067, 5
      %v4909 = vsel %vm1708, %v4907, %v4908
      %v4910 = vrot.slane %v4768, 5
      %v4911 = vrot.slane %v4910, 4
      %v4912 = vrot.slane %v4069, 5
      %v4913 = vsel %vm1708, %v4911, %v4912
      %v4914 = vrot.slane %v4912, 4
      %v4915 = vrot.slane %v4070, 5
      %v4916 = vsel %vm1708, %v4914, %v4915
      %v4917 = vrot.slane %v4769, 5
      %v4918 = vrot.slane %v4917, 4
      %v4919 = vrot.slane %v4072, 5
      %v4920 = vsel %vm1708, %v4918, %v4919
      %v4921 = vrot.slane %v4919, 4
      %v4922 = vrot.slane %v4073, 5
      %v4923 = vsel %vm1708, %v4921, %v4922
      %v4924 = vrot.slane %v4770, 5
      %v4925 = vrot.slane %v4924, 4
      %v4926 = vrot.slane %v4075, 5
      %v4927 = vsel %vm1708, %v4925, %v4926
      %v4928 = vrot.slane %v4926, 4
      %v4929 = vrot.slane %v4076, 5
      %v4930 = vsel %vm1708, %v4928, %v4929
      %s4931 = scalar_lea.vmem %s2, 16
      %v4932 = vld [vmem:[%s4931] sm:$0x3]
      %v4933 = vunpack.c.l.b16 %v4822
      %v4934 = vunpack.c.l.b16 %v4825
      %v4935 = vunpack.c.l.b16 %v4829
      %v4936 = vunpack.c.l.b16 %v4832
      %v4937 = vunpack.c.l.b16 %v4836
      %v4938 = vunpack.c.l.b16 %v4839
      %v4939 = vunpack.c.l.b16 %v4843
      %v4940 = vunpack.c.l.b16 %v4846
      %v4941 = vunpack.c.l.b16 %v4850
      %v4942 = vunpack.c.l.b16 %v4853
      %v4943 = vunpack.c.l.b16 %v4857
      %v4944 = vunpack.c.l.b16 %v4860
      %v4945 = vunpack.c.l.b16 %v4864
      %v4946 = vunpack.c.l.b16 %v4867
      %v4947 = vunpack.c.l.b16 %v4871
      %v4948 = vunpack.c.l.b16 %v4874
      %v4949 = vunpack.c.l.b16 %v4878
      %v4950 = vunpack.c.l.b16 %v4881
      %v4951 = vunpack.c.l.b16 %v4885
      %v4952 = vunpack.c.l.b16 %v4888
      %v4953 = vunpack.c.l.b16 %v4892
      %v4954 = vunpack.c.l.b16 %v4895
      %v4955 = vunpack.c.l.b16 %v4899
      %v4956 = vunpack.c.l.b16 %v4902
      %v4957 = vunpack.c.l.b16 %v4906
      %v4958 = vunpack.c.l.b16 %v4909
      %v4959 = vunpack.c.l.b16 %v4913
      %v4960 = vunpack.c.l.b16 %v4916
      %v4961 = vunpack.c.l.b16 %v4920
      %v4962 = vunpack.c.l.b16 %v4923
      %v4963 = vunpack.c.l.b16 %v4927
      %v4964 = vunpack.c.l.b16 %v4930
      %v4965 = vpack.c.b16 %v4934, %v4933
      %v4966 = vpack.c.b16 %v4936, %v4935
      %v4967 = vpack.c.b16 %v4938, %v4937
      %v4968 = vpack.c.b16 %v4940, %v4939
      %v4969 = vpack.c.b16 %v4942, %v4941
      %v4970 = vpack.c.b16 %v4944, %v4943
      %v4971 = vpack.c.b16 %v4946, %v4945
      %v4972 = vpack.c.b16 %v4948, %v4947
      %v4973 = vpack.c.b16 %v4950, %v4949
      %v4974 = vpack.c.b16 %v4952, %v4951
      %v4975 = vpack.c.b16 %v4954, %v4953
      %v4976 = vpack.c.b16 %v4956, %v4955
      %v4977 = vpack.c.b16 %v4958, %v4957
      %v4978 = vpack.c.b16 %v4960, %v4959
      %v4979 = vpack.c.b16 %v4962, %v4961
      %v4980 = vpack.c.b16 %v4964, %v4963
      %v4982 = vsel %vm1152, %v4965, 0
      %v4985 = vsel %vm1152, %v4966, 0
      %v4988 = vsel %vm1152, %v4967, 0
      %v4991 = vsel %vm1152, %v4968, 0
      %v4994 = vsel %vm1152, %v4969, 0
      %v4997 = vsel %vm1152, %v4970, 0
      %v5000 = vsel %vm1152, %v4971, 0
      %v5003 = vsel %vm1152, %v4972, 0
      %v5006 = vsel %vm1152, %v4973, 0
      %v5009 = vsel %vm1152, %v4974, 0
      %v5012 = vsel %vm1152, %v4975, 0
      %v5015 = vsel %vm1152, %v4976, 0
      %v5018 = vsel %vm1152, %v4977, 0
      %v5021 = vsel %vm1152, %v4978, 0
      %v5024 = vsel %vm1152, %v4979, 0
      %v5027 = vsel %vm1152, %v4980, 0
      %v5030 = vsel %vm1201, %v4932, 0
      %5032 = vmatprep.subr.bf16.mxu0 0
      %5033 = vmatpush1.bf16.msra.mxu0 0
      %5034 = vmatprep.subr.bf16.mxu0 0
      %5035 = vmatpush1.bf16.msra.mxu0 0
      %5036 = vmatprep.subr.bf16.mxu0 0
      %5037 = vmatpush1.bf16.msra.mxu0 0
      %5038 = vmatprep.subr.bf16.mxu0 0
      %5039 = vmatpush1.bf16.msra.mxu0 0
      %5040 = vmatprep.subr.bf16.mxu0 0
      %5041 = vmatpush1.bf16.msra.mxu0 0
      %5042 = vmatprep.subr.bf16.mxu0 0
      %5043 = vmatpush1.bf16.msra.mxu0 0
      %5044 = vmatprep.subr.bf16.mxu0 0
      %5045 = vmatpush1.bf16.msra.mxu0 0
      %5046 = vmatprep.subr.bf16.mxu0 0
      %5047 = vmatpush1.bf16.msra.mxu0 %v5030
      %5048 = vmatprep.subr.bf16.mxu0 0
      %5049 = vmatpush2.bf16.msra.mxu0 0
      %5050 = vmatprep.subr.bf16.mxu0 0
      %5051 = vmatpush2.bf16.msra.mxu0 0
      %5052 = vmatprep.subr.bf16.mxu0 0
      %5053 = vmatpush2.bf16.msra.mxu0 0
      %5054 = vmatprep.subr.bf16.mxu0 0
      %5055 = vmatpush2.bf16.msra.mxu0 0
      %5056 = vmatprep.subr.bf16.mxu0 0
      %5057 = vmatpush2.bf16.msra.mxu0 0
      %5058 = vmatprep.subr.bf16.mxu0 0
      %5059 = vmatpush2.bf16.msra.mxu0 0
      %5060 = vmatprep.subr.bf16.mxu0 0
      %5061 = vmatpush2.bf16.msra.mxu0 0
      %5062 = vmatprep.subr.bf16.mxu0 0
      %5063 = vmatpush2.bf16.msra.mxu0 0
      %5064 = vmatprep.mubr.bf16.mxu0 0
      %5065 = vmatmul.mubr.bf16.gmra.mxu0 %v4982
      %v5066 = vpop.f32.mrf.mxu0
      %v5067 = vadd.f32 0.0, %v5066
      %v5068 = vpop.f32.mrf.mxu0
      %v5069 = vpop.f32.mrf.mxu0
      %v5070 = vadd.f32 0.0, %v5069
      %v5071 = vpop.f32.mrf.mxu0
      %5072 = vmatprep.mubr.bf16.mxu0 0
      %5073 = vmatmul.mubr.bf16.gmra.mxu0 %v4985
      %v5074 = vpop.f32.mrf.mxu0
      %v5075 = vadd.f32 0.0, %v5074
      %v5076 = vpop.f32.mrf.mxu0
      %v5077 = vpop.f32.mrf.mxu0
      %v5078 = vadd.f32 0.0, %v5077
      %v5079 = vpop.f32.mrf.mxu0
      %5080 = vmatprep.mubr.bf16.mxu0 0
      %5081 = vmatmul.mubr.bf16.gmra.mxu0 %v4988
      %v5082 = vpop.f32.mrf.mxu0
      %v5083 = vadd.f32 0.0, %v5082
      %v5084 = vpop.f32.mrf.mxu0
      %v5085 = vpop.f32.mrf.mxu0
      %v5086 = vadd.f32 0.0, %v5085
      %v5087 = vpop.f32.mrf.mxu0
      %5088 = vmatprep.mubr.bf16.mxu0 0
      %5089 = vmatmul.mubr.bf16.gmra.mxu0 %v4991
      %v5090 = vpop.f32.mrf.mxu0
      %v5091 = vadd.f32 0.0, %v5090
      %v5092 = vpop.f32.mrf.mxu0
      %v5093 = vpop.f32.mrf.mxu0
      %v5094 = vadd.f32 0.0, %v5093
      %v5095 = vpop.f32.mrf.mxu0
      %5096 = vmatprep.mubr.bf16.mxu0 0
      %5097 = vmatmul.mubr.bf16.gmra.mxu0 %v4994
      %v5098 = vpop.f32.mrf.mxu0
      %v5099 = vadd.f32 0.0, %v5098
      %v5100 = vpop.f32.mrf.mxu0
      %v5101 = vpop.f32.mrf.mxu0
      %v5102 = vadd.f32 0.0, %v5101
      %v5103 = vpop.f32.mrf.mxu0
      %5104 = vmatprep.mubr.bf16.mxu0 0
      %5105 = vmatmul.mubr.bf16.gmra.mxu0 %v4997
      %v5106 = vpop.f32.mrf.mxu0
      %v5107 = vadd.f32 0.0, %v5106
      %v5108 = vpop.f32.mrf.mxu0
      %v5109 = vpop.f32.mrf.mxu0
      %v5110 = vadd.f32 0.0, %v5109
      %v5111 = vpop.f32.mrf.mxu0
      %5112 = vmatprep.mubr.bf16.mxu0 0
      %5113 = vmatmul.mubr.bf16.gmra.mxu0 %v5000
      %v5114 = vpop.f32.mrf.mxu0
      %v5115 = vadd.f32 0.0, %v5114
      %v5116 = vpop.f32.mrf.mxu0
      %v5117 = vpop.f32.mrf.mxu0
      %v5118 = vadd.f32 0.0, %v5117
      %v5119 = vpop.f32.mrf.mxu0
      %5120 = vmatprep.mubr.bf16.mxu0 0
      %5121 = vmatmul.mubr.bf16.gmra.mxu0 %v5003
      %v5122 = vpop.f32.mrf.mxu0
      %v5123 = vadd.f32 0.0, %v5122
      %v5124 = vpop.f32.mrf.mxu0
      %v5125 = vpop.f32.mrf.mxu0
      %v5126 = vadd.f32 0.0, %v5125
      %v5127 = vpop.f32.mrf.mxu0
      %5128 = vmatprep.mubr.bf16.mxu0 0
      %5129 = vmatmul.mubr.bf16.gmra.mxu0 %v5006
      %v5130 = vpop.f32.mrf.mxu0
      %v5131 = vadd.f32 0.0, %v5130
      %v5132 = vpop.f32.mrf.mxu0
      %v5133 = vpop.f32.mrf.mxu0
      %v5134 = vadd.f32 0.0, %v5133
      %v5135 = vpop.f32.mrf.mxu0
      %5136 = vmatprep.mubr.bf16.mxu0 0
      %5137 = vmatmul.mubr.bf16.gmra.mxu0 %v5009
      %v5138 = vpop.f32.mrf.mxu0
      %v5139 = vadd.f32 0.0, %v5138
      %v5140 = vpop.f32.mrf.mxu0
      %v5141 = vpop.f32.mrf.mxu0
      %v5142 = vadd.f32 0.0, %v5141
      %v5143 = vpop.f32.mrf.mxu0
      %5144 = vmatprep.mubr.bf16.mxu0 0
      %5145 = vmatmul.mubr.bf16.gmra.mxu0 %v5012
      %v5146 = vpop.f32.mrf.mxu0
      %v5147 = vadd.f32 0.0, %v5146
      %v5148 = vpop.f32.mrf.mxu0
      %v5149 = vpop.f32.mrf.mxu0
      %v5150 = vadd.f32 0.0, %v5149
      %v5151 = vpop.f32.mrf.mxu0
      %5152 = vmatprep.mubr.bf16.mxu0 0
      %5153 = vmatmul.mubr.bf16.gmra.mxu0 %v5015
      %v5154 = vpop.f32.mrf.mxu0
      %v5155 = vadd.f32 0.0, %v5154
      %v5156 = vpop.f32.mrf.mxu0
      %v5157 = vpop.f32.mrf.mxu0
      %v5158 = vadd.f32 0.0, %v5157
      %v5159 = vpop.f32.mrf.mxu0
      %5160 = vmatprep.mubr.bf16.mxu0 0
      %5161 = vmatmul.mubr.bf16.gmra.mxu0 %v5018
      %v5162 = vpop.f32.mrf.mxu0
      %v5163 = vadd.f32 0.0, %v5162
      %v5164 = vpop.f32.mrf.mxu0
      %v5165 = vpop.f32.mrf.mxu0
      %v5166 = vadd.f32 0.0, %v5165
      %v5167 = vpop.f32.mrf.mxu0
      %5168 = vmatprep.mubr.bf16.mxu0 0
      %5169 = vmatmul.mubr.bf16.gmra.mxu0 %v5021
      %v5170 = vpop.f32.mrf.mxu0
      %v5171 = vadd.f32 0.0, %v5170
      %v5172 = vpop.f32.mrf.mxu0
      %v5173 = vpop.f32.mrf.mxu0
      %v5174 = vadd.f32 0.0, %v5173
      %v5175 = vpop.f32.mrf.mxu0
      %5176 = vmatprep.mubr.bf16.mxu0 0
      %5177 = vmatmul.mubr.bf16.gmra.mxu0 %v5024
      %v5178 = vpop.f32.mrf.mxu0
      %v5179 = vadd.f32 0.0, %v5178
      %v5180 = vpop.f32.mrf.mxu0
      %v5181 = vpop.f32.mrf.mxu0
      %v5182 = vadd.f32 0.0, %v5181
      %v5183 = vpop.f32.mrf.mxu0
      %5184 = vmatprep.mubr.bf16.mxu0 0
      %5185 = vmatmul.mubr.bf16.gmra.mxu0 %v5027
      %v5186 = vpop.f32.mrf.mxu0
      %v5187 = vadd.f32 0.0, %v5186
      %v5188 = vpop.f32.mrf.mxu0
      %v5189 = vpop.f32.mrf.mxu0
      %v5190 = vadd.f32 0.0, %v5189
      %v5191 = vpop.f32.mrf.mxu0
      %5192 = vdwg.mxu0
      %v5193 = vadd.f32 %v4723, %v5067
      %v5194 = vadd.f32 %v4724, %v5070
      %v5195 = vadd.f32 %v4725, %v5075
      %v5196 = vadd.f32 %v4726, %v5078
      %v5197 = vadd.f32 %v4727, %v5083
      %v5198 = vadd.f32 %v4728, %v5086
      %v5199 = vadd.f32 %v4729, %v5091
      %v5200 = vadd.f32 %v4730, %v5094
      %v5201 = vadd.f32 %v4731, %v5099
      %v5202 = vadd.f32 %v4732, %v5102
      %v5203 = vadd.f32 %v4733, %v5107
      %v5204 = vadd.f32 %v4734, %v5110
      %v5205 = vadd.f32 %v4735, %v5115
      %v5206 = vadd.f32 %v4736, %v5118
      %v5207 = vadd.f32 %v4737, %v5123
      %v5208 = vadd.f32 %v4738, %v5126
      %v5209 = vadd.f32 %v4739, %v5131
      %v5210 = vadd.f32 %v4740, %v5134
      %v5211 = vadd.f32 %v4741, %v5139
      %v5212 = vadd.f32 %v4742, %v5142
      %v5213 = vadd.f32 %v4743, %v5147
      %v5214 = vadd.f32 %v4744, %v5150
      %v5215 = vadd.f32 %v4745, %v5155
      %v5216 = vadd.f32 %v4746, %v5158
      %v5217 = vadd.f32 %v4747, %v5163
      %v5218 = vadd.f32 %v4748, %v5166
      %v5219 = vadd.f32 %v4749, %v5171
      %v5220 = vadd.f32 %v4750, %v5174
      %v5221 = vadd.f32 %v4751, %v5179
      %v5222 = vadd.f32 %v4752, %v5182
      %v5223 = vadd.f32 %v4753, %v5187
      %v5224 = vadd.f32 %v4754, %v5190
      %v5225 = vld [vmem:[%s3] sm:$0x1]
      %v5227 = vlaneseq
      %v5228 = vshrl.u32 %v5227, 7
      %v5229 = vsub.s32 0, %v5228
      %v5230 = vrot.slane %v5225, %v5229
      %v5232 = vadd.f32 %v5193, %v5230
      %v5233 = vadd.f32 %v5194, %v5230
      %v5234 = vadd.f32 %v5195, %v5230
      %v5235 = vadd.f32 %v5196, %v5230
      %v5236 = vadd.f32 %v5197, %v5230
      %v5237 = vadd.f32 %v5198, %v5230
      %v5238 = vadd.f32 %v5199, %v5230
      %v5239 = vadd.f32 %v5200, %v5230
      %v5240 = vadd.f32 %v5201, %v5230
      %v5241 = vadd.f32 %v5202, %v5230
      %v5242 = vadd.f32 %v5203, %v5230
      %v5243 = vadd.f32 %v5204, %v5230
      %v5244 = vadd.f32 %v5205, %v5230
      %v5245 = vadd.f32 %v5206, %v5230
      %v5246 = vadd.f32 %v5207, %v5230
      %v5247 = vadd.f32 %v5208, %v5230
      %v5248 = vadd.f32 %v5209, %v5230
      %v5249 = vadd.f32 %v5210, %v5230
      %v5250 = vadd.f32 %v5211, %v5230
      %v5251 = vadd.f32 %v5212, %v5230
      %v5252 = vadd.f32 %v5213, %v5230
      %v5253 = vadd.f32 %v5214, %v5230
      %v5254 = vadd.f32 %v5215, %v5230
      %v5255 = vadd.f32 %v5216, %v5230
      %v5256 = vadd.f32 %v5217, %v5230
      %v5257 = vadd.f32 %v5218, %v5230
      %v5258 = vadd.f32 %v5219, %v5230
      %v5259 = vadd.f32 %v5220, %v5230
      %v5260 = vadd.f32 %v5221, %v5230
      %v5261 = vadd.f32 %v5222, %v5230
      %v5262 = vadd.f32 %v5223, %v5230
      %v5263 = vadd.f32 %v5224, %v5230
      %v5264 = vmin.f32 %v5232, 20.0
      %v5265 = vmin.f32 %v5233, 20.0
      %v5266 = vmin.f32 %v5234, 20.0
      %v5267 = vmin.f32 %v5235, 20.0
      %v5268 = vmin.f32 %v5236, 20.0
      %v5269 = vmin.f32 %v5237, 20.0
      %v5270 = vmin.f32 %v5238, 20.0
      %v5271 = vmin.f32 %v5239, 20.0
      %v5272 = vmin.f32 %v5240, 20.0
      %v5273 = vmin.f32 %v5241, 20.0
      %v5274 = vmin.f32 %v5242, 20.0
      %v5275 = vmin.f32 %v5243, 20.0
      %v5276 = vmin.f32 %v5244, 20.0
      %v5277 = vmin.f32 %v5245, 20.0
      %v5278 = vmin.f32 %v5246, 20.0
      %v5279 = vmin.f32 %v5247, 20.0
      %v5280 = vmin.f32 %v5248, 20.0
      %v5281 = vmin.f32 %v5249, 20.0
      %v5282 = vmin.f32 %v5250, 20.0
      %v5283 = vmin.f32 %v5251, 20.0
      %v5284 = vmin.f32 %v5252, 20.0
      %v5285 = vmin.f32 %v5253, 20.0
      %v5286 = vmin.f32 %v5254, 20.0
      %v5287 = vmin.f32 %v5255, 20.0
      %v5288 = vmin.f32 %v5256, 20.0
      %v5289 = vmin.f32 %v5257, 20.0
      %v5290 = vmin.f32 %v5258, 20.0
      %v5291 = vmin.f32 %v5259, 20.0
      %v5292 = vmin.f32 %v5260, 20.0
      %v5293 = vmin.f32 %v5261, 20.0
      %v5294 = vmin.f32 %v5262, 20.0
      %v5295 = vmin.f32 %v5263, 20.0
      %v5296 = vmul.f32 %v5264, 1.442695
      %v5297 = vpow.pop %v5296
      %v5298 = vmul.f32 %v5265, 1.442695
      %v5299 = vpow.pop %v5298
      %v5300 = vmul.f32 %v5266, 1.442695
      %v5301 = vpow.pop %v5300
      %v5302 = vmul.f32 %v5267, 1.442695
      %v5303 = vpow.pop %v5302
      %v5304 = vmul.f32 %v5268, 1.442695
      %v5305 = vpow.pop %v5304
      %v5306 = vmul.f32 %v5269, 1.442695
      %v5307 = vpow.pop %v5306
      %v5308 = vmul.f32 %v5270, 1.442695
      %v5309 = vpow.pop %v5308
      %v5310 = vmul.f32 %v5271, 1.442695
      %v5311 = vpow.pop %v5310
      %v5312 = vmul.f32 %v5272, 1.442695
      %v5313 = vpow.pop %v5312
      %v5314 = vmul.f32 %v5273, 1.442695
      %v5315 = vpow.pop %v5314
      %v5316 = vmul.f32 %v5274, 1.442695
      %v5317 = vpow.pop %v5316
      %v5318 = vmul.f32 %v5275, 1.442695
      %v5319 = vpow.pop %v5318
      %v5320 = vmul.f32 %v5276, 1.442695
      %v5321 = vpow.pop %v5320
      %v5322 = vmul.f32 %v5277, 1.442695
      %v5323 = vpow.pop %v5322
      %v5324 = vmul.f32 %v5278, 1.442695
      %v5325 = vpow.pop %v5324
      %v5326 = vmul.f32 %v5279, 1.442695
      %v5327 = vpow.pop %v5326
      %v5328 = vmul.f32 %v5280, 1.442695
      %v5329 = vpow.pop %v5328
      %v5330 = vmul.f32 %v5281, 1.442695
      %v5331 = vpow.pop %v5330
      %v5332 = vmul.f32 %v5282, 1.442695
      %v5333 = vpow.pop %v5332
      %v5334 = vmul.f32 %v5283, 1.442695
      %v5335 = vpow.pop %v5334
      %v5336 = vmul.f32 %v5284, 1.442695
      %v5337 = vpow.pop %v5336
      %v5338 = vmul.f32 %v5285, 1.442695
      %v5339 = vpow.pop %v5338
      %v5340 = vmul.f32 %v5286, 1.442695
      %v5341 = vpow.pop %v5340
      %v5342 = vmul.f32 %v5287, 1.442695
      %v5343 = vpow.pop %v5342
      %v5344 = vmul.f32 %v5288, 1.442695
      %v5345 = vpow.pop %v5344
      %v5346 = vmul.f32 %v5289, 1.442695
      %v5347 = vpow.pop %v5346
      %v5348 = vmul.f32 %v5290, 1.442695
      %v5349 = vpow.pop %v5348
      %v5350 = vmul.f32 %v5291, 1.442695
      %v5351 = vpow.pop %v5350
      %v5352 = vmul.f32 %v5292, 1.442695
      %v5353 = vpow.pop %v5352
      %v5354 = vmul.f32 %v5293, 1.442695
      %v5355 = vpow.pop %v5354
      %v5356 = vmul.f32 %v5294, 1.442695
      %v5357 = vpow.pop %v5356
      %v5358 = vmul.f32 %v5295, 1.442695
      %v5359 = vpow.pop %v5358
      %v5360 = vadd.f32 %v5297, 2.0
      %v5361 = vadd.f32 %v5299, 2.0
      %v5362 = vadd.f32 %v5301, 2.0
      %v5363 = vadd.f32 %v5303, 2.0
      %v5364 = vadd.f32 %v5305, 2.0
      %v5365 = vadd.f32 %v5307, 2.0
      %v5366 = vadd.f32 %v5309, 2.0
      %v5367 = vadd.f32 %v5311, 2.0
      %v5368 = vadd.f32 %v5313, 2.0
      %v5369 = vadd.f32 %v5315, 2.0
      %v5370 = vadd.f32 %v5317, 2.0
      %v5371 = vadd.f32 %v5319, 2.0
      %v5372 = vadd.f32 %v5321, 2.0
      %v5373 = vadd.f32 %v5323, 2.0
      %v5374 = vadd.f32 %v5325, 2.0
      %v5375 = vadd.f32 %v5327, 2.0
      %v5376 = vadd.f32 %v5329, 2.0
      %v5377 = vadd.f32 %v5331, 2.0
      %v5378 = vadd.f32 %v5333, 2.0
      %v5379 = vadd.f32 %v5335, 2.0
      %v5380 = vadd.f32 %v5337, 2.0
      %v5381 = vadd.f32 %v5339, 2.0
      %v5382 = vadd.f32 %v5341, 2.0
      %v5383 = vadd.f32 %v5343, 2.0
      %v5384 = vadd.f32 %v5345, 2.0
      %v5385 = vadd.f32 %v5347, 2.0
      %v5386 = vadd.f32 %v5349, 2.0
      %v5387 = vadd.f32 %v5351, 2.0
      %v5388 = vadd.f32 %v5353, 2.0
      %v5389 = vadd.f32 %v5355, 2.0
      %v5390 = vadd.f32 %v5357, 2.0
      %v5391 = vadd.f32 %v5359, 2.0
      %v5392 = vmul.f32 %v5297, %v5360
      %v5393 = vmul.f32 %v5299, %v5361
      %v5394 = vmul.f32 %v5301, %v5362
      %v5395 = vmul.f32 %v5303, %v5363
      %v5396 = vmul.f32 %v5305, %v5364
      %v5397 = vmul.f32 %v5307, %v5365
      %v5398 = vmul.f32 %v5309, %v5366
      %v5399 = vmul.f32 %v5311, %v5367
      %v5400 = vmul.f32 %v5313, %v5368
      %v5401 = vmul.f32 %v5315, %v5369
      %v5402 = vmul.f32 %v5317, %v5370
      %v5403 = vmul.f32 %v5319, %v5371
      %v5404 = vmul.f32 %v5321, %v5372
      %v5405 = vmul.f32 %v5323, %v5373
      %v5406 = vmul.f32 %v5325, %v5374
      %v5407 = vmul.f32 %v5327, %v5375
      %v5408 = vmul.f32 %v5329, %v5376
      %v5409 = vmul.f32 %v5331, %v5377
      %v5410 = vmul.f32 %v5333, %v5378
      %v5411 = vmul.f32 %v5335, %v5379
      %v5412 = vmul.f32 %v5337, %v5380
      %v5413 = vmul.f32 %v5339, %v5381
      %v5414 = vmul.f32 %v5341, %v5382
      %v5415 = vmul.f32 %v5343, %v5383
      %v5416 = vmul.f32 %v5345, %v5384
      %v5417 = vmul.f32 %v5347, %v5385
      %v5418 = vmul.f32 %v5349, %v5386
      %v5419 = vmul.f32 %v5351, %v5387
      %v5420 = vmul.f32 %v5353, %v5388
      %v5421 = vmul.f32 %v5355, %v5389
      %v5422 = vmul.f32 %v5357, %v5390
      %v5423 = vmul.f32 %v5359, %v5391
      %v5424 = vmul.f32 %v5232, %v5392
      %v5425 = vmul.f32 %v5233, %v5393
      %v5426 = vmul.f32 %v5234, %v5394
      %v5427 = vmul.f32 %v5235, %v5395
      %v5428 = vmul.f32 %v5236, %v5396
      %v5429 = vmul.f32 %v5237, %v5397
      %v5430 = vmul.f32 %v5238, %v5398
      %v5431 = vmul.f32 %v5239, %v5399
      %v5432 = vmul.f32 %v5240, %v5400
      %v5433 = vmul.f32 %v5241, %v5401
      %v5434 = vmul.f32 %v5242, %v5402
      %v5435 = vmul.f32 %v5243, %v5403
      %v5436 = vmul.f32 %v5244, %v5404
      %v5437 = vmul.f32 %v5245, %v5405
      %v5438 = vmul.f32 %v5246, %v5406
      %v5439 = vmul.f32 %v5247, %v5407
      %v5440 = vmul.f32 %v5248, %v5408
      %v5441 = vmul.f32 %v5249, %v5409
      %v5442 = vmul.f32 %v5250, %v5410
      %v5443 = vmul.f32 %v5251, %v5411
      %v5444 = vmul.f32 %v5252, %v5412
      %v5445 = vmul.f32 %v5253, %v5413
      %v5446 = vmul.f32 %v5254, %v5414
      %v5447 = vmul.f32 %v5255, %v5415
      %v5448 = vmul.f32 %v5256, %v5416
      %v5449 = vmul.f32 %v5257, %v5417
      %v5450 = vmul.f32 %v5258, %v5418
      %v5451 = vmul.f32 %v5259, %v5419
      %v5452 = vmul.f32 %v5260, %v5420
      %v5453 = vmul.f32 %v5261, %v5421
      %v5454 = vmul.f32 %v5262, %v5422
      %v5455 = vmul.f32 %v5263, %v5423
      %v5456 = vadd.f32 %v5392, 2.0
      %v5457 = vadd.f32 %v5393, 2.0
      %v5458 = vadd.f32 %v5394, 2.0
      %v5459 = vadd.f32 %v5395, 2.0
      %v5460 = vadd.f32 %v5396, 2.0
      %v5461 = vadd.f32 %v5397, 2.0
      %v5462 = vadd.f32 %v5398, 2.0
      %v5463 = vadd.f32 %v5399, 2.0
      %v5464 = vadd.f32 %v5400, 2.0
      %v5465 = vadd.f32 %v5401, 2.0
      %v5466 = vadd.f32 %v5402, 2.0
      %v5467 = vadd.f32 %v5403, 2.0
      %v5468 = vadd.f32 %v5404, 2.0
      %v5469 = vadd.f32 %v5405, 2.0
      %v5470 = vadd.f32 %v5406, 2.0
      %v5471 = vadd.f32 %v5407, 2.0
      %v5472 = vadd.f32 %v5408, 2.0
      %v5473 = vadd.f32 %v5409, 2.0
      %v5474 = vadd.f32 %v5410, 2.0
      %v5475 = vadd.f32 %v5411, 2.0
      %v5476 = vadd.f32 %v5412, 2.0
      %v5477 = vadd.f32 %v5413, 2.0
      %v5478 = vadd.f32 %v5414, 2.0
      %v5479 = vadd.f32 %v5415, 2.0
      %v5480 = vadd.f32 %v5416, 2.0
      %v5481 = vadd.f32 %v5417, 2.0
      %v5482 = vadd.f32 %v5418, 2.0
      %v5483 = vadd.f32 %v5419, 2.0
      %v5484 = vadd.f32 %v5420, 2.0
      %v5485 = vadd.f32 %v5421, 2.0
      %v5486 = vadd.f32 %v5422, 2.0
      %v5487 = vadd.f32 %v5423, 2.0
      %v5488 = vrcp.pop %v5456
      %v5489 = vrcp.pop %v5457
      %v5490 = vrcp.pop %v5458
      %v5491 = vrcp.pop %v5459
      %v5492 = vrcp.pop %v5460
      %v5493 = vrcp.pop %v5461
      %v5494 = vrcp.pop %v5462
      %v5495 = vrcp.pop %v5463
      %v5496 = vrcp.pop %v5464
      %v5497 = vrcp.pop %v5465
      %v5498 = vrcp.pop %v5466
      %v5499 = vrcp.pop %v5467
      %v5500 = vrcp.pop %v5468
      %v5501 = vrcp.pop %v5469
      %v5502 = vrcp.pop %v5470
      %v5503 = vrcp.pop %v5471
      %v5504 = vrcp.pop %v5472
      %v5505 = vrcp.pop %v5473
      %v5506 = vrcp.pop %v5474
      %v5507 = vrcp.pop %v5475
      %v5508 = vrcp.pop %v5476
      %v5509 = vrcp.pop %v5477
      %v5510 = vrcp.pop %v5478
      %v5511 = vrcp.pop %v5479
      %v5512 = vrcp.pop %v5480
      %v5513 = vrcp.pop %v5481
      %v5514 = vrcp.pop %v5482
      %v5515 = vrcp.pop %v5483
      %v5516 = vrcp.pop %v5484
      %v5517 = vrcp.pop %v5485
      %v5518 = vrcp.pop %v5486
      %v5519 = vrcp.pop %v5487
      %v5520 = vmul.f32 %v5424, %v5488
      %v5521 = vmul.f32 %v5425, %v5489
      %v5522 = vmul.f32 %v5426, %v5490
      %v5523 = vmul.f32 %v5427, %v5491
      %v5524 = vmul.f32 %v5428, %v5492
      %v5525 = vmul.f32 %v5429, %v5493
      %v5526 = vmul.f32 %v5430, %v5494
      %v5527 = vmul.f32 %v5431, %v5495
      %v5528 = vmul.f32 %v5432, %v5496
      %v5529 = vmul.f32 %v5433, %v5497
      %v5530 = vmul.f32 %v5434, %v5498
      %v5531 = vmul.f32 %v5435, %v5499
      %v5532 = vmul.f32 %v5436, %v5500
      %v5533 = vmul.f32 %v5437, %v5501
      %v5534 = vmul.f32 %v5438, %v5502
      %v5535 = vmul.f32 %v5439, %v5503
      %v5536 = vmul.f32 %v5440, %v5504
      %v5537 = vmul.f32 %v5441, %v5505
      %v5538 = vmul.f32 %v5442, %v5506
      %v5539 = vmul.f32 %v5443, %v5507
      %v5540 = vmul.f32 %v5444, %v5508
      %v5541 = vmul.f32 %v5445, %v5509
      %v5542 = vmul.f32 %v5446, %v5510
      %v5543 = vmul.f32 %v5447, %v5511
      %v5544 = vmul.f32 %v5448, %v5512
      %v5545 = vmul.f32 %v5449, %v5513
      %v5546 = vmul.f32 %v5450, %v5514
      %v5547 = vmul.f32 %v5451, %v5515
      %v5548 = vmul.f32 %v5452, %v5516
      %v5549 = vmul.f32 %v5453, %v5517
      %v5550 = vmul.f32 %v5454, %v5518
      %v5551 = vmul.f32 %v5455, %v5519
      %v5552 = vpack.c.bf16 %v5521, %v5520
      %v5553 = vpack.c.bf16 %v5523, %v5522
      %v5554 = vpack.c.bf16 %v5525, %v5524
      %v5555 = vpack.c.bf16 %v5527, %v5526
      %v5556 = vpack.c.bf16 %v5529, %v5528
      %v5557 = vpack.c.bf16 %v5531, %v5530
      %v5558 = vpack.c.bf16 %v5533, %v5532
      %v5559 = vpack.c.bf16 %v5535, %v5534
      %v5560 = vpack.c.bf16 %v5537, %v5536
      %v5561 = vpack.c.bf16 %v5539, %v5538
      %v5562 = vpack.c.bf16 %v5541, %v5540
      %v5563 = vpack.c.bf16 %v5543, %v5542
      %v5564 = vpack.c.bf16 %v5545, %v5544
      %v5565 = vpack.c.bf16 %v5547, %v5546
      %v5566 = vpack.c.bf16 %v5549, %v5548
      %v5567 = vpack.c.bf16 %v5551, %v5550
      %v5584 = vunpack.c.l.b16 %v5552
      %v5585 = vunpack.c.h.b16 %v5552
      %v5586 = vunpack.c.l.b16 %v5553
      %v5587 = vunpack.c.h.b16 %v5553
      %v5588 = vunpack.c.l.b16 %v5554
      %v5589 = vunpack.c.h.b16 %v5554
      %v5590 = vunpack.c.l.b16 %v5555
      %v5591 = vunpack.c.h.b16 %v5555
      %v5592 = vunpack.c.l.b16 %v5556
      %v5593 = vunpack.c.h.b16 %v5556
      %v5594 = vunpack.c.l.b16 %v5557
      %v5595 = vunpack.c.h.b16 %v5557
      %v5596 = vunpack.c.l.b16 %v5558
      %v5597 = vunpack.c.h.b16 %v5558
      %v5598 = vunpack.c.l.b16 %v5559
      %v5599 = vunpack.c.h.b16 %v5559
      %v5600 = vunpack.c.l.b16 %v5560
      %v5601 = vunpack.c.h.b16 %v5560
      %v5602 = vunpack.c.l.b16 %v5561
      %v5603 = vunpack.c.h.b16 %v5561
      %v5604 = vunpack.c.l.b16 %v5562
      %v5605 = vunpack.c.h.b16 %v5562
      %v5606 = vunpack.c.l.b16 %v5563
      %v5607 = vunpack.c.h.b16 %v5563
      %v5608 = vunpack.c.l.b16 %v5564
      %v5609 = vunpack.c.h.b16 %v5564
      %v5610 = vunpack.c.l.b16 %v5565
      %v5611 = vunpack.c.h.b16 %v5565
      %v5612 = vunpack.c.l.b16 %v5566
      %v5613 = vunpack.c.h.b16 %v5566
      %v5614 = vunpack.c.l.b16 %v5567
      %v5615 = vunpack.c.h.b16 %v5567
      %v5616 = vpack.c.b16 %v5584, %v5584
      %v5617 = vpack.c.b16 %v5585, %v5585
      %v5618 = vpack.c.b16 %v5586, %v5586
      %v5619 = vpack.c.b16 %v5587, %v5587
      %v5620 = vpack.c.b16 %v5588, %v5588
      %v5621 = vpack.c.b16 %v5589, %v5589
      %v5622 = vpack.c.b16 %v5590, %v5590
      %v5623 = vpack.c.b16 %v5591, %v5591
      %v5624 = vpack.c.b16 %v5592, %v5592
      %v5625 = vpack.c.b16 %v5593, %v5593
      %v5626 = vpack.c.b16 %v5594, %v5594
      %v5627 = vpack.c.b16 %v5595, %v5595
      %v5628 = vpack.c.b16 %v5596, %v5596
      %v5629 = vpack.c.b16 %v5597, %v5597
      %v5630 = vpack.c.b16 %v5598, %v5598
      %v5631 = vpack.c.b16 %v5599, %v5599
      %v5632 = vpack.c.b16 %v5600, %v5600
      %v5633 = vpack.c.b16 %v5601, %v5601
      %v5634 = vpack.c.b16 %v5602, %v5602
      %v5635 = vpack.c.b16 %v5603, %v5603
      %v5636 = vpack.c.b16 %v5604, %v5604
      %v5637 = vpack.c.b16 %v5605, %v5605
      %v5638 = vpack.c.b16 %v5606, %v5606
      %v5639 = vpack.c.b16 %v5607, %v5607
      %v5640 = vpack.c.b16 %v5608, %v5608
      %v5641 = vpack.c.b16 %v5609, %v5609
      %v5642 = vpack.c.b16 %v5610, %v5610
      %v5643 = vpack.c.b16 %v5611, %v5611
      %v5644 = vpack.c.b16 %v5612, %v5612
      %v5645 = vpack.c.b16 %v5613, %v5613
      %v5646 = vpack.c.b16 %v5614, %v5614
      %v5647 = vpack.c.b16 %v5615, %v5615
      %vm5680 = vcmask 60416
      %5681 = vst.msk [vmem:[%s318] sm:$0xf] %vm5680, %v5616
      %5682 = vst.msk [vmem:[%s318 + $0x4] sm:$0xf] %vm5680, %v5617
      %5683 = vst.msk [vmem:[%s318 + $0x8] sm:$0xf] %vm5680, %v5618
      %5684 = vst.msk [vmem:[%s318 + $0xc] sm:$0xf] %vm5680, %v5619
      %5685 = vst.msk [vmem:[%s318 + $0x10] sm:$0xf] %vm5680, %v5620
      %5686 = vst.msk [vmem:[%s318 + $0x14] sm:$0xf] %vm5680, %v5621
      %5687 = vst.msk [vmem:[%s318 + $0x18] sm:$0xf] %vm5680, %v5622
      %5688 = vst.msk [vmem:[%s318 + $0x1c] sm:$0xf] %vm5680, %v5623
      %5689 = vst.msk [vmem:[%s318 + $0x20] sm:$0xf] %vm5680, %v5624
      %5690 = vst.msk [vmem:[%s318 + $0x24] sm:$0xf] %vm5680, %v5625
      %5691 = vst.msk [vmem:[%s318 + $0x28] sm:$0xf] %vm5680, %v5626
      %5692 = vst.msk [vmem:[%s318 + $0x2c] sm:$0xf] %vm5680, %v5627
      %5693 = vst.msk [vmem:[%s318 + $0x30] sm:$0xf] %vm5680, %v5628
      %5694 = vst.msk [vmem:[%s318 + $0x34] sm:$0xf] %vm5680, %v5629
      %5695 = vst.msk [vmem:[%s318 + $0x38] sm:$0xf] %vm5680, %v5630
      %5696 = vst.msk [vmem:[%s318 + $0x3c] sm:$0xf] %vm5680, %v5631
      %5697 = vst.msk [vmem:[%s318 + $0x40] sm:$0xf] %vm5680, %v5632
      %5698 = vst.msk [vmem:[%s318 + $0x44] sm:$0xf] %vm5680, %v5633
      %5699 = vst.msk [vmem:[%s318 + $0x48] sm:$0xf] %vm5680, %v5634
      %5700 = vst.msk [vmem:[%s318 + $0x4c] sm:$0xf] %vm5680, %v5635
      %5701 = vst.msk [vmem:[%s318 + $0x50] sm:$0xf] %vm5680, %v5636
      %5702 = vst.msk [vmem:[%s318 + $0x54] sm:$0xf] %vm5680, %v5637
      %5703 = vst.msk [vmem:[%s318 + $0x58] sm:$0xf] %vm5680, %v5638
      %5704 = vst.msk [vmem:[%s318 + $0x5c] sm:$0xf] %vm5680, %v5639
      %5705 = vst.msk [vmem:[%s318 + $0x60] sm:$0xf] %vm5680, %v5640
      %5706 = vst.msk [vmem:[%s318 + $0x64] sm:$0xf] %vm5680, %v5641
      %5707 = vst.msk [vmem:[%s318 + $0x68] sm:$0xf] %vm5680, %v5642
      %5708 = vst.msk [vmem:[%s318 + $0x6c] sm:$0xf] %vm5680, %v5643
      %5709 = vst.msk [vmem:[%s318 + $0x70] sm:$0xf] %vm5680, %v5644
      %5710 = vst.msk [vmem:[%s318 + $0x74] sm:$0xf] %vm5680, %v5645
      %5711 = vst.msk [vmem:[%s318 + $0x78] sm:$0xf] %vm5680, %v5646
      %5712 = vst.msk [vmem:[%s318 + $0x7c] sm:$0xf] %vm5680, %v5647
      %s5713 = smul.u32 16, %s20
      %p5714 = scmp.lt.s32.totalorder %s19, 1
      %s5715 = scalar_select %p5714, %s19, 1
      %p5716 = scmp.lt.s32.totalorder %s5713, 15
      %s5717 = scalar_select %p5716, %s5713, 15
      %s5718 = smul.addr %s5717, 2
      %s5719 = smul.addr %s5715, 32
      %s5720 = sadd.s32 %s5718, %s5719
      %s5721 = smul.addr %s5720, 4
      %s5722 = scalar_lea.vmem %s4, %s5721
      // Predicated region
      $region37: #{features_processing.2} parent=35 // pred_check
        %p5723 = pneg %p149
      $region38: #{features_processing.2} parent=35 // pred_check_branch
        %5725 = sbr.rel (%p5723) target = $region40
      $region39: #{features_processing.2} parent=35 // pred_region
        %s5726 = smul.u32 16, %s20
      $region40: #{features_processing.2} parent=35 // pred_fallthru
        _
    $region36: #{features_processing.2} parent=5 // pred_fallthru
      _
    %p5727 = scmp.le.s32.totalorder 2, %s10
    // Predicated region
    $region41: #{features_processing.2} parent=5 // pred_check
      %p5728 = pneg %p5727
    $region42: #{features_processing.2} parent=5 // pred_check_branch
      %5730 = sbr.rel (%p5728) target = $region44
    $region43: #{features_processing.2} parent=5 // pred_region
      %s5731 = ssub.s32 %s10, 2
      // Predicated region
      $region45: #{features_processing.2} parent=43 // pred_check
        %p5732 = pneg %p155
      $region46: #{features_processing.2} parent=43 // pred_check_branch
        %5734 = sbr.rel (%p5732) target = $region48
      $region47: #{features_processing.2} parent=43 // pred_region
        %s5735 = smul.u32 16, %s22
        %p5736 = scmp.lt.s32.totalorder %s21, 1
        %s5737 = scalar_select %p5736, %s21, 1
        %p5738 = scmp.lt.s32.totalorder %s5735, 15
        %s5739 = scalar_select %p5738, %s5735, 15
        %s5740 = smul.addr %s5739, 2
        %s5741 = smul.addr %s5737, 32
        %s5742 = sadd.s32 %s5740, %s5741
        %s5743 = smul.addr %s5742, 4
        %s5744 = scalar_lea.vmem %s4, %s5743
      $region48: #{features_processing.2} parent=43 // pred_fallthru
        _
    $region44: #{features_processing.2} parent=5 // pred_fallthru
      _
  $region6: #{features_processing.2} parent=0 // loop_footer
    %s14 = sadd.s32 1, %s10
  $region7: #{features_processing.2} parent=0 // loop_footer_branch
    %9 = sbr.rel target = $region3
  $region8: #{features_processing.2} parent=0 // loop_exit
    _

// kernel: features_processing.3
$region0: #{features_processing.3}
  #allocation0 [shape = 'u32[]', space=smem, size = 0x4, offset = 0x4, fixed_abs, tag = 'smem constant byte address 0x4 - core index']
  #allocation1 [shape = 'u32[144,128]{1,0:T(1,128)}', space=vmem, size = 0x12000, scoped, tag = 'internal scratch']
  #allocation2 [shape = 'bf16[18,18,8]{2,1,0:T(8,128)(2,1)}', space=vmem, size = 0x1b000, scoped, tag = 'scratch operand']
  %s0 = inlined_call_operand.vmem [shape: bf16[2,24,18,8], index: 0, kind: input, shape index: {}, may-alias: {0,1}]
  %s1 = inlined_call_operand.vmem [shape: bf16[2,24,18,8], index: 1, kind: input, shape index: {}, may-alias: {0,1}]
  %s2 = inlined_call_operand.vmem [shape: f32[2,16,16,4], index: 2, kind: input, shape index: {}]
  %s3 = inlined_call_operand.vmem [shape: bf16[3,3,8,8], index: 3, kind: input, shape index: {}]
  %s4 = inlined_call_operand.vmem [shape: f32[1,8], index: 4, kind: input, shape index: {}]
  %s5 = inlined_call_operand.vmem [shape: bf16[4,8], index: 5, kind: input, shape index: {}]
  %s6 = inlined_call_operand.vmem [shape: f32[1,8], index: 6, kind: input, shape index: {}]
  %s7 = inlined_call_operand.vmem [shape: f32[2,16,16,8], index: 7, kind: output, shape index: {}]
  %s8 = sld [smem:[#allocation0]]
  $region61: #{features_processing.3} parent=0
    _
  %s10 = ssub.s32 1, %s8
  %s11 = scalar_select 0, %s10, %s8
  loop: start=0, step=1, limit=4
  $region2: #{features_processing.3} parent=0 // loop_pre_header
    _
  $region3: #{features_processing.3} parent=0 // loop_header
    %s13 = sphi 0, %s17
    %p14 = scmp.ge.s32.totalorder %s13, 4
    %s20 = sphi 0, %s32
    %s21 = sphi 0, %s28
    %s22 = sphi 0, %s20
    %s23 = sphi 0, %s21
    %s24 = sphi 0, %s22
    %s25 = sphi 0, %s23
    %s37 = sphi 0, %s39
    %s40 = sphi 0, %s37
    %s41 = sphi 0, %s40
    %s57 = sphi 0, %s41
    %s69 = sphi 0, %s71
    %s72 = sphi 0, %s69
    %s73 = sphi 0, %s72
    %s89 = sphi 0, %s73
    %s97 = sphi 0, %s99
    %s100 = sphi 0, %s97
    %s101 = sphi 0, %s100
    %s117 = sphi 0, %s101
    %s121 = sphi 0, %s121
    %s123 = sphi 0, %s121
    %s124 = sphi 0, %s123
    %s138 = sphi 0, %s124
    %s142 = sphi 0, %s142
    %s144 = sphi 0, %s142
    %s145 = sphi 0, %s144
    %s159 = sphi 0, %s145
    %s163 = sphi 0, %s163
    %s165 = sphi 0, %s163
    %s166 = sphi 0, %s165
    %s180 = sphi 0, %s166
    %s184 = sphi 0, %s184
    %s186 = sphi 0, %s184
    %s187 = sphi 0, %s186
    %s201 = sphi 0, %s187
    %s209 = sphi 0, %s211
    %s212 = sphi 0, %s209
    %s213 = sphi 0, %s212
    %s229 = sphi 0, %s213
  $region4: #{features_processing.3} parent=0 // loop_header_branch
    %16 = sbr.rel (%p14) target = $region8
  $region5: #{features_processing.3} parent=0 // loop_body
    %s18 = ssub.s32 %s13, 1
    %s19 = ssub.s32 %s13, 2
    %s26 = sadd.s32 1, %s21
    %p27 = scmp.ge.s32.totalorder %s26, 1
    %s28 = scalar_select %p27, 0, %s26
    %s29 = sadd.s32 1, %s20
    %s30 = scalar_select %p27, %s29, %s20
    %p31 = scmp.ge.s32.totalorder %s30, 2
    %s32 = scalar_select %p31, 0, %s30
    %s33 = ssub.s32 %s20, %s32
    %s34 = ssub.s32 %s21, %s28
    %s35 = sor.u32 %s33, %s34
    %p36 = scmp.eq.s32.totalorder %s35, 0
    %s38 = sadd.s32 %s37, 1
    %s39 = scalar_select %p36, %s37, %s38
    %p42 = pneg %p36
    %p43 = scmp.eq.s32.totalorder %s13, 1
    %p44 = por %p42, %p43
    %p45 = scmp.ne.s32.totalorder %s37, %s40
    %p46 = scmp.eq.s32.totalorder %s13, 0
    %p47 = por %p45, %p46
    %p48 = scmp.ne.s32.totalorder %s37, %s40
    %p49 = scmp.eq.s32.totalorder %s18, 1
    %p50 = por %p48, %p49
    %p51 = scmp.ne.s32.totalorder %s40, %s41
    %p52 = scmp.eq.s32.totalorder %s18, 0
    %p53 = por %p51, %p52
    %p54 = scmp.ne.s32.totalorder %s40, %s41
    %p55 = scmp.eq.s32.totalorder %s19, 1
    %p56 = por %p54, %p55
    %p58 = scmp.ne.s32.totalorder %s41, %s57
    %p59 = scmp.eq.s32.totalorder %s19, 0
    %p60 = por %p58, %p59
    %s61 = sadd.s32 %s21, 1
    %s62 = smul.u32 %s61, 2
    %s63 = sadd.s32 %s28, 1
    %s64 = smul.u32 %s63, 2
    %s65 = ssub.s32 %s20, %s32
    %s66 = ssub.s32 %s62, %s64
    %s67 = sor.u32 %s65, %s66
    %p68 = scmp.eq.s32.totalorder %s67, 0
    %s70 = sadd.s32 %s69, 1
    %s71 = scalar_select %p68, %s69, %s70
    %p74 = pneg %p68
    %p75 = scmp.eq.s32.totalorder %s13, 1
    %p76 = por %p74, %p75
    %p77 = scmp.ne.s32.totalorder %s69, %s72
    %p78 = scmp.eq.s32.totalorder %s13, 0
    %p79 = por %p77, %p78
    %p80 = scmp.ne.s32.totalorder %s69, %s72
    %p81 = scmp.eq.s32.totalorder %s18, 1
    %p82 = por %p80, %p81
    %p83 = scmp.ne.s32.totalorder %s72, %s73
    %p84 = scmp.eq.s32.totalorder %s18, 0
    %p85 = por %p83, %p84
    %p86 = scmp.ne.s32.totalorder %s72, %s73
    %p87 = scmp.eq.s32.totalorder %s19, 1
    %p88 = por %p86, %p87
    %p90 = scmp.ne.s32.totalorder %s73, %s89
    %p91 = scmp.eq.s32.totalorder %s19, 0
    %p92 = por %p90, %p91
    %s93 = ssub.s32 %s20, %s32
    %s94 = ssub.s32 %s21, %s28
    %s95 = sor.u32 %s93, %s94
    %p96 = scmp.eq.s32.totalorder %s95, 0
    %s98 = sadd.s32 %s97, 1
    %s99 = scalar_select %p96, %s97, %s98
    %p102 = pneg %p96
    %p103 = scmp.eq.s32.totalorder %s13, 1
    %p104 = por %p102, %p103
    %p105 = scmp.ne.s32.totalorder %s97, %s100
    %p106 = scmp.eq.s32.totalorder %s13, 0
    %p107 = por %p105, %p106
    %p108 = scmp.ne.s32.totalorder %s97, %s100
    %p109 = scmp.eq.s32.totalorder %s18, 1
    %p110 = por %p108, %p109
    %p111 = scmp.ne.s32.totalorder %s100, %s101
    %p112 = scmp.eq.s32.totalorder %s18, 0
    %p113 = por %p111, %p112
    %p114 = scmp.ne.s32.totalorder %s100, %s101
    %p115 = scmp.eq.s32.totalorder %s19, 1
    %p116 = por %p114, %p115
    %p118 = scmp.ne.s32.totalorder %s101, %s117
    %p119 = scmp.eq.s32.totalorder %s19, 0
    %p120 = por %p118, %p119
    %s122 = sadd.s32 %s121, 1
    %p125 = scmp.eq.s32.totalorder %s13, 1
    %p126 = scmp.ne.s32.totalorder %s121, %s123
    %p127 = scmp.eq.s32.totalorder %s13, 0
    %p128 = por %p126, %p127
    %p129 = scmp.ne.s32.totalorder %s121, %s123
    %p130 = scmp.eq.s32.totalorder %s18, 1
    %p131 = por %p129, %p130
    %p132 = scmp.ne.s32.totalorder %s123, %s124
    %p133 = scmp.eq.s32.totalorder %s18, 0
    %p134 = por %p132, %p133
    %p135 = scmp.ne.s32.totalorder %s123, %s124
    %p136 = scmp.eq.s32.totalorder %s19, 1
    %p137 = por %p135, %p136
    %p139 = scmp.ne.s32.totalorder %s124, %s138
    %p140 = scmp.eq.s32.totalorder %s19, 0
    %p141 = por %p139, %p140
    %s143 = sadd.s32 %s142, 1
    %p146 = scmp.eq.s32.totalorder %s13, 1
    %p147 = scmp.ne.s32.totalorder %s142, %s144
    %p148 = scmp.eq.s32.totalorder %s13, 0
    %p149 = por %p147, %p148
    %p150 = scmp.ne.s32.totalorder %s142, %s144
    %p151 = scmp.eq.s32.totalorder %s18, 1
    %p152 = por %p150, %p151
    %p153 = scmp.ne.s32.totalorder %s144, %s145
    %p154 = scmp.eq.s32.totalorder %s18, 0
    %p155 = por %p153, %p154
    %p156 = scmp.ne.s32.totalorder %s144, %s145
    %p157 = scmp.eq.s32.totalorder %s19, 1
    %p158 = por %p156, %p157
    %p160 = scmp.ne.s32.totalorder %s145, %s159
    %p161 = scmp.eq.s32.totalorder %s19, 0
    %p162 = por %p160, %p161
    %s164 = sadd.s32 %s163, 1
    %p167 = scmp.eq.s32.totalorder %s13, 1
    %p168 = scmp.ne.s32.totalorder %s163, %s165
    %p169 = scmp.eq.s32.totalorder %s13, 0
    %p170 = por %p168, %p169
    %p171 = scmp.ne.s32.totalorder %s163, %s165
    %p172 = scmp.eq.s32.totalorder %s18, 1
    %p173 = por %p171, %p172
    %p174 = scmp.ne.s32.totalorder %s165, %s166
    %p175 = scmp.eq.s32.totalorder %s18, 0
    %p176 = por %p174, %p175
    %p177 = scmp.ne.s32.totalorder %s165, %s166
    %p178 = scmp.eq.s32.totalorder %s19, 1
    %p179 = por %p177, %p178
    %p181 = scmp.ne.s32.totalorder %s166, %s180
    %p182 = scmp.eq.s32.totalorder %s19, 0
    %p183 = por %p181, %p182
    %s185 = sadd.s32 %s184, 1
    %p188 = scmp.eq.s32.totalorder %s13, 1
    %p189 = scmp.ne.s32.totalorder %s184, %s186
    %p190 = scmp.eq.s32.totalorder %s13, 0
    %p191 = por %p189, %p190
    %p192 = scmp.ne.s32.totalorder %s184, %s186
    %p193 = scmp.eq.s32.totalorder %s18, 1
    %p194 = por %p192, %p193
    %p195 = scmp.ne.s32.totalorder %s186, %s187
    %p196 = scmp.eq.s32.totalorder %s18, 0
    %p197 = por %p195, %p196
    %p198 = scmp.ne.s32.totalorder %s186, %s187
    %p199 = scmp.eq.s32.totalorder %s19, 1
    %p200 = por %p198, %p199
    %p202 = scmp.ne.s32.totalorder %s187, %s201
    %p203 = scmp.eq.s32.totalorder %s19, 0
    %p204 = por %p202, %p203
    %s205 = ssub.s32 %s20, %s32
    %s206 = ssub.s32 %s21, %s28
    %s207 = sor.u32 %s205, %s206
    %p208 = scmp.eq.s32.totalorder %s207, 0
    %s210 = sadd.s32 %s209, 1
    %s211 = scalar_select %p208, %s209, %s210
    %p214 = pneg %p208
    %p215 = scmp.eq.s32.totalorder %s13, 1
    %p216 = por %p214, %p215
    %p217 = scmp.ne.s32.totalorder %s209, %s212
    %p218 = scmp.eq.s32.totalorder %s13, 0
    %p219 = por %p217, %p218
    %p220 = scmp.ne.s32.totalorder %s209, %s212
    %p221 = scmp.eq.s32.totalorder %s18, 1
    %p222 = por %p220, %p221
    %p223 = scmp.ne.s32.totalorder %s212, %s213
    %p224 = scmp.eq.s32.totalorder %s18, 0
    %p225 = por %p223, %p224
    %p226 = scmp.ne.s32.totalorder %s212, %s213
    %p227 = scmp.eq.s32.totalorder %s19, 1
    %p228 = por %p226, %p227
    %p230 = scmp.ne.s32.totalorder %s213, %s229
    %p231 = scmp.eq.s32.totalorder %s19, 0
    %p232 = por %p230, %p231
    %p233 = scmp.le.s32.totalorder 1, %s13
    %p234 = scmp.lt.s32.totalorder %s13, 3
    %p235 = pnand %p233, %p234
    %p236 = pneg %p235
    // Predicated region
    $region9: #{features_processing.3} parent=5 // pred_check
      _
    $region10: #{features_processing.3} parent=5 // pred_check_branch
      %238 = sbr.rel (%p235) target = $region12
    $region11: #{features_processing.3} parent=5 // pred_region
      %s239 = ssub.s32 %s13, 1
      // Predicated region
      $region13: #{features_processing.3} parent=11 // pred_check
        %p240 = pneg %p134
      $region14: #{features_processing.3} parent=11 // pred_check_branch
        %242 = sbr.rel (%p240) target = $region16
      $region15: #{features_processing.3} parent=11 // pred_region
        _
      $region16: #{features_processing.3} parent=11 // pred_fallthru
        _
      // Predicated region
      $region17: #{features_processing.3} parent=11 // pred_check
        %p243 = pneg %p155
      $region18: #{features_processing.3} parent=11 // pred_check_branch
        %245 = sbr.rel (%p243) target = $region20
      $region19: #{features_processing.3} parent=11 // pred_region
        _
      $region20: #{features_processing.3} parent=11 // pred_fallthru
        _
      // Predicated region
      $region21: #{features_processing.3} parent=11 // pred_check
        %p246 = pneg %p176
      $region22: #{features_processing.3} parent=11 // pred_check_branch
        %248 = sbr.rel (%p246) target = $region24
      $region23: #{features_processing.3} parent=11 // pred_region
        _
      $region24: #{features_processing.3} parent=11 // pred_fallthru
        _
      // Predicated region
      $region25: #{features_processing.3} parent=11 // pred_check
        %p249 = pneg %p197
      $region26: #{features_processing.3} parent=11 // pred_check_branch
        %251 = sbr.rel (%p249) target = $region28
      $region27: #{features_processing.3} parent=11 // pred_region
        _
      $region28: #{features_processing.3} parent=11 // pred_fallthru
        _
    $region12: #{features_processing.3} parent=5 // pred_fallthru
      _
    %p252 = scmp.lt.s32.totalorder %s13, 2
    // Predicated region
    $region29: #{features_processing.3} parent=5 // pred_check
      %p253 = pneg %p252
    $region30: #{features_processing.3} parent=5 // pred_check_branch
      %255 = sbr.rel (%p253) target = $region32
    $region31: #{features_processing.3} parent=5 // pred_region
      // Predicated region
      $region33: #{features_processing.3} parent=31 // pred_check
        %p256 = pneg %p47
      $region34: #{features_processing.3} parent=31 // pred_check_branch
        %258 = sbr.rel (%p256) target = $region36
      $region35: #{features_processing.3} parent=31 // pred_region
        %s259 = smul.u32 16, %s21
        %s260 = ssub.s32 24, %s259
        %p261 = scmp.lt.s32.totalorder %s260, 16
        %s262 = scalar_select %p261, %s260, 16
        %s263 = smul.u32 64, %s262
        %s264 = smul.u32 %s263, 3
        %p265 = scmp.lt.s32.totalorder %s20, 1
        %s266 = scalar_select %p265, %s20, 1
        %p267 = scmp.lt.s32.totalorder %s259, 23
        %s268 = scalar_select %p267, %s259, 23
        %s269 = smul.addr %s268, 3
        %s270 = smul.addr %s266, 72
        %s271 = sadd.s32 %s269, %s270
        %s272 = smul.addr %s271, 4
        %s273 = scalar_lea.vmem %s0, %s272
        %s274 = smul.u32 16, %s21
        %s275 = ssub.s32 24, %s274
        %p276 = scmp.lt.s32.totalorder %s275, 16
        %s277 = scalar_select %p276, %s275, 16
        %s278 = smul.u32 64, %s277
        %s279 = smul.u32 %s278, 3
      $region36: #{features_processing.3} parent=31 // pred_fallthru
        _
      // Predicated region
      $region37: #{features_processing.3} parent=31 // pred_check
        %p280 = pneg %p79
      $region38: #{features_processing.3} parent=31 // pred_check_branch
        %282 = sbr.rel (%p280) target = $region40
      $region39: #{features_processing.3} parent=31 // pred_region
        %s283 = sadd.s32 %s21, 1
        %s284 = smul.u32 %s283, 2
        %s285 = smul.u32 8, %s284
        %p286 = scmp.lt.s32.totalorder %s20, 1
        %s287 = scalar_select %p286, %s20, 1
        %p288 = scmp.lt.s32.totalorder %s285, 23
        %s289 = scalar_select %p288, %s285, 23
        %s290 = smul.addr %s289, 3
        %s291 = smul.addr %s287, 72
        %s292 = sadd.s32 %s290, %s291
        %s293 = smul.addr %s292, 4
        %s294 = scalar_lea.vmem %s1, %s293
        %s295 = sadd.s32 %s21, 1
        %s296 = smul.u32 %s295, 2
        %s297 = smul.u32 8, %s296
      $region40: #{features_processing.3} parent=31 // pred_fallthru
        _
      // Predicated region
      $region41: #{features_processing.3} parent=31 // pred_check
        %p298 = pneg %p107
      $region42: #{features_processing.3} parent=31 // pred_check_branch
        %300 = sbr.rel (%p298) target = $region44
      $region43: #{features_processing.3} parent=31 // pred_region
        %s301 = smul.u32 16, %s21
        %p302 = scmp.lt.s32.totalorder %s20, 1
        %s303 = scalar_select %p302, %s20, 1
        %p304 = scmp.lt.s32.totalorder %s301, 15
        %s305 = scalar_select %p304, %s301, 15
        %s306 = smul.addr %s305, 2
        %s307 = smul.addr %s303, 32
        %s308 = sadd.s32 %s306, %s307
        %s309 = smul.addr %s308, 8
        %s310 = scalar_lea.vmem %s2, %s309
        %s311 = smul.u32 16, %s21
      $region44: #{features_processing.3} parent=31 // pred_fallthru
        _
    $region32: #{features_processing.3} parent=5 // pred_fallthru
      _
    %p312 = scmp.le.s32.totalorder 1, %s13
    %p313 = scmp.lt.s32.totalorder %s13, 3
    %p314 = pnand %p312, %p313
    %p315 = pneg %p314
    // Predicated region
    $region45: #{features_processing.3} parent=5 // pred_check
      _
    $region46: #{features_processing.3} parent=5 // pred_check_branch
      %317 = sbr.rel (%p314) target = $region48
    $region47: #{features_processing.3} parent=5 // pred_region
      %s318 = ssub.s32 %s13, 1
      %s319 = smul.u32 16, %s23
      %s320 = ssub.s32 24, %s319
      %p321 = scmp.lt.s32.totalorder %s320, 16
      %s322 = scalar_select %p321, %s320, 16
      %s323 = smul.u32 64, %s322
      %s324 = smul.u32 %s323, 3
      %p325 = scmp.lt.s32.totalorder %s22, 1
      %s326 = scalar_select %p325, %s22, 1
      %p327 = scmp.lt.s32.totalorder %s319, 23
      %s328 = scalar_select %p327, %s319, 23
      %s329 = smul.addr %s328, 3
      %s330 = smul.addr %s326, 72
      %s331 = sadd.s32 %s329, %s330
      %s332 = smul.addr %s331, 4
      %s333 = scalar_lea.vmem %s0, %s332
      %p334 = pneg %p53
      %p335 = pneg %p50
      %s336 = sadd.s32 %s23, 1
      %s337 = smul.u32 %s336, 2
      %s338 = smul.u32 8, %s337
      %p339 = scmp.lt.s32.totalorder %s22, 1
      %s340 = scalar_select %p339, %s22, 1
      %p341 = scmp.lt.s32.totalorder %s338, 23
      %s342 = scalar_select %p341, %s338, 23
      %s343 = smul.addr %s342, 3
      %s344 = smul.addr %s340, 72
      %s345 = sadd.s32 %s343, %s344
      %s346 = smul.addr %s345, 4
      %s347 = scalar_lea.vmem %s1, %s346
      %p348 = pneg %p85
      %p349 = pneg %p82
      %s350 = smul.u32 16, %s23
      %p351 = scmp.lt.s32.totalorder %s22, 1
      %s352 = scalar_select %p351, %s22, 1
      %p353 = scmp.lt.s32.totalorder %s350, 15
      %s354 = scalar_select %p353, %s350, 15
      %s355 = smul.addr %s354, 2
      %s356 = smul.addr %s352, 32
      %s357 = sadd.s32 %s355, %s356
      %s358 = smul.addr %s357, 8
      %s359 = scalar_lea.vmem %s2, %s358
      %p360 = pneg %p113
      %p361 = pneg %p110
      %p362 = pneg %p134
      %p363 = pneg %p131
      %p364 = pneg %p155
      %p365 = pneg %p152
      %p366 = pneg %p176
      %p367 = pneg %p173
      %p368 = pneg %p197
      %p369 = pneg %p194
      %p370 = pneg %p225
      %p371 = pneg %p222
      %s372 = smul.u32 16, %s23
      %p373 = scmp.lt.s32.totalorder %s22, 1
      %s374 = scalar_select %p373, %s22, 1
      %p375 = scmp.lt.s32.totalorder %s372, 15
      %s376 = scalar_select %p375, %s372, 15
      %s377 = smul.addr %s376, 2
      %s378 = smul.addr %s374, 32
      %s379 = sadd.s32 %s377, %s378
      %s380 = smul.addr %s379, 8
      %s381 = scalar_lea.vmem %s7, %s380
      %s382 = smul.u32 16, %s23
      %s383 = ssub.s32 24, %s382
      %p384 = scmp.lt.s32.totalorder %s383, 16
      %s385 = scalar_select %p384, %s383, 16
      %s386 = smul.u32 64, %s385
      %s387 = smul.u32 %s386, 3
      %p388 = scmp.lt.s32.totalorder %s22, 1
      %s389 = scalar_select %p388, %s22, 1
      %p390 = scmp.lt.s32.totalorder %s382, 23
      %s391 = scalar_select %p390, %s382, 23
      %s392 = smul.addr %s391, 3
      %s393 = smul.addr %s389, 72
      %s394 = sadd.s32 %s392, %s393
      %s395 = smul.addr %s394, 4
      %s396 = scalar_lea.vmem %s0, %s395
      %s397 = smul.u32 16, %s23
      %s398 = ssub.s32 24, %s397
      %p399 = scmp.lt.s32.totalorder %s398, 16
      %s400 = scalar_select %p399, %s398, 16
      %s401 = smul.u32 64, %s400
      %s402 = smul.u32 %s401, 3
      %s403 = sadd.s32 %s23, 1
      %s404 = smul.u32 %s403, 2
      %s405 = smul.u32 8, %s404
      %p406 = scmp.lt.s32.totalorder %s22, 1
      %s407 = scalar_select %p406, %s22, 1
      %p408 = scmp.lt.s32.totalorder %s405, 23
      %s409 = scalar_select %p408, %s405, 23
      %s410 = smul.addr %s409, 3
      %s411 = smul.addr %s407, 72
      %s412 = sadd.s32 %s410, %s411
      %s413 = smul.addr %s412, 4
      %s414 = scalar_lea.vmem %s1, %s413
      %s415 = sadd.s32 %s23, 1
      %s416 = smul.u32 %s415, 2
      %s417 = smul.u32 8, %s416
      %s418 = smul.u32 16, %s23
      %p419 = scmp.lt.s32.totalorder %s22, 1
      %s420 = scalar_select %p419, %s22, 1
      %p421 = scmp.lt.s32.totalorder %s418, 15
      %s422 = scalar_select %p421, %s418, 15
      %s423 = smul.addr %s422, 2
      %s424 = smul.addr %s420, 32
      %s425 = sadd.s32 %s423, %s424
      %s426 = smul.addr %s425, 8
      %s427 = scalar_lea.vmem %s2, %s426
      %s428 = smul.u32 16, %s23
      %s429 = smul.u32 16, %s23
      %p430 = scmp.lt.s32.totalorder %s22, 1
      %s431 = scalar_select %p430, %s22, 1
      %p432 = scmp.lt.s32.totalorder %s429, 15
      %s433 = scalar_select %p432, %s429, 15
      %s434 = smul.addr %s433, 2
      %s435 = smul.addr %s431, 32
      %s436 = sadd.s32 %s434, %s435
      %s437 = smul.addr %s436, 8
      %s438 = scalar_lea.vmem %s7, %s437
      %s439 = smul.u32 16, %s23
      %v441 = vld [vmem:[%s396] sm:$0xf]
      %v442 = vld [vmem:[%s396 + $0x4] sm:$0xf]
      %v443 = vld [vmem:[%s396 + $0x8] sm:$0x1]
      %v444 = vld [vmem:[%s396 + $0xc] sm:$0xf]
      %v445 = vld [vmem:[%s396 + $0x10] sm:$0xf]
      %v446 = vld [vmem:[%s396 + $0x14] sm:$0x1]
      %v447 = vld [vmem:[%s396 + $0x18] sm:$0xf]
      %v448 = vld [vmem:[%s396 + $0x1c] sm:$0xf]
      %v449 = vld [vmem:[%s396 + $0x20] sm:$0x1]
      %v450 = vld [vmem:[%s396 + $0x24] sm:$0xf]
      %v451 = vld [vmem:[%s396 + $0x28] sm:$0xf]
      %v452 = vld [vmem:[%s396 + $0x2c] sm:$0x1]
      %v453 = vld [vmem:[%s396 + $0x30] sm:$0xf]
      %v454 = vld [vmem:[%s396 + $0x34] sm:$0xf]
      %v455 = vld [vmem:[%s396 + $0x38] sm:$0x1]
      %v456 = vld [vmem:[%s396 + $0x3c] sm:$0xf]
      %v457 = vld [vmem:[%s396 + $0x40] sm:$0xf]
      %v458 = vld [vmem:[%s396 + $0x44] sm:$0x1]
      %v459 = vld [vmem:[%s396 + $0x48] sm:$0xf]
      %v460 = vld [vmem:[%s396 + $0x4c] sm:$0xf]
      %v461 = vld [vmem:[%s396 + $0x50] sm:$0x1]
      %v462 = vld [vmem:[%s396 + $0x54] sm:$0xf]
      %v463 = vld [vmem:[%s396 + $0x58] sm:$0xf]
      %v464 = vld [vmem:[%s396 + $0x5c] sm:$0x1]
      %v465 = vld [vmem:[%s396 + $0x60] sm:$0xf]
      %v466 = vld [vmem:[%s396 + $0x64] sm:$0xf]
      %v467 = vld [vmem:[%s396 + $0x68] sm:$0x1]
      %v468 = vld [vmem:[%s396 + $0x6c] sm:$0xf]
      %v469 = vld [vmem:[%s396 + $0x70] sm:$0xf]
      %v470 = vld [vmem:[%s396 + $0x74] sm:$0x1]
      %v471 = vld [vmem:[%s396 + $0x78] sm:$0xf]
      %v472 = vld [vmem:[%s396 + $0x7c] sm:$0xf]
      %v473 = vld [vmem:[%s396 + $0x80] sm:$0x1]
      %v474 = vld [vmem:[%s396 + $0x84] sm:$0xf]
      %v475 = vld [vmem:[%s396 + $0x88] sm:$0xf]
      %v476 = vld [vmem:[%s396 + $0x8c] sm:$0x1]
      %v477 = vld [vmem:[%s396 + $0x90] sm:$0xf]
      %v478 = vld [vmem:[%s396 + $0x94] sm:$0xf]
      %v479 = vld [vmem:[%s396 + $0x98] sm:$0x1]
      %v480 = vld [vmem:[%s396 + $0x9c] sm:$0xf]
      %v481 = vld [vmem:[%s396 + $0xa0] sm:$0xf]
      %v482 = vld [vmem:[%s396 + $0xa4] sm:$0x1]
      %v483 = vld [vmem:[%s396 + $0xa8] sm:$0xf]
      %v484 = vld [vmem:[%s396 + $0xac] sm:$0xf]
      %v485 = vld [vmem:[%s396 + $0xb0] sm:$0x1]
      %v486 = vld [vmem:[%s396 + $0xb4] sm:$0xf]
      %v487 = vld [vmem:[%s396 + $0xb8] sm:$0xf]
      %v488 = vld [vmem:[%s396 + $0xbc] sm:$0x1]
      %vm489 = vcmask 60416
      %490 = vst.msk [vmem:[#allocation2] sm:$0xf] %vm489, %v441
      %491 = vst.msk [vmem:[#allocation2 + $0x4] sm:$0xf] %vm489, %v442
      %vm492 = vcmask 57344
      %493 = vst.msk [vmem:[#allocation2 + $0x8] sm:$0x1] %vm492, %v443
      %494 = vst.msk [vmem:[#allocation2 + $0xc] sm:$0xf] %vm489, %v444
      %495 = vst.msk [vmem:[#allocation2 + $0x10] sm:$0xf] %vm489, %v445
      %496 = vst.msk [vmem:[#allocation2 + $0x14] sm:$0x1] %vm492, %v446
      %497 = vst.msk [vmem:[#allocation2 + $0x18] sm:$0xf] %vm489, %v447
      %498 = vst.msk [vmem:[#allocation2 + $0x1c] sm:$0xf] %vm489, %v448
      %499 = vst.msk [vmem:[#allocation2 + $0x20] sm:$0x1] %vm492, %v449
      %500 = vst.msk [vmem:[#allocation2 + $0x24] sm:$0xf] %vm489, %v450
      %501 = vst.msk [vmem:[#allocation2 + $0x28] sm:$0xf] %vm489, %v451
      %502 = vst.msk [vmem:[#allocation2 + $0x2c] sm:$0x1] %vm492, %v452
      %503 = vst.msk [vmem:[#allocation2 + $0x30] sm:$0xf] %vm489, %v453
      %504 = vst.msk [vmem:[#allocation2 + $0x34] sm:$0xf] %vm489, %v454
      %505 = vst.msk [vmem:[#allocation2 + $0x38] sm:$0x1] %vm492, %v455
      %506 = vst.msk [vmem:[#allocation2 + $0x3c] sm:$0xf] %vm489, %v456
      %507 = vst.msk [vmem:[#allocation2 + $0x40] sm:$0xf] %vm489, %v457
      %508 = vst.msk [vmem:[#allocation2 + $0x44] sm:$0x1] %vm492, %v458
      %509 = vst.msk [vmem:[#allocation2 + $0x48] sm:$0xf] %vm489, %v459
      %510 = vst.msk [vmem:[#allocation2 + $0x4c] sm:$0xf] %vm489, %v460
      %511 = vst.msk [vmem:[#allocation2 + $0x50] sm:$0x1] %vm492, %v461
      %512 = vst.msk [vmem:[#allocation2 + $0x54] sm:$0xf] %vm489, %v462
      %513 = vst.msk [vmem:[#allocation2 + $0x58] sm:$0xf] %vm489, %v463
      %514 = vst.msk [vmem:[#allocation2 + $0x5c] sm:$0x1] %vm492, %v464
      %515 = vst.msk [vmem:[#allocation2 + $0x60] sm:$0xf] %vm489, %v465
      %516 = vst.msk [vmem:[#allocation2 + $0x64] sm:$0xf] %vm489, %v466
      %517 = vst.msk [vmem:[#allocation2 + $0x68] sm:$0x1] %vm492, %v467
      %518 = vst.msk [vmem:[#allocation2 + $0x6c] sm:$0xf] %vm489, %v468
      %519 = vst.msk [vmem:[#allocation2 + $0x70] sm:$0xf] %vm489, %v469
      %520 = vst.msk [vmem:[#allocation2 + $0x74] sm:$0x1] %vm492, %v470
      %521 = vst.msk [vmem:[#allocation2 + $0x78] sm:$0xf] %vm489, %v471
      %522 = vst.msk [vmem:[#allocation2 + $0x7c] sm:$0xf] %vm489, %v472
      %523 = vst.msk [vmem:[#allocation2 + $0x80] sm:$0x1] %vm492, %v473
      %524 = vst.msk [vmem:[#allocation2 + $0x84] sm:$0xf] %vm489, %v474
      %525 = vst.msk [vmem:[#allocation2 + $0x88] sm:$0xf] %vm489, %v475
      %526 = vst.msk [vmem:[#allocation2 + $0x8c] sm:$0x1] %vm492, %v476
      %527 = vst.msk [vmem:[#allocation2 + $0x90] sm:$0xf] %vm489, %v477
      %528 = vst.msk [vmem:[#allocation2 + $0x94] sm:$0xf] %vm489, %v478
      %529 = vst.msk [vmem:[#allocation2 + $0x98] sm:$0x1] %vm492, %v479
      %530 = vst.msk [vmem:[#allocation2 + $0x9c] sm:$0xf] %vm489, %v480
      %531 = vst.msk [vmem:[#allocation2 + $0xa0] sm:$0xf] %vm489, %v481
      %532 = vst.msk [vmem:[#allocation2 + $0xa4] sm:$0x1] %vm492, %v482
      %533 = vst.msk [vmem:[#allocation2 + $0xa8] sm:$0xf] %vm489, %v483
      %534 = vst.msk [vmem:[#allocation2 + $0xac] sm:$0xf] %vm489, %v484
      %535 = vst.msk [vmem:[#allocation2 + $0xb0] sm:$0x1] %vm492, %v485
      %536 = vst.msk [vmem:[#allocation2 + $0xb4] sm:$0xf] %vm489, %v486
      %537 = vst.msk [vmem:[#allocation2 + $0xb8] sm:$0xf] %vm489, %v487
      %538 = vst.msk [vmem:[#allocation2 + $0xbc] sm:$0x1] %vm492, %v488
      %v539 = vld [vmem:[%s414] sm:$0xf]
      %v540 = vld [vmem:[%s414 + $0x4] sm:$0xf]
      %v541 = vld [vmem:[%s414 + $0x8] sm:$0x1]
      %v542 = vld [vmem:[%s414 + $0xc] sm:$0xf]
      %v543 = vld [vmem:[%s414 + $0x10] sm:$0xf]
      %v544 = vld [vmem:[%s414 + $0x14] sm:$0x1]
      %s545 = scalar_lea.vmem [#allocation2], 192
      %546 = vst.msk [vmem:[%s545] sm:$0xf] %vm489, %v539
      %547 = vst.msk [vmem:[%s545 + $0x4] sm:$0xf] %vm489, %v540
      %548 = vst.msk [vmem:[%s545 + $0x8] sm:$0x1] %vm492, %v541
      %549 = vst.msk [vmem:[%s545 + $0xc] sm:$0xf] %vm489, %v542
      %550 = vst.msk [vmem:[%s545 + $0x10] sm:$0xf] %vm489, %v543
      %551 = vst.msk [vmem:[%s545 + $0x14] sm:$0x1] %vm492, %v544
      %v552 = vld [vmem:[#allocation2] sm:$0xf]
      %v553 = vld [vmem:[#allocation2 + $0x4] sm:$0xf]
      %v554 = vld [vmem:[#allocation2 + $0xc] sm:$0xf]
      %v555 = vld [vmem:[#allocation2 + $0x10] sm:$0xf]
      %v556 = vld [vmem:[#allocation2 + $0x18] sm:$0xf]
      %v557 = vld [vmem:[#allocation2 + $0x1c] sm:$0xf]
      %v558 = vld [vmem:[#allocation2 + $0x24] sm:$0xf]
      %v559 = vld [vmem:[#allocation2 + $0x28] sm:$0xf]
      %v560 = vld [vmem:[#allocation2 + $0x30] sm:$0xf]
      %v561 = vld [vmem:[#allocation2 + $0x34] sm:$0xf]
      %v562 = vld [vmem:[#allocation2 + $0x3c] sm:$0xf]
      %v563 = vld [vmem:[#allocation2 + $0x40] sm:$0xf]
      %v564 = vld [vmem:[#allocation2 + $0x48] sm:$0xf]
      %v565 = vld [vmem:[#allocation2 + $0x4c] sm:$0xf]
      %v566 = vld [vmem:[#allocation2 + $0x54] sm:$0xf]
      %v567 = vld [vmem:[#allocation2 + $0x58] sm:$0xf]
      %v568 = vld [vmem:[#allocation2 + $0x60] sm:$0xf]
      %v569 = vld [vmem:[#allocation2 + $0x64] sm:$0xf]
      %v570 = vld [vmem:[#allocation2 + $0x6c] sm:$0xf]
      %v571 = vld [vmem:[#allocation2 + $0x70] sm:$0xf]
      %v572 = vld [vmem:[#allocation2 + $0x78] sm:$0xf]
      %v573 = vld [vmem:[#allocation2 + $0x7c] sm:$0xf]
      %v574 = vld [vmem:[#allocation2 + $0x84] sm:$0xf]
      %v575 = vld [vmem:[#allocation2 + $0x88] sm:$0xf]
      %v576 = vld [vmem:[#allocation2 + $0x90] sm:$0xf]
      %v577 = vld [vmem:[#allocation2 + $0x94] sm:$0xf]
      %v578 = vld [vmem:[#allocation2 + $0x9c] sm:$0xf]
      %v579 = vld [vmem:[#allocation2 + $0xa0] sm:$0xf]
      %v580 = vld [vmem:[#allocation2 + $0xa8] sm:$0xf]
      %v581 = vld [vmem:[#allocation2 + $0xac] sm:$0xf]
      %v582 = vld [vmem:[#allocation2 + $0xb4] sm:$0xf]
      %v583 = vld [vmem:[#allocation2 + $0xb8] sm:$0xf]
      %v584 = vld [vmem:[%s3] sm:$0xf]
      %v585 = vld [vmem:[#allocation2 + $0x8] sm:$0x1]
      %v586 = vld [vmem:[#allocation2 + $0x14] sm:$0x1]
      %v587 = vld [vmem:[#allocation2 + $0x20] sm:$0x1]
      %v588 = vld [vmem:[#allocation2 + $0x2c] sm:$0x1]
      %v589 = vld [vmem:[#allocation2 + $0x38] sm:$0x1]
      %v590 = vld [vmem:[#allocation2 + $0x44] sm:$0x1]
      %v591 = vld [vmem:[#allocation2 + $0x50] sm:$0x1]
      %v592 = vld [vmem:[#allocation2 + $0x5c] sm:$0x1]
      %v593 = vld [vmem:[#allocation2 + $0x68] sm:$0x1]
      %v594 = vld [vmem:[#allocation2 + $0x74] sm:$0x1]
      %v595 = vld [vmem:[#allocation2 + $0x80] sm:$0x1]
      %v596 = vld [vmem:[#allocation2 + $0x8c] sm:$0x1]
      %v597 = vld [vmem:[#allocation2 + $0x98] sm:$0x1]
      %v598 = vld [vmem:[#allocation2 + $0xa4] sm:$0x1]
      %v599 = vld [vmem:[#allocation2 + $0xb0] sm:$0x1]
      %v600 = vld [vmem:[#allocation2 + $0xbc] sm:$0x1]
      %vm601 = vsmask.f32 3328
      %vm602 = vsmask.f32 7440
      %vm603 = vmor %vm601, %vm602
      %v605 = vshrl.u32 %v552, 16
      %v607 = vrot.slane %v605, 4
      %v608 = vshll.u32 %v552, 16
      %v610 = vrot.slane %v608, 5
      %v611 = vor.u32 %v607, %v610
      %v612 = vrot.slane %v611, 4
      %v614 = vshll.u32 %v553, 16
      %v616 = vrot.slane %v614, 5
      %v617 = vsel %vm603, %v612, %v616
      %v618 = vshrl.u32 %v553, 16
      %v620 = vrot.slane %v618, 4
      %v621 = vor.u32 %v620, %v616
      %v622 = vrot.slane %v621, 4
      %v624 = vshll.u32 %v585, 16
      %v626 = vrot.slane %v624, 5
      %v627 = vsel %vm603, %v622, %v626
      %v629 = vshrl.u32 %v554, 16
      %v631 = vrot.slane %v629, 4
      %v632 = vshll.u32 %v554, 16
      %v634 = vrot.slane %v632, 5
      %v635 = vor.u32 %v631, %v634
      %v636 = vrot.slane %v635, 4
      %v638 = vshll.u32 %v555, 16
      %v640 = vrot.slane %v638, 5
      %v641 = vsel %vm603, %v636, %v640
      %v642 = vshrl.u32 %v555, 16
      %v644 = vrot.slane %v642, 4
      %v645 = vor.u32 %v644, %v640
      %v646 = vrot.slane %v645, 4
      %v648 = vshll.u32 %v586, 16
      %v650 = vrot.slane %v648, 5
      %v651 = vsel %vm603, %v646, %v650
      %v653 = vshrl.u32 %v556, 16
      %v655 = vrot.slane %v653, 4
      %v656 = vshll.u32 %v556, 16
      %v658 = vrot.slane %v656, 5
      %v659 = vor.u32 %v655, %v658
      %v660 = vrot.slane %v659, 4
      %v662 = vshll.u32 %v557, 16
      %v664 = vrot.slane %v662, 5
      %v665 = vsel %vm603, %v660, %v664
      %v666 = vshrl.u32 %v557, 16
      %v668 = vrot.slane %v666, 4
      %v669 = vor.u32 %v668, %v664
      %v670 = vrot.slane %v669, 4
      %v672 = vshll.u32 %v587, 16
      %v674 = vrot.slane %v672, 5
      %v675 = vsel %vm603, %v670, %v674
      %v677 = vshrl.u32 %v558, 16
      %v679 = vrot.slane %v677, 4
      %v680 = vshll.u32 %v558, 16
      %v682 = vrot.slane %v680, 5
      %v683 = vor.u32 %v679, %v682
      %v684 = vrot.slane %v683, 4
      %v686 = vshll.u32 %v559, 16
      %v688 = vrot.slane %v686, 5
      %v689 = vsel %vm603, %v684, %v688
      %v690 = vshrl.u32 %v559, 16
      %v692 = vrot.slane %v690, 4
      %v693 = vor.u32 %v692, %v688
      %v694 = vrot.slane %v693, 4
      %v696 = vshll.u32 %v588, 16
      %v698 = vrot.slane %v696, 5
      %v699 = vsel %vm603, %v694, %v698
      %v701 = vshrl.u32 %v560, 16
      %v703 = vrot.slane %v701, 4
      %v704 = vshll.u32 %v560, 16
      %v706 = vrot.slane %v704, 5
      %v707 = vor.u32 %v703, %v706
      %v708 = vrot.slane %v707, 4
      %v710 = vshll.u32 %v561, 16
      %v712 = vrot.slane %v710, 5
      %v713 = vsel %vm603, %v708, %v712
      %v714 = vshrl.u32 %v561, 16
      %v716 = vrot.slane %v714, 4
      %v717 = vor.u32 %v716, %v712
      %v718 = vrot.slane %v717, 4
      %v720 = vshll.u32 %v589, 16
      %v722 = vrot.slane %v720, 5
      %v723 = vsel %vm603, %v718, %v722
      %v725 = vshrl.u32 %v562, 16
      %v727 = vrot.slane %v725, 4
      %v728 = vshll.u32 %v562, 16
      %v730 = vrot.slane %v728, 5
      %v731 = vor.u32 %v727, %v730
      %v732 = vrot.slane %v731, 4
      %v734 = vshll.u32 %v563, 16
      %v736 = vrot.slane %v734, 5
      %v737 = vsel %vm603, %v732, %v736
      %v738 = vshrl.u32 %v563, 16
      %v740 = vrot.slane %v738, 4
      %v741 = vor.u32 %v740, %v736
      %v742 = vrot.slane %v741, 4
      %v744 = vshll.u32 %v590, 16
      %v746 = vrot.slane %v744, 5
      %v747 = vsel %vm603, %v742, %v746
      %v749 = vshrl.u32 %v564, 16
      %v751 = vrot.slane %v749, 4
      %v752 = vshll.u32 %v564, 16
      %v754 = vrot.slane %v752, 5
      %v755 = vor.u32 %v751, %v754
      %v756 = vrot.slane %v755, 4
      %v758 = vshll.u32 %v565, 16
      %v760 = vrot.slane %v758, 5
      %v761 = vsel %vm603, %v756, %v760
      %v762 = vshrl.u32 %v565, 16
      %v764 = vrot.slane %v762, 4
      %v765 = vor.u32 %v764, %v760
      %v766 = vrot.slane %v765, 4
      %v768 = vshll.u32 %v591, 16
      %v770 = vrot.slane %v768, 5
      %v771 = vsel %vm603, %v766, %v770
      %v773 = vshrl.u32 %v566, 16
      %v775 = vrot.slane %v773, 4
      %v776 = vshll.u32 %v566, 16
      %v778 = vrot.slane %v776, 5
      %v779 = vor.u32 %v775, %v778
      %v780 = vrot.slane %v779, 4
      %v782 = vshll.u32 %v567, 16
      %v784 = vrot.slane %v782, 5
      %v785 = vsel %vm603, %v780, %v784
      %v786 = vshrl.u32 %v567, 16
      %v788 = vrot.slane %v786, 4
      %v789 = vor.u32 %v788, %v784
      %v790 = vrot.slane %v789, 4
      %v792 = vshll.u32 %v592, 16
      %v794 = vrot.slane %v792, 5
      %v795 = vsel %vm603, %v790, %v794
      %v797 = vshrl.u32 %v568, 16
      %v799 = vrot.slane %v797, 4
      %v800 = vshll.u32 %v568, 16
      %v802 = vrot.slane %v800, 5
      %v803 = vor.u32 %v799, %v802
      %v804 = vrot.slane %v803, 4
      %v806 = vshll.u32 %v569, 16
      %v808 = vrot.slane %v806, 5
      %v809 = vsel %vm603, %v804, %v808
      %v810 = vshrl.u32 %v569, 16
      %v812 = vrot.slane %v810, 4
      %v813 = vor.u32 %v812, %v808
      %v814 = vrot.slane %v813, 4
      %v816 = vshll.u32 %v593, 16
      %v818 = vrot.slane %v816, 5
      %v819 = vsel %vm603, %v814, %v818
      %v821 = vshrl.u32 %v570, 16
      %v823 = vrot.slane %v821, 4
      %v824 = vshll.u32 %v570, 16
      %v826 = vrot.slane %v824, 5
      %v827 = vor.u32 %v823, %v826
      %v828 = vrot.slane %v827, 4
      %v830 = vshll.u32 %v571, 16
      %v832 = vrot.slane %v830, 5
      %v833 = vsel %vm603, %v828, %v832
      %v834 = vshrl.u32 %v571, 16
      %v836 = vrot.slane %v834, 4
      %v837 = vor.u32 %v836, %v832
      %v838 = vrot.slane %v837, 4
      %v840 = vshll.u32 %v594, 16
      %v842 = vrot.slane %v840, 5
      %v843 = vsel %vm603, %v838, %v842
      %v845 = vshrl.u32 %v572, 16
      %v847 = vrot.slane %v845, 4
      %v848 = vshll.u32 %v572, 16
      %v850 = vrot.slane %v848, 5
      %v851 = vor.u32 %v847, %v850
      %v852 = vrot.slane %v851, 4
      %v854 = vshll.u32 %v573, 16
      %v856 = vrot.slane %v854, 5
      %v857 = vsel %vm603, %v852, %v856
      %v858 = vshrl.u32 %v573, 16
      %v860 = vrot.slane %v858, 4
      %v861 = vor.u32 %v860, %v856
      %v862 = vrot.slane %v861, 4
      %v864 = vshll.u32 %v595, 16
      %v866 = vrot.slane %v864, 5
      %v867 = vsel %vm603, %v862, %v866
      %v869 = vshrl.u32 %v574, 16
      %v871 = vrot.slane %v869, 4
      %v872 = vshll.u32 %v574, 16
      %v874 = vrot.slane %v872, 5
      %v875 = vor.u32 %v871, %v874
      %v876 = vrot.slane %v875, 4
      %v878 = vshll.u32 %v575, 16
      %v880 = vrot.slane %v878, 5
      %v881 = vsel %vm603, %v876, %v880
      %v882 = vshrl.u32 %v575, 16
      %v884 = vrot.slane %v882, 4
      %v885 = vor.u32 %v884, %v880
      %v886 = vrot.slane %v885, 4
      %v888 = vshll.u32 %v596, 16
      %v890 = vrot.slane %v888, 5
      %v891 = vsel %vm603, %v886, %v890
      %v893 = vshrl.u32 %v576, 16
      %v895 = vrot.slane %v893, 4
      %v896 = vshll.u32 %v576, 16
      %v898 = vrot.slane %v896, 5
      %v899 = vor.u32 %v895, %v898
      %v900 = vrot.slane %v899, 4
      %v902 = vshll.u32 %v577, 16
      %v904 = vrot.slane %v902, 5
      %v905 = vsel %vm603, %v900, %v904
      %v906 = vshrl.u32 %v577, 16
      %v908 = vrot.slane %v906, 4
      %v909 = vor.u32 %v908, %v904
      %v910 = vrot.slane %v909, 4
      %v912 = vshll.u32 %v597, 16
      %v914 = vrot.slane %v912, 5
      %v915 = vsel %vm603, %v910, %v914
      %v917 = vshrl.u32 %v578, 16
      %v919 = vrot.slane %v917, 4
      %v920 = vshll.u32 %v578, 16
      %v922 = vrot.slane %v920, 5
      %v923 = vor.u32 %v919, %v922
      %v924 = vrot.slane %v923, 4
      %v926 = vshll.u32 %v579, 16
      %v928 = vrot.slane %v926, 5
      %v929 = vsel %vm603, %v924, %v928
      %v930 = vshrl.u32 %v579, 16
      %v932 = vrot.slane %v930, 4
      %v933 = vor.u32 %v932, %v928
      %v934 = vrot.slane %v933, 4
      %v936 = vshll.u32 %v598, 16
      %v938 = vrot.slane %v936, 5
      %v939 = vsel %vm603, %v934, %v938
      %v941 = vshrl.u32 %v580, 16
      %v943 = vrot.slane %v941, 4
      %v944 = vshll.u32 %v580, 16
      %v946 = vrot.slane %v944, 5
      %v947 = vor.u32 %v943, %v946
      %v948 = vrot.slane %v947, 4
      %v950 = vshll.u32 %v581, 16
      %v952 = vrot.slane %v950, 5
      %v953 = vsel %vm603, %v948, %v952
      %v954 = vshrl.u32 %v581, 16
      %v956 = vrot.slane %v954, 4
      %v957 = vor.u32 %v956, %v952
      %v958 = vrot.slane %v957, 4
      %v960 = vshll.u32 %v599, 16
      %v962 = vrot.slane %v960, 5
      %v963 = vsel %vm603, %v958, %v962
      %v965 = vshrl.u32 %v582, 16
      %v967 = vrot.slane %v965, 4
      %v968 = vshll.u32 %v582, 16
      %v970 = vrot.slane %v968, 5
      %v971 = vor.u32 %v967, %v970
      %v972 = vrot.slane %v971, 4
      %v974 = vshll.u32 %v583, 16
      %v976 = vrot.slane %v974, 5
      %v977 = vsel %vm603, %v972, %v976
      %v978 = vshrl.u32 %v583, 16
      %v980 = vrot.slane %v978, 4
      %v981 = vor.u32 %v980, %v976
      %v982 = vrot.slane %v981, 4
      %v984 = vshll.u32 %v600, 16
      %v986 = vrot.slane %v984, 5
      %v987 = vsel %vm603, %v982, %v986
      %s988 = scalar_lea.vmem %s3, 4
      %v989 = vld [vmem:[%s988] sm:$0xf]
      %v990 = vunpack.c.l.b16 %v617
      %v991 = vunpack.c.l.b16 %v627
      %v992 = vunpack.c.l.b16 %v641
      %v993 = vunpack.c.l.b16 %v651
      %v994 = vunpack.c.l.b16 %v665
      %v995 = vunpack.c.l.b16 %v675
      %v996 = vunpack.c.l.b16 %v689
      %v997 = vunpack.c.l.b16 %v699
      %v998 = vunpack.c.l.b16 %v713
      %v999 = vunpack.c.l.b16 %v723
      %v1000 = vunpack.c.l.b16 %v737
      %v1001 = vunpack.c.l.b16 %v747
      %v1002 = vunpack.c.l.b16 %v761
      %v1003 = vunpack.c.l.b16 %v771
      %v1004 = vunpack.c.l.b16 %v785
      %v1005 = vunpack.c.l.b16 %v795
      %v1006 = vunpack.c.l.b16 %v809
      %v1007 = vunpack.c.l.b16 %v819
      %v1008 = vunpack.c.l.b16 %v833
      %v1009 = vunpack.c.l.b16 %v843
      %v1010 = vunpack.c.l.b16 %v857
      %v1011 = vunpack.c.l.b16 %v867
      %v1012 = vunpack.c.l.b16 %v881
      %v1013 = vunpack.c.l.b16 %v891
      %v1014 = vunpack.c.l.b16 %v905
      %v1015 = vunpack.c.l.b16 %v915
      %v1016 = vunpack.c.l.b16 %v929
      %v1017 = vunpack.c.l.b16 %v939
      %v1018 = vunpack.c.l.b16 %v953
      %v1019 = vunpack.c.l.b16 %v963
      %v1020 = vunpack.c.l.b16 %v977
      %v1021 = vunpack.c.l.b16 %v987
      %v1022 = vpack.c.b16 %v991, %v990
      %v1023 = vpack.c.b16 %v993, %v992
      %v1024 = vpack.c.b16 %v995, %v994
      %v1025 = vpack.c.b16 %v997, %v996
      %v1026 = vpack.c.b16 %v999, %v998
      %v1027 = vpack.c.b16 %v1001, %v1000
      %v1028 = vpack.c.b16 %v1003, %v1002
      %v1029 = vpack.c.b16 %v1005, %v1004
      %v1030 = vpack.c.b16 %v1007, %v1006
      %v1031 = vpack.c.b16 %v1009, %v1008
      %v1032 = vpack.c.b16 %v1011, %v1010
      %v1033 = vpack.c.b16 %v1013, %v1012
      %v1034 = vpack.c.b16 %v1015, %v1014
      %v1035 = vpack.c.b16 %v1017, %v1016
      %v1036 = vpack.c.b16 %v1019, %v1018
      %v1037 = vpack.c.b16 %v1021, %v1020
      %vm1038 = vcmask 64512
      %v1040 = vsel %vm1038, %v1022, 0
      %v1043 = vsel %vm1038, %v1023, 0
      %v1046 = vsel %vm1038, %v1024, 0
      %v1049 = vsel %vm1038, %v1025, 0
      %v1052 = vsel %vm1038, %v1026, 0
      %v1055 = vsel %vm1038, %v1027, 0
      %v1058 = vsel %vm1038, %v1028, 0
      %v1061 = vsel %vm1038, %v1029, 0
      %v1064 = vsel %vm1038, %v1030, 0
      %v1067 = vsel %vm1038, %v1031, 0
      %v1070 = vsel %vm1038, %v1032, 0
      %v1073 = vsel %vm1038, %v1033, 0
      %v1076 = vsel %vm1038, %v1034, 0
      %v1079 = vsel %vm1038, %v1035, 0
      %v1082 = vsel %vm1038, %v1036, 0
      %v1085 = vsel %vm1038, %v1037, 0
      %vm1087 = vcmask 1043456
      %v1089 = vsel %vm1087, %v989, 0
      %1091 = vmatprep.subr.bf16.mxu0 0
      %1092 = vmatpush1.bf16.msra.mxu0 0
      %1093 = vmatprep.subr.bf16.mxu0 0
      %1094 = vmatpush1.bf16.msra.mxu0 0
      %1095 = vmatprep.subr.bf16.mxu0 0
      %1096 = vmatpush1.bf16.msra.mxu0 0
      %1097 = vmatprep.subr.bf16.mxu0 0
      %1098 = vmatpush1.bf16.msra.mxu0 0
      %1099 = vmatprep.subr.bf16.mxu0 0
      %1100 = vmatpush1.bf16.msra.mxu0 0
      %1101 = vmatprep.subr.bf16.mxu0 0
      %1102 = vmatpush1.bf16.msra.mxu0 0
      %1103 = vmatprep.subr.bf16.mxu0 0
      %1104 = vmatpush1.bf16.msra.mxu0 0
      %1105 = vmatprep.subr.bf16.mxu0 0
      %1106 = vmatpush1.bf16.msra.mxu0 %v1089
      %1107 = vmatprep.subr.bf16.mxu0 0
      %1108 = vmatpush2.bf16.msra.mxu0 0
      %1109 = vmatprep.subr.bf16.mxu0 0
      %1110 = vmatpush2.bf16.msra.mxu0 0
      %1111 = vmatprep.subr.bf16.mxu0 0
      %1112 = vmatpush2.bf16.msra.mxu0 0
      %1113 = vmatprep.subr.bf16.mxu0 0
      %1114 = vmatpush2.bf16.msra.mxu0 0
      %1115 = vmatprep.subr.bf16.mxu0 0
      %1116 = vmatpush2.bf16.msra.mxu0 0
      %1117 = vmatprep.subr.bf16.mxu0 0
      %1118 = vmatpush2.bf16.msra.mxu0 0
      %1119 = vmatprep.subr.bf16.mxu0 0
      %1120 = vmatpush2.bf16.msra.mxu0 0
      %1121 = vmatprep.subr.bf16.mxu0 0
      %1122 = vmatpush2.bf16.msra.mxu0 0
      %1123 = vmatprep.mubr.bf16.mxu0 0
      %1124 = vmatmul.mubr.bf16.gmra.mxu0 %v1040
      %v1125 = vpop.f32.mrf.mxu0
      %v1126 = vadd.f32 0.0, %v1125
      %v1127 = vpop.f32.mrf.mxu0
      %v1128 = vpop.f32.mrf.mxu0
      %v1129 = vadd.f32 0.0, %v1128
      %v1130 = vpop.f32.mrf.mxu0
      %1131 = vmatprep.mubr.bf16.mxu0 0
      %1132 = vmatmul.mubr.bf16.gmra.mxu0 %v1043
      %v1133 = vpop.f32.mrf.mxu0
      %v1134 = vadd.f32 0.0, %v1133
      %v1135 = vpop.f32.mrf.mxu0
      %v1136 = vpop.f32.mrf.mxu0
      %v1137 = vadd.f32 0.0, %v1136
      %v1138 = vpop.f32.mrf.mxu0
      %1139 = vmatprep.mubr.bf16.mxu0 0
      %1140 = vmatmul.mubr.bf16.gmra.mxu0 %v1046
      %v1141 = vpop.f32.mrf.mxu0
      %v1142 = vadd.f32 0.0, %v1141
      %v1143 = vpop.f32.mrf.mxu0
      %v1144 = vpop.f32.mrf.mxu0
      %v1145 = vadd.f32 0.0, %v1144
      %v1146 = vpop.f32.mrf.mxu0
      %1147 = vmatprep.mubr.bf16.mxu0 0
      %1148 = vmatmul.mubr.bf16.gmra.mxu0 %v1049
      %v1149 = vpop.f32.mrf.mxu0
      %v1150 = vadd.f32 0.0, %v1149
      %v1151 = vpop.f32.mrf.mxu0
      %v1152 = vpop.f32.mrf.mxu0
      %v1153 = vadd.f32 0.0, %v1152
      %v1154 = vpop.f32.mrf.mxu0
      %1155 = vmatprep.mubr.bf16.mxu0 0
      %1156 = vmatmul.mubr.bf16.gmra.mxu0 %v1052
      %v1157 = vpop.f32.mrf.mxu0
      %v1158 = vadd.f32 0.0, %v1157
      %v1159 = vpop.f32.mrf.mxu0
      %v1160 = vpop.f32.mrf.mxu0
      %v1161 = vadd.f32 0.0, %v1160
      %v1162 = vpop.f32.mrf.mxu0
      %1163 = vmatprep.mubr.bf16.mxu0 0
      %1164 = vmatmul.mubr.bf16.gmra.mxu0 %v1055
      %v1165 = vpop.f32.mrf.mxu0
      %v1166 = vadd.f32 0.0, %v1165
      %v1167 = vpop.f32.mrf.mxu0
      %v1168 = vpop.f32.mrf.mxu0
      %v1169 = vadd.f32 0.0, %v1168
      %v1170 = vpop.f32.mrf.mxu0
      %1171 = vmatprep.mubr.bf16.mxu0 0
      %1172 = vmatmul.mubr.bf16.gmra.mxu0 %v1058
      %v1173 = vpop.f32.mrf.mxu0
      %v1174 = vadd.f32 0.0, %v1173
      %v1175 = vpop.f32.mrf.mxu0
      %v1176 = vpop.f32.mrf.mxu0
      %v1177 = vadd.f32 0.0, %v1176
      %v1178 = vpop.f32.mrf.mxu0
      %1179 = vmatprep.mubr.bf16.mxu0 0
      %1180 = vmatmul.mubr.bf16.gmra.mxu0 %v1061
      %v1181 = vpop.f32.mrf.mxu0
      %v1182 = vadd.f32 0.0, %v1181
      %v1183 = vpop.f32.mrf.mxu0
      %v1184 = vpop.f32.mrf.mxu0
      %v1185 = vadd.f32 0.0, %v1184
      %v1186 = vpop.f32.mrf.mxu0
      %1187 = vmatprep.mubr.bf16.mxu0 0
      %1188 = vmatmul.mubr.bf16.gmra.mxu0 %v1064
      %v1189 = vpop.f32.mrf.mxu0
      %v1190 = vadd.f32 0.0, %v1189
      %v1191 = vpop.f32.mrf.mxu0
      %v1192 = vpop.f32.mrf.mxu0
      %v1193 = vadd.f32 0.0, %v1192
      %v1194 = vpop.f32.mrf.mxu0
      %1195 = vmatprep.mubr.bf16.mxu0 0
      %1196 = vmatmul.mubr.bf16.gmra.mxu0 %v1067
      %v1197 = vpop.f32.mrf.mxu0
      %v1198 = vadd.f32 0.0, %v1197
      %v1199 = vpop.f32.mrf.mxu0
      %v1200 = vpop.f32.mrf.mxu0
      %v1201 = vadd.f32 0.0, %v1200
      %v1202 = vpop.f32.mrf.mxu0
      %1203 = vmatprep.mubr.bf16.mxu0 0
      %1204 = vmatmul.mubr.bf16.gmra.mxu0 %v1070
      %v1205 = vpop.f32.mrf.mxu0
      %v1206 = vadd.f32 0.0, %v1205
      %v1207 = vpop.f32.mrf.mxu0
      %v1208 = vpop.f32.mrf.mxu0
      %v1209 = vadd.f32 0.0, %v1208
      %v1210 = vpop.f32.mrf.mxu0
      %1211 = vmatprep.mubr.bf16.mxu0 0
      %1212 = vmatmul.mubr.bf16.gmra.mxu0 %v1073
      %v1213 = vpop.f32.mrf.mxu0
      %v1214 = vadd.f32 0.0, %v1213
      %v1215 = vpop.f32.mrf.mxu0
      %v1216 = vpop.f32.mrf.mxu0
      %v1217 = vadd.f32 0.0, %v1216
      %v1218 = vpop.f32.mrf.mxu0
      %1219 = vmatprep.mubr.bf16.mxu0 0
      %1220 = vmatmul.mubr.bf16.gmra.mxu0 %v1076
      %v1221 = vpop.f32.mrf.mxu0
      %v1222 = vadd.f32 0.0, %v1221
      %v1223 = vpop.f32.mrf.mxu0
      %v1224 = vpop.f32.mrf.mxu0
      %v1225 = vadd.f32 0.0, %v1224
      %v1226 = vpop.f32.mrf.mxu0
      %1227 = vmatprep.mubr.bf16.mxu0 0
      %1228 = vmatmul.mubr.bf16.gmra.mxu0 %v1079
      %v1229 = vpop.f32.mrf.mxu0
      %v1230 = vadd.f32 0.0, %v1229
      %v1231 = vpop.f32.mrf.mxu0
      %v1232 = vpop.f32.mrf.mxu0
      %v1233 = vadd.f32 0.0, %v1232
      %v1234 = vpop.f32.mrf.mxu0
      %1235 = vmatprep.mubr.bf16.mxu0 0
      %1236 = vmatmul.mubr.bf16.gmra.mxu0 %v1082
      %v1237 = vpop.f32.mrf.mxu0
      %v1238 = vadd.f32 0.0, %v1237
      %v1239 = vpop.f32.mrf.mxu0
      %v1240 = vpop.f32.mrf.mxu0
      %v1241 = vadd.f32 0.0, %v1240
      %v1242 = vpop.f32.mrf.mxu0
      %1243 = vmatprep.mubr.bf16.mxu0 0
      %1244 = vmatmul.mubr.bf16.gmra.mxu0 %v1085
      %v1245 = vpop.f32.mrf.mxu0
      %v1246 = vadd.f32 0.0, %v1245
      %v1247 = vpop.f32.mrf.mxu0
      %v1248 = vpop.f32.mrf.mxu0
      %v1249 = vadd.f32 0.0, %v1248
      %v1250 = vpop.f32.mrf.mxu0
      %1251 = vdwg.mxu0
      %v1284 = vunpack.c.l.b16 %v552
      %v1285 = vunpack.c.l.b16 %v553
      %v1286 = vunpack.c.l.b16 %v554
      %v1287 = vunpack.c.l.b16 %v555
      %v1288 = vunpack.c.l.b16 %v556
      %v1289 = vunpack.c.l.b16 %v557
      %v1290 = vunpack.c.l.b16 %v558
      %v1291 = vunpack.c.l.b16 %v559
      %v1292 = vunpack.c.l.b16 %v560
      %v1293 = vunpack.c.l.b16 %v561
      %v1294 = vunpack.c.l.b16 %v562
      %v1295 = vunpack.c.l.b16 %v563
      %v1296 = vunpack.c.l.b16 %v564
      %v1297 = vunpack.c.l.b16 %v565
      %v1298 = vunpack.c.l.b16 %v566
      %v1299 = vunpack.c.l.b16 %v567
      %v1300 = vunpack.c.l.b16 %v568
      %v1301 = vunpack.c.l.b16 %v569
      %v1302 = vunpack.c.l.b16 %v570
      %v1303 = vunpack.c.l.b16 %v571
      %v1304 = vunpack.c.l.b16 %v572
      %v1305 = vunpack.c.l.b16 %v573
      %v1306 = vunpack.c.l.b16 %v574
      %v1307 = vunpack.c.l.b16 %v575
      %v1308 = vunpack.c.l.b16 %v576
      %v1309 = vunpack.c.l.b16 %v577
      %v1310 = vunpack.c.l.b16 %v578
      %v1311 = vunpack.c.l.b16 %v579
      %v1312 = vunpack.c.l.b16 %v580
      %v1313 = vunpack.c.l.b16 %v581
      %v1314 = vunpack.c.l.b16 %v582
      %v1315 = vunpack.c.l.b16 %v583
      %v1316 = vpack.c.b16 %v1285, %v1284
      %v1317 = vpack.c.b16 %v1287, %v1286
      %v1318 = vpack.c.b16 %v1289, %v1288
      %v1319 = vpack.c.b16 %v1291, %v1290
      %v1320 = vpack.c.b16 %v1293, %v1292
      %v1321 = vpack.c.b16 %v1295, %v1294
      %v1322 = vpack.c.b16 %v1297, %v1296
      %v1323 = vpack.c.b16 %v1299, %v1298
      %v1324 = vpack.c.b16 %v1301, %v1300
      %v1325 = vpack.c.b16 %v1303, %v1302
      %v1326 = vpack.c.b16 %v1305, %v1304
      %v1327 = vpack.c.b16 %v1307, %v1306
      %v1328 = vpack.c.b16 %v1309, %v1308
      %v1329 = vpack.c.b16 %v1311, %v1310
      %v1330 = vpack.c.b16 %v1313, %v1312
      %v1331 = vpack.c.b16 %v1315, %v1314
      %v1333 = vsel %vm1038, %v1316, 0
      %v1336 = vsel %vm1038, %v1317, 0
      %v1339 = vsel %vm1038, %v1318, 0
      %v1342 = vsel %vm1038, %v1319, 0
      %v1345 = vsel %vm1038, %v1320, 0
      %v1348 = vsel %vm1038, %v1321, 0
      %v1351 = vsel %vm1038, %v1322, 0
      %v1354 = vsel %vm1038, %v1323, 0
      %v1357 = vsel %vm1038, %v1324, 0
      %v1360 = vsel %vm1038, %v1325, 0
      %v1363 = vsel %vm1038, %v1326, 0
      %v1366 = vsel %vm1038, %v1327, 0
      %v1369 = vsel %vm1038, %v1328, 0
      %v1372 = vsel %vm1038, %v1329, 0
      %v1375 = vsel %vm1038, %v1330, 0
      %v1378 = vsel %vm1038, %v1331, 0
      %v1381 = vsel %vm1087, %v584, 0
      %1383 = vmatprep.subr.bf16.mxu0 0
      %1384 = vmatpush1.bf16.msra.mxu0 0
      %1385 = vmatprep.subr.bf16.mxu0 0
      %1386 = vmatpush1.bf16.msra.mxu0 0
      %1387 = vmatprep.subr.bf16.mxu0 0
      %1388 = vmatpush1.bf16.msra.mxu0 0
      %1389 = vmatprep.subr.bf16.mxu0 0
      %1390 = vmatpush1.bf16.msra.mxu0 0
      %1391 = vmatprep.subr.bf16.mxu0 0
      %1392 = vmatpush1.bf16.msra.mxu0 0
      %1393 = vmatprep.subr.bf16.mxu0 0
      %1394 = vmatpush1.bf16.msra.mxu0 0
      %1395 = vmatprep.subr.bf16.mxu0 0
      %1396 = vmatpush1.bf16.msra.mxu0 0
      %1397 = vmatprep.subr.bf16.mxu0 0
      %1398 = vmatpush1.bf16.msra.mxu0 %v1381
      %1399 = vmatprep.subr.bf16.mxu0 0
      %1400 = vmatpush2.bf16.msra.mxu0 0
      %1401 = vmatprep.subr.bf16.mxu0 0
      %1402 = vmatpush2.bf16.msra.mxu0 0
      %1403 = vmatprep.subr.bf16.mxu0 0
      %1404 = vmatpush2.bf16.msra.mxu0 0
      %1405 = vmatprep.subr.bf16.mxu0 0
      %1406 = vmatpush2.bf16.msra.mxu0 0
      %1407 = vmatprep.subr.bf16.mxu0 0
      %1408 = vmatpush2.bf16.msra.mxu0 0
      %1409 = vmatprep.subr.bf16.mxu0 0
      %1410 = vmatpush2.bf16.msra.mxu0 0
      %1411 = vmatprep.subr.bf16.mxu0 0
      %1412 = vmatpush2.bf16.msra.mxu0 0
      %1413 = vmatprep.subr.bf16.mxu0 0
      %1414 = vmatpush2.bf16.msra.mxu0 0
      %1415 = vmatprep.mubr.bf16.mxu0 0
      %1416 = vmatmul.mubr.bf16.gmra.mxu0 %v1333
      %v1417 = vpop.f32.mrf.mxu0
      %v1418 = vadd.f32 %v1126, %v1417
      %v1419 = vpop.f32.mrf.mxu0
      %v1420 = vpop.f32.mrf.mxu0
      %v1421 = vadd.f32 %v1129, %v1420
      %v1422 = vpop.f32.mrf.mxu0
      %1423 = vmatprep.mubr.bf16.mxu0 0
      %1424 = vmatmul.mubr.bf16.gmra.mxu0 %v1336
      %v1425 = vpop.f32.mrf.mxu0
      %v1426 = vadd.f32 %v1134, %v1425
      %v1427 = vpop.f32.mrf.mxu0
      %v1428 = vpop.f32.mrf.mxu0
      %v1429 = vadd.f32 %v1137, %v1428
      %v1430 = vpop.f32.mrf.mxu0
      %1431 = vmatprep.mubr.bf16.mxu0 0
      %1432 = vmatmul.mubr.bf16.gmra.mxu0 %v1339
      %v1433 = vpop.f32.mrf.mxu0
      %v1434 = vadd.f32 %v1142, %v1433
      %v1435 = vpop.f32.mrf.mxu0
      %v1436 = vpop.f32.mrf.mxu0
      %v1437 = vadd.f32 %v1145, %v1436
      %v1438 = vpop.f32.mrf.mxu0
      %1439 = vmatprep.mubr.bf16.mxu0 0
      %1440 = vmatmul.mubr.bf16.gmra.mxu0 %v1342
      %v1441 = vpop.f32.mrf.mxu0
      %v1442 = vadd.f32 %v1150, %v1441
      %v1443 = vpop.f32.mrf.mxu0
      %v1444 = vpop.f32.mrf.mxu0
      %v1445 = vadd.f32 %v1153, %v1444
      %v1446 = vpop.f32.mrf.mxu0
      %1447 = vmatprep.mubr.bf16.mxu0 0
      %1448 = vmatmul.mubr.bf16.gmra.mxu0 %v1345
      %v1449 = vpop.f32.mrf.mxu0
      %v1450 = vadd.f32 %v1158, %v1449
      %v1451 = vpop.f32.mrf.mxu0
      %v1452 = vpop.f32.mrf.mxu0
      %v1453 = vadd.f32 %v1161, %v1452
      %v1454 = vpop.f32.mrf.mxu0
      %1455 = vmatprep.mubr.bf16.mxu0 0
      %1456 = vmatmul.mubr.bf16.gmra.mxu0 %v1348
      %v1457 = vpop.f32.mrf.mxu0
      %v1458 = vadd.f32 %v1166, %v1457
      %v1459 = vpop.f32.mrf.mxu0
      %v1460 = vpop.f32.mrf.mxu0
      %v1461 = vadd.f32 %v1169, %v1460
      %v1462 = vpop.f32.mrf.mxu0
      %1463 = vmatprep.mubr.bf16.mxu0 0
      %1464 = vmatmul.mubr.bf16.gmra.mxu0 %v1351
      %v1465 = vpop.f32.mrf.mxu0
      %v1466 = vadd.f32 %v1174, %v1465
      %v1467 = vpop.f32.mrf.mxu0
      %v1468 = vpop.f32.mrf.mxu0
      %v1469 = vadd.f32 %v1177, %v1468
      %v1470 = vpop.f32.mrf.mxu0
      %1471 = vmatprep.mubr.bf16.mxu0 0
      %1472 = vmatmul.mubr.bf16.gmra.mxu0 %v1354
      %v1473 = vpop.f32.mrf.mxu0
      %v1474 = vadd.f32 %v1182, %v1473
      %v1475 = vpop.f32.mrf.mxu0
      %v1476 = vpop.f32.mrf.mxu0
      %v1477 = vadd.f32 %v1185, %v1476
      %v1478 = vpop.f32.mrf.mxu0
      %1479 = vmatprep.mubr.bf16.mxu0 0
      %1480 = vmatmul.mubr.bf16.gmra.mxu0 %v1357
      %v1481 = vpop.f32.mrf.mxu0
      %v1482 = vadd.f32 %v1190, %v1481
      %v1483 = vpop.f32.mrf.mxu0
      %v1484 = vpop.f32.mrf.mxu0
      %v1485 = vadd.f32 %v1193, %v1484
      %v1486 = vpop.f32.mrf.mxu0
      %1487 = vmatprep.mubr.bf16.mxu0 0
      %1488 = vmatmul.mubr.bf16.gmra.mxu0 %v1360
      %v1489 = vpop.f32.mrf.mxu0
      %v1490 = vadd.f32 %v1198, %v1489
      %v1491 = vpop.f32.mrf.mxu0
      %v1492 = vpop.f32.mrf.mxu0
      %v1493 = vadd.f32 %v1201, %v1492
      %v1494 = vpop.f32.mrf.mxu0
      %1495 = vmatprep.mubr.bf16.mxu0 0
      %1496 = vmatmul.mubr.bf16.gmra.mxu0 %v1363
      %v1497 = vpop.f32.mrf.mxu0
      %v1498 = vadd.f32 %v1206, %v1497
      %v1499 = vpop.f32.mrf.mxu0
      %v1500 = vpop.f32.mrf.mxu0
      %v1501 = vadd.f32 %v1209, %v1500
      %v1502 = vpop.f32.mrf.mxu0
      %1503 = vmatprep.mubr.bf16.mxu0 0
      %1504 = vmatmul.mubr.bf16.gmra.mxu0 %v1366
      %v1505 = vpop.f32.mrf.mxu0
      %v1506 = vadd.f32 %v1214, %v1505
      %v1507 = vpop.f32.mrf.mxu0
      %v1508 = vpop.f32.mrf.mxu0
      %v1509 = vadd.f32 %v1217, %v1508
      %v1510 = vpop.f32.mrf.mxu0
      %1511 = vmatprep.mubr.bf16.mxu0 0
      %1512 = vmatmul.mubr.bf16.gmra.mxu0 %v1369
      %v1513 = vpop.f32.mrf.mxu0
      %v1514 = vadd.f32 %v1222, %v1513
      %v1515 = vpop.f32.mrf.mxu0
      %v1516 = vpop.f32.mrf.mxu0
      %v1517 = vadd.f32 %v1225, %v1516
      %v1518 = vpop.f32.mrf.mxu0
      %1519 = vmatprep.mubr.bf16.mxu0 0
      %1520 = vmatmul.mubr.bf16.gmra.mxu0 %v1372
      %v1521 = vpop.f32.mrf.mxu0
      %v1522 = vadd.f32 %v1230, %v1521
      %v1523 = vpop.f32.mrf.mxu0
      %v1524 = vpop.f32.mrf.mxu0
      %v1525 = vadd.f32 %v1233, %v1524
      %v1526 = vpop.f32.mrf.mxu0
      %1527 = vmatprep.mubr.bf16.mxu0 0
      %1528 = vmatmul.mubr.bf16.gmra.mxu0 %v1375
      %v1529 = vpop.f32.mrf.mxu0
      %v1530 = vadd.f32 %v1238, %v1529
      %v1531 = vpop.f32.mrf.mxu0
      %v1532 = vpop.f32.mrf.mxu0
      %v1533 = vadd.f32 %v1241, %v1532
      %v1534 = vpop.f32.mrf.mxu0
      %1535 = vmatprep.mubr.bf16.mxu0 0
      %1536 = vmatmul.mubr.bf16.gmra.mxu0 %v1378
      %v1537 = vpop.f32.mrf.mxu0
      %v1538 = vadd.f32 %v1246, %v1537
      %v1539 = vpop.f32.mrf.mxu0
      %v1540 = vpop.f32.mrf.mxu0
      %v1541 = vadd.f32 %v1249, %v1540
      %v1542 = vpop.f32.mrf.mxu0
      %1543 = vdwg.mxu0
      %v1544 = vld [vmem:[#allocation2] sm:$0xe]
      %v1545 = vld [vmem:[#allocation2 + $0xc] sm:$0xe]
      %v1546 = vld [vmem:[#allocation2 + $0x18] sm:$0xe]
      %v1547 = vld [vmem:[#allocation2 + $0x24] sm:$0xe]
      %v1548 = vld [vmem:[#allocation2 + $0x30] sm:$0xe]
      %v1549 = vld [vmem:[#allocation2 + $0x3c] sm:$0xe]
      %v1550 = vld [vmem:[#allocation2 + $0x48] sm:$0xe]
      %v1551 = vld [vmem:[#allocation2 + $0x54] sm:$0xe]
      %v1552 = vld [vmem:[#allocation2 + $0x60] sm:$0xe]
      %v1553 = vld [vmem:[#allocation2 + $0x6c] sm:$0xe]
      %v1554 = vld [vmem:[#allocation2 + $0x78] sm:$0xe]
      %v1555 = vld [vmem:[#allocation2 + $0x84] sm:$0xe]
      %v1556 = vld [vmem:[#allocation2 + $0x90] sm:$0xe]
      %v1557 = vld [vmem:[#allocation2 + $0x9c] sm:$0xe]
      %v1558 = vld [vmem:[#allocation2 + $0xa8] sm:$0xe]
      %v1559 = vld [vmem:[#allocation2 + $0xb4] sm:$0xe]
      %vm1592 = vcmask 1042432
      %vm1593 = vcmask 1046532
      %vm1594 = vmor %vm1592, %vm1593
      %v1595 = vrot.slane %v1544, 5
      %v1596 = vrot.slane %v1595, 4
      %v1597 = vrot.slane %v553, 5
      %v1598 = vsel %vm1594, %v1596, %v1597
      %v1599 = vrot.slane %v1597, 4
      %v1600 = vrot.slane %v585, 5
      %v1601 = vsel %vm1594, %v1599, %v1600
      %v1602 = vrot.slane %v1545, 5
      %v1603 = vrot.slane %v1602, 4
      %v1604 = vrot.slane %v555, 5
      %v1605 = vsel %vm1594, %v1603, %v1604
      %v1606 = vrot.slane %v1604, 4
      %v1607 = vrot.slane %v586, 5
      %v1608 = vsel %vm1594, %v1606, %v1607
      %v1609 = vrot.slane %v1546, 5
      %v1610 = vrot.slane %v1609, 4
      %v1611 = vrot.slane %v557, 5
      %v1612 = vsel %vm1594, %v1610, %v1611
      %v1613 = vrot.slane %v1611, 4
      %v1614 = vrot.slane %v587, 5
      %v1615 = vsel %vm1594, %v1613, %v1614
      %v1616 = vrot.slane %v1547, 5
      %v1617 = vrot.slane %v1616, 4
      %v1618 = vrot.slane %v559, 5
      %v1619 = vsel %vm1594, %v1617, %v1618
      %v1620 = vrot.slane %v1618, 4
      %v1621 = vrot.slane %v588, 5
      %v1622 = vsel %vm1594, %v1620, %v1621
      %v1623 = vrot.slane %v1548, 5
      %v1624 = vrot.slane %v1623, 4
      %v1625 = vrot.slane %v561, 5
      %v1626 = vsel %vm1594, %v1624, %v1625
      %v1627 = vrot.slane %v1625, 4
      %v1628 = vrot.slane %v589, 5
      %v1629 = vsel %vm1594, %v1627, %v1628
      %v1630 = vrot.slane %v1549, 5
      %v1631 = vrot.slane %v1630, 4
      %v1632 = vrot.slane %v563, 5
      %v1633 = vsel %vm1594, %v1631, %v1632
      %v1634 = vrot.slane %v1632, 4
      %v1635 = vrot.slane %v590, 5
      %v1636 = vsel %vm1594, %v1634, %v1635
      %v1637 = vrot.slane %v1550, 5
      %v1638 = vrot.slane %v1637, 4
      %v1639 = vrot.slane %v565, 5
      %v1640 = vsel %vm1594, %v1638, %v1639
      %v1641 = vrot.slane %v1639, 4
      %v1642 = vrot.slane %v591, 5
      %v1643 = vsel %vm1594, %v1641, %v1642
      %v1644 = vrot.slane %v1551, 5
      %v1645 = vrot.slane %v1644, 4
      %v1646 = vrot.slane %v567, 5
      %v1647 = vsel %vm1594, %v1645, %v1646
      %v1648 = vrot.slane %v1646, 4
      %v1649 = vrot.slane %v592, 5
      %v1650 = vsel %vm1594, %v1648, %v1649
      %v1651 = vrot.slane %v1552, 5
      %v1652 = vrot.slane %v1651, 4
      %v1653 = vrot.slane %v569, 5
      %v1654 = vsel %vm1594, %v1652, %v1653
      %v1655 = vrot.slane %v1653, 4
      %v1656 = vrot.slane %v593, 5
      %v1657 = vsel %vm1594, %v1655, %v1656
      %v1658 = vrot.slane %v1553, 5
      %v1659 = vrot.slane %v1658, 4
      %v1660 = vrot.slane %v571, 5
      %v1661 = vsel %vm1594, %v1659, %v1660
      %v1662 = vrot.slane %v1660, 4
      %v1663 = vrot.slane %v594, 5
      %v1664 = vsel %vm1594, %v1662, %v1663
      %v1665 = vrot.slane %v1554, 5
      %v1666 = vrot.slane %v1665, 4
      %v1667 = vrot.slane %v573, 5
      %v1668 = vsel %vm1594, %v1666, %v1667
      %v1669 = vrot.slane %v1667, 4
      %v1670 = vrot.slane %v595, 5
      %v1671 = vsel %vm1594, %v1669, %v1670
      %v1672 = vrot.slane %v1555, 5
      %v1673 = vrot.slane %v1672, 4
      %v1674 = vrot.slane %v575, 5
      %v1675 = vsel %vm1594, %v1673, %v1674
      %v1676 = vrot.slane %v1674, 4
      %v1677 = vrot.slane %v596, 5
      %v1678 = vsel %vm1594, %v1676, %v1677
      %v1679 = vrot.slane %v1556, 5
      %v1680 = vrot.slane %v1679, 4
      %v1681 = vrot.slane %v577, 5
      %v1682 = vsel %vm1594, %v1680, %v1681
      %v1683 = vrot.slane %v1681, 4
      %v1684 = vrot.slane %v597, 5
      %v1685 = vsel %vm1594, %v1683, %v1684
      %v1686 = vrot.slane %v1557, 5
      %v1687 = vrot.slane %v1686, 4
      %v1688 = vrot.slane %v579, 5
      %v1689 = vsel %vm1594, %v1687, %v1688
      %v1690 = vrot.slane %v1688, 4
      %v1691 = vrot.slane %v598, 5
      %v1692 = vsel %vm1594, %v1690, %v1691
      %v1693 = vrot.slane %v1558, 5
      %v1694 = vrot.slane %v1693, 4
      %v1695 = vrot.slane %v581, 5
      %v1696 = vsel %vm1594, %v1694, %v1695
      %v1697 = vrot.slane %v1695, 4
      %v1698 = vrot.slane %v599, 5
      %v1699 = vsel %vm1594, %v1697, %v1698
      %v1700 = vrot.slane %v1559, 5
      %v1701 = vrot.slane %v1700, 4
      %v1702 = vrot.slane %v583, 5
      %v1703 = vsel %vm1594, %v1701, %v1702
      %v1704 = vrot.slane %v1702, 4
      %v1705 = vrot.slane %v600, 5
      %v1706 = vsel %vm1594, %v1704, %v1705
      %s1707 = scalar_lea.vmem %s3, 8
      %v1708 = vld [vmem:[%s1707] sm:$0xf]
      %v1709 = vunpack.c.l.b16 %v1598
      %v1710 = vunpack.c.l.b16 %v1601
      %v1711 = vunpack.c.l.b16 %v1605
      %v1712 = vunpack.c.l.b16 %v1608
      %v1713 = vunpack.c.l.b16 %v1612
      %v1714 = vunpack.c.l.b16 %v1615
      %v1715 = vunpack.c.l.b16 %v1619
      %v1716 = vunpack.c.l.b16 %v1622
      %v1717 = vunpack.c.l.b16 %v1626
      %v1718 = vunpack.c.l.b16 %v1629
      %v1719 = vunpack.c.l.b16 %v1633
      %v1720 = vunpack.c.l.b16 %v1636
      %v1721 = vunpack.c.l.b16 %v1640
      %v1722 = vunpack.c.l.b16 %v1643
      %v1723 = vunpack.c.l.b16 %v1647
      %v1724 = vunpack.c.l.b16 %v1650
      %v1725 = vunpack.c.l.b16 %v1654
      %v1726 = vunpack.c.l.b16 %v1657
      %v1727 = vunpack.c.l.b16 %v1661
      %v1728 = vunpack.c.l.b16 %v1664
      %v1729 = vunpack.c.l.b16 %v1668
      %v1730 = vunpack.c.l.b16 %v1671
      %v1731 = vunpack.c.l.b16 %v1675
      %v1732 = vunpack.c.l.b16 %v1678
      %v1733 = vunpack.c.l.b16 %v1682
      %v1734 = vunpack.c.l.b16 %v1685
      %v1735 = vunpack.c.l.b16 %v1689
      %v1736 = vunpack.c.l.b16 %v1692
      %v1737 = vunpack.c.l.b16 %v1696
      %v1738 = vunpack.c.l.b16 %v1699
      %v1739 = vunpack.c.l.b16 %v1703
      %v1740 = vunpack.c.l.b16 %v1706
      %v1741 = vpack.c.b16 %v1710, %v1709
      %v1742 = vpack.c.b16 %v1712, %v1711
      %v1743 = vpack.c.b16 %v1714, %v1713
      %v1744 = vpack.c.b16 %v1716, %v1715
      %v1745 = vpack.c.b16 %v1718, %v1717
      %v1746 = vpack.c.b16 %v1720, %v1719
      %v1747 = vpack.c.b16 %v1722, %v1721
      %v1748 = vpack.c.b16 %v1724, %v1723
      %v1749 = vpack.c.b16 %v1726, %v1725
      %v1750 = vpack.c.b16 %v1728, %v1727
      %v1751 = vpack.c.b16 %v1730, %v1729
      %v1752 = vpack.c.b16 %v1732, %v1731
      %v1753 = vpack.c.b16 %v1734, %v1733
      %v1754 = vpack.c.b16 %v1736, %v1735
      %v1755 = vpack.c.b16 %v1738, %v1737
      %v1756 = vpack.c.b16 %v1740, %v1739
      %v1758 = vsel %vm1038, %v1741, 0
      %v1761 = vsel %vm1038, %v1742, 0
      %v1764 = vsel %vm1038, %v1743, 0
      %v1767 = vsel %vm1038, %v1744, 0
      %v1770 = vsel %vm1038, %v1745, 0
      %v1773 = vsel %vm1038, %v1746, 0
      %v1776 = vsel %vm1038, %v1747, 0
      %v1779 = vsel %vm1038, %v1748, 0
      %v1782 = vsel %vm1038, %v1749, 0
      %v1785 = vsel %vm1038, %v1750, 0
      %v1788 = vsel %vm1038, %v1751, 0
      %v1791 = vsel %vm1038, %v1752, 0
      %v1794 = vsel %vm1038, %v1753, 0
      %v1797 = vsel %vm1038, %v1754, 0
      %v1800 = vsel %vm1038, %v1755, 0
      %v1803 = vsel %vm1038, %v1756, 0
      %v1806 = vsel %vm1087, %v1708, 0
      %1808 = vmatprep.subr.bf16.mxu0 0
      %1809 = vmatpush1.bf16.msra.mxu0 0
      %1810 = vmatprep.subr.bf16.mxu0 0
      %1811 = vmatpush1.bf16.msra.mxu0 0
      %1812 = vmatprep.subr.bf16.mxu0 0
      %1813 = vmatpush1.bf16.msra.mxu0 0
      %1814 = vmatprep.subr.bf16.mxu0 0
      %1815 = vmatpush1.bf16.msra.mxu0 0
      %1816 = vmatprep.subr.bf16.mxu0 0
      %1817 = vmatpush1.bf16.msra.mxu0 0
      %1818 = vmatprep.subr.bf16.mxu0 0
      %1819 = vmatpush1.bf16.msra.mxu0 0
      %1820 = vmatprep.subr.bf16.mxu0 0
      %1821 = vmatpush1.bf16.msra.mxu0 0
      %1822 = vmatprep.subr.bf16.mxu0 0
      %1823 = vmatpush1.bf16.msra.mxu0 %v1806
      %1824 = vmatprep.subr.bf16.mxu0 0
      %1825 = vmatpush2.bf16.msra.mxu0 0
      %1826 = vmatprep.subr.bf16.mxu0 0
      %1827 = vmatpush2.bf16.msra.mxu0 0
      %1828 = vmatprep.subr.bf16.mxu0 0
      %1829 = vmatpush2.bf16.msra.mxu0 0
      %1830 = vmatprep.subr.bf16.mxu0 0
      %1831 = vmatpush2.bf16.msra.mxu0 0
      %1832 = vmatprep.subr.bf16.mxu0 0
      %1833 = vmatpush2.bf16.msra.mxu0 0
      %1834 = vmatprep.subr.bf16.mxu0 0
      %1835 = vmatpush2.bf16.msra.mxu0 0
      %1836 = vmatprep.subr.bf16.mxu0 0
      %1837 = vmatpush2.bf16.msra.mxu0 0
      %1838 = vmatprep.subr.bf16.mxu0 0
      %1839 = vmatpush2.bf16.msra.mxu0 0
      %1840 = vmatprep.mubr.bf16.mxu0 0
      %1841 = vmatmul.mubr.bf16.gmra.mxu0 %v1758
      %v1842 = vpop.f32.mrf.mxu0
      %v1843 = vadd.f32 0.0, %v1842
      %v1844 = vpop.f32.mrf.mxu0
      %v1845 = vpop.f32.mrf.mxu0
      %v1846 = vadd.f32 0.0, %v1845
      %v1847 = vpop.f32.mrf.mxu0
      %1848 = vmatprep.mubr.bf16.mxu0 0
      %1849 = vmatmul.mubr.bf16.gmra.mxu0 %v1761
      %v1850 = vpop.f32.mrf.mxu0
      %v1851 = vadd.f32 0.0, %v1850
      %v1852 = vpop.f32.mrf.mxu0
      %v1853 = vpop.f32.mrf.mxu0
      %v1854 = vadd.f32 0.0, %v1853
      %v1855 = vpop.f32.mrf.mxu0
      %1856 = vmatprep.mubr.bf16.mxu0 0
      %1857 = vmatmul.mubr.bf16.gmra.mxu0 %v1764
      %v1858 = vpop.f32.mrf.mxu0
      %v1859 = vadd.f32 0.0, %v1858
      %v1860 = vpop.f32.mrf.mxu0
      %v1861 = vpop.f32.mrf.mxu0
      %v1862 = vadd.f32 0.0, %v1861
      %v1863 = vpop.f32.mrf.mxu0
      %1864 = vmatprep.mubr.bf16.mxu0 0
      %1865 = vmatmul.mubr.bf16.gmra.mxu0 %v1767
      %v1866 = vpop.f32.mrf.mxu0
      %v1867 = vadd.f32 0.0, %v1866
      %v1868 = vpop.f32.mrf.mxu0
      %v1869 = vpop.f32.mrf.mxu0
      %v1870 = vadd.f32 0.0, %v1869
      %v1871 = vpop.f32.mrf.mxu0
      %1872 = vmatprep.mubr.bf16.mxu0 0
      %1873 = vmatmul.mubr.bf16.gmra.mxu0 %v1770
      %v1874 = vpop.f32.mrf.mxu0
      %v1875 = vadd.f32 0.0, %v1874
      %v1876 = vpop.f32.mrf.mxu0
      %v1877 = vpop.f32.mrf.mxu0
      %v1878 = vadd.f32 0.0, %v1877
      %v1879 = vpop.f32.mrf.mxu0
      %1880 = vmatprep.mubr.bf16.mxu0 0
      %1881 = vmatmul.mubr.bf16.gmra.mxu0 %v1773
      %v1882 = vpop.f32.mrf.mxu0
      %v1883 = vadd.f32 0.0, %v1882
      %v1884 = vpop.f32.mrf.mxu0
      %v1885 = vpop.f32.mrf.mxu0
      %v1886 = vadd.f32 0.0, %v1885
      %v1887 = vpop.f32.mrf.mxu0
      %1888 = vmatprep.mubr.bf16.mxu0 0
      %1889 = vmatmul.mubr.bf16.gmra.mxu0 %v1776
      %v1890 = vpop.f32.mrf.mxu0
      %v1891 = vadd.f32 0.0, %v1890
      %v1892 = vpop.f32.mrf.mxu0
      %v1893 = vpop.f32.mrf.mxu0
      %v1894 = vadd.f32 0.0, %v1893
      %v1895 = vpop.f32.mrf.mxu0
      %1896 = vmatprep.mubr.bf16.mxu0 0
      %1897 = vmatmul.mubr.bf16.gmra.mxu0 %v1779
      %v1898 = vpop.f32.mrf.mxu0
      %v1899 = vadd.f32 0.0, %v1898
      %v1900 = vpop.f32.mrf.mxu0
      %v1901 = vpop.f32.mrf.mxu0
      %v1902 = vadd.f32 0.0, %v1901
      %v1903 = vpop.f32.mrf.mxu0
      %1904 = vmatprep.mubr.bf16.mxu0 0
      %1905 = vmatmul.mubr.bf16.gmra.mxu0 %v1782
      %v1906 = vpop.f32.mrf.mxu0
      %v1907 = vadd.f32 0.0, %v1906
      %v1908 = vpop.f32.mrf.mxu0
      %v1909 = vpop.f32.mrf.mxu0
      %v1910 = vadd.f32 0.0, %v1909
      %v1911 = vpop.f32.mrf.mxu0
      %1912 = vmatprep.mubr.bf16.mxu0 0
      %1913 = vmatmul.mubr.bf16.gmra.mxu0 %v1785
      %v1914 = vpop.f32.mrf.mxu0
      %v1915 = vadd.f32 0.0, %v1914
      %v1916 = vpop.f32.mrf.mxu0
      %v1917 = vpop.f32.mrf.mxu0
      %v1918 = vadd.f32 0.0, %v1917
      %v1919 = vpop.f32.mrf.mxu0
      %1920 = vmatprep.mubr.bf16.mxu0 0
      %1921 = vmatmul.mubr.bf16.gmra.mxu0 %v1788
      %v1922 = vpop.f32.mrf.mxu0
      %v1923 = vadd.f32 0.0, %v1922
      %v1924 = vpop.f32.mrf.mxu0
      %v1925 = vpop.f32.mrf.mxu0
      %v1926 = vadd.f32 0.0, %v1925
      %v1927 = vpop.f32.mrf.mxu0
      %1928 = vmatprep.mubr.bf16.mxu0 0
      %1929 = vmatmul.mubr.bf16.gmra.mxu0 %v1791
      %v1930 = vpop.f32.mrf.mxu0
      %v1931 = vadd.f32 0.0, %v1930
      %v1932 = vpop.f32.mrf.mxu0
      %v1933 = vpop.f32.mrf.mxu0
      %v1934 = vadd.f32 0.0, %v1933
      %v1935 = vpop.f32.mrf.mxu0
      %1936 = vmatprep.mubr.bf16.mxu0 0
      %1937 = vmatmul.mubr.bf16.gmra.mxu0 %v1794
      %v1938 = vpop.f32.mrf.mxu0
      %v1939 = vadd.f32 0.0, %v1938
      %v1940 = vpop.f32.mrf.mxu0
      %v1941 = vpop.f32.mrf.mxu0
      %v1942 = vadd.f32 0.0, %v1941
      %v1943 = vpop.f32.mrf.mxu0
      %1944 = vmatprep.mubr.bf16.mxu0 0
      %1945 = vmatmul.mubr.bf16.gmra.mxu0 %v1797
      %v1946 = vpop.f32.mrf.mxu0
      %v1947 = vadd.f32 0.0, %v1946
      %v1948 = vpop.f32.mrf.mxu0
      %v1949 = vpop.f32.mrf.mxu0
      %v1950 = vadd.f32 0.0, %v1949
      %v1951 = vpop.f32.mrf.mxu0
      %1952 = vmatprep.mubr.bf16.mxu0 0
      %1953 = vmatmul.mubr.bf16.gmra.mxu0 %v1800
      %v1954 = vpop.f32.mrf.mxu0
      %v1955 = vadd.f32 0.0, %v1954
      %v1956 = vpop.f32.mrf.mxu0
      %v1957 = vpop.f32.mrf.mxu0
      %v1958 = vadd.f32 0.0, %v1957
      %v1959 = vpop.f32.mrf.mxu0
      %1960 = vmatprep.mubr.bf16.mxu0 0
      %1961 = vmatmul.mubr.bf16.gmra.mxu0 %v1803
      %v1962 = vpop.f32.mrf.mxu0
      %v1963 = vadd.f32 0.0, %v1962
      %v1964 = vpop.f32.mrf.mxu0
      %v1965 = vpop.f32.mrf.mxu0
      %v1966 = vadd.f32 0.0, %v1965
      %v1967 = vpop.f32.mrf.mxu0
      %1968 = vdwg.mxu0
      %v1969 = vadd.f32 %v1418, %v1843
      %v1970 = vadd.f32 %v1421, %v1846
      %v1971 = vadd.f32 %v1426, %v1851
      %v1972 = vadd.f32 %v1429, %v1854
      %v1973 = vadd.f32 %v1434, %v1859
      %v1974 = vadd.f32 %v1437, %v1862
      %v1975 = vadd.f32 %v1442, %v1867
      %v1976 = vadd.f32 %v1445, %v1870
      %v1977 = vadd.f32 %v1450, %v1875
      %v1978 = vadd.f32 %v1453, %v1878
      %v1979 = vadd.f32 %v1458, %v1883
      %v1980 = vadd.f32 %v1461, %v1886
      %v1981 = vadd.f32 %v1466, %v1891
      %v1982 = vadd.f32 %v1469, %v1894
      %v1983 = vadd.f32 %v1474, %v1899
      %v1984 = vadd.f32 %v1477, %v1902
      %v1985 = vadd.f32 %v1482, %v1907
      %v1986 = vadd.f32 %v1485, %v1910
      %v1987 = vadd.f32 %v1490, %v1915
      %v1988 = vadd.f32 %v1493, %v1918
      %v1989 = vadd.f32 %v1498, %v1923
      %v1990 = vadd.f32 %v1501, %v1926
      %v1991 = vadd.f32 %v1506, %v1931
      %v1992 = vadd.f32 %v1509, %v1934
      %v1993 = vadd.f32 %v1514, %v1939
      %v1994 = vadd.f32 %v1517, %v1942
      %v1995 = vadd.f32 %v1522, %v1947
      %v1996 = vadd.f32 %v1525, %v1950
      %v1997 = vadd.f32 %v1530, %v1955
      %v1998 = vadd.f32 %v1533, %v1958
      %v1999 = vadd.f32 %v1538, %v1963
      %v2000 = vadd.f32 %v1541, %v1966
      %s2001 = scalar_lea.vmem [#allocation2], 12
      %v2002 = vld [vmem:[%s2001] sm:$0xf]
      %v2003 = vld [vmem:[%s2001 + $0x4] sm:$0xf]
      %v2004 = vld [vmem:[%s2001 + $0xc] sm:$0xf]
      %v2005 = vld [vmem:[%s2001 + $0x10] sm:$0xf]
      %v2006 = vld [vmem:[%s2001 + $0x18] sm:$0xf]
      %v2007 = vld [vmem:[%s2001 + $0x1c] sm:$0xf]
      %v2008 = vld [vmem:[%s2001 + $0x24] sm:$0xf]
      %v2009 = vld [vmem:[%s2001 + $0x28] sm:$0xf]
      %v2010 = vld [vmem:[%s2001 + $0x30] sm:$0xf]
      %v2011 = vld [vmem:[%s2001 + $0x34] sm:$0xf]
      %v2012 = vld [vmem:[%s2001 + $0x3c] sm:$0xf]
      %v2013 = vld [vmem:[%s2001 + $0x40] sm:$0xf]
      %v2014 = vld [vmem:[%s2001 + $0x48] sm:$0xf]
      %v2015 = vld [vmem:[%s2001 + $0x4c] sm:$0xf]
      %v2016 = vld [vmem:[%s2001 + $0x54] sm:$0xf]
      %v2017 = vld [vmem:[%s2001 + $0x58] sm:$0xf]
      %v2018 = vld [vmem:[%s2001 + $0x60] sm:$0xf]
      %v2019 = vld [vmem:[%s2001 + $0x64] sm:$0xf]
      %v2020 = vld [vmem:[%s2001 + $0x6c] sm:$0xf]
      %v2021 = vld [vmem:[%s2001 + $0x70] sm:$0xf]
      %v2022 = vld [vmem:[%s2001 + $0x78] sm:$0xf]
      %v2023 = vld [vmem:[%s2001 + $0x7c] sm:$0xf]
      %v2024 = vld [vmem:[%s2001 + $0x84] sm:$0xf]
      %v2025 = vld [vmem:[%s2001 + $0x88] sm:$0xf]
      %v2026 = vld [vmem:[%s2001 + $0x90] sm:$0xf]
      %v2027 = vld [vmem:[%s2001 + $0x94] sm:$0xf]
      %v2028 = vld [vmem:[%s2001 + $0x9c] sm:$0xf]
      %v2029 = vld [vmem:[%s2001 + $0xa0] sm:$0xf]
      %v2030 = vld [vmem:[%s2001 + $0xa8] sm:$0xf]
      %v2031 = vld [vmem:[%s2001 + $0xac] sm:$0xf]
      %v2032 = vld [vmem:[%s2001 + $0xb4] sm:$0xf]
      %v2033 = vld [vmem:[%s2001 + $0xb8] sm:$0xf]
      %s2034 = scalar_lea.vmem %s3, 12
      %v2035 = vld [vmem:[%s2034] sm:$0xf]
      %v2068 = vunpack.c.l.b16 %v2002
      %v2069 = vunpack.c.l.b16 %v2003
      %v2070 = vunpack.c.l.b16 %v2004
      %v2071 = vunpack.c.l.b16 %v2005
      %v2072 = vunpack.c.l.b16 %v2006
      %v2073 = vunpack.c.l.b16 %v2007
      %v2074 = vunpack.c.l.b16 %v2008
      %v2075 = vunpack.c.l.b16 %v2009
      %v2076 = vunpack.c.l.b16 %v2010
      %v2077 = vunpack.c.l.b16 %v2011
      %v2078 = vunpack.c.l.b16 %v2012
      %v2079 = vunpack.c.l.b16 %v2013
      %v2080 = vunpack.c.l.b16 %v2014
      %v2081 = vunpack.c.l.b16 %v2015
      %v2082 = vunpack.c.l.b16 %v2016
      %v2083 = vunpack.c.l.b16 %v2017
      %v2084 = vunpack.c.l.b16 %v2018
      %v2085 = vunpack.c.l.b16 %v2019
      %v2086 = vunpack.c.l.b16 %v2020
      %v2087 = vunpack.c.l.b16 %v2021
      %v2088 = vunpack.c.l.b16 %v2022
      %v2089 = vunpack.c.l.b16 %v2023
      %v2090 = vunpack.c.l.b16 %v2024
      %v2091 = vunpack.c.l.b16 %v2025
      %v2092 = vunpack.c.l.b16 %v2026
      %v2093 = vunpack.c.l.b16 %v2027
      %v2094 = vunpack.c.l.b16 %v2028
      %v2095 = vunpack.c.l.b16 %v2029
      %v2096 = vunpack.c.l.b16 %v2030
      %v2097 = vunpack.c.l.b16 %v2031
      %v2098 = vunpack.c.l.b16 %v2032
      %v2099 = vunpack.c.l.b16 %v2033
      %v2100 = vpack.c.b16 %v2069, %v2068
      %v2101 = vpack.c.b16 %v2071, %v2070
      %v2102 = vpack.c.b16 %v2073, %v2072
      %v2103 = vpack.c.b16 %v2075, %v2074
      %v2104 = vpack.c.b16 %v2077, %v2076
      %v2105 = vpack.c.b16 %v2079, %v2078
      %v2106 = vpack.c.b16 %v2081, %v2080
      %v2107 = vpack.c.b16 %v2083, %v2082
      %v2108 = vpack.c.b16 %v2085, %v2084
      %v2109 = vpack.c.b16 %v2087, %v2086
      %v2110 = vpack.c.b16 %v2089, %v2088
      %v2111 = vpack.c.b16 %v2091, %v2090
      %v2112 = vpack.c.b16 %v2093, %v2092
      %v2113 = vpack.c.b16 %v2095, %v2094
      %v2114 = vpack.c.b16 %v2097, %v2096
      %v2115 = vpack.c.b16 %v2099, %v2098
      %v2117 = vsel %vm1038, %v2100, 0
      %v2120 = vsel %vm1038, %v2101, 0
      %v2123 = vsel %vm1038, %v2102, 0
      %v2126 = vsel %vm1038, %v2103, 0
      %v2129 = vsel %vm1038, %v2104, 0
      %v2132 = vsel %vm1038, %v2105, 0
      %v2135 = vsel %vm1038, %v2106, 0
      %v2138 = vsel %vm1038, %v2107, 0
      %v2141 = vsel %vm1038, %v2108, 0
      %v2144 = vsel %vm1038, %v2109, 0
      %v2147 = vsel %vm1038, %v2110, 0
      %v2150 = vsel %vm1038, %v2111, 0
      %v2153 = vsel %vm1038, %v2112, 0
      %v2156 = vsel %vm1038, %v2113, 0
      %v2159 = vsel %vm1038, %v2114, 0
      %v2162 = vsel %vm1038, %v2115, 0
      %v2165 = vsel %vm1087, %v2035, 0
      %2167 = vmatprep.subr.bf16.mxu0 0
      %2168 = vmatpush1.bf16.msra.mxu0 0
      %2169 = vmatprep.subr.bf16.mxu0 0
      %2170 = vmatpush1.bf16.msra.mxu0 0
      %2171 = vmatprep.subr.bf16.mxu0 0
      %2172 = vmatpush1.bf16.msra.mxu0 0
      %2173 = vmatprep.subr.bf16.mxu0 0
      %2174 = vmatpush1.bf16.msra.mxu0 0
      %2175 = vmatprep.subr.bf16.mxu0 0
      %2176 = vmatpush1.bf16.msra.mxu0 0
      %2177 = vmatprep.subr.bf16.mxu0 0
      %2178 = vmatpush1.bf16.msra.mxu0 0
      %2179 = vmatprep.subr.bf16.mxu0 0
      %2180 = vmatpush1.bf16.msra.mxu0 0
      %2181 = vmatprep.subr.bf16.mxu0 0
      %2182 = vmatpush1.bf16.msra.mxu0 %v2165
      %2183 = vmatprep.subr.bf16.mxu0 0
      %2184 = vmatpush2.bf16.msra.mxu0 0
      %2185 = vmatprep.subr.bf16.mxu0 0
      %2186 = vmatpush2.bf16.msra.mxu0 0
      %2187 = vmatprep.subr.bf16.mxu0 0
      %2188 = vmatpush2.bf16.msra.mxu0 0
      %2189 = vmatprep.subr.bf16.mxu0 0
      %2190 = vmatpush2.bf16.msra.mxu0 0
      %2191 = vmatprep.subr.bf16.mxu0 0
      %2192 = vmatpush2.bf16.msra.mxu0 0
      %2193 = vmatprep.subr.bf16.mxu0 0
      %2194 = vmatpush2.bf16.msra.mxu0 0
      %2195 = vmatprep.subr.bf16.mxu0 0
      %2196 = vmatpush2.bf16.msra.mxu0 0
      %2197 = vmatprep.subr.bf16.mxu0 0
      %2198 = vmatpush2.bf16.msra.mxu0 0
      %2199 = vmatprep.mubr.bf16.mxu0 0
      %2200 = vmatmul.mubr.bf16.gmra.mxu0 %v2117
      %v2201 = vpop.f32.mrf.mxu0
      %v2202 = vadd.f32 0.0, %v2201
      %v2203 = vpop.f32.mrf.mxu0
      %v2204 = vpop.f32.mrf.mxu0
      %v2205 = vadd.f32 0.0, %v2204
      %v2206 = vpop.f32.mrf.mxu0
      %2207 = vmatprep.mubr.bf16.mxu0 0
      %2208 = vmatmul.mubr.bf16.gmra.mxu0 %v2120
      %v2209 = vpop.f32.mrf.mxu0
      %v2210 = vadd.f32 0.0, %v2209
      %v2211 = vpop.f32.mrf.mxu0
      %v2212 = vpop.f32.mrf.mxu0
      %v2213 = vadd.f32 0.0, %v2212
      %v2214 = vpop.f32.mrf.mxu0
      %2215 = vmatprep.mubr.bf16.mxu0 0
      %2216 = vmatmul.mubr.bf16.gmra.mxu0 %v2123
      %v2217 = vpop.f32.mrf.mxu0
      %v2218 = vadd.f32 0.0, %v2217
      %v2219 = vpop.f32.mrf.mxu0
      %v2220 = vpop.f32.mrf.mxu0
      %v2221 = vadd.f32 0.0, %v2220
      %v2222 = vpop.f32.mrf.mxu0
      %2223 = vmatprep.mubr.bf16.mxu0 0
      %2224 = vmatmul.mubr.bf16.gmra.mxu0 %v2126
      %v2225 = vpop.f32.mrf.mxu0
      %v2226 = vadd.f32 0.0, %v2225
      %v2227 = vpop.f32.mrf.mxu0
      %v2228 = vpop.f32.mrf.mxu0
      %v2229 = vadd.f32 0.0, %v2228
      %v2230 = vpop.f32.mrf.mxu0
      %2231 = vmatprep.mubr.bf16.mxu0 0
      %2232 = vmatmul.mubr.bf16.gmra.mxu0 %v2129
      %v2233 = vpop.f32.mrf.mxu0
      %v2234 = vadd.f32 0.0, %v2233
      %v2235 = vpop.f32.mrf.mxu0
      %v2236 = vpop.f32.mrf.mxu0
      %v2237 = vadd.f32 0.0, %v2236
      %v2238 = vpop.f32.mrf.mxu0
      %2239 = vmatprep.mubr.bf16.mxu0 0
      %2240 = vmatmul.mubr.bf16.gmra.mxu0 %v2132
      %v2241 = vpop.f32.mrf.mxu0
      %v2242 = vadd.f32 0.0, %v2241
      %v2243 = vpop.f32.mrf.mxu0
      %v2244 = vpop.f32.mrf.mxu0
      %v2245 = vadd.f32 0.0, %v2244
      %v2246 = vpop.f32.mrf.mxu0
      %2247 = vmatprep.mubr.bf16.mxu0 0
      %2248 = vmatmul.mubr.bf16.gmra.mxu0 %v2135
      %v2249 = vpop.f32.mrf.mxu0
      %v2250 = vadd.f32 0.0, %v2249
      %v2251 = vpop.f32.mrf.mxu0
      %v2252 = vpop.f32.mrf.mxu0
      %v2253 = vadd.f32 0.0, %v2252
      %v2254 = vpop.f32.mrf.mxu0
      %2255 = vmatprep.mubr.bf16.mxu0 0
      %2256 = vmatmul.mubr.bf16.gmra.mxu0 %v2138
      %v2257 = vpop.f32.mrf.mxu0
      %v2258 = vadd.f32 0.0, %v2257
      %v2259 = vpop.f32.mrf.mxu0
      %v2260 = vpop.f32.mrf.mxu0
      %v2261 = vadd.f32 0.0, %v2260
      %v2262 = vpop.f32.mrf.mxu0
      %2263 = vmatprep.mubr.bf16.mxu0 0
      %2264 = vmatmul.mubr.bf16.gmra.mxu0 %v2141
      %v2265 = vpop.f32.mrf.mxu0
      %v2266 = vadd.f32 0.0, %v2265
      %v2267 = vpop.f32.mrf.mxu0
      %v2268 = vpop.f32.mrf.mxu0
      %v2269 = vadd.f32 0.0, %v2268
      %v2270 = vpop.f32.mrf.mxu0
      %2271 = vmatprep.mubr.bf16.mxu0 0
      %2272 = vmatmul.mubr.bf16.gmra.mxu0 %v2144
      %v2273 = vpop.f32.mrf.mxu0
      %v2274 = vadd.f32 0.0, %v2273
      %v2275 = vpop.f32.mrf.mxu0
      %v2276 = vpop.f32.mrf.mxu0
      %v2277 = vadd.f32 0.0, %v2276
      %v2278 = vpop.f32.mrf.mxu0
      %2279 = vmatprep.mubr.bf16.mxu0 0
      %2280 = vmatmul.mubr.bf16.gmra.mxu0 %v2147
      %v2281 = vpop.f32.mrf.mxu0
      %v2282 = vadd.f32 0.0, %v2281
      %v2283 = vpop.f32.mrf.mxu0
      %v2284 = vpop.f32.mrf.mxu0
      %v2285 = vadd.f32 0.0, %v2284
      %v2286 = vpop.f32.mrf.mxu0
      %2287 = vmatprep.mubr.bf16.mxu0 0
      %2288 = vmatmul.mubr.bf16.gmra.mxu0 %v2150
      %v2289 = vpop.f32.mrf.mxu0
      %v2290 = vadd.f32 0.0, %v2289
      %v2291 = vpop.f32.mrf.mxu0
      %v2292 = vpop.f32.mrf.mxu0
      %v2293 = vadd.f32 0.0, %v2292
      %v2294 = vpop.f32.mrf.mxu0
      %2295 = vmatprep.mubr.bf16.mxu0 0
      %2296 = vmatmul.mubr.bf16.gmra.mxu0 %v2153
      %v2297 = vpop.f32.mrf.mxu0
      %v2298 = vadd.f32 0.0, %v2297
      %v2299 = vpop.f32.mrf.mxu0
      %v2300 = vpop.f32.mrf.mxu0
      %v2301 = vadd.f32 0.0, %v2300
      %v2302 = vpop.f32.mrf.mxu0
      %2303 = vmatprep.mubr.bf16.mxu0 0
      %2304 = vmatmul.mubr.bf16.gmra.mxu0 %v2156
      %v2305 = vpop.f32.mrf.mxu0
      %v2306 = vadd.f32 0.0, %v2305
      %v2307 = vpop.f32.mrf.mxu0
      %v2308 = vpop.f32.mrf.mxu0
      %v2309 = vadd.f32 0.0, %v2308
      %v2310 = vpop.f32.mrf.mxu0
      %2311 = vmatprep.mubr.bf16.mxu0 0
      %2312 = vmatmul.mubr.bf16.gmra.mxu0 %v2159
      %v2313 = vpop.f32.mrf.mxu0
      %v2314 = vadd.f32 0.0, %v2313
      %v2315 = vpop.f32.mrf.mxu0
      %v2316 = vpop.f32.mrf.mxu0
      %v2317 = vadd.f32 0.0, %v2316
      %v2318 = vpop.f32.mrf.mxu0
      %2319 = vmatprep.mubr.bf16.mxu0 0
      %2320 = vmatmul.mubr.bf16.gmra.mxu0 %v2162
      %v2321 = vpop.f32.mrf.mxu0
      %v2322 = vadd.f32 0.0, %v2321
      %v2323 = vpop.f32.mrf.mxu0
      %v2324 = vpop.f32.mrf.mxu0
      %v2325 = vadd.f32 0.0, %v2324
      %v2326 = vpop.f32.mrf.mxu0
      %2327 = vdwg.mxu0
      %v2328 = vadd.f32 %v1969, %v2202
      %v2329 = vadd.f32 %v1970, %v2205
      %v2330 = vadd.f32 %v1971, %v2210
      %v2331 = vadd.f32 %v1972, %v2213
      %v2332 = vadd.f32 %v1973, %v2218
      %v2333 = vadd.f32 %v1974, %v2221
      %v2334 = vadd.f32 %v1975, %v2226
      %v2335 = vadd.f32 %v1976, %v2229
      %v2336 = vadd.f32 %v1977, %v2234
      %v2337 = vadd.f32 %v1978, %v2237
      %v2338 = vadd.f32 %v1979, %v2242
      %v2339 = vadd.f32 %v1980, %v2245
      %v2340 = vadd.f32 %v1981, %v2250
      %v2341 = vadd.f32 %v1982, %v2253
      %v2342 = vadd.f32 %v1983, %v2258
      %v2343 = vadd.f32 %v1984, %v2261
      %v2344 = vadd.f32 %v1985, %v2266
      %v2345 = vadd.f32 %v1986, %v2269
      %v2346 = vadd.f32 %v1987, %v2274
      %v2347 = vadd.f32 %v1988, %v2277
      %v2348 = vadd.f32 %v1989, %v2282
      %v2349 = vadd.f32 %v1990, %v2285
      %v2350 = vadd.f32 %v1991, %v2290
      %v2351 = vadd.f32 %v1992, %v2293
      %v2352 = vadd.f32 %v1993, %v2298
      %v2353 = vadd.f32 %v1994, %v2301
      %v2354 = vadd.f32 %v1995, %v2306
      %v2355 = vadd.f32 %v1996, %v2309
      %v2356 = vadd.f32 %v1997, %v2314
      %v2357 = vadd.f32 %v1998, %v2317
      %v2358 = vadd.f32 %v1999, %v2322
      %v2359 = vadd.f32 %v2000, %v2325
      %v2360 = vld [vmem:[%s2001] sm:$0xf]
      %v2361 = vld [vmem:[%s2001 + $0x4] sm:$0xf]
      %v2362 = vld [vmem:[%s2001 + $0x8] sm:$0x1]
      %v2363 = vld [vmem:[%s2001 + $0xc] sm:$0xf]
      %v2364 = vld [vmem:[%s2001 + $0x10] sm:$0xf]
      %v2365 = vld [vmem:[%s2001 + $0x14] sm:$0x1]
      %v2366 = vld [vmem:[%s2001 + $0x18] sm:$0xf]
      %v2367 = vld [vmem:[%s2001 + $0x1c] sm:$0xf]
      %v2368 = vld [vmem:[%s2001 + $0x20] sm:$0x1]
      %v2369 = vld [vmem:[%s2001 + $0x24] sm:$0xf]
      %v2370 = vld [vmem:[%s2001 + $0x28] sm:$0xf]
      %v2371 = vld [vmem:[%s2001 + $0x2c] sm:$0x1]
      %v2372 = vld [vmem:[%s2001 + $0x30] sm:$0xf]
      %v2373 = vld [vmem:[%s2001 + $0x34] sm:$0xf]
      %v2374 = vld [vmem:[%s2001 + $0x38] sm:$0x1]
      %v2375 = vld [vmem:[%s2001 + $0x3c] sm:$0xf]
      %v2376 = vld [vmem:[%s2001 + $0x40] sm:$0xf]
      %v2377 = vld [vmem:[%s2001 + $0x44] sm:$0x1]
      %v2378 = vld [vmem:[%s2001 + $0x48] sm:$0xf]
      %v2379 = vld [vmem:[%s2001 + $0x4c] sm:$0xf]
      %v2380 = vld [vmem:[%s2001 + $0x50] sm:$0x1]
      %v2381 = vld [vmem:[%s2001 + $0x54] sm:$0xf]
      %v2382 = vld [vmem:[%s2001 + $0x58] sm:$0xf]
      %v2383 = vld [vmem:[%s2001 + $0x5c] sm:$0x1]
      %v2384 = vld [vmem:[%s2001 + $0x60] sm:$0xf]
      %v2385 = vld [vmem:[%s2001 + $0x64] sm:$0xf]
      %v2386 = vld [vmem:[%s2001 + $0x68] sm:$0x1]
      %v2387 = vld [vmem:[%s2001 + $0x6c] sm:$0xf]
      %v2388 = vld [vmem:[%s2001 + $0x70] sm:$0xf]
      %v2389 = vld [vmem:[%s2001 + $0x74] sm:$0x1]
      %v2390 = vld [vmem:[%s2001 + $0x78] sm:$0xf]
      %v2391 = vld [vmem:[%s2001 + $0x7c] sm:$0xf]
      %v2392 = vld [vmem:[%s2001 + $0x80] sm:$0x1]
      %v2393 = vld [vmem:[%s2001 + $0x84] sm:$0xf]
      %v2394 = vld [vmem:[%s2001 + $0x88] sm:$0xf]
      %v2395 = vld [vmem:[%s2001 + $0x8c] sm:$0x1]
      %v2396 = vld [vmem:[%s2001 + $0x90] sm:$0xf]
      %v2397 = vld [vmem:[%s2001 + $0x94] sm:$0xf]
      %v2398 = vld [vmem:[%s2001 + $0x98] sm:$0x1]
      %v2399 = vld [vmem:[%s2001 + $0x9c] sm:$0xf]
      %v2400 = vld [vmem:[%s2001 + $0xa0] sm:$0xf]
      %v2401 = vld [vmem:[%s2001 + $0xa4] sm:$0x1]
      %v2402 = vld [vmem:[%s2001 + $0xa8] sm:$0xf]
      %v2403 = vld [vmem:[%s2001 + $0xac] sm:$0xf]
      %v2404 = vld [vmem:[%s2001 + $0xb0] sm:$0x1]
      %v2405 = vld [vmem:[%s2001 + $0xb4] sm:$0xf]
      %v2406 = vld [vmem:[%s2001 + $0xb8] sm:$0xf]
      %v2407 = vld [vmem:[%s2001 + $0xbc] sm:$0x1]
      %v2409 = vshrl.u32 %v2360, 16
      %v2411 = vrot.slane %v2409, 4
      %v2412 = vshll.u32 %v2360, 16
      %v2414 = vrot.slane %v2412, 5
      %v2415 = vor.u32 %v2411, %v2414
      %v2416 = vrot.slane %v2415, 4
      %v2418 = vshll.u32 %v2361, 16
      %v2420 = vrot.slane %v2418, 5
      %v2421 = vsel %vm603, %v2416, %v2420
      %v2422 = vshrl.u32 %v2361, 16
      %v2424 = vrot.slane %v2422, 4
      %v2425 = vor.u32 %v2424, %v2420
      %v2426 = vrot.slane %v2425, 4
      %v2428 = vshll.u32 %v2362, 16
      %v2430 = vrot.slane %v2428, 5
      %v2431 = vsel %vm603, %v2426, %v2430
      %v2433 = vshrl.u32 %v2363, 16
      %v2435 = vrot.slane %v2433, 4
      %v2436 = vshll.u32 %v2363, 16
      %v2438 = vrot.slane %v2436, 5
      %v2439 = vor.u32 %v2435, %v2438
      %v2440 = vrot.slane %v2439, 4
      %v2442 = vshll.u32 %v2364, 16
      %v2444 = vrot.slane %v2442, 5
      %v2445 = vsel %vm603, %v2440, %v2444
      %v2446 = vshrl.u32 %v2364, 16
      %v2448 = vrot.slane %v2446, 4
      %v2449 = vor.u32 %v2448, %v2444
      %v2450 = vrot.slane %v2449, 4
      %v2452 = vshll.u32 %v2365, 16
      %v2454 = vrot.slane %v2452, 5
      %v2455 = vsel %vm603, %v2450, %v2454
      %v2457 = vshrl.u32 %v2366, 16
      %v2459 = vrot.slane %v2457, 4
      %v2460 = vshll.u32 %v2366, 16
      %v2462 = vrot.slane %v2460, 5
      %v2463 = vor.u32 %v2459, %v2462
      %v2464 = vrot.slane %v2463, 4
      %v2466 = vshll.u32 %v2367, 16
      %v2468 = vrot.slane %v2466, 5
      %v2469 = vsel %vm603, %v2464, %v2468
      %v2470 = vshrl.u32 %v2367, 16
      %v2472 = vrot.slane %v2470, 4
      %v2473 = vor.u32 %v2472, %v2468
      %v2474 = vrot.slane %v2473, 4
      %v2476 = vshll.u32 %v2368, 16
      %v2478 = vrot.slane %v2476, 5
      %v2479 = vsel %vm603, %v2474, %v2478
      %v2481 = vshrl.u32 %v2369, 16
      %v2483 = vrot.slane %v2481, 4
      %v2484 = vshll.u32 %v2369, 16
      %v2486 = vrot.slane %v2484, 5
      %v2487 = vor.u32 %v2483, %v2486
      %v2488 = vrot.slane %v2487, 4
      %v2490 = vshll.u32 %v2370, 16
      %v2492 = vrot.slane %v2490, 5
      %v2493 = vsel %vm603, %v2488, %v2492
      %v2494 = vshrl.u32 %v2370, 16
      %v2496 = vrot.slane %v2494, 4
      %v2497 = vor.u32 %v2496, %v2492
      %v2498 = vrot.slane %v2497, 4
      %v2500 = vshll.u32 %v2371, 16
      %v2502 = vrot.slane %v2500, 5
      %v2503 = vsel %vm603, %v2498, %v2502
      %v2505 = vshrl.u32 %v2372, 16
      %v2507 = vrot.slane %v2505, 4
      %v2508 = vshll.u32 %v2372, 16
      %v2510 = vrot.slane %v2508, 5
      %v2511 = vor.u32 %v2507, %v2510
      %v2512 = vrot.slane %v2511, 4
      %v2514 = vshll.u32 %v2373, 16
      %v2516 = vrot.slane %v2514, 5
      %v2517 = vsel %vm603, %v2512, %v2516
      %v2518 = vshrl.u32 %v2373, 16
      %v2520 = vrot.slane %v2518, 4
      %v2521 = vor.u32 %v2520, %v2516
      %v2522 = vrot.slane %v2521, 4
      %v2524 = vshll.u32 %v2374, 16
      %v2526 = vrot.slane %v2524, 5
      %v2527 = vsel %vm603, %v2522, %v2526
      %v2529 = vshrl.u32 %v2375, 16
      %v2531 = vrot.slane %v2529, 4
      %v2532 = vshll.u32 %v2375, 16
      %v2534 = vrot.slane %v2532, 5
      %v2535 = vor.u32 %v2531, %v2534
      %v2536 = vrot.slane %v2535, 4
      %v2538 = vshll.u32 %v2376, 16
      %v2540 = vrot.slane %v2538, 5
      %v2541 = vsel %vm603, %v2536, %v2540
      %v2542 = vshrl.u32 %v2376, 16
      %v2544 = vrot.slane %v2542, 4
      %v2545 = vor.u32 %v2544, %v2540
      %v2546 = vrot.slane %v2545, 4
      %v2548 = vshll.u32 %v2377, 16
      %v2550 = vrot.slane %v2548, 5
      %v2551 = vsel %vm603, %v2546, %v2550
      %v2553 = vshrl.u32 %v2378, 16
      %v2555 = vrot.slane %v2553, 4
      %v2556 = vshll.u32 %v2378, 16
      %v2558 = vrot.slane %v2556, 5
      %v2559 = vor.u32 %v2555, %v2558
      %v2560 = vrot.slane %v2559, 4
      %v2562 = vshll.u32 %v2379, 16
      %v2564 = vrot.slane %v2562, 5
      %v2565 = vsel %vm603, %v2560, %v2564
      %v2566 = vshrl.u32 %v2379, 16
      %v2568 = vrot.slane %v2566, 4
      %v2569 = vor.u32 %v2568, %v2564
      %v2570 = vrot.slane %v2569, 4
      %v2572 = vshll.u32 %v2380, 16
      %v2574 = vrot.slane %v2572, 5
      %v2575 = vsel %vm603, %v2570, %v2574
      %v2577 = vshrl.u32 %v2381, 16
      %v2579 = vrot.slane %v2577, 4
      %v2580 = vshll.u32 %v2381, 16
      %v2582 = vrot.slane %v2580, 5
      %v2583 = vor.u32 %v2579, %v2582
      %v2584 = vrot.slane %v2583, 4
      %v2586 = vshll.u32 %v2382, 16
      %v2588 = vrot.slane %v2586, 5
      %v2589 = vsel %vm603, %v2584, %v2588
      %v2590 = vshrl.u32 %v2382, 16
      %v2592 = vrot.slane %v2590, 4
      %v2593 = vor.u32 %v2592, %v2588
      %v2594 = vrot.slane %v2593, 4
      %v2596 = vshll.u32 %v2383, 16
      %v2598 = vrot.slane %v2596, 5
      %v2599 = vsel %vm603, %v2594, %v2598
      %v2601 = vshrl.u32 %v2384, 16
      %v2603 = vrot.slane %v2601, 4
      %v2604 = vshll.u32 %v2384, 16
      %v2606 = vrot.slane %v2604, 5
      %v2607 = vor.u32 %v2603, %v2606
      %v2608 = vrot.slane %v2607, 4
      %v2610 = vshll.u32 %v2385, 16
      %v2612 = vrot.slane %v2610, 5
      %v2613 = vsel %vm603, %v2608, %v2612
      %v2614 = vshrl.u32 %v2385, 16
      %v2616 = vrot.slane %v2614, 4
      %v2617 = vor.u32 %v2616, %v2612
      %v2618 = vrot.slane %v2617, 4
      %v2620 = vshll.u32 %v2386, 16
      %v2622 = vrot.slane %v2620, 5
      %v2623 = vsel %vm603, %v2618, %v2622
      %v2625 = vshrl.u32 %v2387, 16
      %v2627 = vrot.slane %v2625, 4
      %v2628 = vshll.u32 %v2387, 16
      %v2630 = vrot.slane %v2628, 5
      %v2631 = vor.u32 %v2627, %v2630
      %v2632 = vrot.slane %v2631, 4
      %v2634 = vshll.u32 %v2388, 16
      %v2636 = vrot.slane %v2634, 5
      %v2637 = vsel %vm603, %v2632, %v2636
      %v2638 = vshrl.u32 %v2388, 16
      %v2640 = vrot.slane %v2638, 4
      %v2641 = vor.u32 %v2640, %v2636
      %v2642 = vrot.slane %v2641, 4
      %v2644 = vshll.u32 %v2389, 16
      %v2646 = vrot.slane %v2644, 5
      %v2647 = vsel %vm603, %v2642, %v2646
      %v2649 = vshrl.u32 %v2390, 16
      %v2651 = vrot.slane %v2649, 4
      %v2652 = vshll.u32 %v2390, 16
      %v2654 = vrot.slane %v2652, 5
      %v2655 = vor.u32 %v2651, %v2654
      %v2656 = vrot.slane %v2655, 4
      %v2658 = vshll.u32 %v2391, 16
      %v2660 = vrot.slane %v2658, 5
      %v2661 = vsel %vm603, %v2656, %v2660
      %v2662 = vshrl.u32 %v2391, 16
      %v2664 = vrot.slane %v2662, 4
      %v2665 = vor.u32 %v2664, %v2660
      %v2666 = vrot.slane %v2665, 4
      %v2668 = vshll.u32 %v2392, 16
      %v2670 = vrot.slane %v2668, 5
      %v2671 = vsel %vm603, %v2666, %v2670
      %v2673 = vshrl.u32 %v2393, 16
      %v2675 = vrot.slane %v2673, 4
      %v2676 = vshll.u32 %v2393, 16
      %v2678 = vrot.slane %v2676, 5
      %v2679 = vor.u32 %v2675, %v2678
      %v2680 = vrot.slane %v2679, 4
      %v2682 = vshll.u32 %v2394, 16
      %v2684 = vrot.slane %v2682, 5
      %v2685 = vsel %vm603, %v2680, %v2684
      %v2686 = vshrl.u32 %v2394, 16
      %v2688 = vrot.slane %v2686, 4
      %v2689 = vor.u32 %v2688, %v2684
      %v2690 = vrot.slane %v2689, 4
      %v2692 = vshll.u32 %v2395, 16
      %v2694 = vrot.slane %v2692, 5
      %v2695 = vsel %vm603, %v2690, %v2694
      %v2697 = vshrl.u32 %v2396, 16
      %v2699 = vrot.slane %v2697, 4
      %v2700 = vshll.u32 %v2396, 16
      %v2702 = vrot.slane %v2700, 5
      %v2703 = vor.u32 %v2699, %v2702
      %v2704 = vrot.slane %v2703, 4
      %v2706 = vshll.u32 %v2397, 16
      %v2708 = vrot.slane %v2706, 5
      %v2709 = vsel %vm603, %v2704, %v2708
      %v2710 = vshrl.u32 %v2397, 16
      %v2712 = vrot.slane %v2710, 4
      %v2713 = vor.u32 %v2712, %v2708
      %v2714 = vrot.slane %v2713, 4
      %v2716 = vshll.u32 %v2398, 16
      %v2718 = vrot.slane %v2716, 5
      %v2719 = vsel %vm603, %v2714, %v2718
      %v2721 = vshrl.u32 %v2399, 16
      %v2723 = vrot.slane %v2721, 4
      %v2724 = vshll.u32 %v2399, 16
      %v2726 = vrot.slane %v2724, 5
      %v2727 = vor.u32 %v2723, %v2726
      %v2728 = vrot.slane %v2727, 4
      %v2730 = vshll.u32 %v2400, 16
      %v2732 = vrot.slane %v2730, 5
      %v2733 = vsel %vm603, %v2728, %v2732
      %v2734 = vshrl.u32 %v2400, 16
      %v2736 = vrot.slane %v2734, 4
      %v2737 = vor.u32 %v2736, %v2732
      %v2738 = vrot.slane %v2737, 4
      %v2740 = vshll.u32 %v2401, 16
      %v2742 = vrot.slane %v2740, 5
      %v2743 = vsel %vm603, %v2738, %v2742
      %v2745 = vshrl.u32 %v2402, 16
      %v2747 = vrot.slane %v2745, 4
      %v2748 = vshll.u32 %v2402, 16
      %v2750 = vrot.slane %v2748, 5
      %v2751 = vor.u32 %v2747, %v2750
      %v2752 = vrot.slane %v2751, 4
      %v2754 = vshll.u32 %v2403, 16
      %v2756 = vrot.slane %v2754, 5
      %v2757 = vsel %vm603, %v2752, %v2756
      %v2758 = vshrl.u32 %v2403, 16
      %v2760 = vrot.slane %v2758, 4
      %v2761 = vor.u32 %v2760, %v2756
      %v2762 = vrot.slane %v2761, 4
      %v2764 = vshll.u32 %v2404, 16
      %v2766 = vrot.slane %v2764, 5
      %v2767 = vsel %vm603, %v2762, %v2766
      %v2769 = vshrl.u32 %v2405, 16
      %v2771 = vrot.slane %v2769, 4
      %v2772 = vshll.u32 %v2405, 16
      %v2774 = vrot.slane %v2772, 5
      %v2775 = vor.u32 %v2771, %v2774
      %v2776 = vrot.slane %v2775, 4
      %v2778 = vshll.u32 %v2406, 16
      %v2780 = vrot.slane %v2778, 5
      %v2781 = vsel %vm603, %v2776, %v2780
      %v2782 = vshrl.u32 %v2406, 16
      %v2784 = vrot.slane %v2782, 4
      %v2785 = vor.u32 %v2784, %v2780
      %v2786 = vrot.slane %v2785, 4
      %v2788 = vshll.u32 %v2407, 16
      %v2790 = vrot.slane %v2788, 5
      %v2791 = vsel %vm603, %v2786, %v2790
      %s2792 = scalar_lea.vmem %s3, 16
      %v2793 = vld [vmem:[%s2792] sm:$0xf]
      %v2794 = vunpack.c.l.b16 %v2421
      %v2795 = vunpack.c.l.b16 %v2431
      %v2796 = vunpack.c.l.b16 %v2445
      %v2797 = vunpack.c.l.b16 %v2455
      %v2798 = vunpack.c.l.b16 %v2469
      %v2799 = vunpack.c.l.b16 %v2479
      %v2800 = vunpack.c.l.b16 %v2493
      %v2801 = vunpack.c.l.b16 %v2503
      %v2802 = vunpack.c.l.b16 %v2517
      %v2803 = vunpack.c.l.b16 %v2527
      %v2804 = vunpack.c.l.b16 %v2541
      %v2805 = vunpack.c.l.b16 %v2551
      %v2806 = vunpack.c.l.b16 %v2565
      %v2807 = vunpack.c.l.b16 %v2575
      %v2808 = vunpack.c.l.b16 %v2589
      %v2809 = vunpack.c.l.b16 %v2599
      %v2810 = vunpack.c.l.b16 %v2613
      %v2811 = vunpack.c.l.b16 %v2623
      %v2812 = vunpack.c.l.b16 %v2637
      %v2813 = vunpack.c.l.b16 %v2647
      %v2814 = vunpack.c.l.b16 %v2661
      %v2815 = vunpack.c.l.b16 %v2671
      %v2816 = vunpack.c.l.b16 %v2685
      %v2817 = vunpack.c.l.b16 %v2695
      %v2818 = vunpack.c.l.b16 %v2709
      %v2819 = vunpack.c.l.b16 %v2719
      %v2820 = vunpack.c.l.b16 %v2733
      %v2821 = vunpack.c.l.b16 %v2743
      %v2822 = vunpack.c.l.b16 %v2757
      %v2823 = vunpack.c.l.b16 %v2767
      %v2824 = vunpack.c.l.b16 %v2781
      %v2825 = vunpack.c.l.b16 %v2791
      %v2826 = vpack.c.b16 %v2795, %v2794
      %v2827 = vpack.c.b16 %v2797, %v2796
      %v2828 = vpack.c.b16 %v2799, %v2798
      %v2829 = vpack.c.b16 %v2801, %v2800
      %v2830 = vpack.c.b16 %v2803, %v2802
      %v2831 = vpack.c.b16 %v2805, %v2804
      %v2832 = vpack.c.b16 %v2807, %v2806
      %v2833 = vpack.c.b16 %v2809, %v2808
      %v2834 = vpack.c.b16 %v2811, %v2810
      %v2835 = vpack.c.b16 %v2813, %v2812
      %v2836 = vpack.c.b16 %v2815, %v2814
      %v2837 = vpack.c.b16 %v2817, %v2816
      %v2838 = vpack.c.b16 %v2819, %v2818
      %v2839 = vpack.c.b16 %v2821, %v2820
      %v2840 = vpack.c.b16 %v2823, %v2822
      %v2841 = vpack.c.b16 %v2825, %v2824
      %v2843 = vsel %vm1038, %v2826, 0
      %v2846 = vsel %vm1038, %v2827, 0
      %v2849 = vsel %vm1038, %v2828, 0
      %v2852 = vsel %vm1038, %v2829, 0
      %v2855 = vsel %vm1038, %v2830, 0
      %v2858 = vsel %vm1038, %v2831, 0
      %v2861 = vsel %vm1038, %v2832, 0
      %v2864 = vsel %vm1038, %v2833, 0
      %v2867 = vsel %vm1038, %v2834, 0
      %v2870 = vsel %vm1038, %v2835, 0
      %v2873 = vsel %vm1038, %v2836, 0
      %v2876 = vsel %vm1038, %v2837, 0
      %v2879 = vsel %vm1038, %v2838, 0
      %v2882 = vsel %vm1038, %v2839, 0
      %v2885 = vsel %vm1038, %v2840, 0
      %v2888 = vsel %vm1038, %v2841, 0
      %v2891 = vsel %vm1087, %v2793, 0
      %2893 = vmatprep.subr.bf16.mxu0 0
      %2894 = vmatpush1.bf16.msra.mxu0 0
      %2895 = vmatprep.subr.bf16.mxu0 0
      %2896 = vmatpush1.bf16.msra.mxu0 0
      %2897 = vmatprep.subr.bf16.mxu0 0
      %2898 = vmatpush1.bf16.msra.mxu0 0
      %2899 = vmatprep.subr.bf16.mxu0 0
      %2900 = vmatpush1.bf16.msra.mxu0 0
      %2901 = vmatprep.subr.bf16.mxu0 0
      %2902 = vmatpush1.bf16.msra.mxu0 0
      %2903 = vmatprep.subr.bf16.mxu0 0
      %2904 = vmatpush1.bf16.msra.mxu0 0
      %2905 = vmatprep.subr.bf16.mxu0 0
      %2906 = vmatpush1.bf16.msra.mxu0 0
      %2907 = vmatprep.subr.bf16.mxu0 0
      %2908 = vmatpush1.bf16.msra.mxu0 %v2891
      %2909 = vmatprep.subr.bf16.mxu0 0
      %2910 = vmatpush2.bf16.msra.mxu0 0
      %2911 = vmatprep.subr.bf16.mxu0 0
      %2912 = vmatpush2.bf16.msra.mxu0 0
      %2913 = vmatprep.subr.bf16.mxu0 0
      %2914 = vmatpush2.bf16.msra.mxu0 0
      %2915 = vmatprep.subr.bf16.mxu0 0
      %2916 = vmatpush2.bf16.msra.mxu0 0
      %2917 = vmatprep.subr.bf16.mxu0 0
      %2918 = vmatpush2.bf16.msra.mxu0 0
      %2919 = vmatprep.subr.bf16.mxu0 0
      %2920 = vmatpush2.bf16.msra.mxu0 0
      %2921 = vmatprep.subr.bf16.mxu0 0
      %2922 = vmatpush2.bf16.msra.mxu0 0
      %2923 = vmatprep.subr.bf16.mxu0 0
      %2924 = vmatpush2.bf16.msra.mxu0 0
      %2925 = vmatprep.mubr.bf16.mxu0 0
      %2926 = vmatmul.mubr.bf16.gmra.mxu0 %v2843
      %v2927 = vpop.f32.mrf.mxu0
      %v2928 = vadd.f32 0.0, %v2927
      %v2929 = vpop.f32.mrf.mxu0
      %v2930 = vpop.f32.mrf.mxu0
      %v2931 = vadd.f32 0.0, %v2930
      %v2932 = vpop.f32.mrf.mxu0
      %2933 = vmatprep.mubr.bf16.mxu0 0
      %2934 = vmatmul.mubr.bf16.gmra.mxu0 %v2846
      %v2935 = vpop.f32.mrf.mxu0
      %v2936 = vadd.f32 0.0, %v2935
      %v2937 = vpop.f32.mrf.mxu0
      %v2938 = vpop.f32.mrf.mxu0
      %v2939 = vadd.f32 0.0, %v2938
      %v2940 = vpop.f32.mrf.mxu0
      %2941 = vmatprep.mubr.bf16.mxu0 0
      %2942 = vmatmul.mubr.bf16.gmra.mxu0 %v2849
      %v2943 = vpop.f32.mrf.mxu0
      %v2944 = vadd.f32 0.0, %v2943
      %v2945 = vpop.f32.mrf.mxu0
      %v2946 = vpop.f32.mrf.mxu0
      %v2947 = vadd.f32 0.0, %v2946
      %v2948 = vpop.f32.mrf.mxu0
      %2949 = vmatprep.mubr.bf16.mxu0 0
      %2950 = vmatmul.mubr.bf16.gmra.mxu0 %v2852
      %v2951 = vpop.f32.mrf.mxu0
      %v2952 = vadd.f32 0.0, %v2951
      %v2953 = vpop.f32.mrf.mxu0
      %v2954 = vpop.f32.mrf.mxu0
      %v2955 = vadd.f32 0.0, %v2954
      %v2956 = vpop.f32.mrf.mxu0
      %2957 = vmatprep.mubr.bf16.mxu0 0
      %2958 = vmatmul.mubr.bf16.gmra.mxu0 %v2855
      %v2959 = vpop.f32.mrf.mxu0
      %v2960 = vadd.f32 0.0, %v2959
      %v2961 = vpop.f32.mrf.mxu0
      %v2962 = vpop.f32.mrf.mxu0
      %v2963 = vadd.f32 0.0, %v2962
      %v2964 = vpop.f32.mrf.mxu0
      %2965 = vmatprep.mubr.bf16.mxu0 0
      %2966 = vmatmul.mubr.bf16.gmra.mxu0 %v2858
      %v2967 = vpop.f32.mrf.mxu0
      %v2968 = vadd.f32 0.0, %v2967
      %v2969 = vpop.f32.mrf.mxu0
      %v2970 = vpop.f32.mrf.mxu0
      %v2971 = vadd.f32 0.0, %v2970
      %v2972 = vpop.f32.mrf.mxu0
      %2973 = vmatprep.mubr.bf16.mxu0 0
      %2974 = vmatmul.mubr.bf16.gmra.mxu0 %v2861
      %v2975 = vpop.f32.mrf.mxu0
      %v2976 = vadd.f32 0.0, %v2975
      %v2977 = vpop.f32.mrf.mxu0
      %v2978 = vpop.f32.mrf.mxu0
      %v2979 = vadd.f32 0.0, %v2978
      %v2980 = vpop.f32.mrf.mxu0
      %2981 = vmatprep.mubr.bf16.mxu0 0
      %2982 = vmatmul.mubr.bf16.gmra.mxu0 %v2864
      %v2983 = vpop.f32.mrf.mxu0
      %v2984 = vadd.f32 0.0, %v2983
      %v2985 = vpop.f32.mrf.mxu0
      %v2986 = vpop.f32.mrf.mxu0
      %v2987 = vadd.f32 0.0, %v2986
      %v2988 = vpop.f32.mrf.mxu0
      %2989 = vmatprep.mubr.bf16.mxu0 0
      %2990 = vmatmul.mubr.bf16.gmra.mxu0 %v2867
      %v2991 = vpop.f32.mrf.mxu0
      %v2992 = vadd.f32 0.0, %v2991
      %v2993 = vpop.f32.mrf.mxu0
      %v2994 = vpop.f32.mrf.mxu0
      %v2995 = vadd.f32 0.0, %v2994
      %v2996 = vpop.f32.mrf.mxu0
      %2997 = vmatprep.mubr.bf16.mxu0 0
      %2998 = vmatmul.mubr.bf16.gmra.mxu0 %v2870
      %v2999 = vpop.f32.mrf.mxu0
      %v3000 = vadd.f32 0.0, %v2999
      %v3001 = vpop.f32.mrf.mxu0
      %v3002 = vpop.f32.mrf.mxu0
      %v3003 = vadd.f32 0.0, %v3002
      %v3004 = vpop.f32.mrf.mxu0
      %3005 = vmatprep.mubr.bf16.mxu0 0
      %3006 = vmatmul.mubr.bf16.gmra.mxu0 %v2873
      %v3007 = vpop.f32.mrf.mxu0
      %v3008 = vadd.f32 0.0, %v3007
      %v3009 = vpop.f32.mrf.mxu0
      %v3010 = vpop.f32.mrf.mxu0
      %v3011 = vadd.f32 0.0, %v3010
      %v3012 = vpop.f32.mrf.mxu0
      %3013 = vmatprep.mubr.bf16.mxu0 0
      %3014 = vmatmul.mubr.bf16.gmra.mxu0 %v2876
      %v3015 = vpop.f32.mrf.mxu0
      %v3016 = vadd.f32 0.0, %v3015
      %v3017 = vpop.f32.mrf.mxu0
      %v3018 = vpop.f32.mrf.mxu0
      %v3019 = vadd.f32 0.0, %v3018
      %v3020 = vpop.f32.mrf.mxu0
      %3021 = vmatprep.mubr.bf16.mxu0 0
      %3022 = vmatmul.mubr.bf16.gmra.mxu0 %v2879
      %v3023 = vpop.f32.mrf.mxu0
      %v3024 = vadd.f32 0.0, %v3023
      %v3025 = vpop.f32.mrf.mxu0
      %v3026 = vpop.f32.mrf.mxu0
      %v3027 = vadd.f32 0.0, %v3026
      %v3028 = vpop.f32.mrf.mxu0
      %3029 = vmatprep.mubr.bf16.mxu0 0
      %3030 = vmatmul.mubr.bf16.gmra.mxu0 %v2882
      %v3031 = vpop.f32.mrf.mxu0
      %v3032 = vadd.f32 0.0, %v3031
      %v3033 = vpop.f32.mrf.mxu0
      %v3034 = vpop.f32.mrf.mxu0
      %v3035 = vadd.f32 0.0, %v3034
      %v3036 = vpop.f32.mrf.mxu0
      %3037 = vmatprep.mubr.bf16.mxu0 0
      %3038 = vmatmul.mubr.bf16.gmra.mxu0 %v2885
      %v3039 = vpop.f32.mrf.mxu0
      %v3040 = vadd.f32 0.0, %v3039
      %v3041 = vpop.f32.mrf.mxu0
      %v3042 = vpop.f32.mrf.mxu0
      %v3043 = vadd.f32 0.0, %v3042
      %v3044 = vpop.f32.mrf.mxu0
      %3045 = vmatprep.mubr.bf16.mxu0 0
      %3046 = vmatmul.mubr.bf16.gmra.mxu0 %v2888
      %v3047 = vpop.f32.mrf.mxu0
      %v3048 = vadd.f32 0.0, %v3047
      %v3049 = vpop.f32.mrf.mxu0
      %v3050 = vpop.f32.mrf.mxu0
      %v3051 = vadd.f32 0.0, %v3050
      %v3052 = vpop.f32.mrf.mxu0
      %3053 = vdwg.mxu0
      %v3054 = vadd.f32 %v2328, %v2928
      %v3055 = vadd.f32 %v2329, %v2931
      %v3056 = vadd.f32 %v2330, %v2936
      %v3057 = vadd.f32 %v2331, %v2939
      %v3058 = vadd.f32 %v2332, %v2944
      %v3059 = vadd.f32 %v2333, %v2947
      %v3060 = vadd.f32 %v2334, %v2952
      %v3061 = vadd.f32 %v2335, %v2955
      %v3062 = vadd.f32 %v2336, %v2960
      %v3063 = vadd.f32 %v2337, %v2963
      %v3064 = vadd.f32 %v2338, %v2968
      %v3065 = vadd.f32 %v2339, %v2971
      %v3066 = vadd.f32 %v2340, %v2976
      %v3067 = vadd.f32 %v2341, %v2979
      %v3068 = vadd.f32 %v2342, %v2984
      %v3069 = vadd.f32 %v2343, %v2987
      %v3070 = vadd.f32 %v2344, %v2992
      %v3071 = vadd.f32 %v2345, %v2995
      %v3072 = vadd.f32 %v2346, %v3000
      %v3073 = vadd.f32 %v2347, %v3003
      %v3074 = vadd.f32 %v2348, %v3008
      %v3075 = vadd.f32 %v2349, %v3011
      %v3076 = vadd.f32 %v2350, %v3016
      %v3077 = vadd.f32 %v2351, %v3019
      %v3078 = vadd.f32 %v2352, %v3024
      %v3079 = vadd.f32 %v2353, %v3027
      %v3080 = vadd.f32 %v2354, %v3032
      %v3081 = vadd.f32 %v2355, %v3035
      %v3082 = vadd.f32 %v2356, %v3040
      %v3083 = vadd.f32 %v2357, %v3043
      %v3084 = vadd.f32 %v2358, %v3048
      %v3085 = vadd.f32 %v2359, %v3051
      %v3086 = vld [vmem:[%s2001] sm:$0xe]
      %v3087 = vld [vmem:[%s2001 + $0xc] sm:$0xe]
      %v3088 = vld [vmem:[%s2001 + $0x18] sm:$0xe]
      %v3089 = vld [vmem:[%s2001 + $0x24] sm:$0xe]
      %v3090 = vld [vmem:[%s2001 + $0x30] sm:$0xe]
      %v3091 = vld [vmem:[%s2001 + $0x3c] sm:$0xe]
      %v3092 = vld [vmem:[%s2001 + $0x48] sm:$0xe]
      %v3093 = vld [vmem:[%s2001 + $0x54] sm:$0xe]
      %v3094 = vld [vmem:[%s2001 + $0x60] sm:$0xe]
      %v3095 = vld [vmem:[%s2001 + $0x6c] sm:$0xe]
      %v3096 = vld [vmem:[%s2001 + $0x78] sm:$0xe]
      %v3097 = vld [vmem:[%s2001 + $0x84] sm:$0xe]
      %v3098 = vld [vmem:[%s2001 + $0x90] sm:$0xe]
      %v3099 = vld [vmem:[%s2001 + $0x9c] sm:$0xe]
      %v3100 = vld [vmem:[%s2001 + $0xa8] sm:$0xe]
      %v3101 = vld [vmem:[%s2001 + $0xb4] sm:$0xe]
      %v3150 = vrot.slane %v3086, 5
      %v3151 = vrot.slane %v3150, 4
      %v3152 = vrot.slane %v2361, 5
      %v3153 = vsel %vm1594, %v3151, %v3152
      %v3154 = vrot.slane %v3152, 4
      %v3155 = vrot.slane %v2362, 5
      %v3156 = vsel %vm1594, %v3154, %v3155
      %v3157 = vrot.slane %v3087, 5
      %v3158 = vrot.slane %v3157, 4
      %v3159 = vrot.slane %v2364, 5
      %v3160 = vsel %vm1594, %v3158, %v3159
      %v3161 = vrot.slane %v3159, 4
      %v3162 = vrot.slane %v2365, 5
      %v3163 = vsel %vm1594, %v3161, %v3162
      %v3164 = vrot.slane %v3088, 5
      %v3165 = vrot.slane %v3164, 4
      %v3166 = vrot.slane %v2367, 5
      %v3167 = vsel %vm1594, %v3165, %v3166
      %v3168 = vrot.slane %v3166, 4
      %v3169 = vrot.slane %v2368, 5
      %v3170 = vsel %vm1594, %v3168, %v3169
      %v3171 = vrot.slane %v3089, 5
      %v3172 = vrot.slane %v3171, 4
      %v3173 = vrot.slane %v2370, 5
      %v3174 = vsel %vm1594, %v3172, %v3173
      %v3175 = vrot.slane %v3173, 4
      %v3176 = vrot.slane %v2371, 5
      %v3177 = vsel %vm1594, %v3175, %v3176
      %v3178 = vrot.slane %v3090, 5
      %v3179 = vrot.slane %v3178, 4
      %v3180 = vrot.slane %v2373, 5
      %v3181 = vsel %vm1594, %v3179, %v3180
      %v3182 = vrot.slane %v3180, 4
      %v3183 = vrot.slane %v2374, 5
      %v3184 = vsel %vm1594, %v3182, %v3183
      %v3185 = vrot.slane %v3091, 5
      %v3186 = vrot.slane %v3185, 4
      %v3187 = vrot.slane %v2376, 5
      %v3188 = vsel %vm1594, %v3186, %v3187
      %v3189 = vrot.slane %v3187, 4
      %v3190 = vrot.slane %v2377, 5
      %v3191 = vsel %vm1594, %v3189, %v3190
      %v3192 = vrot.slane %v3092, 5
      %v3193 = vrot.slane %v3192, 4
      %v3194 = vrot.slane %v2379, 5
      %v3195 = vsel %vm1594, %v3193, %v3194
      %v3196 = vrot.slane %v3194, 4
      %v3197 = vrot.slane %v2380, 5
      %v3198 = vsel %vm1594, %v3196, %v3197
      %v3199 = vrot.slane %v3093, 5
      %v3200 = vrot.slane %v3199, 4
      %v3201 = vrot.slane %v2382, 5
      %v3202 = vsel %vm1594, %v3200, %v3201
      %v3203 = vrot.slane %v3201, 4
      %v3204 = vrot.slane %v2383, 5
      %v3205 = vsel %vm1594, %v3203, %v3204
      %v3206 = vrot.slane %v3094, 5
      %v3207 = vrot.slane %v3206, 4
      %v3208 = vrot.slane %v2385, 5
      %v3209 = vsel %vm1594, %v3207, %v3208
      %v3210 = vrot.slane %v3208, 4
      %v3211 = vrot.slane %v2386, 5
      %v3212 = vsel %vm1594, %v3210, %v3211
      %v3213 = vrot.slane %v3095, 5
      %v3214 = vrot.slane %v3213, 4
      %v3215 = vrot.slane %v2388, 5
      %v3216 = vsel %vm1594, %v3214, %v3215
      %v3217 = vrot.slane %v3215, 4
      %v3218 = vrot.slane %v2389, 5
      %v3219 = vsel %vm1594, %v3217, %v3218
      %v3220 = vrot.slane %v3096, 5
      %v3221 = vrot.slane %v3220, 4
      %v3222 = vrot.slane %v2391, 5
      %v3223 = vsel %vm1594, %v3221, %v3222
      %v3224 = vrot.slane %v3222, 4
      %v3225 = vrot.slane %v2392, 5
      %v3226 = vsel %vm1594, %v3224, %v3225
      %v3227 = vrot.slane %v3097, 5
      %v3228 = vrot.slane %v3227, 4
      %v3229 = vrot.slane %v2394, 5
      %v3230 = vsel %vm1594, %v3228, %v3229
      %v3231 = vrot.slane %v3229, 4
      %v3232 = vrot.slane %v2395, 5
      %v3233 = vsel %vm1594, %v3231, %v3232
      %v3234 = vrot.slane %v3098, 5
      %v3235 = vrot.slane %v3234, 4
      %v3236 = vrot.slane %v2397, 5
      %v3237 = vsel %vm1594, %v3235, %v3236
      %v3238 = vrot.slane %v3236, 4
      %v3239 = vrot.slane %v2398, 5
      %v3240 = vsel %vm1594, %v3238, %v3239
      %v3241 = vrot.slane %v3099, 5
      %v3242 = vrot.slane %v3241, 4
      %v3243 = vrot.slane %v2400, 5
      %v3244 = vsel %vm1594, %v3242, %v3243
      %v3245 = vrot.slane %v3243, 4
      %v3246 = vrot.slane %v2401, 5
      %v3247 = vsel %vm1594, %v3245, %v3246
      %v3248 = vrot.slane %v3100, 5
      %v3249 = vrot.slane %v3248, 4
      %v3250 = vrot.slane %v2403, 5
      %v3251 = vsel %vm1594, %v3249, %v3250
      %v3252 = vrot.slane %v3250, 4
      %v3253 = vrot.slane %v2404, 5
      %v3254 = vsel %vm1594, %v3252, %v3253
      %v3255 = vrot.slane %v3101, 5
      %v3256 = vrot.slane %v3255, 4
      %v3257 = vrot.slane %v2406, 5
      %v3258 = vsel %vm1594, %v3256, %v3257
      %v3259 = vrot.slane %v3257, 4
      %v3260 = vrot.slane %v2407, 5
      %v3261 = vsel %vm1594, %v3259, %v3260
      %s3262 = scalar_lea.vmem %s3, 20
      %v3263 = vld [vmem:[%s3262] sm:$0xf]
      %v3264 = vunpack.c.l.b16 %v3153
      %v3265 = vunpack.c.l.b16 %v3156
      %v3266 = vunpack.c.l.b16 %v3160
      %v3267 = vunpack.c.l.b16 %v3163
      %v3268 = vunpack.c.l.b16 %v3167
      %v3269 = vunpack.c.l.b16 %v3170
      %v3270 = vunpack.c.l.b16 %v3174
      %v3271 = vunpack.c.l.b16 %v3177
      %v3272 = vunpack.c.l.b16 %v3181
      %v3273 = vunpack.c.l.b16 %v3184
      %v3274 = vunpack.c.l.b16 %v3188
      %v3275 = vunpack.c.l.b16 %v3191
      %v3276 = vunpack.c.l.b16 %v3195
      %v3277 = vunpack.c.l.b16 %v3198
      %v3278 = vunpack.c.l.b16 %v3202
      %v3279 = vunpack.c.l.b16 %v3205
      %v3280 = vunpack.c.l.b16 %v3209
      %v3281 = vunpack.c.l.b16 %v3212
      %v3282 = vunpack.c.l.b16 %v3216
      %v3283 = vunpack.c.l.b16 %v3219
      %v3284 = vunpack.c.l.b16 %v3223
      %v3285 = vunpack.c.l.b16 %v3226
      %v3286 = vunpack.c.l.b16 %v3230
      %v3287 = vunpack.c.l.b16 %v3233
      %v3288 = vunpack.c.l.b16 %v3237
      %v3289 = vunpack.c.l.b16 %v3240
      %v3290 = vunpack.c.l.b16 %v3244
      %v3291 = vunpack.c.l.b16 %v3247
      %v3292 = vunpack.c.l.b16 %v3251
      %v3293 = vunpack.c.l.b16 %v3254
      %v3294 = vunpack.c.l.b16 %v3258
      %v3295 = vunpack.c.l.b16 %v3261
      %v3296 = vpack.c.b16 %v3265, %v3264
      %v3297 = vpack.c.b16 %v3267, %v3266
      %v3298 = vpack.c.b16 %v3269, %v3268
      %v3299 = vpack.c.b16 %v3271, %v3270
      %v3300 = vpack.c.b16 %v3273, %v3272
      %v3301 = vpack.c.b16 %v3275, %v3274
      %v3302 = vpack.c.b16 %v3277, %v3276
      %v3303 = vpack.c.b16 %v3279, %v3278
      %v3304 = vpack.c.b16 %v3281, %v3280
      %v3305 = vpack.c.b16 %v3283, %v3282
      %v3306 = vpack.c.b16 %v3285, %v3284
      %v3307 = vpack.c.b16 %v3287, %v3286
      %v3308 = vpack.c.b16 %v3289, %v3288
      %v3309 = vpack.c.b16 %v3291, %v3290
      %v3310 = vpack.c.b16 %v3293, %v3292
      %v3311 = vpack.c.b16 %v3295, %v3294
      %v3313 = vsel %vm1038, %v3296, 0
      %v3316 = vsel %vm1038, %v3297, 0
      %v3319 = vsel %vm1038, %v3298, 0
      %v3322 = vsel %vm1038, %v3299, 0
      %v3325 = vsel %vm1038, %v3300, 0
      %v3328 = vsel %vm1038, %v3301, 0
      %v3331 = vsel %vm1038, %v3302, 0
      %v3334 = vsel %vm1038, %v3303, 0
      %v3337 = vsel %vm1038, %v3304, 0
      %v3340 = vsel %vm1038, %v3305, 0
      %v3343 = vsel %vm1038, %v3306, 0
      %v3346 = vsel %vm1038, %v3307, 0
      %v3349 = vsel %vm1038, %v3308, 0
      %v3352 = vsel %vm1038, %v3309, 0
      %v3355 = vsel %vm1038, %v3310, 0
      %v3358 = vsel %vm1038, %v3311, 0
      %v3361 = vsel %vm1087, %v3263, 0
      %3363 = vmatprep.subr.bf16.mxu0 0
      %3364 = vmatpush1.bf16.msra.mxu0 0
      %3365 = vmatprep.subr.bf16.mxu0 0
      %3366 = vmatpush1.bf16.msra.mxu0 0
      %3367 = vmatprep.subr.bf16.mxu0 0
      %3368 = vmatpush1.bf16.msra.mxu0 0
      %3369 = vmatprep.subr.bf16.mxu0 0
      %3370 = vmatpush1.bf16.msra.mxu0 0
      %3371 = vmatprep.subr.bf16.mxu0 0
      %3372 = vmatpush1.bf16.msra.mxu0 0
      %3373 = vmatprep.subr.bf16.mxu0 0
      %3374 = vmatpush1.bf16.msra.mxu0 0
      %3375 = vmatprep.subr.bf16.mxu0 0
      %3376 = vmatpush1.bf16.msra.mxu0 0
      %3377 = vmatprep.subr.bf16.mxu0 0
      %3378 = vmatpush1.bf16.msra.mxu0 %v3361
      %3379 = vmatprep.subr.bf16.mxu0 0
      %3380 = vmatpush2.bf16.msra.mxu0 0
      %3381 = vmatprep.subr.bf16.mxu0 0
      %3382 = vmatpush2.bf16.msra.mxu0 0
      %3383 = vmatprep.subr.bf16.mxu0 0
      %3384 = vmatpush2.bf16.msra.mxu0 0
      %3385 = vmatprep.subr.bf16.mxu0 0
      %3386 = vmatpush2.bf16.msra.mxu0 0
      %3387 = vmatprep.subr.bf16.mxu0 0
      %3388 = vmatpush2.bf16.msra.mxu0 0
      %3389 = vmatprep.subr.bf16.mxu0 0
      %3390 = vmatpush2.bf16.msra.mxu0 0
      %3391 = vmatprep.subr.bf16.mxu0 0
      %3392 = vmatpush2.bf16.msra.mxu0 0
      %3393 = vmatprep.subr.bf16.mxu0 0
      %3394 = vmatpush2.bf16.msra.mxu0 0
      %3395 = vmatprep.mubr.bf16.mxu0 0
      %3396 = vmatmul.mubr.bf16.gmra.mxu0 %v3313
      %v3397 = vpop.f32.mrf.mxu0
      %v3398 = vadd.f32 0.0, %v3397
      %v3399 = vpop.f32.mrf.mxu0
      %v3400 = vpop.f32.mrf.mxu0
      %v3401 = vadd.f32 0.0, %v3400
      %v3402 = vpop.f32.mrf.mxu0
      %3403 = vmatprep.mubr.bf16.mxu0 0
      %3404 = vmatmul.mubr.bf16.gmra.mxu0 %v3316
      %v3405 = vpop.f32.mrf.mxu0
      %v3406 = vadd.f32 0.0, %v3405
      %v3407 = vpop.f32.mrf.mxu0
      %v3408 = vpop.f32.mrf.mxu0
      %v3409 = vadd.f32 0.0, %v3408
      %v3410 = vpop.f32.mrf.mxu0
      %3411 = vmatprep.mubr.bf16.mxu0 0
      %3412 = vmatmul.mubr.bf16.gmra.mxu0 %v3319
      %v3413 = vpop.f32.mrf.mxu0
      %v3414 = vadd.f32 0.0, %v3413
      %v3415 = vpop.f32.mrf.mxu0
      %v3416 = vpop.f32.mrf.mxu0
      %v3417 = vadd.f32 0.0, %v3416
      %v3418 = vpop.f32.mrf.mxu0
      %3419 = vmatprep.mubr.bf16.mxu0 0
      %3420 = vmatmul.mubr.bf16.gmra.mxu0 %v3322
      %v3421 = vpop.f32.mrf.mxu0
      %v3422 = vadd.f32 0.0, %v3421
      %v3423 = vpop.f32.mrf.mxu0
      %v3424 = vpop.f32.mrf.mxu0
      %v3425 = vadd.f32 0.0, %v3424
      %v3426 = vpop.f32.mrf.mxu0
      %3427 = vmatprep.mubr.bf16.mxu0 0
      %3428 = vmatmul.mubr.bf16.gmra.mxu0 %v3325
      %v3429 = vpop.f32.mrf.mxu0
      %v3430 = vadd.f32 0.0, %v3429
      %v3431 = vpop.f32.mrf.mxu0
      %v3432 = vpop.f32.mrf.mxu0
      %v3433 = vadd.f32 0.0, %v3432
      %v3434 = vpop.f32.mrf.mxu0
      %3435 = vmatprep.mubr.bf16.mxu0 0
      %3436 = vmatmul.mubr.bf16.gmra.mxu0 %v3328
      %v3437 = vpop.f32.mrf.mxu0
      %v3438 = vadd.f32 0.0, %v3437
      %v3439 = vpop.f32.mrf.mxu0
      %v3440 = vpop.f32.mrf.mxu0
      %v3441 = vadd.f32 0.0, %v3440
      %v3442 = vpop.f32.mrf.mxu0
      %3443 = vmatprep.mubr.bf16.mxu0 0
      %3444 = vmatmul.mubr.bf16.gmra.mxu0 %v3331
      %v3445 = vpop.f32.mrf.mxu0
      %v3446 = vadd.f32 0.0, %v3445
      %v3447 = vpop.f32.mrf.mxu0
      %v3448 = vpop.f32.mrf.mxu0
      %v3449 = vadd.f32 0.0, %v3448
      %v3450 = vpop.f32.mrf.mxu0
      %3451 = vmatprep.mubr.bf16.mxu0 0
      %3452 = vmatmul.mubr.bf16.gmra.mxu0 %v3334
      %v3453 = vpop.f32.mrf.mxu0
      %v3454 = vadd.f32 0.0, %v3453
      %v3455 = vpop.f32.mrf.mxu0
      %v3456 = vpop.f32.mrf.mxu0
      %v3457 = vadd.f32 0.0, %v3456
      %v3458 = vpop.f32.mrf.mxu0
      %3459 = vmatprep.mubr.bf16.mxu0 0
      %3460 = vmatmul.mubr.bf16.gmra.mxu0 %v3337
      %v3461 = vpop.f32.mrf.mxu0
      %v3462 = vadd.f32 0.0, %v3461
      %v3463 = vpop.f32.mrf.mxu0
      %v3464 = vpop.f32.mrf.mxu0
      %v3465 = vadd.f32 0.0, %v3464
      %v3466 = vpop.f32.mrf.mxu0
      %3467 = vmatprep.mubr.bf16.mxu0 0
      %3468 = vmatmul.mubr.bf16.gmra.mxu0 %v3340
      %v3469 = vpop.f32.mrf.mxu0
      %v3470 = vadd.f32 0.0, %v3469
      %v3471 = vpop.f32.mrf.mxu0
      %v3472 = vpop.f32.mrf.mxu0
      %v3473 = vadd.f32 0.0, %v3472
      %v3474 = vpop.f32.mrf.mxu0
      %3475 = vmatprep.mubr.bf16.mxu0 0
      %3476 = vmatmul.mubr.bf16.gmra.mxu0 %v3343
      %v3477 = vpop.f32.mrf.mxu0
      %v3478 = vadd.f32 0.0, %v3477
      %v3479 = vpop.f32.mrf.mxu0
      %v3480 = vpop.f32.mrf.mxu0
      %v3481 = vadd.f32 0.0, %v3480
      %v3482 = vpop.f32.mrf.mxu0
      %3483 = vmatprep.mubr.bf16.mxu0 0
      %3484 = vmatmul.mubr.bf16.gmra.mxu0 %v3346
      %v3485 = vpop.f32.mrf.mxu0
      %v3486 = vadd.f32 0.0, %v3485
      %v3487 = vpop.f32.mrf.mxu0
      %v3488 = vpop.f32.mrf.mxu0
      %v3489 = vadd.f32 0.0, %v3488
      %v3490 = vpop.f32.mrf.mxu0
      %3491 = vmatprep.mubr.bf16.mxu0 0
      %3492 = vmatmul.mubr.bf16.gmra.mxu0 %v3349
      %v3493 = vpop.f32.mrf.mxu0
      %v3494 = vadd.f32 0.0, %v3493
      %v3495 = vpop.f32.mrf.mxu0
      %v3496 = vpop.f32.mrf.mxu0
      %v3497 = vadd.f32 0.0, %v3496
      %v3498 = vpop.f32.mrf.mxu0
      %3499 = vmatprep.mubr.bf16.mxu0 0
      %3500 = vmatmul.mubr.bf16.gmra.mxu0 %v3352
      %v3501 = vpop.f32.mrf.mxu0
      %v3502 = vadd.f32 0.0, %v3501
      %v3503 = vpop.f32.mrf.mxu0
      %v3504 = vpop.f32.mrf.mxu0
      %v3505 = vadd.f32 0.0, %v3504
      %v3506 = vpop.f32.mrf.mxu0
      %3507 = vmatprep.mubr.bf16.mxu0 0
      %3508 = vmatmul.mubr.bf16.gmra.mxu0 %v3355
      %v3509 = vpop.f32.mrf.mxu0
      %v3510 = vadd.f32 0.0, %v3509
      %v3511 = vpop.f32.mrf.mxu0
      %v3512 = vpop.f32.mrf.mxu0
      %v3513 = vadd.f32 0.0, %v3512
      %v3514 = vpop.f32.mrf.mxu0
      %3515 = vmatprep.mubr.bf16.mxu0 0
      %3516 = vmatmul.mubr.bf16.gmra.mxu0 %v3358
      %v3517 = vpop.f32.mrf.mxu0
      %v3518 = vadd.f32 0.0, %v3517
      %v3519 = vpop.f32.mrf.mxu0
      %v3520 = vpop.f32.mrf.mxu0
      %v3521 = vadd.f32 0.0, %v3520
      %v3522 = vpop.f32.mrf.mxu0
      %3523 = vdwg.mxu0
      %v3524 = vadd.f32 %v3054, %v3398
      %v3525 = vadd.f32 %v3055, %v3401
      %v3526 = vadd.f32 %v3056, %v3406
      %v3527 = vadd.f32 %v3057, %v3409
      %v3528 = vadd.f32 %v3058, %v3414
      %v3529 = vadd.f32 %v3059, %v3417
      %v3530 = vadd.f32 %v3060, %v3422
      %v3531 = vadd.f32 %v3061, %v3425
      %v3532 = vadd.f32 %v3062, %v3430
      %v3533 = vadd.f32 %v3063, %v3433
      %v3534 = vadd.f32 %v3064, %v3438
      %v3535 = vadd.f32 %v3065, %v3441
      %v3536 = vadd.f32 %v3066, %v3446
      %v3537 = vadd.f32 %v3067, %v3449
      %v3538 = vadd.f32 %v3068, %v3454
      %v3539 = vadd.f32 %v3069, %v3457
      %v3540 = vadd.f32 %v3070, %v3462
      %v3541 = vadd.f32 %v3071, %v3465
      %v3542 = vadd.f32 %v3072, %v3470
      %v3543 = vadd.f32 %v3073, %v3473
      %v3544 = vadd.f32 %v3074, %v3478
      %v3545 = vadd.f32 %v3075, %v3481
      %v3546 = vadd.f32 %v3076, %v3486
      %v3547 = vadd.f32 %v3077, %v3489
      %v3548 = vadd.f32 %v3078, %v3494
      %v3549 = vadd.f32 %v3079, %v3497
      %v3550 = vadd.f32 %v3080, %v3502
      %v3551 = vadd.f32 %v3081, %v3505
      %v3552 = vadd.f32 %v3082, %v3510
      %v3553 = vadd.f32 %v3083, %v3513
      %v3554 = vadd.f32 %v3084, %v3518
      %v3555 = vadd.f32 %v3085, %v3521
      %s3556 = scalar_lea.vmem [#allocation2], 24
      %v3557 = vld [vmem:[%s3556] sm:$0xf]
      %v3558 = vld [vmem:[%s3556 + $0x4] sm:$0xf]
      %v3559 = vld [vmem:[%s3556 + $0xc] sm:$0xf]
      %v3560 = vld [vmem:[%s3556 + $0x10] sm:$0xf]
      %v3561 = vld [vmem:[%s3556 + $0x18] sm:$0xf]
      %v3562 = vld [vmem:[%s3556 + $0x1c] sm:$0xf]
      %v3563 = vld [vmem:[%s3556 + $0x24] sm:$0xf]
      %v3564 = vld [vmem:[%s3556 + $0x28] sm:$0xf]
      %v3565 = vld [vmem:[%s3556 + $0x30] sm:$0xf]
      %v3566 = vld [vmem:[%s3556 + $0x34] sm:$0xf]
      %v3567 = vld [vmem:[%s3556 + $0x3c] sm:$0xf]
      %v3568 = vld [vmem:[%s3556 + $0x40] sm:$0xf]
      %v3569 = vld [vmem:[%s3556 + $0x48] sm:$0xf]
      %v3570 = vld [vmem:[%s3556 + $0x4c] sm:$0xf]
      %v3571 = vld [vmem:[%s3556 + $0x54] sm:$0xf]
      %v3572 = vld [vmem:[%s3556 + $0x58] sm:$0xf]
      %v3573 = vld [vmem:[%s3556 + $0x60] sm:$0xf]
      %v3574 = vld [vmem:[%s3556 + $0x64] sm:$0xf]
      %v3575 = vld [vmem:[%s3556 + $0x6c] sm:$0xf]
      %v3576 = vld [vmem:[%s3556 + $0x70] sm:$0xf]
      %v3577 = vld [vmem:[%s3556 + $0x78] sm:$0xf]
      %v3578 = vld [vmem:[%s3556 + $0x7c] sm:$0xf]
      %v3579 = vld [vmem:[%s3556 + $0x84] sm:$0xf]
      %v3580 = vld [vmem:[%s3556 + $0x88] sm:$0xf]
      %v3581 = vld [vmem:[%s3556 + $0x90] sm:$0xf]
      %v3582 = vld [vmem:[%s3556 + $0x94] sm:$0xf]
      %v3583 = vld [vmem:[%s3556 + $0x9c] sm:$0xf]
      %v3584 = vld [vmem:[%s3556 + $0xa0] sm:$0xf]
      %v3585 = vld [vmem:[%s3556 + $0xa8] sm:$0xf]
      %v3586 = vld [vmem:[%s3556 + $0xac] sm:$0xf]
      %v3587 = vld [vmem:[%s3556 + $0xb4] sm:$0xf]
      %v3588 = vld [vmem:[%s3556 + $0xb8] sm:$0xf]
      %s3589 = scalar_lea.vmem %s3, 24
      %v3590 = vld [vmem:[%s3589] sm:$0xf]
      %v3623 = vunpack.c.l.b16 %v3557
      %v3624 = vunpack.c.l.b16 %v3558
      %v3625 = vunpack.c.l.b16 %v3559
      %v3626 = vunpack.c.l.b16 %v3560
      %v3627 = vunpack.c.l.b16 %v3561
      %v3628 = vunpack.c.l.b16 %v3562
      %v3629 = vunpack.c.l.b16 %v3563
      %v3630 = vunpack.c.l.b16 %v3564
      %v3631 = vunpack.c.l.b16 %v3565
      %v3632 = vunpack.c.l.b16 %v3566
      %v3633 = vunpack.c.l.b16 %v3567
      %v3634 = vunpack.c.l.b16 %v3568
      %v3635 = vunpack.c.l.b16 %v3569
      %v3636 = vunpack.c.l.b16 %v3570
      %v3637 = vunpack.c.l.b16 %v3571
      %v3638 = vunpack.c.l.b16 %v3572
      %v3639 = vunpack.c.l.b16 %v3573
      %v3640 = vunpack.c.l.b16 %v3574
      %v3641 = vunpack.c.l.b16 %v3575
      %v3642 = vunpack.c.l.b16 %v3576
      %v3643 = vunpack.c.l.b16 %v3577
      %v3644 = vunpack.c.l.b16 %v3578
      %v3645 = vunpack.c.l.b16 %v3579
      %v3646 = vunpack.c.l.b16 %v3580
      %v3647 = vunpack.c.l.b16 %v3581
      %v3648 = vunpack.c.l.b16 %v3582
      %v3649 = vunpack.c.l.b16 %v3583
      %v3650 = vunpack.c.l.b16 %v3584
      %v3651 = vunpack.c.l.b16 %v3585
      %v3652 = vunpack.c.l.b16 %v3586
      %v3653 = vunpack.c.l.b16 %v3587
      %v3654 = vunpack.c.l.b16 %v3588
      %v3655 = vpack.c.b16 %v3624, %v3623
      %v3656 = vpack.c.b16 %v3626, %v3625
      %v3657 = vpack.c.b16 %v3628, %v3627
      %v3658 = vpack.c.b16 %v3630, %v3629
      %v3659 = vpack.c.b16 %v3632, %v3631
      %v3660 = vpack.c.b16 %v3634, %v3633
      %v3661 = vpack.c.b16 %v3636, %v3635
      %v3662 = vpack.c.b16 %v3638, %v3637
      %v3663 = vpack.c.b16 %v3640, %v3639
      %v3664 = vpack.c.b16 %v3642, %v3641
      %v3665 = vpack.c.b16 %v3644, %v3643
      %v3666 = vpack.c.b16 %v3646, %v3645
      %v3667 = vpack.c.b16 %v3648, %v3647
      %v3668 = vpack.c.b16 %v3650, %v3649
      %v3669 = vpack.c.b16 %v3652, %v3651
      %v3670 = vpack.c.b16 %v3654, %v3653
      %v3672 = vsel %vm1038, %v3655, 0
      %v3675 = vsel %vm1038, %v3656, 0
      %v3678 = vsel %vm1038, %v3657, 0
      %v3681 = vsel %vm1038, %v3658, 0
      %v3684 = vsel %vm1038, %v3659, 0
      %v3687 = vsel %vm1038, %v3660, 0
      %v3690 = vsel %vm1038, %v3661, 0
      %v3693 = vsel %vm1038, %v3662, 0
      %v3696 = vsel %vm1038, %v3663, 0
      %v3699 = vsel %vm1038, %v3664, 0
      %v3702 = vsel %vm1038, %v3665, 0
      %v3705 = vsel %vm1038, %v3666, 0
      %v3708 = vsel %vm1038, %v3667, 0
      %v3711 = vsel %vm1038, %v3668, 0
      %v3714 = vsel %vm1038, %v3669, 0
      %v3717 = vsel %vm1038, %v3670, 0
      %v3720 = vsel %vm1087, %v3590, 0
      %3722 = vmatprep.subr.bf16.mxu0 0
      %3723 = vmatpush1.bf16.msra.mxu0 0
      %3724 = vmatprep.subr.bf16.mxu0 0
      %3725 = vmatpush1.bf16.msra.mxu0 0
      %3726 = vmatprep.subr.bf16.mxu0 0
      %3727 = vmatpush1.bf16.msra.mxu0 0
      %3728 = vmatprep.subr.bf16.mxu0 0
      %3729 = vmatpush1.bf16.msra.mxu0 0
      %3730 = vmatprep.subr.bf16.mxu0 0
      %3731 = vmatpush1.bf16.msra.mxu0 0
      %3732 = vmatprep.subr.bf16.mxu0 0
      %3733 = vmatpush1.bf16.msra.mxu0 0
      %3734 = vmatprep.subr.bf16.mxu0 0
      %3735 = vmatpush1.bf16.msra.mxu0 0
      %3736 = vmatprep.subr.bf16.mxu0 0
      %3737 = vmatpush1.bf16.msra.mxu0 %v3720
      %3738 = vmatprep.subr.bf16.mxu0 0
      %3739 = vmatpush2.bf16.msra.mxu0 0
      %3740 = vmatprep.subr.bf16.mxu0 0
      %3741 = vmatpush2.bf16.msra.mxu0 0
      %3742 = vmatprep.subr.bf16.mxu0 0
      %3743 = vmatpush2.bf16.msra.mxu0 0
      %3744 = vmatprep.subr.bf16.mxu0 0
      %3745 = vmatpush2.bf16.msra.mxu0 0
      %3746 = vmatprep.subr.bf16.mxu0 0
      %3747 = vmatpush2.bf16.msra.mxu0 0
      %3748 = vmatprep.subr.bf16.mxu0 0
      %3749 = vmatpush2.bf16.msra.mxu0 0
      %3750 = vmatprep.subr.bf16.mxu0 0
      %3751 = vmatpush2.bf16.msra.mxu0 0
      %3752 = vmatprep.subr.bf16.mxu0 0
      %3753 = vmatpush2.bf16.msra.mxu0 0
      %3754 = vmatprep.mubr.bf16.mxu0 0
      %3755 = vmatmul.mubr.bf16.gmra.mxu0 %v3672
      %v3756 = vpop.f32.mrf.mxu0
      %v3757 = vadd.f32 0.0, %v3756
      %v3758 = vpop.f32.mrf.mxu0
      %v3759 = vpop.f32.mrf.mxu0
      %v3760 = vadd.f32 0.0, %v3759
      %v3761 = vpop.f32.mrf.mxu0
      %3762 = vmatprep.mubr.bf16.mxu0 0
      %3763 = vmatmul.mubr.bf16.gmra.mxu0 %v3675
      %v3764 = vpop.f32.mrf.mxu0
      %v3765 = vadd.f32 0.0, %v3764
      %v3766 = vpop.f32.mrf.mxu0
      %v3767 = vpop.f32.mrf.mxu0
      %v3768 = vadd.f32 0.0, %v3767
      %v3769 = vpop.f32.mrf.mxu0
      %3770 = vmatprep.mubr.bf16.mxu0 0
      %3771 = vmatmul.mubr.bf16.gmra.mxu0 %v3678
      %v3772 = vpop.f32.mrf.mxu0
      %v3773 = vadd.f32 0.0, %v3772
      %v3774 = vpop.f32.mrf.mxu0
      %v3775 = vpop.f32.mrf.mxu0
      %v3776 = vadd.f32 0.0, %v3775
      %v3777 = vpop.f32.mrf.mxu0
      %3778 = vmatprep.mubr.bf16.mxu0 0
      %3779 = vmatmul.mubr.bf16.gmra.mxu0 %v3681
      %v3780 = vpop.f32.mrf.mxu0
      %v3781 = vadd.f32 0.0, %v3780
      %v3782 = vpop.f32.mrf.mxu0
      %v3783 = vpop.f32.mrf.mxu0
      %v3784 = vadd.f32 0.0, %v3783
      %v3785 = vpop.f32.mrf.mxu0
      %3786 = vmatprep.mubr.bf16.mxu0 0
      %3787 = vmatmul.mubr.bf16.gmra.mxu0 %v3684
      %v3788 = vpop.f32.mrf.mxu0
      %v3789 = vadd.f32 0.0, %v3788
      %v3790 = vpop.f32.mrf.mxu0
      %v3791 = vpop.f32.mrf.mxu0
      %v3792 = vadd.f32 0.0, %v3791
      %v3793 = vpop.f32.mrf.mxu0
      %3794 = vmatprep.mubr.bf16.mxu0 0
      %3795 = vmatmul.mubr.bf16.gmra.mxu0 %v3687
      %v3796 = vpop.f32.mrf.mxu0
      %v3797 = vadd.f32 0.0, %v3796
      %v3798 = vpop.f32.mrf.mxu0
      %v3799 = vpop.f32.mrf.mxu0
      %v3800 = vadd.f32 0.0, %v3799
      %v3801 = vpop.f32.mrf.mxu0
      %3802 = vmatprep.mubr.bf16.mxu0 0
      %3803 = vmatmul.mubr.bf16.gmra.mxu0 %v3690
      %v3804 = vpop.f32.mrf.mxu0
      %v3805 = vadd.f32 0.0, %v3804
      %v3806 = vpop.f32.mrf.mxu0
      %v3807 = vpop.f32.mrf.mxu0
      %v3808 = vadd.f32 0.0, %v3807
      %v3809 = vpop.f32.mrf.mxu0
      %3810 = vmatprep.mubr.bf16.mxu0 0
      %3811 = vmatmul.mubr.bf16.gmra.mxu0 %v3693
      %v3812 = vpop.f32.mrf.mxu0
      %v3813 = vadd.f32 0.0, %v3812
      %v3814 = vpop.f32.mrf.mxu0
      %v3815 = vpop.f32.mrf.mxu0
      %v3816 = vadd.f32 0.0, %v3815
      %v3817 = vpop.f32.mrf.mxu0
      %3818 = vmatprep.mubr.bf16.mxu0 0
      %3819 = vmatmul.mubr.bf16.gmra.mxu0 %v3696
      %v3820 = vpop.f32.mrf.mxu0
      %v3821 = vadd.f32 0.0, %v3820
      %v3822 = vpop.f32.mrf.mxu0
      %v3823 = vpop.f32.mrf.mxu0
      %v3824 = vadd.f32 0.0, %v3823
      %v3825 = vpop.f32.mrf.mxu0
      %3826 = vmatprep.mubr.bf16.mxu0 0
      %3827 = vmatmul.mubr.bf16.gmra.mxu0 %v3699
      %v3828 = vpop.f32.mrf.mxu0
      %v3829 = vadd.f32 0.0, %v3828
      %v3830 = vpop.f32.mrf.mxu0
      %v3831 = vpop.f32.mrf.mxu0
      %v3832 = vadd.f32 0.0, %v3831
      %v3833 = vpop.f32.mrf.mxu0
      %3834 = vmatprep.mubr.bf16.mxu0 0
      %3835 = vmatmul.mubr.bf16.gmra.mxu0 %v3702
      %v3836 = vpop.f32.mrf.mxu0
      %v3837 = vadd.f32 0.0, %v3836
      %v3838 = vpop.f32.mrf.mxu0
      %v3839 = vpop.f32.mrf.mxu0
      %v3840 = vadd.f32 0.0, %v3839
      %v3841 = vpop.f32.mrf.mxu0
      %3842 = vmatprep.mubr.bf16.mxu0 0
      %3843 = vmatmul.mubr.bf16.gmra.mxu0 %v3705
      %v3844 = vpop.f32.mrf.mxu0
      %v3845 = vadd.f32 0.0, %v3844
      %v3846 = vpop.f32.mrf.mxu0
      %v3847 = vpop.f32.mrf.mxu0
      %v3848 = vadd.f32 0.0, %v3847
      %v3849 = vpop.f32.mrf.mxu0
      %3850 = vmatprep.mubr.bf16.mxu0 0
      %3851 = vmatmul.mubr.bf16.gmra.mxu0 %v3708
      %v3852 = vpop.f32.mrf.mxu0
      %v3853 = vadd.f32 0.0, %v3852
      %v3854 = vpop.f32.mrf.mxu0
      %v3855 = vpop.f32.mrf.mxu0
      %v3856 = vadd.f32 0.0, %v3855
      %v3857 = vpop.f32.mrf.mxu0
      %3858 = vmatprep.mubr.bf16.mxu0 0
      %3859 = vmatmul.mubr.bf16.gmra.mxu0 %v3711
      %v3860 = vpop.f32.mrf.mxu0
      %v3861 = vadd.f32 0.0, %v3860
      %v3862 = vpop.f32.mrf.mxu0
      %v3863 = vpop.f32.mrf.mxu0
      %v3864 = vadd.f32 0.0, %v3863
      %v3865 = vpop.f32.mrf.mxu0
      %3866 = vmatprep.mubr.bf16.mxu0 0
      %3867 = vmatmul.mubr.bf16.gmra.mxu0 %v3714
      %v3868 = vpop.f32.mrf.mxu0
      %v3869 = vadd.f32 0.0, %v3868
      %v3870 = vpop.f32.mrf.mxu0
      %v3871 = vpop.f32.mrf.mxu0
      %v3872 = vadd.f32 0.0, %v3871
      %v3873 = vpop.f32.mrf.mxu0
      %3874 = vmatprep.mubr.bf16.mxu0 0
      %3875 = vmatmul.mubr.bf16.gmra.mxu0 %v3717
      %v3876 = vpop.f32.mrf.mxu0
      %v3877 = vadd.f32 0.0, %v3876
      %v3878 = vpop.f32.mrf.mxu0
      %v3879 = vpop.f32.mrf.mxu0
      %v3880 = vadd.f32 0.0, %v3879
      %v3881 = vpop.f32.mrf.mxu0
      %3882 = vdwg.mxu0
      %v3883 = vadd.f32 %v3524, %v3757
      %v3884 = vadd.f32 %v3525, %v3760
      %v3885 = vadd.f32 %v3526, %v3765
      %v3886 = vadd.f32 %v3527, %v3768
      %v3887 = vadd.f32 %v3528, %v3773
      %v3888 = vadd.f32 %v3529, %v3776
      %v3889 = vadd.f32 %v3530, %v3781
      %v3890 = vadd.f32 %v3531, %v3784
      %v3891 = vadd.f32 %v3532, %v3789
      %v3892 = vadd.f32 %v3533, %v3792
      %v3893 = vadd.f32 %v3534, %v3797
      %v3894 = vadd.f32 %v3535, %v3800
      %v3895 = vadd.f32 %v3536, %v3805
      %v3896 = vadd.f32 %v3537, %v3808
      %v3897 = vadd.f32 %v3538, %v3813
      %v3898 = vadd.f32 %v3539, %v3816
      %v3899 = vadd.f32 %v3540, %v3821
      %v3900 = vadd.f32 %v3541, %v3824
      %v3901 = vadd.f32 %v3542, %v3829
      %v3902 = vadd.f32 %v3543, %v3832
      %v3903 = vadd.f32 %v3544, %v3837
      %v3904 = vadd.f32 %v3545, %v3840
      %v3905 = vadd.f32 %v3546, %v3845
      %v3906 = vadd.f32 %v3547, %v3848
      %v3907 = vadd.f32 %v3548, %v3853
      %v3908 = vadd.f32 %v3549, %v3856
      %v3909 = vadd.f32 %v3550, %v3861
      %v3910 = vadd.f32 %v3551, %v3864
      %v3911 = vadd.f32 %v3552, %v3869
      %v3912 = vadd.f32 %v3553, %v3872
      %v3913 = vadd.f32 %v3554, %v3877
      %v3914 = vadd.f32 %v3555, %v3880
      %v3915 = vld [vmem:[%s3556] sm:$0xf]
      %v3916 = vld [vmem:[%s3556 + $0x4] sm:$0xf]
      %v3917 = vld [vmem:[%s3556 + $0x8] sm:$0x1]
      %v3918 = vld [vmem:[%s3556 + $0xc] sm:$0xf]
      %v3919 = vld [vmem:[%s3556 + $0x10] sm:$0xf]
      %v3920 = vld [vmem:[%s3556 + $0x14] sm:$0x1]
      %v3921 = vld [vmem:[%s3556 + $0x18] sm:$0xf]
      %v3922 = vld [vmem:[%s3556 + $0x1c] sm:$0xf]
      %v3923 = vld [vmem:[%s3556 + $0x20] sm:$0x1]
      %v3924 = vld [vmem:[%s3556 + $0x24] sm:$0xf]
      %v3925 = vld [vmem:[%s3556 + $0x28] sm:$0xf]
      %v3926 = vld [vmem:[%s3556 + $0x2c] sm:$0x1]
      %v3927 = vld [vmem:[%s3556 + $0x30] sm:$0xf]
      %v3928 = vld [vmem:[%s3556 + $0x34] sm:$0xf]
      %v3929 = vld [vmem:[%s3556 + $0x38] sm:$0x1]
      %v3930 = vld [vmem:[%s3556 + $0x3c] sm:$0xf]
      %v3931 = vld [vmem:[%s3556 + $0x40] sm:$0xf]
      %v3932 = vld [vmem:[%s3556 + $0x44] sm:$0x1]
      %v3933 = vld [vmem:[%s3556 + $0x48] sm:$0xf]
      %v3934 = vld [vmem:[%s3556 + $0x4c] sm:$0xf]
      %v3935 = vld [vmem:[%s3556 + $0x50] sm:$0x1]
      %v3936 = vld [vmem:[%s3556 + $0x54] sm:$0xf]
      %v3937 = vld [vmem:[%s3556 + $0x58] sm:$0xf]
      %v3938 = vld [vmem:[%s3556 + $0x5c] sm:$0x1]
      %v3939 = vld [vmem:[%s3556 + $0x60] sm:$0xf]
      %v3940 = vld [vmem:[%s3556 + $0x64] sm:$0xf]
      %v3941 = vld [vmem:[%s3556 + $0x68] sm:$0x1]
      %v3942 = vld [vmem:[%s3556 + $0x6c] sm:$0xf]
      %v3943 = vld [vmem:[%s3556 + $0x70] sm:$0xf]
      %v3944 = vld [vmem:[%s3556 + $0x74] sm:$0x1]
      %v3945 = vld [vmem:[%s3556 + $0x78] sm:$0xf]
      %v3946 = vld [vmem:[%s3556 + $0x7c] sm:$0xf]
      %v3947 = vld [vmem:[%s3556 + $0x80] sm:$0x1]
      %v3948 = vld [vmem:[%s3556 + $0x84] sm:$0xf]
      %v3949 = vld [vmem:[%s3556 + $0x88] sm:$0xf]
      %v3950 = vld [vmem:[%s3556 + $0x8c] sm:$0x1]
      %v3951 = vld [vmem:[%s3556 + $0x90] sm:$0xf]
      %v3952 = vld [vmem:[%s3556 + $0x94] sm:$0xf]
      %v3953 = vld [vmem:[%s3556 + $0x98] sm:$0x1]
      %v3954 = vld [vmem:[%s3556 + $0x9c] sm:$0xf]
      %v3955 = vld [vmem:[%s3556 + $0xa0] sm:$0xf]
      %v3956 = vld [vmem:[%s3556 + $0xa4] sm:$0x1]
      %v3957 = vld [vmem:[%s3556 + $0xa8] sm:$0xf]
      %v3958 = vld [vmem:[%s3556 + $0xac] sm:$0xf]
      %v3959 = vld [vmem:[%s3556 + $0xb0] sm:$0x1]
      %v3960 = vld [vmem:[%s3556 + $0xb4] sm:$0xf]
      %v3961 = vld [vmem:[%s3556 + $0xb8] sm:$0xf]
      %v3962 = vld [vmem:[%s3556 + $0xbc] sm:$0x1]
      %v3964 = vshrl.u32 %v3915, 16
      %v3966 = vrot.slane %v3964, 4
      %v3967 = vshll.u32 %v3915, 16
      %v3969 = vrot.slane %v3967, 5
      %v3970 = vor.u32 %v3966, %v3969
      %v3971 = vrot.slane %v3970, 4
      %v3973 = vshll.u32 %v3916, 16
      %v3975 = vrot.slane %v3973, 5
      %v3976 = vsel %vm603, %v3971, %v3975
      %v3977 = vshrl.u32 %v3916, 16
      %v3979 = vrot.slane %v3977, 4
      %v3980 = vor.u32 %v3979, %v3975
      %v3981 = vrot.slane %v3980, 4
      %v3983 = vshll.u32 %v3917, 16
      %v3985 = vrot.slane %v3983, 5
      %v3986 = vsel %vm603, %v3981, %v3985
      %v3988 = vshrl.u32 %v3918, 16
      %v3990 = vrot.slane %v3988, 4
      %v3991 = vshll.u32 %v3918, 16
      %v3993 = vrot.slane %v3991, 5
      %v3994 = vor.u32 %v3990, %v3993
      %v3995 = vrot.slane %v3994, 4
      %v3997 = vshll.u32 %v3919, 16
      %v3999 = vrot.slane %v3997, 5
      %v4000 = vsel %vm603, %v3995, %v3999
      %v4001 = vshrl.u32 %v3919, 16
      %v4003 = vrot.slane %v4001, 4
      %v4004 = vor.u32 %v4003, %v3999
      %v4005 = vrot.slane %v4004, 4
      %v4007 = vshll.u32 %v3920, 16
      %v4009 = vrot.slane %v4007, 5
      %v4010 = vsel %vm603, %v4005, %v4009
      %v4012 = vshrl.u32 %v3921, 16
      %v4014 = vrot.slane %v4012, 4
      %v4015 = vshll.u32 %v3921, 16
      %v4017 = vrot.slane %v4015, 5
      %v4018 = vor.u32 %v4014, %v4017
      %v4019 = vrot.slane %v4018, 4
      %v4021 = vshll.u32 %v3922, 16
      %v4023 = vrot.slane %v4021, 5
      %v4024 = vsel %vm603, %v4019, %v4023
      %v4025 = vshrl.u32 %v3922, 16
      %v4027 = vrot.slane %v4025, 4
      %v4028 = vor.u32 %v4027, %v4023
      %v4029 = vrot.slane %v4028, 4
      %v4031 = vshll.u32 %v3923, 16
      %v4033 = vrot.slane %v4031, 5
      %v4034 = vsel %vm603, %v4029, %v4033
      %v4036 = vshrl.u32 %v3924, 16
      %v4038 = vrot.slane %v4036, 4
      %v4039 = vshll.u32 %v3924, 16
      %v4041 = vrot.slane %v4039, 5
      %v4042 = vor.u32 %v4038, %v4041
      %v4043 = vrot.slane %v4042, 4
      %v4045 = vshll.u32 %v3925, 16
      %v4047 = vrot.slane %v4045, 5
      %v4048 = vsel %vm603, %v4043, %v4047
      %v4049 = vshrl.u32 %v3925, 16
      %v4051 = vrot.slane %v4049, 4
      %v4052 = vor.u32 %v4051, %v4047
      %v4053 = vrot.slane %v4052, 4
      %v4055 = vshll.u32 %v3926, 16
      %v4057 = vrot.slane %v4055, 5
      %v4058 = vsel %vm603, %v4053, %v4057
      %v4060 = vshrl.u32 %v3927, 16
      %v4062 = vrot.slane %v4060, 4
      %v4063 = vshll.u32 %v3927, 16
      %v4065 = vrot.slane %v4063, 5
      %v4066 = vor.u32 %v4062, %v4065
      %v4067 = vrot.slane %v4066, 4
      %v4069 = vshll.u32 %v3928, 16
      %v4071 = vrot.slane %v4069, 5
      %v4072 = vsel %vm603, %v4067, %v4071
      %v4073 = vshrl.u32 %v3928, 16
      %v4075 = vrot.slane %v4073, 4
      %v4076 = vor.u32 %v4075, %v4071
      %v4077 = vrot.slane %v4076, 4
      %v4079 = vshll.u32 %v3929, 16
      %v4081 = vrot.slane %v4079, 5
      %v4082 = vsel %vm603, %v4077, %v4081
      %v4084 = vshrl.u32 %v3930, 16
      %v4086 = vrot.slane %v4084, 4
      %v4087 = vshll.u32 %v3930, 16
      %v4089 = vrot.slane %v4087, 5
      %v4090 = vor.u32 %v4086, %v4089
      %v4091 = vrot.slane %v4090, 4
      %v4093 = vshll.u32 %v3931, 16
      %v4095 = vrot.slane %v4093, 5
      %v4096 = vsel %vm603, %v4091, %v4095
      %v4097 = vshrl.u32 %v3931, 16
      %v4099 = vrot.slane %v4097, 4
      %v4100 = vor.u32 %v4099, %v4095
      %v4101 = vrot.slane %v4100, 4
      %v4103 = vshll.u32 %v3932, 16
      %v4105 = vrot.slane %v4103, 5
      %v4106 = vsel %vm603, %v4101, %v4105
      %v4108 = vshrl.u32 %v3933, 16
      %v4110 = vrot.slane %v4108, 4
      %v4111 = vshll.u32 %v3933, 16
      %v4113 = vrot.slane %v4111, 5
      %v4114 = vor.u32 %v4110, %v4113
      %v4115 = vrot.slane %v4114, 4
      %v4117 = vshll.u32 %v3934, 16
      %v4119 = vrot.slane %v4117, 5
      %v4120 = vsel %vm603, %v4115, %v4119
      %v4121 = vshrl.u32 %v3934, 16
      %v4123 = vrot.slane %v4121, 4
      %v4124 = vor.u32 %v4123, %v4119
      %v4125 = vrot.slane %v4124, 4
      %v4127 = vshll.u32 %v3935, 16
      %v4129 = vrot.slane %v4127, 5
      %v4130 = vsel %vm603, %v4125, %v4129
      %v4132 = vshrl.u32 %v3936, 16
      %v4134 = vrot.slane %v4132, 4
      %v4135 = vshll.u32 %v3936, 16
      %v4137 = vrot.slane %v4135, 5
      %v4138 = vor.u32 %v4134, %v4137
      %v4139 = vrot.slane %v4138, 4
      %v4141 = vshll.u32 %v3937, 16
      %v4143 = vrot.slane %v4141, 5
      %v4144 = vsel %vm603, %v4139, %v4143
      %v4145 = vshrl.u32 %v3937, 16
      %v4147 = vrot.slane %v4145, 4
      %v4148 = vor.u32 %v4147, %v4143
      %v4149 = vrot.slane %v4148, 4
      %v4151 = vshll.u32 %v3938, 16
      %v4153 = vrot.slane %v4151, 5
      %v4154 = vsel %vm603, %v4149, %v4153
      %v4156 = vshrl.u32 %v3939, 16
      %v4158 = vrot.slane %v4156, 4
      %v4159 = vshll.u32 %v3939, 16
      %v4161 = vrot.slane %v4159, 5
      %v4162 = vor.u32 %v4158, %v4161
      %v4163 = vrot.slane %v4162, 4
      %v4165 = vshll.u32 %v3940, 16
      %v4167 = vrot.slane %v4165, 5
      %v4168 = vsel %vm603, %v4163, %v4167
      %v4169 = vshrl.u32 %v3940, 16
      %v4171 = vrot.slane %v4169, 4
      %v4172 = vor.u32 %v4171, %v4167
      %v4173 = vrot.slane %v4172, 4
      %v4175 = vshll.u32 %v3941, 16
      %v4177 = vrot.slane %v4175, 5
      %v4178 = vsel %vm603, %v4173, %v4177
      %v4180 = vshrl.u32 %v3942, 16
      %v4182 = vrot.slane %v4180, 4
      %v4183 = vshll.u32 %v3942, 16
      %v4185 = vrot.slane %v4183, 5
      %v4186 = vor.u32 %v4182, %v4185
      %v4187 = vrot.slane %v4186, 4
      %v4189 = vshll.u32 %v3943, 16
      %v4191 = vrot.slane %v4189, 5
      %v4192 = vsel %vm603, %v4187, %v4191
      %v4193 = vshrl.u32 %v3943, 16
      %v4195 = vrot.slane %v4193, 4
      %v4196 = vor.u32 %v4195, %v4191
      %v4197 = vrot.slane %v4196, 4
      %v4199 = vshll.u32 %v3944, 16
      %v4201 = vrot.slane %v4199, 5
      %v4202 = vsel %vm603, %v4197, %v4201
      %v4204 = vshrl.u32 %v3945, 16
      %v4206 = vrot.slane %v4204, 4
      %v4207 = vshll.u32 %v3945, 16
      %v4209 = vrot.slane %v4207, 5
      %v4210 = vor.u32 %v4206, %v4209
      %v4211 = vrot.slane %v4210, 4
      %v4213 = vshll.u32 %v3946, 16
      %v4215 = vrot.slane %v4213, 5
      %v4216 = vsel %vm603, %v4211, %v4215
      %v4217 = vshrl.u32 %v3946, 16
      %v4219 = vrot.slane %v4217, 4
      %v4220 = vor.u32 %v4219, %v4215
      %v4221 = vrot.slane %v4220, 4
      %v4223 = vshll.u32 %v3947, 16
      %v4225 = vrot.slane %v4223, 5
      %v4226 = vsel %vm603, %v4221, %v4225
      %v4228 = vshrl.u32 %v3948, 16
      %v4230 = vrot.slane %v4228, 4
      %v4231 = vshll.u32 %v3948, 16
      %v4233 = vrot.slane %v4231, 5
      %v4234 = vor.u32 %v4230, %v4233
      %v4235 = vrot.slane %v4234, 4
      %v4237 = vshll.u32 %v3949, 16
      %v4239 = vrot.slane %v4237, 5
      %v4240 = vsel %vm603, %v4235, %v4239
      %v4241 = vshrl.u32 %v3949, 16
      %v4243 = vrot.slane %v4241, 4
      %v4244 = vor.u32 %v4243, %v4239
      %v4245 = vrot.slane %v4244, 4
      %v4247 = vshll.u32 %v3950, 16
      %v4249 = vrot.slane %v4247, 5
      %v4250 = vsel %vm603, %v4245, %v4249
      %v4252 = vshrl.u32 %v3951, 16
      %v4254 = vrot.slane %v4252, 4
      %v4255 = vshll.u32 %v3951, 16
      %v4257 = vrot.slane %v4255, 5
      %v4258 = vor.u32 %v4254, %v4257
      %v4259 = vrot.slane %v4258, 4
      %v4261 = vshll.u32 %v3952, 16
      %v4263 = vrot.slane %v4261, 5
      %v4264 = vsel %vm603, %v4259, %v4263
      %v4265 = vshrl.u32 %v3952, 16
      %v4267 = vrot.slane %v4265, 4
      %v4268 = vor.u32 %v4267, %v4263
      %v4269 = vrot.slane %v4268, 4
      %v4271 = vshll.u32 %v3953, 16
      %v4273 = vrot.slane %v4271, 5
      %v4274 = vsel %vm603, %v4269, %v4273
      %v4276 = vshrl.u32 %v3954, 16
      %v4278 = vrot.slane %v4276, 4
      %v4279 = vshll.u32 %v3954, 16
      %v4281 = vrot.slane %v4279, 5
      %v4282 = vor.u32 %v4278, %v4281
      %v4283 = vrot.slane %v4282, 4
      %v4285 = vshll.u32 %v3955, 16
      %v4287 = vrot.slane %v4285, 5
      %v4288 = vsel %vm603, %v4283, %v4287
      %v4289 = vshrl.u32 %v3955, 16
      %v4291 = vrot.slane %v4289, 4
      %v4292 = vor.u32 %v4291, %v4287
      %v4293 = vrot.slane %v4292, 4
      %v4295 = vshll.u32 %v3956, 16
      %v4297 = vrot.slane %v4295, 5
      %v4298 = vsel %vm603, %v4293, %v4297
      %v4300 = vshrl.u32 %v3957, 16
      %v4302 = vrot.slane %v4300, 4
      %v4303 = vshll.u32 %v3957, 16
      %v4305 = vrot.slane %v4303, 5
      %v4306 = vor.u32 %v4302, %v4305
      %v4307 = vrot.slane %v4306, 4
      %v4309 = vshll.u32 %v3958, 16
      %v4311 = vrot.slane %v4309, 5
      %v4312 = vsel %vm603, %v4307, %v4311
      %v4313 = vshrl.u32 %v3958, 16
      %v4315 = vrot.slane %v4313, 4
      %v4316 = vor.u32 %v4315, %v4311
      %v4317 = vrot.slane %v4316, 4
      %v4319 = vshll.u32 %v3959, 16
      %v4321 = vrot.slane %v4319, 5
      %v4322 = vsel %vm603, %v4317, %v4321
      %v4324 = vshrl.u32 %v3960, 16
      %v4326 = vrot.slane %v4324, 4
      %v4327 = vshll.u32 %v3960, 16
      %v4329 = vrot.slane %v4327, 5
      %v4330 = vor.u32 %v4326, %v4329
      %v4331 = vrot.slane %v4330, 4
      %v4333 = vshll.u32 %v3961, 16
      %v4335 = vrot.slane %v4333, 5
      %v4336 = vsel %vm603, %v4331, %v4335
      %v4337 = vshrl.u32 %v3961, 16
      %v4339 = vrot.slane %v4337, 4
      %v4340 = vor.u32 %v4339, %v4335
      %v4341 = vrot.slane %v4340, 4
      %v4343 = vshll.u32 %v3962, 16
      %v4345 = vrot.slane %v4343, 5
      %v4346 = vsel %vm603, %v4341, %v4345
      %s4347 = scalar_lea.vmem %s3, 28
      %v4348 = vld [vmem:[%s4347] sm:$0xf]
      %v4349 = vunpack.c.l.b16 %v3976
      %v4350 = vunpack.c.l.b16 %v3986
      %v4351 = vunpack.c.l.b16 %v4000
      %v4352 = vunpack.c.l.b16 %v4010
      %v4353 = vunpack.c.l.b16 %v4024
      %v4354 = vunpack.c.l.b16 %v4034
      %v4355 = vunpack.c.l.b16 %v4048
      %v4356 = vunpack.c.l.b16 %v4058
      %v4357 = vunpack.c.l.b16 %v4072
      %v4358 = vunpack.c.l.b16 %v4082
      %v4359 = vunpack.c.l.b16 %v4096
      %v4360 = vunpack.c.l.b16 %v4106
      %v4361 = vunpack.c.l.b16 %v4120
      %v4362 = vunpack.c.l.b16 %v4130
      %v4363 = vunpack.c.l.b16 %v4144
      %v4364 = vunpack.c.l.b16 %v4154
      %v4365 = vunpack.c.l.b16 %v4168
      %v4366 = vunpack.c.l.b16 %v4178
      %v4367 = vunpack.c.l.b16 %v4192
      %v4368 = vunpack.c.l.b16 %v4202
      %v4369 = vunpack.c.l.b16 %v4216
      %v4370 = vunpack.c.l.b16 %v4226
      %v4371 = vunpack.c.l.b16 %v4240
      %v4372 = vunpack.c.l.b16 %v4250
      %v4373 = vunpack.c.l.b16 %v4264
      %v4374 = vunpack.c.l.b16 %v4274
      %v4375 = vunpack.c.l.b16 %v4288
      %v4376 = vunpack.c.l.b16 %v4298
      %v4377 = vunpack.c.l.b16 %v4312
      %v4378 = vunpack.c.l.b16 %v4322
      %v4379 = vunpack.c.l.b16 %v4336
      %v4380 = vunpack.c.l.b16 %v4346
      %v4381 = vpack.c.b16 %v4350, %v4349
      %v4382 = vpack.c.b16 %v4352, %v4351
      %v4383 = vpack.c.b16 %v4354, %v4353
      %v4384 = vpack.c.b16 %v4356, %v4355
      %v4385 = vpack.c.b16 %v4358, %v4357
      %v4386 = vpack.c.b16 %v4360, %v4359
      %v4387 = vpack.c.b16 %v4362, %v4361
      %v4388 = vpack.c.b16 %v4364, %v4363
      %v4389 = vpack.c.b16 %v4366, %v4365
      %v4390 = vpack.c.b16 %v4368, %v4367
      %v4391 = vpack.c.b16 %v4370, %v4369
      %v4392 = vpack.c.b16 %v4372, %v4371
      %v4393 = vpack.c.b16 %v4374, %v4373
      %v4394 = vpack.c.b16 %v4376, %v4375
      %v4395 = vpack.c.b16 %v4378, %v4377
      %v4396 = vpack.c.b16 %v4380, %v4379
      %v4398 = vsel %vm1038, %v4381, 0
      %v4401 = vsel %vm1038, %v4382, 0
      %v4404 = vsel %vm1038, %v4383, 0
      %v4407 = vsel %vm1038, %v4384, 0
      %v4410 = vsel %vm1038, %v4385, 0
      %v4413 = vsel %vm1038, %v4386, 0
      %v4416 = vsel %vm1038, %v4387, 0
      %v4419 = vsel %vm1038, %v4388, 0
      %v4422 = vsel %vm1038, %v4389, 0
      %v4425 = vsel %vm1038, %v4390, 0
      %v4428 = vsel %vm1038, %v4391, 0
      %v4431 = vsel %vm1038, %v4392, 0
      %v4434 = vsel %vm1038, %v4393, 0
      %v4437 = vsel %vm1038, %v4394, 0
      %v4440 = vsel %vm1038, %v4395, 0
      %v4443 = vsel %vm1038, %v4396, 0
      %v4446 = vsel %vm1087, %v4348, 0
      %4448 = vmatprep.subr.bf16.mxu0 0
      %4449 = vmatpush1.bf16.msra.mxu0 0
      %4450 = vmatprep.subr.bf16.mxu0 0
      %4451 = vmatpush1.bf16.msra.mxu0 0
      %4452 = vmatprep.subr.bf16.mxu0 0
      %4453 = vmatpush1.bf16.msra.mxu0 0
      %4454 = vmatprep.subr.bf16.mxu0 0
      %4455 = vmatpush1.bf16.msra.mxu0 0
      %4456 = vmatprep.subr.bf16.mxu0 0
      %4457 = vmatpush1.bf16.msra.mxu0 0
      %4458 = vmatprep.subr.bf16.mxu0 0
      %4459 = vmatpush1.bf16.msra.mxu0 0
      %4460 = vmatprep.subr.bf16.mxu0 0
      %4461 = vmatpush1.bf16.msra.mxu0 0
      %4462 = vmatprep.subr.bf16.mxu0 0
      %4463 = vmatpush1.bf16.msra.mxu0 %v4446
      %4464 = vmatprep.subr.bf16.mxu0 0
      %4465 = vmatpush2.bf16.msra.mxu0 0
      %4466 = vmatprep.subr.bf16.mxu0 0
      %4467 = vmatpush2.bf16.msra.mxu0 0
      %4468 = vmatprep.subr.bf16.mxu0 0
      %4469 = vmatpush2.bf16.msra.mxu0 0
      %4470 = vmatprep.subr.bf16.mxu0 0
      %4471 = vmatpush2.bf16.msra.mxu0 0
      %4472 = vmatprep.subr.bf16.mxu0 0
      %4473 = vmatpush2.bf16.msra.mxu0 0
      %4474 = vmatprep.subr.bf16.mxu0 0
      %4475 = vmatpush2.bf16.msra.mxu0 0
      %4476 = vmatprep.subr.bf16.mxu0 0
      %4477 = vmatpush2.bf16.msra.mxu0 0
      %4478 = vmatprep.subr.bf16.mxu0 0
      %4479 = vmatpush2.bf16.msra.mxu0 0
      %4480 = vmatprep.mubr.bf16.mxu0 0
      %4481 = vmatmul.mubr.bf16.gmra.mxu0 %v4398
      %v4482 = vpop.f32.mrf.mxu0
      %v4483 = vadd.f32 0.0, %v4482
      %v4484 = vpop.f32.mrf.mxu0
      %v4485 = vpop.f32.mrf.mxu0
      %v4486 = vadd.f32 0.0, %v4485
      %v4487 = vpop.f32.mrf.mxu0
      %4488 = vmatprep.mubr.bf16.mxu0 0
      %4489 = vmatmul.mubr.bf16.gmra.mxu0 %v4401
      %v4490 = vpop.f32.mrf.mxu0
      %v4491 = vadd.f32 0.0, %v4490
      %v4492 = vpop.f32.mrf.mxu0
      %v4493 = vpop.f32.mrf.mxu0
      %v4494 = vadd.f32 0.0, %v4493
      %v4495 = vpop.f32.mrf.mxu0
      %4496 = vmatprep.mubr.bf16.mxu0 0
      %4497 = vmatmul.mubr.bf16.gmra.mxu0 %v4404
      %v4498 = vpop.f32.mrf.mxu0
      %v4499 = vadd.f32 0.0, %v4498
      %v4500 = vpop.f32.mrf.mxu0
      %v4501 = vpop.f32.mrf.mxu0
      %v4502 = vadd.f32 0.0, %v4501
      %v4503 = vpop.f32.mrf.mxu0
      %4504 = vmatprep.mubr.bf16.mxu0 0
      %4505 = vmatmul.mubr.bf16.gmra.mxu0 %v4407
      %v4506 = vpop.f32.mrf.mxu0
      %v4507 = vadd.f32 0.0, %v4506
      %v4508 = vpop.f32.mrf.mxu0
      %v4509 = vpop.f32.mrf.mxu0
      %v4510 = vadd.f32 0.0, %v4509
      %v4511 = vpop.f32.mrf.mxu0
      %4512 = vmatprep.mubr.bf16.mxu0 0
      %4513 = vmatmul.mubr.bf16.gmra.mxu0 %v4410
      %v4514 = vpop.f32.mrf.mxu0
      %v4515 = vadd.f32 0.0, %v4514
      %v4516 = vpop.f32.mrf.mxu0
      %v4517 = vpop.f32.mrf.mxu0
      %v4518 = vadd.f32 0.0, %v4517
      %v4519 = vpop.f32.mrf.mxu0
      %4520 = vmatprep.mubr.bf16.mxu0 0
      %4521 = vmatmul.mubr.bf16.gmra.mxu0 %v4413
      %v4522 = vpop.f32.mrf.mxu0
      %v4523 = vadd.f32 0.0, %v4522
      %v4524 = vpop.f32.mrf.mxu0
      %v4525 = vpop.f32.mrf.mxu0
      %v4526 = vadd.f32 0.0, %v4525
      %v4527 = vpop.f32.mrf.mxu0
      %4528 = vmatprep.mubr.bf16.mxu0 0
      %4529 = vmatmul.mubr.bf16.gmra.mxu0 %v4416
      %v4530 = vpop.f32.mrf.mxu0
      %v4531 = vadd.f32 0.0, %v4530
      %v4532 = vpop.f32.mrf.mxu0
      %v4533 = vpop.f32.mrf.mxu0
      %v4534 = vadd.f32 0.0, %v4533
      %v4535 = vpop.f32.mrf.mxu0
      %4536 = vmatprep.mubr.bf16.mxu0 0
      %4537 = vmatmul.mubr.bf16.gmra.mxu0 %v4419
      %v4538 = vpop.f32.mrf.mxu0
      %v4539 = vadd.f32 0.0, %v4538
      %v4540 = vpop.f32.mrf.mxu0
      %v4541 = vpop.f32.mrf.mxu0
      %v4542 = vadd.f32 0.0, %v4541
      %v4543 = vpop.f32.mrf.mxu0
      %4544 = vmatprep.mubr.bf16.mxu0 0
      %4545 = vmatmul.mubr.bf16.gmra.mxu0 %v4422
      %v4546 = vpop.f32.mrf.mxu0
      %v4547 = vadd.f32 0.0, %v4546
      %v4548 = vpop.f32.mrf.mxu0
      %v4549 = vpop.f32.mrf.mxu0
      %v4550 = vadd.f32 0.0, %v4549
      %v4551 = vpop.f32.mrf.mxu0
      %4552 = vmatprep.mubr.bf16.mxu0 0
      %4553 = vmatmul.mubr.bf16.gmra.mxu0 %v4425
      %v4554 = vpop.f32.mrf.mxu0
      %v4555 = vadd.f32 0.0, %v4554
      %v4556 = vpop.f32.mrf.mxu0
      %v4557 = vpop.f32.mrf.mxu0
      %v4558 = vadd.f32 0.0, %v4557
      %v4559 = vpop.f32.mrf.mxu0
      %4560 = vmatprep.mubr.bf16.mxu0 0
      %4561 = vmatmul.mubr.bf16.gmra.mxu0 %v4428
      %v4562 = vpop.f32.mrf.mxu0
      %v4563 = vadd.f32 0.0, %v4562
      %v4564 = vpop.f32.mrf.mxu0
      %v4565 = vpop.f32.mrf.mxu0
      %v4566 = vadd.f32 0.0, %v4565
      %v4567 = vpop.f32.mrf.mxu0
      %4568 = vmatprep.mubr.bf16.mxu0 0
      %4569 = vmatmul.mubr.bf16.gmra.mxu0 %v4431
      %v4570 = vpop.f32.mrf.mxu0
      %v4571 = vadd.f32 0.0, %v4570
      %v4572 = vpop.f32.mrf.mxu0
      %v4573 = vpop.f32.mrf.mxu0
      %v4574 = vadd.f32 0.0, %v4573
      %v4575 = vpop.f32.mrf.mxu0
      %4576 = vmatprep.mubr.bf16.mxu0 0
      %4577 = vmatmul.mubr.bf16.gmra.mxu0 %v4434
      %v4578 = vpop.f32.mrf.mxu0
      %v4579 = vadd.f32 0.0, %v4578
      %v4580 = vpop.f32.mrf.mxu0
      %v4581 = vpop.f32.mrf.mxu0
      %v4582 = vadd.f32 0.0, %v4581
      %v4583 = vpop.f32.mrf.mxu0
      %4584 = vmatprep.mubr.bf16.mxu0 0
      %4585 = vmatmul.mubr.bf16.gmra.mxu0 %v4437
      %v4586 = vpop.f32.mrf.mxu0
      %v4587 = vadd.f32 0.0, %v4586
      %v4588 = vpop.f32.mrf.mxu0
      %v4589 = vpop.f32.mrf.mxu0
      %v4590 = vadd.f32 0.0, %v4589
      %v4591 = vpop.f32.mrf.mxu0
      %4592 = vmatprep.mubr.bf16.mxu0 0
      %4593 = vmatmul.mubr.bf16.gmra.mxu0 %v4440
      %v4594 = vpop.f32.mrf.mxu0
      %v4595 = vadd.f32 0.0, %v4594
      %v4596 = vpop.f32.mrf.mxu0
      %v4597 = vpop.f32.mrf.mxu0
      %v4598 = vadd.f32 0.0, %v4597
      %v4599 = vpop.f32.mrf.mxu0
      %4600 = vmatprep.mubr.bf16.mxu0 0
      %4601 = vmatmul.mubr.bf16.gmra.mxu0 %v4443
      %v4602 = vpop.f32.mrf.mxu0
      %v4603 = vadd.f32 0.0, %v4602
      %v4604 = vpop.f32.mrf.mxu0
      %v4605 = vpop.f32.mrf.mxu0
      %v4606 = vadd.f32 0.0, %v4605
      %v4607 = vpop.f32.mrf.mxu0
      %4608 = vdwg.mxu0
      %v4609 = vadd.f32 %v3883, %v4483
      %v4610 = vadd.f32 %v3884, %v4486
      %v4611 = vadd.f32 %v3885, %v4491
      %v4612 = vadd.f32 %v3886, %v4494
      %v4613 = vadd.f32 %v3887, %v4499
      %v4614 = vadd.f32 %v3888, %v4502
      %v4615 = vadd.f32 %v3889, %v4507
      %v4616 = vadd.f32 %v3890, %v4510
      %v4617 = vadd.f32 %v3891, %v4515
      %v4618 = vadd.f32 %v3892, %v4518
      %v4619 = vadd.f32 %v3893, %v4523
      %v4620 = vadd.f32 %v3894, %v4526
      %v4621 = vadd.f32 %v3895, %v4531
      %v4622 = vadd.f32 %v3896, %v4534
      %v4623 = vadd.f32 %v3897, %v4539
      %v4624 = vadd.f32 %v3898, %v4542
      %v4625 = vadd.f32 %v3899, %v4547
      %v4626 = vadd.f32 %v3900, %v4550
      %v4627 = vadd.f32 %v3901, %v4555
      %v4628 = vadd.f32 %v3902, %v4558
      %v4629 = vadd.f32 %v3903, %v4563
      %v4630 = vadd.f32 %v3904, %v4566
      %v4631 = vadd.f32 %v3905, %v4571
      %v4632 = vadd.f32 %v3906, %v4574
      %v4633 = vadd.f32 %v3907, %v4579
      %v4634 = vadd.f32 %v3908, %v4582
      %v4635 = vadd.f32 %v3909, %v4587
      %v4636 = vadd.f32 %v3910, %v4590
      %v4637 = vadd.f32 %v3911, %v4595
      %v4638 = vadd.f32 %v3912, %v4598
      %v4639 = vadd.f32 %v3913, %v4603
      %v4640 = vadd.f32 %v3914, %v4606
      %v4641 = vld [vmem:[%s3556] sm:$0xe]
      %v4642 = vld [vmem:[%s3556 + $0xc] sm:$0xe]
      %v4643 = vld [vmem:[%s3556 + $0x18] sm:$0xe]
      %v4644 = vld [vmem:[%s3556 + $0x24] sm:$0xe]
      %v4645 = vld [vmem:[%s3556 + $0x30] sm:$0xe]
      %v4646 = vld [vmem:[%s3556 + $0x3c] sm:$0xe]
      %v4647 = vld [vmem:[%s3556 + $0x48] sm:$0xe]
      %v4648 = vld [vmem:[%s3556 + $0x54] sm:$0xe]
      %v4649 = vld [vmem:[%s3556 + $0x60] sm:$0xe]
      %v4650 = vld [vmem:[%s3556 + $0x6c] sm:$0xe]
      %v4651 = vld [vmem:[%s3556 + $0x78] sm:$0xe]
      %v4652 = vld [vmem:[%s3556 + $0x84] sm:$0xe]
      %v4653 = vld [vmem:[%s3556 + $0x90] sm:$0xe]
      %v4654 = vld [vmem:[%s3556 + $0x9c] sm:$0xe]
      %v4655 = vld [vmem:[%s3556 + $0xa8] sm:$0xe]
      %v4656 = vld [vmem:[%s3556 + $0xb4] sm:$0xe]
      %v4705 = vrot.slane %v4641, 5
      %v4706 = vrot.slane %v4705, 4
      %v4707 = vrot.slane %v3916, 5
      %v4708 = vsel %vm1594, %v4706, %v4707
      %v4709 = vrot.slane %v4707, 4
      %v4710 = vrot.slane %v3917, 5
      %v4711 = vsel %vm1594, %v4709, %v4710
      %v4712 = vrot.slane %v4642, 5
      %v4713 = vrot.slane %v4712, 4
      %v4714 = vrot.slane %v3919, 5
      %v4715 = vsel %vm1594, %v4713, %v4714
      %v4716 = vrot.slane %v4714, 4
      %v4717 = vrot.slane %v3920, 5
      %v4718 = vsel %vm1594, %v4716, %v4717
      %v4719 = vrot.slane %v4643, 5
      %v4720 = vrot.slane %v4719, 4
      %v4721 = vrot.slane %v3922, 5
      %v4722 = vsel %vm1594, %v4720, %v4721
      %v4723 = vrot.slane %v4721, 4
      %v4724 = vrot.slane %v3923, 5
      %v4725 = vsel %vm1594, %v4723, %v4724
      %v4726 = vrot.slane %v4644, 5
      %v4727 = vrot.slane %v4726, 4
      %v4728 = vrot.slane %v3925, 5
      %v4729 = vsel %vm1594, %v4727, %v4728
      %v4730 = vrot.slane %v4728, 4
      %v4731 = vrot.slane %v3926, 5
      %v4732 = vsel %vm1594, %v4730, %v4731
      %v4733 = vrot.slane %v4645, 5
      %v4734 = vrot.slane %v4733, 4
      %v4735 = vrot.slane %v3928, 5
      %v4736 = vsel %vm1594, %v4734, %v4735
      %v4737 = vrot.slane %v4735, 4
      %v4738 = vrot.slane %v3929, 5
      %v4739 = vsel %vm1594, %v4737, %v4738
      %v4740 = vrot.slane %v4646, 5
      %v4741 = vrot.slane %v4740, 4
      %v4742 = vrot.slane %v3931, 5
      %v4743 = vsel %vm1594, %v4741, %v4742
      %v4744 = vrot.slane %v4742, 4
      %v4745 = vrot.slane %v3932, 5
      %v4746 = vsel %vm1594, %v4744, %v4745
      %v4747 = vrot.slane %v4647, 5
      %v4748 = vrot.slane %v4747, 4
      %v4749 = vrot.slane %v3934, 5
      %v4750 = vsel %vm1594, %v4748, %v4749
      %v4751 = vrot.slane %v4749, 4
      %v4752 = vrot.slane %v3935, 5
      %v4753 = vsel %vm1594, %v4751, %v4752
      %v4754 = vrot.slane %v4648, 5
      %v4755 = vrot.slane %v4754, 4
      %v4756 = vrot.slane %v3937, 5
      %v4757 = vsel %vm1594, %v4755, %v4756
      %v4758 = vrot.slane %v4756, 4
      %v4759 = vrot.slane %v3938, 5
      %v4760 = vsel %vm1594, %v4758, %v4759
      %v4761 = vrot.slane %v4649, 5
      %v4762 = vrot.slane %v4761, 4
      %v4763 = vrot.slane %v3940, 5
      %v4764 = vsel %vm1594, %v4762, %v4763
      %v4765 = vrot.slane %v4763, 4
      %v4766 = vrot.slane %v3941, 5
      %v4767 = vsel %vm1594, %v4765, %v4766
      %v4768 = vrot.slane %v4650, 5
      %v4769 = vrot.slane %v4768, 4
      %v4770 = vrot.slane %v3943, 5
      %v4771 = vsel %vm1594, %v4769, %v4770
      %v4772 = vrot.slane %v4770, 4
      %v4773 = vrot.slane %v3944, 5
      %v4774 = vsel %vm1594, %v4772, %v4773
      %v4775 = vrot.slane %v4651, 5
      %v4776 = vrot.slane %v4775, 4
      %v4777 = vrot.slane %v3946, 5
      %v4778 = vsel %vm1594, %v4776, %v4777
      %v4779 = vrot.slane %v4777, 4
      %v4780 = vrot.slane %v3947, 5
      %v4781 = vsel %vm1594, %v4779, %v4780
      %v4782 = vrot.slane %v4652, 5
      %v4783 = vrot.slane %v4782, 4
      %v4784 = vrot.slane %v3949, 5
      %v4785 = vsel %vm1594, %v4783, %v4784
      %v4786 = vrot.slane %v4784, 4
      %v4787 = vrot.slane %v3950, 5
      %v4788 = vsel %vm1594, %v4786, %v4787
      %v4789 = vrot.slane %v4653, 5
      %v4790 = vrot.slane %v4789, 4
      %v4791 = vrot.slane %v3952, 5
      %v4792 = vsel %vm1594, %v4790, %v4791
      %v4793 = vrot.slane %v4791, 4
      %v4794 = vrot.slane %v3953, 5
      %v4795 = vsel %vm1594, %v4793, %v4794
      %v4796 = vrot.slane %v4654, 5
      %v4797 = vrot.slane %v4796, 4
      %v4798 = vrot.slane %v3955, 5
      %v4799 = vsel %vm1594, %v4797, %v4798
      %v4800 = vrot.slane %v4798, 4
      %v4801 = vrot.slane %v3956, 5
      %v4802 = vsel %vm1594, %v4800, %v4801
      %v4803 = vrot.slane %v4655, 5
      %v4804 = vrot.slane %v4803, 4
      %v4805 = vrot.slane %v3958, 5
      %v4806 = vsel %vm1594, %v4804, %v4805
      %v4807 = vrot.slane %v4805, 4
      %v4808 = vrot.slane %v3959, 5
      %v4809 = vsel %vm1594, %v4807, %v4808
      %v4810 = vrot.slane %v4656, 5
      %v4811 = vrot.slane %v4810, 4
      %v4812 = vrot.slane %v3961, 5
      %v4813 = vsel %vm1594, %v4811, %v4812
      %v4814 = vrot.slane %v4812, 4
      %v4815 = vrot.slane %v3962, 5
      %v4816 = vsel %vm1594, %v4814, %v4815
      %s4817 = scalar_lea.vmem %s3, 32
      %v4818 = vld [vmem:[%s4817] sm:$0xf]
      %v4819 = vunpack.c.l.b16 %v4708
      %v4820 = vunpack.c.l.b16 %v4711
      %v4821 = vunpack.c.l.b16 %v4715
      %v4822 = vunpack.c.l.b16 %v4718
      %v4823 = vunpack.c.l.b16 %v4722
      %v4824 = vunpack.c.l.b16 %v4725
      %v4825 = vunpack.c.l.b16 %v4729
      %v4826 = vunpack.c.l.b16 %v4732
      %v4827 = vunpack.c.l.b16 %v4736
      %v4828 = vunpack.c.l.b16 %v4739
      %v4829 = vunpack.c.l.b16 %v4743
      %v4830 = vunpack.c.l.b16 %v4746
      %v4831 = vunpack.c.l.b16 %v4750
      %v4832 = vunpack.c.l.b16 %v4753
      %v4833 = vunpack.c.l.b16 %v4757
      %v4834 = vunpack.c.l.b16 %v4760
      %v4835 = vunpack.c.l.b16 %v4764
      %v4836 = vunpack.c.l.b16 %v4767
      %v4837 = vunpack.c.l.b16 %v4771
      %v4838 = vunpack.c.l.b16 %v4774
      %v4839 = vunpack.c.l.b16 %v4778
      %v4840 = vunpack.c.l.b16 %v4781
      %v4841 = vunpack.c.l.b16 %v4785
      %v4842 = vunpack.c.l.b16 %v4788
      %v4843 = vunpack.c.l.b16 %v4792
      %v4844 = vunpack.c.l.b16 %v4795
      %v4845 = vunpack.c.l.b16 %v4799
      %v4846 = vunpack.c.l.b16 %v4802
      %v4847 = vunpack.c.l.b16 %v4806
      %v4848 = vunpack.c.l.b16 %v4809
      %v4849 = vunpack.c.l.b16 %v4813
      %v4850 = vunpack.c.l.b16 %v4816
      %v4851 = vpack.c.b16 %v4820, %v4819
      %v4852 = vpack.c.b16 %v4822, %v4821
      %v4853 = vpack.c.b16 %v4824, %v4823
      %v4854 = vpack.c.b16 %v4826, %v4825
      %v4855 = vpack.c.b16 %v4828, %v4827
      %v4856 = vpack.c.b16 %v4830, %v4829
      %v4857 = vpack.c.b16 %v4832, %v4831
      %v4858 = vpack.c.b16 %v4834, %v4833
      %v4859 = vpack.c.b16 %v4836, %v4835
      %v4860 = vpack.c.b16 %v4838, %v4837
      %v4861 = vpack.c.b16 %v4840, %v4839
      %v4862 = vpack.c.b16 %v4842, %v4841
      %v4863 = vpack.c.b16 %v4844, %v4843
      %v4864 = vpack.c.b16 %v4846, %v4845
      %v4865 = vpack.c.b16 %v4848, %v4847
      %v4866 = vpack.c.b16 %v4850, %v4849
      %v4868 = vsel %vm1038, %v4851, 0
      %v4871 = vsel %vm1038, %v4852, 0
      %v4874 = vsel %vm1038, %v4853, 0
      %v4877 = vsel %vm1038, %v4854, 0
      %v4880 = vsel %vm1038, %v4855, 0
      %v4883 = vsel %vm1038, %v4856, 0
      %v4886 = vsel %vm1038, %v4857, 0
      %v4889 = vsel %vm1038, %v4858, 0
      %v4892 = vsel %vm1038, %v4859, 0
      %v4895 = vsel %vm1038, %v4860, 0
      %v4898 = vsel %vm1038, %v4861, 0
      %v4901 = vsel %vm1038, %v4862, 0
      %v4904 = vsel %vm1038, %v4863, 0
      %v4907 = vsel %vm1038, %v4864, 0
      %v4910 = vsel %vm1038, %v4865, 0
      %v4913 = vsel %vm1038, %v4866, 0
      %v4916 = vsel %vm1087, %v4818, 0
      %4918 = vmatprep.subr.bf16.mxu0 0
      %4919 = vmatpush1.bf16.msra.mxu0 0
      %4920 = vmatprep.subr.bf16.mxu0 0
      %4921 = vmatpush1.bf16.msra.mxu0 0
      %4922 = vmatprep.subr.bf16.mxu0 0
      %4923 = vmatpush1.bf16.msra.mxu0 0
      %4924 = vmatprep.subr.bf16.mxu0 0
      %4925 = vmatpush1.bf16.msra.mxu0 0
      %4926 = vmatprep.subr.bf16.mxu0 0
      %4927 = vmatpush1.bf16.msra.mxu0 0
      %4928 = vmatprep.subr.bf16.mxu0 0
      %4929 = vmatpush1.bf16.msra.mxu0 0
      %4930 = vmatprep.subr.bf16.mxu0 0
      %4931 = vmatpush1.bf16.msra.mxu0 0
      %4932 = vmatprep.subr.bf16.mxu0 0
      %4933 = vmatpush1.bf16.msra.mxu0 %v4916
      %4934 = vmatprep.subr.bf16.mxu0 0
      %4935 = vmatpush2.bf16.msra.mxu0 0
      %4936 = vmatprep.subr.bf16.mxu0 0
      %4937 = vmatpush2.bf16.msra.mxu0 0
      %4938 = vmatprep.subr.bf16.mxu0 0
      %4939 = vmatpush2.bf16.msra.mxu0 0
      %4940 = vmatprep.subr.bf16.mxu0 0
      %4941 = vmatpush2.bf16.msra.mxu0 0
      %4942 = vmatprep.subr.bf16.mxu0 0
      %4943 = vmatpush2.bf16.msra.mxu0 0
      %4944 = vmatprep.subr.bf16.mxu0 0
      %4945 = vmatpush2.bf16.msra.mxu0 0
      %4946 = vmatprep.subr.bf16.mxu0 0
      %4947 = vmatpush2.bf16.msra.mxu0 0
      %4948 = vmatprep.subr.bf16.mxu0 0
      %4949 = vmatpush2.bf16.msra.mxu0 0
      %4950 = vmatprep.mubr.bf16.mxu0 0
      %4951 = vmatmul.mubr.bf16.gmra.mxu0 %v4868
      %v4952 = vpop.f32.mrf.mxu0
      %v4953 = vadd.f32 0.0, %v4952
      %v4954 = vpop.f32.mrf.mxu0
      %v4955 = vpop.f32.mrf.mxu0
      %v4956 = vadd.f32 0.0, %v4955
      %v4957 = vpop.f32.mrf.mxu0
      %4958 = vmatprep.mubr.bf16.mxu0 0
      %4959 = vmatmul.mubr.bf16.gmra.mxu0 %v4871
      %v4960 = vpop.f32.mrf.mxu0
      %v4961 = vadd.f32 0.0, %v4960
      %v4962 = vpop.f32.mrf.mxu0
      %v4963 = vpop.f32.mrf.mxu0
      %v4964 = vadd.f32 0.0, %v4963
      %v4965 = vpop.f32.mrf.mxu0
      %4966 = vmatprep.mubr.bf16.mxu0 0
      %4967 = vmatmul.mubr.bf16.gmra.mxu0 %v4874
      %v4968 = vpop.f32.mrf.mxu0
      %v4969 = vadd.f32 0.0, %v4968
      %v4970 = vpop.f32.mrf.mxu0
      %v4971 = vpop.f32.mrf.mxu0
      %v4972 = vadd.f32 0.0, %v4971
      %v4973 = vpop.f32.mrf.mxu0
      %4974 = vmatprep.mubr.bf16.mxu0 0
      %4975 = vmatmul.mubr.bf16.gmra.mxu0 %v4877
      %v4976 = vpop.f32.mrf.mxu0
      %v4977 = vadd.f32 0.0, %v4976
      %v4978 = vpop.f32.mrf.mxu0
      %v4979 = vpop.f32.mrf.mxu0
      %v4980 = vadd.f32 0.0, %v4979
      %v4981 = vpop.f32.mrf.mxu0
      %4982 = vmatprep.mubr.bf16.mxu0 0
      %4983 = vmatmul.mubr.bf16.gmra.mxu0 %v4880
      %v4984 = vpop.f32.mrf.mxu0
      %v4985 = vadd.f32 0.0, %v4984
      %v4986 = vpop.f32.mrf.mxu0
      %v4987 = vpop.f32.mrf.mxu0
      %v4988 = vadd.f32 0.0, %v4987
      %v4989 = vpop.f32.mrf.mxu0
      %4990 = vmatprep.mubr.bf16.mxu0 0
      %4991 = vmatmul.mubr.bf16.gmra.mxu0 %v4883
      %v4992 = vpop.f32.mrf.mxu0
      %v4993 = vadd.f32 0.0, %v4992
      %v4994 = vpop.f32.mrf.mxu0
      %v4995 = vpop.f32.mrf.mxu0
      %v4996 = vadd.f32 0.0, %v4995
      %v4997 = vpop.f32.mrf.mxu0
      %4998 = vmatprep.mubr.bf16.mxu0 0
      %4999 = vmatmul.mubr.bf16.gmra.mxu0 %v4886
      %v5000 = vpop.f32.mrf.mxu0
      %v5001 = vadd.f32 0.0, %v5000
      %v5002 = vpop.f32.mrf.mxu0
      %v5003 = vpop.f32.mrf.mxu0
      %v5004 = vadd.f32 0.0, %v5003
      %v5005 = vpop.f32.mrf.mxu0
      %5006 = vmatprep.mubr.bf16.mxu0 0
      %5007 = vmatmul.mubr.bf16.gmra.mxu0 %v4889
      %v5008 = vpop.f32.mrf.mxu0
      %v5009 = vadd.f32 0.0, %v5008
      %v5010 = vpop.f32.mrf.mxu0
      %v5011 = vpop.f32.mrf.mxu0
      %v5012 = vadd.f32 0.0, %v5011
      %v5013 = vpop.f32.mrf.mxu0
      %5014 = vmatprep.mubr.bf16.mxu0 0
      %5015 = vmatmul.mubr.bf16.gmra.mxu0 %v4892
      %v5016 = vpop.f32.mrf.mxu0
      %v5017 = vadd.f32 0.0, %v5016
      %v5018 = vpop.f32.mrf.mxu0
      %v5019 = vpop.f32.mrf.mxu0
      %v5020 = vadd.f32 0.0, %v5019
      %v5021 = vpop.f32.mrf.mxu0
      %5022 = vmatprep.mubr.bf16.mxu0 0
      %5023 = vmatmul.mubr.bf16.gmra.mxu0 %v4895
      %v5024 = vpop.f32.mrf.mxu0
      %v5025 = vadd.f32 0.0, %v5024
      %v5026 = vpop.f32.mrf.mxu0
      %v5027 = vpop.f32.mrf.mxu0
      %v5028 = vadd.f32 0.0, %v5027
      %v5029 = vpop.f32.mrf.mxu0
      %5030 = vmatprep.mubr.bf16.mxu0 0
      %5031 = vmatmul.mubr.bf16.gmra.mxu0 %v4898
      %v5032 = vpop.f32.mrf.mxu0
      %v5033 = vadd.f32 0.0, %v5032
      %v5034 = vpop.f32.mrf.mxu0
      %v5035 = vpop.f32.mrf.mxu0
      %v5036 = vadd.f32 0.0, %v5035
      %v5037 = vpop.f32.mrf.mxu0
      %5038 = vmatprep.mubr.bf16.mxu0 0
      %5039 = vmatmul.mubr.bf16.gmra.mxu0 %v4901
      %v5040 = vpop.f32.mrf.mxu0
      %v5041 = vadd.f32 0.0, %v5040
      %v5042 = vpop.f32.mrf.mxu0
      %v5043 = vpop.f32.mrf.mxu0
      %v5044 = vadd.f32 0.0, %v5043
      %v5045 = vpop.f32.mrf.mxu0
      %5046 = vmatprep.mubr.bf16.mxu0 0
      %5047 = vmatmul.mubr.bf16.gmra.mxu0 %v4904
      %v5048 = vpop.f32.mrf.mxu0
      %v5049 = vadd.f32 0.0, %v5048
      %v5050 = vpop.f32.mrf.mxu0
      %v5051 = vpop.f32.mrf.mxu0
      %v5052 = vadd.f32 0.0, %v5051
      %v5053 = vpop.f32.mrf.mxu0
      %5054 = vmatprep.mubr.bf16.mxu0 0
      %5055 = vmatmul.mubr.bf16.gmra.mxu0 %v4907
      %v5056 = vpop.f32.mrf.mxu0
      %v5057 = vadd.f32 0.0, %v5056
      %v5058 = vpop.f32.mrf.mxu0
      %v5059 = vpop.f32.mrf.mxu0
      %v5060 = vadd.f32 0.0, %v5059
      %v5061 = vpop.f32.mrf.mxu0
      %5062 = vmatprep.mubr.bf16.mxu0 0
      %5063 = vmatmul.mubr.bf16.gmra.mxu0 %v4910
      %v5064 = vpop.f32.mrf.mxu0
      %v5065 = vadd.f32 0.0, %v5064
      %v5066 = vpop.f32.mrf.mxu0
      %v5067 = vpop.f32.mrf.mxu0
      %v5068 = vadd.f32 0.0, %v5067
      %v5069 = vpop.f32.mrf.mxu0
      %5070 = vmatprep.mubr.bf16.mxu0 0
      %5071 = vmatmul.mubr.bf16.gmra.mxu0 %v4913
      %v5072 = vpop.f32.mrf.mxu0
      %v5073 = vadd.f32 0.0, %v5072
      %v5074 = vpop.f32.mrf.mxu0
      %v5075 = vpop.f32.mrf.mxu0
      %v5076 = vadd.f32 0.0, %v5075
      %v5077 = vpop.f32.mrf.mxu0
      %5078 = vdwg.mxu0
      %v5079 = vadd.f32 %v4609, %v4953
      %v5080 = vadd.f32 %v4610, %v4956
      %v5081 = vadd.f32 %v4611, %v4961
      %v5082 = vadd.f32 %v4612, %v4964
      %v5083 = vadd.f32 %v4613, %v4969
      %v5084 = vadd.f32 %v4614, %v4972
      %v5085 = vadd.f32 %v4615, %v4977
      %v5086 = vadd.f32 %v4616, %v4980
      %v5087 = vadd.f32 %v4617, %v4985
      %v5088 = vadd.f32 %v4618, %v4988
      %v5089 = vadd.f32 %v4619, %v4993
      %v5090 = vadd.f32 %v4620, %v4996
      %v5091 = vadd.f32 %v4621, %v5001
      %v5092 = vadd.f32 %v4622, %v5004
      %v5093 = vadd.f32 %v4623, %v5009
      %v5094 = vadd.f32 %v4624, %v5012
      %v5095 = vadd.f32 %v4625, %v5017
      %v5096 = vadd.f32 %v4626, %v5020
      %v5097 = vadd.f32 %v4627, %v5025
      %v5098 = vadd.f32 %v4628, %v5028
      %v5099 = vadd.f32 %v4629, %v5033
      %v5100 = vadd.f32 %v4630, %v5036
      %v5101 = vadd.f32 %v4631, %v5041
      %v5102 = vadd.f32 %v4632, %v5044
      %v5103 = vadd.f32 %v4633, %v5049
      %v5104 = vadd.f32 %v4634, %v5052
      %v5105 = vadd.f32 %v4635, %v5057
      %v5106 = vadd.f32 %v4636, %v5060
      %v5107 = vadd.f32 %v4637, %v5065
      %v5108 = vadd.f32 %v4638, %v5068
      %v5109 = vadd.f32 %v4639, %v5073
      %v5110 = vadd.f32 %v4640, %v5076
      %v5111 = vld [vmem:[%s4] sm:$0x1]
      %v5113 = vlaneseq
      %v5114 = vshrl.u32 %v5113, 7
      %v5115 = vsub.s32 0, %v5114
      %v5116 = vrot.slane %v5111, %v5115
      %v5118 = vadd.f32 %v5079, %v5116
      %v5119 = vadd.f32 %v5080, %v5116
      %v5120 = vadd.f32 %v5081, %v5116
      %v5121 = vadd.f32 %v5082, %v5116
      %v5122 = vadd.f32 %v5083, %v5116
      %v5123 = vadd.f32 %v5084, %v5116
      %v5124 = vadd.f32 %v5085, %v5116
      %v5125 = vadd.f32 %v5086, %v5116
      %v5126 = vadd.f32 %v5087, %v5116
      %v5127 = vadd.f32 %v5088, %v5116
      %v5128 = vadd.f32 %v5089, %v5116
      %v5129 = vadd.f32 %v5090, %v5116
      %v5130 = vadd.f32 %v5091, %v5116
      %v5131 = vadd.f32 %v5092, %v5116
      %v5132 = vadd.f32 %v5093, %v5116
      %v5133 = vadd.f32 %v5094, %v5116
      %v5134 = vadd.f32 %v5095, %v5116
      %v5135 = vadd.f32 %v5096, %v5116
      %v5136 = vadd.f32 %v5097, %v5116
      %v5137 = vadd.f32 %v5098, %v5116
      %v5138 = vadd.f32 %v5099, %v5116
      %v5139 = vadd.f32 %v5100, %v5116
      %v5140 = vadd.f32 %v5101, %v5116
      %v5141 = vadd.f32 %v5102, %v5116
      %v5142 = vadd.f32 %v5103, %v5116
      %v5143 = vadd.f32 %v5104, %v5116
      %v5144 = vadd.f32 %v5105, %v5116
      %v5145 = vadd.f32 %v5106, %v5116
      %v5146 = vadd.f32 %v5107, %v5116
      %v5147 = vadd.f32 %v5108, %v5116
      %v5148 = vadd.f32 %v5109, %v5116
      %v5149 = vadd.f32 %v5110, %v5116
      %v5150 = vld [vmem:[%s427] sm:$0xff]
      %v5151 = vld [vmem:[%s427 + $0x8] sm:$0xff]
      %v5152 = vld [vmem:[%s427 + $0x10] sm:$0xff]
      %v5153 = vld [vmem:[%s427 + $0x18] sm:$0xff]
      %v5154 = vld [vmem:[%s427 + $0x20] sm:$0xff]
      %v5155 = vld [vmem:[%s427 + $0x28] sm:$0xff]
      %v5156 = vld [vmem:[%s427 + $0x30] sm:$0xff]
      %v5157 = vld [vmem:[%s427 + $0x38] sm:$0xff]
      %v5158 = vld [vmem:[%s427 + $0x40] sm:$0xff]
      %v5159 = vld [vmem:[%s427 + $0x48] sm:$0xff]
      %v5160 = vld [vmem:[%s427 + $0x50] sm:$0xff]
      %v5161 = vld [vmem:[%s427 + $0x58] sm:$0xff]
      %v5162 = vld [vmem:[%s427 + $0x60] sm:$0xff]
      %v5163 = vld [vmem:[%s427 + $0x68] sm:$0xff]
      %v5164 = vld [vmem:[%s427 + $0x70] sm:$0xff]
      %v5165 = vld [vmem:[%s427 + $0x78] sm:$0xff]
      %v5166 = vld [vmem:[%s427 + $0x80] sm:$0xff]
      %v5167 = vld [vmem:[%s427 + $0x88] sm:$0xff]
      %v5168 = vld [vmem:[%s427 + $0x90] sm:$0xff]
      %v5169 = vld [vmem:[%s427 + $0x98] sm:$0xff]
      %v5170 = vld [vmem:[%s427 + $0xa0] sm:$0xff]
      %v5171 = vld [vmem:[%s427 + $0xa8] sm:$0xff]
      %v5172 = vld [vmem:[%s427 + $0xb0] sm:$0xff]
      %v5173 = vld [vmem:[%s427 + $0xb8] sm:$0xff]
      %v5174 = vld [vmem:[%s427 + $0xc0] sm:$0xff]
      %v5175 = vld [vmem:[%s427 + $0xc8] sm:$0xff]
      %v5176 = vld [vmem:[%s427 + $0xd0] sm:$0xff]
      %v5177 = vld [vmem:[%s427 + $0xd8] sm:$0xff]
      %v5178 = vld [vmem:[%s427 + $0xe0] sm:$0xff]
      %v5179 = vld [vmem:[%s427 + $0xe8] sm:$0xff]
      %v5180 = vld [vmem:[%s427 + $0xf0] sm:$0xff]
      %v5181 = vld [vmem:[%s427 + $0xf8] sm:$0xff]
      %v5182 = vpack.c.bf16 %v5151, %v5150
      %v5183 = vpack.c.bf16 %v5153, %v5152
      %v5184 = vpack.c.bf16 %v5155, %v5154
      %v5185 = vpack.c.bf16 %v5157, %v5156
      %v5186 = vpack.c.bf16 %v5159, %v5158
      %v5187 = vpack.c.bf16 %v5161, %v5160
      %v5188 = vpack.c.bf16 %v5163, %v5162
      %v5189 = vpack.c.bf16 %v5165, %v5164
      %v5190 = vpack.c.bf16 %v5167, %v5166
      %v5191 = vpack.c.bf16 %v5169, %v5168
      %v5192 = vpack.c.bf16 %v5171, %v5170
      %v5193 = vpack.c.bf16 %v5173, %v5172
      %v5194 = vpack.c.bf16 %v5175, %v5174
      %v5195 = vpack.c.bf16 %v5177, %v5176
      %v5196 = vpack.c.bf16 %v5179, %v5178
      %v5197 = vpack.c.bf16 %v5181, %v5180
      %v5198 = vld [vmem:[%s5] sm:$0x3]
      %v5199 = vld [vmem:[%s6] sm:$0x1]
      %v5201 = vlaneseq
      %v5202 = vshrl.u32 %v5201, 7
      %v5203 = vsub.s32 0, %v5202
      %v5204 = vrot.slane %v5199, %v5203
      %vm5206 = vcmask 31744
      %v5208 = vsel %vm5206, %v5182, 0
      %v5211 = vsel %vm5206, %v5183, 0
      %v5214 = vsel %vm5206, %v5184, 0
      %v5217 = vsel %vm5206, %v5185, 0
      %v5220 = vsel %vm5206, %v5186, 0
      %v5223 = vsel %vm5206, %v5187, 0
      %v5226 = vsel %vm5206, %v5188, 0
      %v5229 = vsel %vm5206, %v5189, 0
      %v5232 = vsel %vm5206, %v5190, 0
      %v5235 = vsel %vm5206, %v5191, 0
      %v5238 = vsel %vm5206, %v5192, 0
      %v5241 = vsel %vm5206, %v5193, 0
      %v5244 = vsel %vm5206, %v5194, 0
      %v5247 = vsel %vm5206, %v5195, 0
      %v5250 = vsel %vm5206, %v5196, 0
      %v5253 = vsel %vm5206, %v5197, 0
      %vm5255 = vcmask 1041408
      %v5257 = vsel %vm5255, %v5198, 0
      %5259 = vmatprep.subr.bf16.mxu0 0
      %5260 = vmatpush1.bf16.msra.mxu0 0
      %5261 = vmatprep.subr.bf16.mxu0 0
      %5262 = vmatpush1.bf16.msra.mxu0 0
      %5263 = vmatprep.subr.bf16.mxu0 0
      %5264 = vmatpush1.bf16.msra.mxu0 0
      %5265 = vmatprep.subr.bf16.mxu0 0
      %5266 = vmatpush1.bf16.msra.mxu0 0
      %5267 = vmatprep.subr.bf16.mxu0 0
      %5268 = vmatpush1.bf16.msra.mxu0 0
      %5269 = vmatprep.subr.bf16.mxu0 0
      %5270 = vmatpush1.bf16.msra.mxu0 0
      %5271 = vmatprep.subr.bf16.mxu0 0
      %5272 = vmatpush1.bf16.msra.mxu0 0
      %5273 = vmatprep.subr.bf16.mxu0 0
      %5274 = vmatpush1.bf16.msra.mxu0 %v5257
      %5275 = vmatprep.subr.bf16.mxu0 0
      %5276 = vmatpush2.bf16.msra.mxu0 0
      %5277 = vmatprep.subr.bf16.mxu0 0
      %5278 = vmatpush2.bf16.msra.mxu0 0
      %5279 = vmatprep.subr.bf16.mxu0 0
      %5280 = vmatpush2.bf16.msra.mxu0 0
      %5281 = vmatprep.subr.bf16.mxu0 0
      %5282 = vmatpush2.bf16.msra.mxu0 0
      %5283 = vmatprep.subr.bf16.mxu0 0
      %5284 = vmatpush2.bf16.msra.mxu0 0
      %5285 = vmatprep.subr.bf16.mxu0 0
      %5286 = vmatpush2.bf16.msra.mxu0 0
      %5287 = vmatprep.subr.bf16.mxu0 0
      %5288 = vmatpush2.bf16.msra.mxu0 0
      %5289 = vmatprep.subr.bf16.mxu0 0
      %5290 = vmatpush2.bf16.msra.mxu0 0
      %5291 = vmatprep.mubr.bf16.mxu0 0
      %5292 = vmatmul.mubr.bf16.gmra.mxu0 %v5208
      %v5293 = vpop.f32.mrf.mxu0
      %v5294 = vadd.f32 %v5204, %v5293
      %v5295 = vpop.f32.mrf.mxu0
      %v5296 = vpop.f32.mrf.mxu0
      %v5297 = vadd.f32 %v5204, %v5296
      %v5298 = vpop.f32.mrf.mxu0
      %5299 = vmatprep.mubr.bf16.mxu0 0
      %5300 = vmatmul.mubr.bf16.gmra.mxu0 %v5211
      %v5301 = vpop.f32.mrf.mxu0
      %v5302 = vadd.f32 %v5204, %v5301
      %v5303 = vpop.f32.mrf.mxu0
      %v5304 = vpop.f32.mrf.mxu0
      %v5305 = vadd.f32 %v5204, %v5304
      %v5306 = vpop.f32.mrf.mxu0
      %5307 = vmatprep.mubr.bf16.mxu0 0
      %5308 = vmatmul.mubr.bf16.gmra.mxu0 %v5214
      %v5309 = vpop.f32.mrf.mxu0
      %v5310 = vadd.f32 %v5204, %v5309
      %v5311 = vpop.f32.mrf.mxu0
      %v5312 = vpop.f32.mrf.mxu0
      %v5313 = vadd.f32 %v5204, %v5312
      %v5314 = vpop.f32.mrf.mxu0
      %5315 = vmatprep.mubr.bf16.mxu0 0
      %5316 = vmatmul.mubr.bf16.gmra.mxu0 %v5217
      %v5317 = vpop.f32.mrf.mxu0
      %v5318 = vadd.f32 %v5204, %v5317
      %v5319 = vpop.f32.mrf.mxu0
      %v5320 = vpop.f32.mrf.mxu0
      %v5321 = vadd.f32 %v5204, %v5320
      %v5322 = vpop.f32.mrf.mxu0
      %5323 = vmatprep.mubr.bf16.mxu0 0
      %5324 = vmatmul.mubr.bf16.gmra.mxu0 %v5220
      %v5325 = vpop.f32.mrf.mxu0
      %v5326 = vadd.f32 %v5204, %v5325
      %v5327 = vpop.f32.mrf.mxu0
      %v5328 = vpop.f32.mrf.mxu0
      %v5329 = vadd.f32 %v5204, %v5328
      %v5330 = vpop.f32.mrf.mxu0
      %5331 = vmatprep.mubr.bf16.mxu0 0
      %5332 = vmatmul.mubr.bf16.gmra.mxu0 %v5223
      %v5333 = vpop.f32.mrf.mxu0
      %v5334 = vadd.f32 %v5204, %v5333
      %v5335 = vpop.f32.mrf.mxu0
      %v5336 = vpop.f32.mrf.mxu0
      %v5337 = vadd.f32 %v5204, %v5336
      %v5338 = vpop.f32.mrf.mxu0
      %5339 = vmatprep.mubr.bf16.mxu0 0
      %5340 = vmatmul.mubr.bf16.gmra.mxu0 %v5226
      %v5341 = vpop.f32.mrf.mxu0
      %v5342 = vadd.f32 %v5204, %v5341
      %v5343 = vpop.f32.mrf.mxu0
      %v5344 = vpop.f32.mrf.mxu0
      %v5345 = vadd.f32 %v5204, %v5344
      %v5346 = vpop.f32.mrf.mxu0
      %5347 = vmatprep.mubr.bf16.mxu0 0
      %5348 = vmatmul.mubr.bf16.gmra.mxu0 %v5229
      %v5349 = vpop.f32.mrf.mxu0
      %v5350 = vadd.f32 %v5204, %v5349
      %v5351 = vpop.f32.mrf.mxu0
      %v5352 = vpop.f32.mrf.mxu0
      %v5353 = vadd.f32 %v5204, %v5352
      %v5354 = vpop.f32.mrf.mxu0
      %5355 = vmatprep.mubr.bf16.mxu0 0
      %5356 = vmatmul.mubr.bf16.gmra.mxu0 %v5232
      %v5357 = vpop.f32.mrf.mxu0
      %v5358 = vadd.f32 %v5204, %v5357
      %v5359 = vpop.f32.mrf.mxu0
      %v5360 = vpop.f32.mrf.mxu0
      %v5361 = vadd.f32 %v5204, %v5360
      %v5362 = vpop.f32.mrf.mxu0
      %5363 = vmatprep.mubr.bf16.mxu0 0
      %5364 = vmatmul.mubr.bf16.gmra.mxu0 %v5235
      %v5365 = vpop.f32.mrf.mxu0
      %v5366 = vadd.f32 %v5204, %v5365
      %v5367 = vpop.f32.mrf.mxu0
      %v5368 = vpop.f32.mrf.mxu0
      %v5369 = vadd.f32 %v5204, %v5368
      %v5370 = vpop.f32.mrf.mxu0
      %5371 = vmatprep.mubr.bf16.mxu0 0
      %5372 = vmatmul.mubr.bf16.gmra.mxu0 %v5238
      %v5373 = vpop.f32.mrf.mxu0
      %v5374 = vadd.f32 %v5204, %v5373
      %v5375 = vpop.f32.mrf.mxu0
      %v5376 = vpop.f32.mrf.mxu0
      %v5377 = vadd.f32 %v5204, %v5376
      %v5378 = vpop.f32.mrf.mxu0
      %5379 = vmatprep.mubr.bf16.mxu0 0
      %5380 = vmatmul.mubr.bf16.gmra.mxu0 %v5241
      %v5381 = vpop.f32.mrf.mxu0
      %v5382 = vadd.f32 %v5204, %v5381
      %v5383 = vpop.f32.mrf.mxu0
      %v5384 = vpop.f32.mrf.mxu0
      %v5385 = vadd.f32 %v5204, %v5384
      %v5386 = vpop.f32.mrf.mxu0
      %5387 = vmatprep.mubr.bf16.mxu0 0
      %5388 = vmatmul.mubr.bf16.gmra.mxu0 %v5244
      %v5389 = vpop.f32.mrf.mxu0
      %v5390 = vadd.f32 %v5204, %v5389
      %v5391 = vpop.f32.mrf.mxu0
      %v5392 = vpop.f32.mrf.mxu0
      %v5393 = vadd.f32 %v5204, %v5392
      %v5394 = vpop.f32.mrf.mxu0
      %5395 = vmatprep.mubr.bf16.mxu0 0
      %5396 = vmatmul.mubr.bf16.gmra.mxu0 %v5247
      %v5397 = vpop.f32.mrf.mxu0
      %v5398 = vadd.f32 %v5204, %v5397
      %v5399 = vpop.f32.mrf.mxu0
      %v5400 = vpop.f32.mrf.mxu0
      %v5401 = vadd.f32 %v5204, %v5400
      %v5402 = vpop.f32.mrf.mxu0
      %5403 = vmatprep.mubr.bf16.mxu0 0
      %5404 = vmatmul.mubr.bf16.gmra.mxu0 %v5250
      %v5405 = vpop.f32.mrf.mxu0
      %v5406 = vadd.f32 %v5204, %v5405
      %v5407 = vpop.f32.mrf.mxu0
      %v5408 = vpop.f32.mrf.mxu0
      %v5409 = vadd.f32 %v5204, %v5408
      %v5410 = vpop.f32.mrf.mxu0
      %5411 = vmatprep.mubr.bf16.mxu0 0
      %5412 = vmatmul.mubr.bf16.gmra.mxu0 %v5253
      %v5413 = vpop.f32.mrf.mxu0
      %v5414 = vadd.f32 %v5204, %v5413
      %v5415 = vpop.f32.mrf.mxu0
      %v5416 = vpop.f32.mrf.mxu0
      %v5417 = vadd.f32 %v5204, %v5416
      %v5418 = vpop.f32.mrf.mxu0
      %5419 = vdwg.mxu0
      %v5420 = vadd.f32 %v5118, %v5294
      %v5421 = vadd.f32 %v5119, %v5297
      %v5422 = vadd.f32 %v5120, %v5302
      %v5423 = vadd.f32 %v5121, %v5305
      %v5424 = vadd.f32 %v5122, %v5310
      %v5425 = vadd.f32 %v5123, %v5313
      %v5426 = vadd.f32 %v5124, %v5318
      %v5427 = vadd.f32 %v5125, %v5321
      %v5428 = vadd.f32 %v5126, %v5326
      %v5429 = vadd.f32 %v5127, %v5329
      %v5430 = vadd.f32 %v5128, %v5334
      %v5431 = vadd.f32 %v5129, %v5337
      %v5432 = vadd.f32 %v5130, %v5342
      %v5433 = vadd.f32 %v5131, %v5345
      %v5434 = vadd.f32 %v5132, %v5350
      %v5435 = vadd.f32 %v5133, %v5353
      %v5436 = vadd.f32 %v5134, %v5358
      %v5437 = vadd.f32 %v5135, %v5361
      %v5438 = vadd.f32 %v5136, %v5366
      %v5439 = vadd.f32 %v5137, %v5369
      %v5440 = vadd.f32 %v5138, %v5374
      %v5441 = vadd.f32 %v5139, %v5377
      %v5442 = vadd.f32 %v5140, %v5382
      %v5443 = vadd.f32 %v5141, %v5385
      %v5444 = vadd.f32 %v5142, %v5390
      %v5445 = vadd.f32 %v5143, %v5393
      %v5446 = vadd.f32 %v5144, %v5398
      %v5447 = vadd.f32 %v5145, %v5401
      %v5448 = vadd.f32 %v5146, %v5406
      %v5449 = vadd.f32 %v5147, %v5409
      %v5450 = vadd.f32 %v5148, %v5414
      %v5451 = vadd.f32 %v5149, %v5417
      %v5452 = vmin.f32 %v5420, 20.0
      %v5453 = vmin.f32 %v5421, 20.0
      %v5454 = vmin.f32 %v5422, 20.0
      %v5455 = vmin.f32 %v5423, 20.0
      %v5456 = vmin.f32 %v5424, 20.0
      %v5457 = vmin.f32 %v5425, 20.0
      %v5458 = vmin.f32 %v5426, 20.0
      %v5459 = vmin.f32 %v5427, 20.0
      %v5460 = vmin.f32 %v5428, 20.0
      %v5461 = vmin.f32 %v5429, 20.0
      %v5462 = vmin.f32 %v5430, 20.0
      %v5463 = vmin.f32 %v5431, 20.0
      %v5464 = vmin.f32 %v5432, 20.0
      %v5465 = vmin.f32 %v5433, 20.0
      %v5466 = vmin.f32 %v5434, 20.0
      %v5467 = vmin.f32 %v5435, 20.0
      %v5468 = vmin.f32 %v5436, 20.0
      %v5469 = vmin.f32 %v5437, 20.0
      %v5470 = vmin.f32 %v5438, 20.0
      %v5471 = vmin.f32 %v5439, 20.0
      %v5472 = vmin.f32 %v5440, 20.0
      %v5473 = vmin.f32 %v5441, 20.0
      %v5474 = vmin.f32 %v5442, 20.0
      %v5475 = vmin.f32 %v5443, 20.0
      %v5476 = vmin.f32 %v5444, 20.0
      %v5477 = vmin.f32 %v5445, 20.0
      %v5478 = vmin.f32 %v5446, 20.0
      %v5479 = vmin.f32 %v5447, 20.0
      %v5480 = vmin.f32 %v5448, 20.0
      %v5481 = vmin.f32 %v5449, 20.0
      %v5482 = vmin.f32 %v5450, 20.0
      %v5483 = vmin.f32 %v5451, 20.0
      %v5484 = vmul.f32 %v5452, 1.442695
      %v5485 = vpow.pop %v5484
      %v5486 = vmul.f32 %v5453, 1.442695
      %v5487 = vpow.pop %v5486
      %v5488 = vmul.f32 %v5454, 1.442695
      %v5489 = vpow.pop %v5488
      %v5490 = vmul.f32 %v5455, 1.442695
      %v5491 = vpow.pop %v5490
      %v5492 = vmul.f32 %v5456, 1.442695
      %v5493 = vpow.pop %v5492
      %v5494 = vmul.f32 %v5457, 1.442695
      %v5495 = vpow.pop %v5494
      %v5496 = vmul.f32 %v5458, 1.442695
      %v5497 = vpow.pop %v5496
      %v5498 = vmul.f32 %v5459, 1.442695
      %v5499 = vpow.pop %v5498
      %v5500 = vmul.f32 %v5460, 1.442695
      %v5501 = vpow.pop %v5500
      %v5502 = vmul.f32 %v5461, 1.442695
      %v5503 = vpow.pop %v5502
      %v5504 = vmul.f32 %v5462, 1.442695
      %v5505 = vpow.pop %v5504
      %v5506 = vmul.f32 %v5463, 1.442695
      %v5507 = vpow.pop %v5506
      %v5508 = vmul.f32 %v5464, 1.442695
      %v5509 = vpow.pop %v5508
      %v5510 = vmul.f32 %v5465, 1.442695
      %v5511 = vpow.pop %v5510
      %v5512 = vmul.f32 %v5466, 1.442695
      %v5513 = vpow.pop %v5512
      %v5514 = vmul.f32 %v5467, 1.442695
      %v5515 = vpow.pop %v5514
      %v5516 = vmul.f32 %v5468, 1.442695
      %v5517 = vpow.pop %v5516
      %v5518 = vmul.f32 %v5469, 1.442695
      %v5519 = vpow.pop %v5518
      %v5520 = vmul.f32 %v5470, 1.442695
      %v5521 = vpow.pop %v5520
      %v5522 = vmul.f32 %v5471, 1.442695
      %v5523 = vpow.pop %v5522
      %v5524 = vmul.f32 %v5472, 1.442695
      %v5525 = vpow.pop %v5524
      %v5526 = vmul.f32 %v5473, 1.442695
      %v5527 = vpow.pop %v5526
      %v5528 = vmul.f32 %v5474, 1.442695
      %v5529 = vpow.pop %v5528
      %v5530 = vmul.f32 %v5475, 1.442695
      %v5531 = vpow.pop %v5530
      %v5532 = vmul.f32 %v5476, 1.442695
      %v5533 = vpow.pop %v5532
      %v5534 = vmul.f32 %v5477, 1.442695
      %v5535 = vpow.pop %v5534
      %v5536 = vmul.f32 %v5478, 1.442695
      %v5537 = vpow.pop %v5536
      %v5538 = vmul.f32 %v5479, 1.442695
      %v5539 = vpow.pop %v5538
      %v5540 = vmul.f32 %v5480, 1.442695
      %v5541 = vpow.pop %v5540
      %v5542 = vmul.f32 %v5481, 1.442695
      %v5543 = vpow.pop %v5542
      %v5544 = vmul.f32 %v5482, 1.442695
      %v5545 = vpow.pop %v5544
      %v5546 = vmul.f32 %v5483, 1.442695
      %v5547 = vpow.pop %v5546
      %v5548 = vadd.f32 %v5485, 2.0
      %v5549 = vadd.f32 %v5487, 2.0
      %v5550 = vadd.f32 %v5489, 2.0
      %v5551 = vadd.f32 %v5491, 2.0
      %v5552 = vadd.f32 %v5493, 2.0
      %v5553 = vadd.f32 %v5495, 2.0
      %v5554 = vadd.f32 %v5497, 2.0
      %v5555 = vadd.f32 %v5499, 2.0
      %v5556 = vadd.f32 %v5501, 2.0
      %v5557 = vadd.f32 %v5503, 2.0
      %v5558 = vadd.f32 %v5505, 2.0
      %v5559 = vadd.f32 %v5507, 2.0
      %v5560 = vadd.f32 %v5509, 2.0
      %v5561 = vadd.f32 %v5511, 2.0
      %v5562 = vadd.f32 %v5513, 2.0
      %v5563 = vadd.f32 %v5515, 2.0
      %v5564 = vadd.f32 %v5517, 2.0
      %v5565 = vadd.f32 %v5519, 2.0
      %v5566 = vadd.f32 %v5521, 2.0
      %v5567 = vadd.f32 %v5523, 2.0
      %v5568 = vadd.f32 %v5525, 2.0
      %v5569 = vadd.f32 %v5527, 2.0
      %v5570 = vadd.f32 %v5529, 2.0
      %v5571 = vadd.f32 %v5531, 2.0
      %v5572 = vadd.f32 %v5533, 2.0
      %v5573 = vadd.f32 %v5535, 2.0
      %v5574 = vadd.f32 %v5537, 2.0
      %v5575 = vadd.f32 %v5539, 2.0
      %v5576 = vadd.f32 %v5541, 2.0
      %v5577 = vadd.f32 %v5543, 2.0
      %v5578 = vadd.f32 %v5545, 2.0
      %v5579 = vadd.f32 %v5547, 2.0
      %v5580 = vmul.f32 %v5485, %v5548
      %v5581 = vmul.f32 %v5487, %v5549
      %v5582 = vmul.f32 %v5489, %v5550
      %v5583 = vmul.f32 %v5491, %v5551
      %v5584 = vmul.f32 %v5493, %v5552
      %v5585 = vmul.f32 %v5495, %v5553
      %v5586 = vmul.f32 %v5497, %v5554
      %v5587 = vmul.f32 %v5499, %v5555
      %v5588 = vmul.f32 %v5501, %v5556
      %v5589 = vmul.f32 %v5503, %v5557
      %v5590 = vmul.f32 %v5505, %v5558
      %v5591 = vmul.f32 %v5507, %v5559
      %v5592 = vmul.f32 %v5509, %v5560
      %v5593 = vmul.f32 %v5511, %v5561
      %v5594 = vmul.f32 %v5513, %v5562
      %v5595 = vmul.f32 %v5515, %v5563
      %v5596 = vmul.f32 %v5517, %v5564
      %v5597 = vmul.f32 %v5519, %v5565
      %v5598 = vmul.f32 %v5521, %v5566
      %v5599 = vmul.f32 %v5523, %v5567
      %v5600 = vmul.f32 %v5525, %v5568
      %v5601 = vmul.f32 %v5527, %v5569
      %v5602 = vmul.f32 %v5529, %v5570
      %v5603 = vmul.f32 %v5531, %v5571
      %v5604 = vmul.f32 %v5533, %v5572
      %v5605 = vmul.f32 %v5535, %v5573
      %v5606 = vmul.f32 %v5537, %v5574
      %v5607 = vmul.f32 %v5539, %v5575
      %v5608 = vmul.f32 %v5541, %v5576
      %v5609 = vmul.f32 %v5543, %v5577
      %v5610 = vmul.f32 %v5545, %v5578
      %v5611 = vmul.f32 %v5547, %v5579
      %v5612 = vmul.f32 %v5420, %v5580
      %v5613 = vmul.f32 %v5421, %v5581
      %v5614 = vmul.f32 %v5422, %v5582
      %v5615 = vmul.f32 %v5423, %v5583
      %v5616 = vmul.f32 %v5424, %v5584
      %v5617 = vmul.f32 %v5425, %v5585
      %v5618 = vmul.f32 %v5426, %v5586
      %v5619 = vmul.f32 %v5427, %v5587
      %v5620 = vmul.f32 %v5428, %v5588
      %v5621 = vmul.f32 %v5429, %v5589
      %v5622 = vmul.f32 %v5430, %v5590
      %v5623 = vmul.f32 %v5431, %v5591
      %v5624 = vmul.f32 %v5432, %v5592
      %v5625 = vmul.f32 %v5433, %v5593
      %v5626 = vmul.f32 %v5434, %v5594
      %v5627 = vmul.f32 %v5435, %v5595
      %v5628 = vmul.f32 %v5436, %v5596
      %v5629 = vmul.f32 %v5437, %v5597
      %v5630 = vmul.f32 %v5438, %v5598
      %v5631 = vmul.f32 %v5439, %v5599
      %v5632 = vmul.f32 %v5440, %v5600
      %v5633 = vmul.f32 %v5441, %v5601
      %v5634 = vmul.f32 %v5442, %v5602
      %v5635 = vmul.f32 %v5443, %v5603
      %v5636 = vmul.f32 %v5444, %v5604
      %v5637 = vmul.f32 %v5445, %v5605
      %v5638 = vmul.f32 %v5446, %v5606
      %v5639 = vmul.f32 %v5447, %v5607
      %v5640 = vmul.f32 %v5448, %v5608
      %v5641 = vmul.f32 %v5449, %v5609
      %v5642 = vmul.f32 %v5450, %v5610
      %v5643 = vmul.f32 %v5451, %v5611
      %v5644 = vadd.f32 %v5580, 2.0
      %v5645 = vadd.f32 %v5581, 2.0
      %v5646 = vadd.f32 %v5582, 2.0
      %v5647 = vadd.f32 %v5583, 2.0
      %v5648 = vadd.f32 %v5584, 2.0
      %v5649 = vadd.f32 %v5585, 2.0
      %v5650 = vadd.f32 %v5586, 2.0
      %v5651 = vadd.f32 %v5587, 2.0
      %v5652 = vadd.f32 %v5588, 2.0
      %v5653 = vadd.f32 %v5589, 2.0
      %v5654 = vadd.f32 %v5590, 2.0
      %v5655 = vadd.f32 %v5591, 2.0
      %v5656 = vadd.f32 %v5592, 2.0
      %v5657 = vadd.f32 %v5593, 2.0
      %v5658 = vadd.f32 %v5594, 2.0
      %v5659 = vadd.f32 %v5595, 2.0
      %v5660 = vadd.f32 %v5596, 2.0
      %v5661 = vadd.f32 %v5597, 2.0
      %v5662 = vadd.f32 %v5598, 2.0
      %v5663 = vadd.f32 %v5599, 2.0
      %v5664 = vadd.f32 %v5600, 2.0
      %v5665 = vadd.f32 %v5601, 2.0
      %v5666 = vadd.f32 %v5602, 2.0
      %v5667 = vadd.f32 %v5603, 2.0
      %v5668 = vadd.f32 %v5604, 2.0
      %v5669 = vadd.f32 %v5605, 2.0
      %v5670 = vadd.f32 %v5606, 2.0
      %v5671 = vadd.f32 %v5607, 2.0
      %v5672 = vadd.f32 %v5608, 2.0
      %v5673 = vadd.f32 %v5609, 2.0
      %v5674 = vadd.f32 %v5610, 2.0
      %v5675 = vadd.f32 %v5611, 2.0
      %v5676 = vrcp.pop %v5644
      %v5677 = vrcp.pop %v5645
      %v5678 = vrcp.pop %v5646
      %v5679 = vrcp.pop %v5647
      %v5680 = vrcp.pop %v5648
      %v5681 = vrcp.pop %v5649
      %v5682 = vrcp.pop %v5650
      %v5683 = vrcp.pop %v5651
      %v5684 = vrcp.pop %v5652
      %v5685 = vrcp.pop %v5653
      %v5686 = vrcp.pop %v5654
      %v5687 = vrcp.pop %v5655
      %v5688 = vrcp.pop %v5656
      %v5689 = vrcp.pop %v5657
      %v5690 = vrcp.pop %v5658
      %v5691 = vrcp.pop %v5659
      %v5692 = vrcp.pop %v5660
      %v5693 = vrcp.pop %v5661
      %v5694 = vrcp.pop %v5662
      %v5695 = vrcp.pop %v5663
      %v5696 = vrcp.pop %v5664
      %v5697 = vrcp.pop %v5665
      %v5698 = vrcp.pop %v5666
      %v5699 = vrcp.pop %v5667
      %v5700 = vrcp.pop %v5668
      %v5701 = vrcp.pop %v5669
      %v5702 = vrcp.pop %v5670
      %v5703 = vrcp.pop %v5671
      %v5704 = vrcp.pop %v5672
      %v5705 = vrcp.pop %v5673
      %v5706 = vrcp.pop %v5674
      %v5707 = vrcp.pop %v5675
      %v5708 = vmul.f32 %v5612, %v5676
      %v5709 = vmul.f32 %v5613, %v5677
      %v5710 = vmul.f32 %v5614, %v5678
      %v5711 = vmul.f32 %v5615, %v5679
      %v5712 = vmul.f32 %v5616, %v5680
      %v5713 = vmul.f32 %v5617, %v5681
      %v5714 = vmul.f32 %v5618, %v5682
      %v5715 = vmul.f32 %v5619, %v5683
      %v5716 = vmul.f32 %v5620, %v5684
      %v5717 = vmul.f32 %v5621, %v5685
      %v5718 = vmul.f32 %v5622, %v5686
      %v5719 = vmul.f32 %v5623, %v5687
      %v5720 = vmul.f32 %v5624, %v5688
      %v5721 = vmul.f32 %v5625, %v5689
      %v5722 = vmul.f32 %v5626, %v5690
      %v5723 = vmul.f32 %v5627, %v5691
      %v5724 = vmul.f32 %v5628, %v5692
      %v5725 = vmul.f32 %v5629, %v5693
      %v5726 = vmul.f32 %v5630, %v5694
      %v5727 = vmul.f32 %v5631, %v5695
      %v5728 = vmul.f32 %v5632, %v5696
      %v5729 = vmul.f32 %v5633, %v5697
      %v5730 = vmul.f32 %v5634, %v5698
      %v5731 = vmul.f32 %v5635, %v5699
      %v5732 = vmul.f32 %v5636, %v5700
      %v5733 = vmul.f32 %v5637, %v5701
      %v5734 = vmul.f32 %v5638, %v5702
      %v5735 = vmul.f32 %v5639, %v5703
      %v5736 = vmul.f32 %v5640, %v5704
      %v5737 = vmul.f32 %v5641, %v5705
      %v5738 = vmul.f32 %v5642, %v5706
      %v5739 = vmul.f32 %v5643, %v5707
      %5740 = vst.msk [vmem:[%s438] sm:$0xff] %vm1038, %v5708
      %5741 = vst.msk [vmem:[%s438 + $0x8] sm:$0xff] %vm1038, %v5709
      %5742 = vst.msk [vmem:[%s438 + $0x10] sm:$0xff] %vm1038, %v5710
      %5743 = vst.msk [vmem:[%s438 + $0x18] sm:$0xff] %vm1038, %v5711
      %5744 = vst.msk [vmem:[%s438 + $0x20] sm:$0xff] %vm1038, %v5712
      %5745 = vst.msk [vmem:[%s438 + $0x28] sm:$0xff] %vm1038, %v5713
      %5746 = vst.msk [vmem:[%s438 + $0x30] sm:$0xff] %vm1038, %v5714
      %5747 = vst.msk [vmem:[%s438 + $0x38] sm:$0xff] %vm1038, %v5715
      %5748 = vst.msk [vmem:[%s438 + $0x40] sm:$0xff] %vm1038, %v5716
      %5749 = vst.msk [vmem:[%s438 + $0x48] sm:$0xff] %vm1038, %v5717
      %5750 = vst.msk [vmem:[%s438 + $0x50] sm:$0xff] %vm1038, %v5718
      %5751 = vst.msk [vmem:[%s438 + $0x58] sm:$0xff] %vm1038, %v5719
      %5752 = vst.msk [vmem:[%s438 + $0x60] sm:$0xff] %vm1038, %v5720
      %5753 = vst.msk [vmem:[%s438 + $0x68] sm:$0xff] %vm1038, %v5721
      %5754 = vst.msk [vmem:[%s438 + $0x70] sm:$0xff] %vm1038, %v5722
      %5755 = vst.msk [vmem:[%s438 + $0x78] sm:$0xff] %vm1038, %v5723
      %5756 = vst.msk [vmem:[%s438 + $0x80] sm:$0xff] %vm1038, %v5724
      %5757 = vst.msk [vmem:[%s438 + $0x88] sm:$0xff] %vm1038, %v5725
      %5758 = vst.msk [vmem:[%s438 + $0x90] sm:$0xff] %vm1038, %v5726
      %5759 = vst.msk [vmem:[%s438 + $0x98] sm:$0xff] %vm1038, %v5727
      %5760 = vst.msk [vmem:[%s438 + $0xa0] sm:$0xff] %vm1038, %v5728
      %5761 = vst.msk [vmem:[%s438 + $0xa8] sm:$0xff] %vm1038, %v5729
      %5762 = vst.msk [vmem:[%s438 + $0xb0] sm:$0xff] %vm1038, %v5730
      %5763 = vst.msk [vmem:[%s438 + $0xb8] sm:$0xff] %vm1038, %v5731
      %5764 = vst.msk [vmem:[%s438 + $0xc0] sm:$0xff] %vm1038, %v5732
      %5765 = vst.msk [vmem:[%s438 + $0xc8] sm:$0xff] %vm1038, %v5733
      %5766 = vst.msk [vmem:[%s438 + $0xd0] sm:$0xff] %vm1038, %v5734
      %5767 = vst.msk [vmem:[%s438 + $0xd8] sm:$0xff] %vm1038, %v5735
      %5768 = vst.msk [vmem:[%s438 + $0xe0] sm:$0xff] %vm1038, %v5736
      %5769 = vst.msk [vmem:[%s438 + $0xe8] sm:$0xff] %vm1038, %v5737
      %5770 = vst.msk [vmem:[%s438 + $0xf0] sm:$0xff] %vm1038, %v5738
      %5771 = vst.msk [vmem:[%s438 + $0xf8] sm:$0xff] %vm1038, %v5739
      %s5772 = smul.u32 16, %s23
      %p5773 = scmp.lt.s32.totalorder %s22, 1
      %s5774 = scalar_select %p5773, %s22, 1
      %p5775 = scmp.lt.s32.totalorder %s5772, 15
      %s5776 = scalar_select %p5775, %s5772, 15
      %s5777 = smul.addr %s5776, 2
      %s5778 = smul.addr %s5774, 32
      %s5779 = sadd.s32 %s5777, %s5778
      %s5780 = smul.addr %s5779, 8
      %s5781 = scalar_lea.vmem %s7, %s5780
      // Predicated region
      $region49: #{features_processing.3} parent=47 // pred_check
        %p5782 = pneg %p222
      $region50: #{features_processing.3} parent=47 // pred_check_branch
        %5784 = sbr.rel (%p5782) target = $region52
      $region51: #{features_processing.3} parent=47 // pred_region
        %s5785 = smul.u32 16, %s23
      $region52: #{features_processing.3} parent=47 // pred_fallthru
        _
    $region48: #{features_processing.3} parent=5 // pred_fallthru
      _
    %p5786 = scmp.le.s32.totalorder 2, %s13
    // Predicated region
    $region53: #{features_processing.3} parent=5 // pred_check
      %p5787 = pneg %p5786
    $region54: #{features_processing.3} parent=5 // pred_check_branch
      %5789 = sbr.rel (%p5787) target = $region56
    $region55: #{features_processing.3} parent=5 // pred_region
      %s5790 = ssub.s32 %s13, 2
      // Predicated region
      $region57: #{features_processing.3} parent=55 // pred_check
        %p5791 = pneg %p228
      $region58: #{features_processing.3} parent=55 // pred_check_branch
        %5793 = sbr.rel (%p5791) target = $region60
      $region59: #{features_processing.3} parent=55 // pred_region
        %s5794 = smul.u32 16, %s25
        %p5795 = scmp.lt.s32.totalorder %s24, 1
        %s5796 = scalar_select %p5795, %s24, 1
        %p5797 = scmp.lt.s32.totalorder %s5794, 15
        %s5798 = scalar_select %p5797, %s5794, 15
        %s5799 = smul.addr %s5798, 2
        %s5800 = smul.addr %s5796, 32
        %s5801 = sadd.s32 %s5799, %s5800
        %s5802 = smul.addr %s5801, 8
        %s5803 = scalar_lea.vmem %s7, %s5802
      $region60: #{features_processing.3} parent=55 // pred_fallthru
        _
    $region56: #{features_processing.3} parent=5 // pred_fallthru
      _
  $region6: #{features_processing.3} parent=0 // loop_footer
    %s17 = sadd.s32 1, %s13
  $region7: #{features_processing.3} parent=0 // loop_footer_branch
    %12 = sbr.rel target = $region3
  $region8: #{features_processing.3} parent=0 // loop_exit
    _

</llo_original>
